<compile_context>
chip_gen: v7x
topology: tpu7x:2x2x1
jax: 0.10.0
libtpu: 0.0.40
codegen_flags: <defaults>
</compile_context>

<pallas_src>
import jax
import jax.numpy as jnp
from jax.experimental import pallas as pl
from jax.experimental.pallas import tpu as pltpu

# ---- hyperparameters (module defaults) ----
C_IN = 30                  # input_channels (W of NCHW)
C1, C2, C3, C4 = 25, 50, 100, 200
KT = 10                    # temporal conv kernel; later convs use hard-coded 10
KP, SP = 3, 3              # max-pool kernel / stride along time
LIN_IN, LIN_OUT = 400, 4
T_IN = 522                 # time samples; forced by Flatten -> Linear(400, 4)
BN_EPS = 1e-5
N = 2                      # batch

def _after_conv(t, k): return t - k + 1
def _after_pool(t): return (t - KP) // SP + 1

T1 = _after_conv(T_IN, KT); P1 = _after_pool(T1)     # 513 -> 171
T2 = _after_conv(P1, KT);   P2 = _after_pool(T2)     # 162 -> 54
T3 = _after_conv(P2, KT);   P3 = _after_pool(T3)     # 45  -> 15
T4 = _after_conv(P3, KT);   P4 = _after_pool(T4)     # 6   -> 2
assert C4 * P4 == LIN_IN, (C4, P4, LIN_IN)
assert T1 % SP == 0 and T2 % SP == 0 and T3 % SP == 0 and T4 % SP == 0

G_IN = T_IN // SP           # 174: input time rows grouped by pool stride
W_IN = SP * C_IN            # 90:  lanes per grouped input row
WIN = KT + SP - 1           # 12:  source rows feeding one pooled output row
VPW = SP * C3               # 300: width of the packed small-vector operand


# ---------------- Pallas kernel ----------------
def _elu(v):
    return jnp.where(v > 0, v, jnp.exp(jnp.minimum(v, 0.0)) - 1.0)


def deepconv_kernel(x_ref, w1_ref, w2_ref, w3_ref, w4_ref, wL_ref, vp_ref,
                    o_ref,
                    j1_ref, p1_ref, j2_ref, p2_ref, j3_ref, p3_ref, j4_ref):
    f32 = jnp.float32
    bf16 = jnp.bfloat16

    def vec(row, width):            # (1, width) f32 slice of the packed vector operand
        return vp_ref[pl.ds(row, 1), pl.ds(0, width)]

    def phase_max(a, c):            # MaxPool((3,1),stride 3) == max over 3 phase col-groups
        return jnp.maximum(jnp.maximum(a[:, 0:c], a[:, c:2 * c]), a[:, 2 * c:3 * c])

    # ---- block 1: fused (temporal conv + spatial filter) -> BN1 -> ELU -> pool ----
    # x_ref is (1, 174, 90): time grouped by 3 in the wrapper, so J1 (171, 360) is
    # built with 4 DENSE sublane-offset copies; J1[j] = x rows [3j, 3j+12) flattened.
    for s in range(WIN // SP):                                  # 4 copies
        j1_ref[:, pl.ds(s * W_IN, W_IN)] = x_ref[0, pl.ds(s, P1), :].astype(bf16)
    a = jnp.dot(j1_ref[...], w1_ref[...], preferred_element_type=f32)   # (P1, 3*C1)
    a = _elu(a * vec(0, SP * C1) + vec(1, SP * C1))
    p1_ref[...] = phase_max(a, C1)                                      # (P1, C1)

    # ---- block 2: conv(25->50, k=10) -> BN2 -> ELU -> pool ----
    # J2[j, k*C1 + c] = p1[3j + k, c]; slab k is a stride-3 sublane read (f32 ref).
    for k in range(WIN):                                        # 12 copies
        j2_ref[:, pl.ds(k * C1, C1)] = p1_ref[pl.ds(k, P2, stride=SP), :].astype(bf16)
    a = jnp.dot(j2_ref[...], w2_ref[...], preferred_element_type=f32)   # (P2, 3*C2)
    a = _elu(a * vec(2, SP * C2) + vec(3, SP * C2))
    p2_ref[...] = phase_max(a, C2)                                      # (P2, C2)

    # ---- block 3: conv(50->100, k=10) -> ELU -> BN3 -> pool (order per module) ----
    for k in range(WIN):
        j3_ref[:, pl.ds(k * C2, C2)] = p2_ref[pl.ds(k, P3, stride=SP), :].astype(bf16)
    a = jnp.dot(j3_ref[...], w3_ref[...], preferred_element_type=f32)   # (P3, 3*C3)
    a = _elu(a + vec(4, SP * C3)) * vec(5, SP * C3) + vec(6, SP * C3)
    p3_ref[...] = phase_max(a, C3)                                      # (P3, C3)

    # ---- block 4: conv(100->200, k=10) -> BN4 -> ELU -> pool ----
    # Plain tiny im2col (6, 1000); single wide-K matmul; pool done in-register.
    for k in range(KT):
        j4_ref[:, pl.ds(k * C3, C3)] = p3_ref[pl.ds(k, T4), :].astype(bf16)
    h = jnp.dot(j4_ref[...], w4_ref[...], preferred_element_type=f32)   # (T4, C4)
    h = _elu(h * vec(7, C4) + vec(8, C4))
    r0 = jnp.maximum(jnp.maximum(h[0:1, :], h[1:2, :]), h[2:3, :])
    r1 = jnp.maximum(jnp.maximum(h[3:4, :], h[4:5, :]), h[5:6, :])
    p4 = jnp.concatenate([r0, r1], axis=0)                              # (P4, C4)

    # ---- flatten (channel-major like torch.Flatten) + Linear(400, 4) ----
    # Single (2, 200) @ (200, 8) matmul; output column block h*4+o belongs to row h.
    m = jnp.dot(p4.astype(bf16), wL_ref[...], preferred_element_type=f32)   # (2, 8)
    o_ref[0] = m[0:1, 0:LIN_OUT] + m[1:2, LIN_OUT:2 * LIN_OUT] + vec(9, LIN_OUT)


# ---------------- glue: parameter setup ----------------
def _bn_fold(stats):
    g, b, rm, rv = stats
    s = g / jnp.sqrt(rv + BN_EPS)
    return s, b - rm * s


def init_params(key):
    ks = jax.random.split(key, 16)

    def u(k, shape, fan_in):
        b = 1.0 / jnp.sqrt(fan_in)
        return jax.random.uniform(k, shape, jnp.float32, -b, b)

    p = {}
    p['W1'] = u(ks[0], (C1, 1, KT, 1), KT);           p['b1'] = u(ks[1], (C1,), KT)
    p['W2'] = u(ks[2], (C1, C1, 1, C_IN), C1 * C_IN); p['b2'] = u(ks[3], (C1,), C1 * C_IN)
    p['W3'] = u(ks[4], (C2, C1, 10, 1), C1 * 10);     p['b3'] = u(ks[5], (C2,), C1 * 10)
    p['W4'] = u(ks[6], (C3, C2, 10, 1), C2 * 10);     p['b4'] = u(ks[7], (C3,), C2 * 10)
    p['W5'] = u(ks[8], (C4, C3, 10, 1), C3 * 10);     p['b5'] = u(ks[9], (C4,), C3 * 10)
    p['WL'] = u(ks[10], (LIN_OUT, LIN_IN), LIN_IN);   p['bL'] = u(ks[11], (LIN_OUT,), LIN_IN)

    def bn(k, c):   # eval-mode BN: (gamma, beta, running_mean, running_var)
        k1, k2, k3, k4 = jax.random.split(k, 4)
        g = 1.0 + 0.1 * jax.random.normal(k1, (c,), jnp.float32)
        beta = 0.1 * jax.random.normal(k2, (c,), jnp.float32)
        rm = 0.1 * jax.random.normal(k3, (c,), jnp.float32)
        rv = 1.0 + 0.1 * jnp.abs(jax.random.normal(k4, (c,), jnp.float32))
        return (g, beta, rm, rv)

    p['bn1'] = bn(ks[12], C1); p['bn2'] = bn(ks[13], C2)
    p['bn3'] = bn(ks[14], C3); p['bn4'] = bn(ks[15], C4)
    return p


def kernel_operands(p):
    bf16 = jnp.bfloat16
    # fuse temporal conv (1->C1, k=(KT,1)) with spatial filter (C1->C1, k=(1,C_IN))
    w1t = p['W1'][:, 0, :, 0]                                 # (C1, KT)
    w2s = p['W2'][:, :, 0, :]                                 # (C1, C1, C_IN)
    wA = jnp.einsum('ocw,ck->okw', w2s, w1t)                  # (C1, KT, C_IN)
    w1 = jnp.transpose(wA, (1, 2, 0)).reshape(KT * C_IN, C1)  # (300, 25); rows k*C_IN + w
    bA = p['b2'] + jnp.einsum('ocw,c->o', w2s, p['b1'])       # fused conv bias (C1,)

    def conv_w(W):      # (Cout, Cin, K, 1) -> (K*Cin, Cout); rows: k*Cin + c
        return jnp.transpose(W[:, :, :, 0], (2, 1, 0)).reshape(-1, W.shape[0])

    def phase_stack(w, cin):
        # (K*cin? no: (10*cin, cout)) -> (12*cin, 3*cout): phase p = w shifted down
        # p*cin rows, placed in output-column block [p*cout, (p+1)*cout).
        K, cout = w.shape
        out = jnp.zeros((K + (SP - 1) * cin, SP * cout), jnp.float32)
        for ph in range(SP):
            out = out.at[ph * cin: ph * cin + K, ph * cout:(ph + 1) * cout].set(w)
        return out

    w1a = phase_stack(w1, C_IN)               # (360, 75)
    w2a = phase_stack(conv_w(p['W3']), C1)    # (300, 150)
    w3a = phase_stack(conv_w(p['W4']), C2)    # (600, 300)
    w4 = conv_w(p['W5'])                      # (1000, 200) single wide-K matrix
    # linear: torch flatten index = c*P4 + h ; column block h*LIN_OUT + o
    wL2 = jnp.transpose(p['WL'].reshape(LIN_OUT, C4, P4), (1, 2, 0)).reshape(C4, P4 * LIN_OUT)

    s1, t1 = _bn_fold(p['bn1']); s2, t2 = _bn_fold(p['bn2'])
    s3, t3 = _bn_fold(p['bn3']); s4, t4 = _bn_fold(p['bn4'])

    def tile3(v): return jnp.tile(v, SP)      # repeat per-channel vec over 3 phase cols

    vp = jnp.zeros((10, VPW), jnp.float32)    # pack every small vector into one operand
    packed = [(0, tile3(s1)), (1, tile3(bA * s1 + t1)),        # block 1: scale, shift
              (2, tile3(s2)), (3, tile3(p['b3'] * s2 + t2)),   # block 2
              (4, tile3(p['b4'])), (5, tile3(s3)), (6, tile3(t3)),  # block 3 (ELU pre-BN)
              (7, s4), (8, p['b5'] * s4 + t4),                 # block 4
              (9, p['bL'])]                                    # linear bias
    for r, v in packed:
        vp = vp.at[r, :v.shape[0]].set(v)

    return (w1a.astype(bf16), w2a.astype(bf16), w3a.astype(bf16),
            w4.astype(bf16), wL2.astype(bf16), vp)


@jax.jit
def deepconvnet_forward(x_nchw, params):
    n = x_nchw.shape[0]
    # contiguous (N,1,522,30) -> (N,174,90): time grouped by the pool stride; free reshape,
    # no wrapper-side im2col / cast kernels before the pallas_call.
    xg = x_nchw.reshape(n, G_IN, W_IN)
    ops = kernel_operands(params)

    def full_spec(a):
        nd = a.ndim
        return pl.BlockSpec(a.shape, lambda i, _nd=nd: (0,) * _nd)

    in_specs = [pl.BlockSpec((1, G_IN, W_IN), lambda i: (i, 0, 0))]
    in_specs += [full_spec(a) for a in ops]

    out = pl.pallas_call(
        deepconv_kernel,
        out_shape=jax.ShapeDtypeStruct((n, 1, LIN_OUT), jnp.float32),
        grid_spec=pltpu.PrefetchScalarGridSpec(
            num_scalar_prefetch=0,
            grid=(n,),
            in_specs=in_specs,
            out_specs=pl.BlockSpec((1, 1, LIN_OUT), lambda i: (i, 0, 0)),
            scratch_shapes=[
                pltpu.VMEM((P1, (WIN // SP) * W_IN), jnp.bfloat16),   # J1 (171, 360)
                pltpu.VMEM((P1, C1), jnp.float32),                    # pool1 (171, 25)
                pltpu.VMEM((P2, WIN * C1), jnp.bfloat16),             # J2 (54, 300)
                pltpu.VMEM((P2, C2), jnp.float32),                    # pool2 (54, 50)
                pltpu.VMEM((P3, WIN * C2), jnp.bfloat16),             # J3 (15, 600)
                pltpu.VMEM((P3, C3), jnp.float32),                    # pool3 (15, 100)
                pltpu.VMEM((T4, KT * C3), jnp.bfloat16),              # J4 (6, 1000)
            ]),
        compiler_params=pltpu.CompilerParams(
            dimension_semantics=("parallel",)),
    )(xg, *ops)
    return out[:, 0, :]


# ---------------- plain-JAX reference (for verification) ----------------
def reference_forward(x_nchw, p):
    dn = ('NCHW', 'OIHW', 'NCHW')

    def conv(h, w, b):
        o = jax.lax.conv_general_dilated(h, w, (1, 1), 'VALID', dimension_numbers=dn)
        return o + b[None, :, None, None]

    def bn(h, stats):
        g, bta, rm, rv = stats
        s = g / jnp.sqrt(rv + BN_EPS)
        return (h - rm[None, :, None, None]) * s[None, :, None, None] + bta[None, :, None, None]

    def elu(h):
        return jnp.where(h > 0, h, jnp.exp(jnp.minimum(h, 0.0)) - 1.0)

    def pool(h):
        return jax.lax.reduce_window(h, -jnp.inf, jax.lax.max,
                                     (1, 1, KP, 1), (1, 1, SP, 1), 'VALID')

    h = conv(x_nchw, p['W1'], p['b1'])
    h = conv(h, p['W2'], p['b2'])
    h = pool(elu(bn(h, p['bn1'])))
    h = conv(h, p['W3'], p['b3']); h = pool(elu(bn(h, p['bn2'])))
    h = conv(h, p['W4'], p['b4']); h = pool(bn(elu(h), p['bn3']))   # ELU before BN in block 3
    h = conv(h, p['W5'], p['b5']); h = pool(elu(bn(h, p['bn4'])))
    flat = h.reshape(h.shape[0], -1)
    return flat @ p['WL'].T + p['bL']


if __name__ == "__main__":
    key = jax.random.PRNGKey(0)
    kx, kp = jax.random.split(key)
    x = jax.random.normal(kx, (N, 1, T_IN, C_IN), jnp.float32)
    params = init_params(kp)

    y = deepconvnet_forward(x, params)
    y = jax.block_until_ready(y)
    assert y.shape == (N, LIN_OUT)

    y_ref = reference_forward(x, params)
    err = float(jnp.max(jnp.abs(y - y_ref)))
    assert err < 5e-2, f"max abs diff vs reference: {err}"
    print("KERNEL_OK")
</pallas_src>

<mosaic_0001>
module attributes {stable_mosaic.version = 11 : i64} {
  func.func @deepconv_kernel(%arg0: i32, %arg1: memref<1x174x90xf32, #tpu.memory_space<vmem>>, %arg2: memref<360x75xbf16, #tpu.memory_space<vmem>>, %arg3: memref<300x150xbf16, #tpu.memory_space<vmem>>, %arg4: memref<600x300xbf16, #tpu.memory_space<vmem>>, %arg5: memref<1000x200xbf16, #tpu.memory_space<vmem>>, %arg6: memref<200x8xbf16, #tpu.memory_space<vmem>>, %arg7: memref<10x300xf32, #tpu.memory_space<vmem>>, %arg8: memref<1x1x4xf32, #tpu.memory_space<vmem>>, %arg9: memref<171x360xbf16, #tpu.memory_space<vmem>>, %arg10: memref<171x25xf32, #tpu.memory_space<vmem>>, %arg11: memref<54x300xbf16, #tpu.memory_space<vmem>>, %arg12: memref<54x50xf32, #tpu.memory_space<vmem>>, %arg13: memref<15x600xbf16, #tpu.memory_space<vmem>>, %arg14: memref<15x100xf32, #tpu.memory_space<vmem>>, %arg15: memref<6x1000xbf16, #tpu.memory_space<vmem>>) attributes {dimension_semantics = [#tpu.dimension_semantics<parallel>], iteration_bounds = array<i64: 2>, scalar_prefetch = 0 : i64, scratch_operands = 7 : i64, tpu.core_type = #tpu.core_type<tc>, window_params = [{transform_indices = @transform_0, window_bounds = array<i64: 1, 174, 90>}, {pipeline_mode = #tpu.pipeline_mode<synchronous>, transform_indices = @transform_1, window_bounds = array<i64: 360, 75>}, {pipeline_mode = #tpu.pipeline_mode<synchronous>, transform_indices = @transform_2, window_bounds = array<i64: 300, 150>}, {pipeline_mode = #tpu.pipeline_mode<synchronous>, transform_indices = @transform_3, window_bounds = array<i64: 600, 300>}, {pipeline_mode = #tpu.pipeline_mode<synchronous>, transform_indices = @transform_4, window_bounds = array<i64: 1000, 200>}, {pipeline_mode = #tpu.pipeline_mode<synchronous>, transform_indices = @transform_5, window_bounds = array<i64: 200, 8>}, {pipeline_mode = #tpu.pipeline_mode<synchronous>, transform_indices = @transform_6, window_bounds = array<i64: 10, 300>}, {transform_indices = @transform_7, window_bounds = array<i64: 1, 1, 4>}]} {
    %c0 = arith.constant 0 : index
    %c0_0 = arith.constant 0 : index
    %c0_1 = arith.constant 0 : index
    %0 = vector.load %arg1[%c0, %c0_0, %c0_1] : memref<1x174x90xf32, #tpu.memory_space<vmem>>, vector<1x171x90xf32>
    %1 = vector.shape_cast %0 : vector<1x171x90xf32> to vector<171x90xf32>
    %2 = arith.truncf %1 : vector<171x90xf32> to vector<171x90xbf16>
    %c0_2 = arith.constant 0 : index
    %c0_3 = arith.constant 0 : index
    %3 = vector.load %arg9[%c0_2, %c0_3] : memref<171x360xbf16, #tpu.memory_space<vmem>>, vector<171x90xbf16>
    tpu.vector_store %arg9[%c0_2, %c0_3], %2 {strides = array<i32>} : memref<171x360xbf16, #tpu.memory_space<vmem>>, vector<171x90xbf16>,
    %c0_4 = arith.constant 0 : index
    %c1 = arith.constant 1 : index
    %c0_5 = arith.constant 0 : index
    %4 = vector.load %arg1[%c0_4, %c1, %c0_5] : memref<1x174x90xf32, #tpu.memory_space<vmem>>, vector<1x171x90xf32>
    %5 = vector.shape_cast %4 : vector<1x171x90xf32> to vector<171x90xf32>
    %6 = arith.truncf %5 : vector<171x90xf32> to vector<171x90xbf16>
    %c0_6 = arith.constant 0 : index
    %c90 = arith.constant 90 : index
    %7 = vector.load %arg9[%c0_6, %c90] : memref<171x360xbf16, #tpu.memory_space<vmem>>, vector<171x90xbf16>
    tpu.vector_store %arg9[%c0_6, %c90], %6 {strides = array<i32>} : memref<171x360xbf16, #tpu.memory_space<vmem>>, vector<171x90xbf16>,
    %c0_7 = arith.constant 0 : index
    %c2 = arith.constant 2 : index
    %c0_8 = arith.constant 0 : index
    %8 = vector.load %arg1[%c0_7, %c2, %c0_8] : memref<1x174x90xf32, #tpu.memory_space<vmem>>, vector<1x171x90xf32>
    %9 = vector.shape_cast %8 : vector<1x171x90xf32> to vector<171x90xf32>
    %10 = arith.truncf %9 : vector<171x90xf32> to vector<171x90xbf16>
    %c0_9 = arith.constant 0 : index
    %c180 = arith.constant 180 : index
    %11 = vector.load %arg9[%c0_9, %c180] : memref<171x360xbf16, #tpu.memory_space<vmem>>, vector<171x90xbf16>
    tpu.vector_store %arg9[%c0_9, %c180], %10 {strides = array<i32>} : memref<171x360xbf16, #tpu.memory_space<vmem>>, vector<171x90xbf16>,
    %c0_10 = arith.constant 0 : index
    %c3 = arith.constant 3 : index
    %c0_11 = arith.constant 0 : index
    %12 = vector.load %arg1[%c0_10, %c3, %c0_11] : memref<1x174x90xf32, #tpu.memory_space<vmem>>, vector<1x171x90xf32>
    %13 = vector.shape_cast %12 : vector<1x171x90xf32> to vector<171x90xf32>
    %14 = arith.truncf %13 : vector<171x90xf32> to vector<171x90xbf16>
    %c0_12 = arith.constant 0 : index
    %c270 = arith.constant 270 : index
    %15 = vector.load %arg9[%c0_12, %c270] : memref<171x360xbf16, #tpu.memory_space<vmem>>, vector<171x90xbf16>
    tpu.vector_store %arg9[%c0_12, %c270], %14 {strides = array<i32>} : memref<171x360xbf16, #tpu.memory_space<vmem>>, vector<171x90xbf16>,
    %c0_13 = arith.constant 0 : index
    %c0_14 = arith.constant 0 : index
    %16 = vector.load %arg9[%c0_13, %c0_14] : memref<171x360xbf16, #tpu.memory_space<vmem>>, vector<171x360xbf16>
    %c0_15 = arith.constant 0 : index
    %c0_16 = arith.constant 0 : index
    %17 = vector.load %arg2[%c0_15, %c0_16] : memref<360x75xbf16, #tpu.memory_space<vmem>>, vector<360x75xbf16>
    %cst = arith.constant dense<0.000000e+00> : vector<171x75xf32>
    %18 = tpu.matmul %16, %17, %cst {dimension_numbers = #tpu.dot_dimension_numbers<[1], [0], [0], [1], [0, 0, 1, 1], [], []>} : vector<171x360xbf16>, vector<360x75xbf16>, vector<171x75xf32> -> vector<171x75xf32>
    %c0_17 = arith.constant 0 : index
    %c0_18 = arith.constant 0 : index
    %19 = vector.load %arg7[%c0_17, %c0_18] : memref<10x300xf32, #tpu.memory_space<vmem>>, vector<1x75xf32>
    %20 = vector.broadcast %19 : vector<1x75xf32> to vector<171x75xf32>
    %21 = arith.mulf %18, %20 : vector<171x75xf32>
    %c1_19 = arith.constant 1 : index
    %c0_20 = arith.constant 0 : index
    %22 = vector.load %arg7[%c1_19, %c0_20] : memref<10x300xf32, #tpu.memory_space<vmem>>, vector<1x75xf32>
    %23 = vector.broadcast %22 : vector<1x75xf32> to vector<171x75xf32>
    %24 = arith.addf %21, %23 : vector<171x75xf32>
    %cst_21 = arith.constant 0.000000e+00 : f32
    %25 = vector.broadcast %cst_21 : f32 to vector<171x75xf32>
    %26 = arith.cmpf ogt, %24, %25 : vector<171x75xf32>
    %cst_22 = arith.constant 0.000000e+00 : f32
    %27 = vector.broadcast %cst_22 : f32 to vector<171x75xf32>
    %28 = arith.minimumf %24, %27 : vector<171x75xf32>
    %29 = math.exp %28 : vector<171x75xf32>
    %cst_23 = arith.constant 1.000000e+00 : f32
    %30 = vector.broadcast %cst_23 : f32 to vector<171x75xf32>
    %31 = arith.subf %29, %30 : vector<171x75xf32>
    %32 = arith.select %26, %24, %31 : vector<171x75xi1>, vector<171x75xf32>
    %33 = vector.extract_strided_slice %32 {offsets = [0, 0], sizes = [171, 25], strides = [1, 1]} : vector<171x75xf32> to vector<171x25xf32>
    %34 = vector.extract_strided_slice %32 {offsets = [0, 25], sizes = [171, 25], strides = [1, 1]} : vector<171x75xf32> to vector<171x25xf32>
    %35 = arith.maximumf %33, %34 : vector<171x25xf32>
    %36 = vector.extract_strided_slice %32 {offsets = [0, 50], sizes = [171, 25], strides = [1, 1]} : vector<171x75xf32> to vector<171x25xf32>
    %37 = arith.maximumf %35, %36 : vector<171x25xf32>
    %c0_24 = arith.constant 0 : index
    %c0_25 = arith.constant 0 : index
    %38 = vector.load %arg10[%c0_24, %c0_25] : memref<171x25xf32, #tpu.memory_space<vmem>>, vector<171x25xf32>
    tpu.vector_store %arg10[%c0_24, %c0_25], %37 {strides = array<i32>} : memref<171x25xf32, #tpu.memory_space<vmem>>, vector<171x25xf32>,
    %c0_26 = arith.constant 0 : index
    %c0_27 = arith.constant 0 : index
    %39 = tpu.strided_load %arg10[%c0_26, %c0_27] {strides = array<i32: 3, 1>} : memref<171x25xf32, #tpu.memory_space<vmem>>, vector<54x25xf32>
    %40 = arith.truncf %39 : vector<54x25xf32> to vector<54x25xbf16>
    %c0_28 = arith.constant 0 : index
    %c0_29 = arith.constant 0 : index
    %41 = vector.load %arg11[%c0_28, %c0_29] : memref<54x300xbf16, #tpu.memory_space<vmem>>, vector<54x25xbf16>
    tpu.vector_store %arg11[%c0_28, %c0_29], %40 {strides = array<i32>} : memref<54x300xbf16, #tpu.memory_space<vmem>>, vector<54x25xbf16>,
    %c1_30 = arith.constant 1 : index
    %c0_31 = arith.constant 0 : index
    %42 = tpu.strided_load %arg10[%c1_30, %c0_31] {strides = array<i32: 3, 1>} : memref<171x25xf32, #tpu.memory_space<vmem>>, vector<54x25xf32>
    %43 = arith.truncf %42 : vector<54x25xf32> to vector<54x25xbf16>
    %c0_32 = arith.constant 0 : index
    %c25 = arith.constant 25 : index
    %44 = vector.load %arg11[%c0_32, %c25] : memref<54x300xbf16, #tpu.memory_space<vmem>>, vector<54x25xbf16>
    tpu.vector_store %arg11[%c0_32, %c25], %43 {strides = array<i32>} : memref<54x300xbf16, #tpu.memory_space<vmem>>, vector<54x25xbf16>,
    %c2_33 = arith.constant 2 : index
    %c0_34 = arith.constant 0 : index
    %45 = tpu.strided_load %arg10[%c2_33, %c0_34] {strides = array<i32: 3, 1>} : memref<171x25xf32, #tpu.memory_space<vmem>>, vector<54x25xf32>
    %46 = arith.truncf %45 : vector<54x25xf32> to vector<54x25xbf16>
    %c0_35 = arith.constant 0 : index
    %c50 = arith.constant 50 : index
    %47 = vector.load %arg11[%c0_35, %c50] : memref<54x300xbf16, #tpu.memory_space<vmem>>, vector<54x25xbf16>
    tpu.vector_store %arg11[%c0_35, %c50], %46 {strides = array<i32>} : memref<54x300xbf16, #tpu.memory_space<vmem>>, vector<54x25xbf16>,
    %c3_36 = arith.constant 3 : index
    %c0_37 = arith.constant 0 : index
    %48 = tpu.strided_load %arg10[%c3_36, %c0_37] {strides = array<i32: 3, 1>} : memref<171x25xf32, #tpu.memory_space<vmem>>, vector<54x25xf32>
    %49 = arith.truncf %48 : vector<54x25xf32> to vector<54x25xbf16>
    %c0_38 = arith.constant 0 : index
    %c75 = arith.constant 75 : index
    %50 = vector.load %arg11[%c0_38, %c75] : memref<54x300xbf16, #tpu.memory_space<vmem>>, vector<54x25xbf16>
    tpu.vector_store %arg11[%c0_38, %c75], %49 {strides = array<i32>} : memref<54x300xbf16, #tpu.memory_space<vmem>>, vector<54x25xbf16>,
    %c4 = arith.constant 4 : index
    %c0_39 = arith.constant 0 : index
    %51 = tpu.strided_load %arg10[%c4, %c0_39] {strides = array<i32: 3, 1>} : memref<171x25xf32, #tpu.memory_space<vmem>>, vector<54x25xf32>
    %52 = arith.truncf %51 : vector<54x25xf32> to vector<54x25xbf16>
    %c0_40 = arith.constant 0 : index
    %c100 = arith.constant 100 : index
    %53 = vector.load %arg11[%c0_40, %c100] : memref<54x300xbf16, #tpu.memory_space<vmem>>, vector<54x25xbf16>
    tpu.vector_store %arg11[%c0_40, %c100], %52 {strides = array<i32>} : memref<54x300xbf16, #tpu.memory_space<vmem>>, vector<54x25xbf16>,
    %c5 = arith.constant 5 : index
    %c0_41 = arith.constant 0 : index
    %54 = tpu.strided_load %arg10[%c5, %c0_41] {strides = array<i32: 3, 1>} : memref<171x25xf32, #tpu.memory_space<vmem>>, vector<54x25xf32>
    %55 = arith.truncf %54 : vector<54x25xf32> to vector<54x25xbf16>
    %c0_42 = arith.constant 0 : index
    %c125 = arith.constant 125 : index
    %56 = vector.load %arg11[%c0_42, %c125] : memref<54x300xbf16, #tpu.memory_space<vmem>>, vector<54x25xbf16>
    tpu.vector_store %arg11[%c0_42, %c125], %55 {strides = array<i32>} : memref<54x300xbf16, #tpu.memory_space<vmem>>, vector<54x25xbf16>,
    %c6 = arith.constant 6 : index
    %c0_43 = arith.constant 0 : index
    %57 = tpu.strided_load %arg10[%c6, %c0_43] {strides = array<i32: 3, 1>} : memref<171x25xf32, #tpu.memory_space<vmem>>, vector<54x25xf32>
    %58 = arith.truncf %57 : vector<54x25xf32> to vector<54x25xbf16>
    %c0_44 = arith.constant 0 : index
    %c150 = arith.constant 150 : index
    %59 = vector.load %arg11[%c0_44, %c150] : memref<54x300xbf16, #tpu.memory_space<vmem>>, vector<54x25xbf16>
    tpu.vector_store %arg11[%c0_44, %c150], %58 {strides = array<i32>} : memref<54x300xbf16, #tpu.memory_space<vmem>>, vector<54x25xbf16>,
    %c7 = arith.constant 7 : index
    %c0_45 = arith.constant 0 : index
    %60 = tpu.strided_load %arg10[%c7, %c0_45] {strides = array<i32: 3, 1>} : memref<171x25xf32, #tpu.memory_space<vmem>>, vector<54x25xf32>
    %61 = arith.truncf %60 : vector<54x25xf32> to vector<54x25xbf16>
    %c0_46 = arith.constant 0 : index
    %c175 = arith.constant 175 : index
    %62 = vector.load %arg11[%c0_46, %c175] : memref<54x300xbf16, #tpu.memory_space<vmem>>, vector<54x25xbf16>
    tpu.vector_store %arg11[%c0_46, %c175], %61 {strides = array<i32>} : memref<54x300xbf16, #tpu.memory_space<vmem>>, vector<54x25xbf16>,
    %c8 = arith.constant 8 : index
    %c0_47 = arith.constant 0 : index
    %63 = tpu.strided_load %arg10[%c8, %c0_47] {strides = array<i32: 3, 1>} : memref<171x25xf32, #tpu.memory_space<vmem>>, vector<54x25xf32>
    %64 = arith.truncf %63 : vector<54x25xf32> to vector<54x25xbf16>
    %c0_48 = arith.constant 0 : index
    %c200 = arith.constant 200 : index
    %65 = vector.load %arg11[%c0_48, %c200] : memref<54x300xbf16, #tpu.memory_space<vmem>>, vector<54x25xbf16>
    tpu.vector_store %arg11[%c0_48, %c200], %64 {strides = array<i32>} : memref<54x300xbf16, #tpu.memory_space<vmem>>, vector<54x25xbf16>,
    %c9 = arith.constant 9 : index
    %c0_49 = arith.constant 0 : index
    %66 = tpu.strided_load %arg10[%c9, %c0_49] {strides = array<i32: 3, 1>} : memref<171x25xf32, #tpu.memory_space<vmem>>, vector<54x25xf32>
    %67 = arith.truncf %66 : vector<54x25xf32> to vector<54x25xbf16>
    %c0_50 = arith.constant 0 : index
    %c225 = arith.constant 225 : index
    %68 = vector.load %arg11[%c0_50, %c225] : memref<54x300xbf16, #tpu.memory_space<vmem>>, vector<54x25xbf16>
    tpu.vector_store %arg11[%c0_50, %c225], %67 {strides = array<i32>} : memref<54x300xbf16, #tpu.memory_space<vmem>>, vector<54x25xbf16>,
    %c10 = arith.constant 10 : index
    %c0_51 = arith.constant 0 : index
    %69 = tpu.strided_load %arg10[%c10, %c0_51] {strides = array<i32: 3, 1>} : memref<171x25xf32, #tpu.memory_space<vmem>>, vector<54x25xf32>
    %70 = arith.truncf %69 : vector<54x25xf32> to vector<54x25xbf16>
    %c0_52 = arith.constant 0 : index
    %c250 = arith.constant 250 : index
    %71 = vector.load %arg11[%c0_52, %c250] : memref<54x300xbf16, #tpu.memory_space<vmem>>, vector<54x25xbf16>
    tpu.vector_store %arg11[%c0_52, %c250], %70 {strides = array<i32>} : memref<54x300xbf16, #tpu.memory_space<vmem>>, vector<54x25xbf16>,
    %c11 = arith.constant 11 : index
    %c0_53 = arith.constant 0 : index
    %72 = tpu.strided_load %arg10[%c11, %c0_53] {strides = array<i32: 3, 1>} : memref<171x25xf32, #tpu.memory_space<vmem>>, vector<54x25xf32>
    %73 = arith.truncf %72 : vector<54x25xf32> to vector<54x25xbf16>
    %c0_54 = arith.constant 0 : index
    %c275 = arith.constant 275 : index
    %74 = vector.load %arg11[%c0_54, %c275] : memref<54x300xbf16, #tpu.memory_space<vmem>>, vector<54x25xbf16>
    tpu.vector_store %arg11[%c0_54, %c275], %73 {strides = array<i32>} : memref<54x300xbf16, #tpu.memory_space<vmem>>, vector<54x25xbf16>,
    %c0_55 = arith.constant 0 : index
    %c0_56 = arith.constant 0 : index
    %75 = vector.load %arg11[%c0_55, %c0_56] : memref<54x300xbf16, #tpu.memory_space<vmem>>, vector<54x300xbf16>
    %c0_57 = arith.constant 0 : index
    %c0_58 = arith.constant 0 : index
    %76 = vector.load %arg3[%c0_57, %c0_58] : memref<300x150xbf16, #tpu.memory_space<vmem>>, vector<300x150xbf16>
    %cst_59 = arith.constant dense<0.000000e+00> : vector<54x150xf32>
    %77 = tpu.matmul %75, %76, %cst_59 {dimension_numbers = #tpu.dot_dimension_numbers<[1], [0], [0], [1], [0, 0, 1, 1], [], []>} : vector<54x300xbf16>, vector<300x150xbf16>, vector<54x150xf32> -> vector<54x150xf32>
    %c2_60 = arith.constant 2 : index
    %c0_61 = arith.constant 0 : index
    %78 = vector.load %arg7[%c2_60, %c0_61] : memref<10x300xf32, #tpu.memory_space<vmem>>, vector<1x150xf32>
    %79 = vector.broadcast %78 : vector<1x150xf32> to vector<54x150xf32>
    %80 = arith.mulf %77, %79 : vector<54x150xf32>
    %c3_62 = arith.constant 3 : index
    %c0_63 = arith.constant 0 : index
    %81 = vector.load %arg7[%c3_62, %c0_63] : memref<10x300xf32, #tpu.memory_space<vmem>>, vector<1x150xf32>
    %82 = vector.broadcast %81 : vector<1x150xf32> to vector<54x150xf32>
    %83 = arith.addf %80, %82 : vector<54x150xf32>
    %cst_64 = arith.constant 0.000000e+00 : f32
    %84 = vector.broadcast %cst_64 : f32 to vector<54x150xf32>
    %85 = arith.cmpf ogt, %83, %84 : vector<54x150xf32>
    %cst_65 = arith.constant 0.000000e+00 : f32
    %86 = vector.broadcast %cst_65 : f32 to vector<54x150xf32>
    %87 = arith.minimumf %83, %86 : vector<54x150xf32>
    %88 = math.exp %87 : vector<54x150xf32>
    %cst_66 = arith.constant 1.000000e+00 : f32
    %89 = vector.broadcast %cst_66 : f32 to vector<54x150xf32>
    %90 = arith.subf %88, %89 : vector<54x150xf32>
    %91 = arith.select %85, %83, %90 : vector<54x150xi1>, vector<54x150xf32>
    %92 = vector.extract_strided_slice %91 {offsets = [0, 0], sizes = [54, 50], strides = [1, 1]} : vector<54x150xf32> to vector<54x50xf32>
    %93 = vector.extract_strided_slice %91 {offsets = [0, 50], sizes = [54, 50], strides = [1, 1]} : vector<54x150xf32> to vector<54x50xf32>
    %94 = arith.maximumf %92, %93 : vector<54x50xf32>
    %95 = vector.extract_strided_slice %91 {offsets = [0, 100], sizes = [54, 50], strides = [1, 1]} : vector<54x150xf32> to vector<54x50xf32>
    %96 = arith.maximumf %94, %95 : vector<54x50xf32>
    %c0_67 = arith.constant 0 : index
    %c0_68 = arith.constant 0 : index
    %97 = vector.load %arg12[%c0_67, %c0_68] : memref<54x50xf32, #tpu.memory_space<vmem>>, vector<54x50xf32>
    tpu.vector_store %arg12[%c0_67, %c0_68], %96 {strides = array<i32>} : memref<54x50xf32, #tpu.memory_space<vmem>>, vector<54x50xf32>,
    %c0_69 = arith.constant 0 : index
    %c0_70 = arith.constant 0 : index
    %98 = tpu.strided_load %arg12[%c0_69, %c0_70] {strides = array<i32: 3, 1>} : memref<54x50xf32, #tpu.memory_space<vmem>>, vector<15x50xf32>
    %99 = arith.truncf %98 : vector<15x50xf32> to vector<15x50xbf16>
    %c0_71 = arith.constant 0 : index
    %c0_72 = arith.constant 0 : index
    %100 = vector.load %arg13[%c0_71, %c0_72] : memref<15x600xbf16, #tpu.memory_space<vmem>>, vector<15x50xbf16>
    tpu.vector_store %arg13[%c0_71, %c0_72], %99 {strides = array<i32>} : memref<15x600xbf16, #tpu.memory_space<vmem>>, vector<15x50xbf16>,
    %c1_73 = arith.constant 1 : index
    %c0_74 = arith.constant 0 : index
    %101 = tpu.strided_load %arg12[%c1_73, %c0_74] {strides = array<i32: 3, 1>} : memref<54x50xf32, #tpu.memory_space<vmem>>, vector<15x50xf32>
    %102 = arith.truncf %101 : vector<15x50xf32> to vector<15x50xbf16>
    %c0_75 = arith.constant 0 : index
    %c50_76 = arith.constant 50 : index
    %103 = vector.load %arg13[%c0_75, %c50_76] : memref<15x600xbf16, #tpu.memory_space<vmem>>, vector<15x50xbf16>
    tpu.vector_store %arg13[%c0_75, %c50_76], %102 {strides = array<i32>} : memref<15x600xbf16, #tpu.memory_space<vmem>>, vector<15x50xbf16>,
    %c2_77 = arith.constant 2 : index
    %c0_78 = arith.constant 0 : index
    %104 = tpu.strided_load %arg12[%c2_77, %c0_78] {strides = array<i32: 3, 1>} : memref<54x50xf32, #tpu.memory_space<vmem>>, vector<15x50xf32>
    %105 = arith.truncf %104 : vector<15x50xf32> to vector<15x50xbf16>
    %c0_79 = arith.constant 0 : index
    %c100_80 = arith.constant 100 : index
    %106 = vector.load %arg13[%c0_79, %c100_80] : memref<15x600xbf16, #tpu.memory_space<vmem>>, vector<15x50xbf16>
    tpu.vector_store %arg13[%c0_79, %c100_80], %105 {strides = array<i32>} : memref<15x600xbf16, #tpu.memory_space<vmem>>, vector<15x50xbf16>,
    %c3_81 = arith.constant 3 : index
    %c0_82 = arith.constant 0 : index
    %107 = tpu.strided_load %arg12[%c3_81, %c0_82] {strides = array<i32: 3, 1>} : memref<54x50xf32, #tpu.memory_space<vmem>>, vector<15x50xf32>
    %108 = arith.truncf %107 : vector<15x50xf32> to vector<15x50xbf16>
    %c0_83 = arith.constant 0 : index
    %c150_84 = arith.constant 150 : index
    %109 = vector.load %arg13[%c0_83, %c150_84] : memref<15x600xbf16, #tpu.memory_space<vmem>>, vector<15x50xbf16>
    tpu.vector_store %arg13[%c0_83, %c150_84], %108 {strides = array<i32>} : memref<15x600xbf16, #tpu.memory_space<vmem>>, vector<15x50xbf16>,
    %c4_85 = arith.constant 4 : index
    %c0_86 = arith.constant 0 : index
    %110 = tpu.strided_load %arg12[%c4_85, %c0_86] {strides = array<i32: 3, 1>} : memref<54x50xf32, #tpu.memory_space<vmem>>, vector<15x50xf32>
    %111 = arith.truncf %110 : vector<15x50xf32> to vector<15x50xbf16>
    %c0_87 = arith.constant 0 : index
    %c200_88 = arith.constant 200 : index
    %112 = vector.load %arg13[%c0_87, %c200_88] : memref<15x600xbf16, #tpu.memory_space<vmem>>, vector<15x50xbf16>
    tpu.vector_store %arg13[%c0_87, %c200_88], %111 {strides = array<i32>} : memref<15x600xbf16, #tpu.memory_space<vmem>>, vector<15x50xbf16>,
    %c5_89 = arith.constant 5 : index
    %c0_90 = arith.constant 0 : index
    %113 = tpu.strided_load %arg12[%c5_89, %c0_90] {strides = array<i32: 3, 1>} : memref<54x50xf32, #tpu.memory_space<vmem>>, vector<15x50xf32>
    %114 = arith.truncf %113 : vector<15x50xf32> to vector<15x50xbf16>
    %c0_91 = arith.constant 0 : index
    %c250_92 = arith.constant 250 : index
    %115 = vector.load %arg13[%c0_91, %c250_92] : memref<15x600xbf16, #tpu.memory_space<vmem>>, vector<15x50xbf16>
    tpu.vector_store %arg13[%c0_91, %c250_92], %114 {strides = array<i32>} : memref<15x600xbf16, #tpu.memory_space<vmem>>, vector<15x50xbf16>,
    %c6_93 = arith.constant 6 : index
    %c0_94 = arith.constant 0 : index
    %116 = tpu.strided_load %arg12[%c6_93, %c0_94] {strides = array<i32: 3, 1>} : memref<54x50xf32, #tpu.memory_space<vmem>>, vector<15x50xf32>
    %117 = arith.truncf %116 : vector<15x50xf32> to vector<15x50xbf16>
    %c0_95 = arith.constant 0 : index
    %c300 = arith.constant 300 : index
    %118 = vector.load %arg13[%c0_95, %c300] : memref<15x600xbf16, #tpu.memory_space<vmem>>, vector<15x50xbf16>
    tpu.vector_store %arg13[%c0_95, %c300], %117 {strides = array<i32>} : memref<15x600xbf16, #tpu.memory_space<vmem>>, vector<15x50xbf16>,
    %c7_96 = arith.constant 7 : index
    %c0_97 = arith.constant 0 : index
    %119 = tpu.strided_load %arg12[%c7_96, %c0_97] {strides = array<i32: 3, 1>} : memref<54x50xf32, #tpu.memory_space<vmem>>, vector<15x50xf32>
    %120 = arith.truncf %119 : vector<15x50xf32> to vector<15x50xbf16>
    %c0_98 = arith.constant 0 : index
    %c350 = arith.constant 350 : index
    %121 = vector.load %arg13[%c0_98, %c350] : memref<15x600xbf16, #tpu.memory_space<vmem>>, vector<15x50xbf16>
    tpu.vector_store %arg13[%c0_98, %c350], %120 {strides = array<i32>} : memref<15x600xbf16, #tpu.memory_space<vmem>>, vector<15x50xbf16>,
    %c8_99 = arith.constant 8 : index
    %c0_100 = arith.constant 0 : index
    %122 = tpu.strided_load %arg12[%c8_99, %c0_100] {strides = array<i32: 3, 1>} : memref<54x50xf32, #tpu.memory_space<vmem>>, vector<15x50xf32>
    %123 = arith.truncf %122 : vector<15x50xf32> to vector<15x50xbf16>
    %c0_101 = arith.constant 0 : index
    %c400 = arith.constant 400 : index
    %124 = vector.load %arg13[%c0_101, %c400] : memref<15x600xbf16, #tpu.memory_space<vmem>>, vector<15x50xbf16>
    tpu.vector_store %arg13[%c0_101, %c400], %123 {strides = array<i32>} : memref<15x600xbf16, #tpu.memory_space<vmem>>, vector<15x50xbf16>,
    %c9_102 = arith.constant 9 : index
    %c0_103 = arith.constant 0 : index
    %125 = tpu.strided_load %arg12[%c9_102, %c0_103] {strides = array<i32: 3, 1>} : memref<54x50xf32, #tpu.memory_space<vmem>>, vector<15x50xf32>
    %126 = arith.truncf %125 : vector<15x50xf32> to vector<15x50xbf16>
    %c0_104 = arith.constant 0 : index
    %c450 = arith.constant 450 : index
    %127 = vector.load %arg13[%c0_104, %c450] : memref<15x600xbf16, #tpu.memory_space<vmem>>, vector<15x50xbf16>
    tpu.vector_store %arg13[%c0_104, %c450], %126 {strides = array<i32>} : memref<15x600xbf16, #tpu.memory_space<vmem>>, vector<15x50xbf16>,
    %c10_105 = arith.constant 10 : index
    %c0_106 = arith.constant 0 : index
    %128 = tpu.strided_load %arg12[%c10_105, %c0_106] {strides = array<i32: 3, 1>} : memref<54x50xf32, #tpu.memory_space<vmem>>, vector<15x50xf32>
    %129 = arith.truncf %128 : vector<15x50xf32> to vector<15x50xbf16>
    %c0_107 = arith.constant 0 : index
    %c500 = arith.constant 500 : index
    %130 = vector.load %arg13[%c0_107, %c500] : memref<15x600xbf16, #tpu.memory_space<vmem>>, vector<15x50xbf16>
    tpu.vector_store %arg13[%c0_107, %c500], %129 {strides = array<i32>} : memref<15x600xbf16, #tpu.memory_space<vmem>>, vector<15x50xbf16>,
    %c11_108 = arith.constant 11 : index
    %c0_109 = arith.constant 0 : index
    %131 = tpu.strided_load %arg12[%c11_108, %c0_109] {strides = array<i32: 3, 1>} : memref<54x50xf32, #tpu.memory_space<vmem>>, vector<15x50xf32>
    %132 = arith.truncf %131 : vector<15x50xf32> to vector<15x50xbf16>
    %c0_110 = arith.constant 0 : index
    %c550 = arith.constant 550 : index
    %133 = vector.load %arg13[%c0_110, %c550] : memref<15x600xbf16, #tpu.memory_space<vmem>>, vector<15x50xbf16>
    tpu.vector_store %arg13[%c0_110, %c550], %132 {strides = array<i32>} : memref<15x600xbf16, #tpu.memory_space<vmem>>, vector<15x50xbf16>,
    %c0_111 = arith.constant 0 : index
    %c0_112 = arith.constant 0 : index
    %134 = vector.load %arg13[%c0_111, %c0_112] : memref<15x600xbf16, #tpu.memory_space<vmem>>, vector<15x600xbf16>
    %c0_113 = arith.constant 0 : index
    %c0_114 = arith.constant 0 : index
    %135 = vector.load %arg4[%c0_113, %c0_114] : memref<600x300xbf16, #tpu.memory_space<vmem>>, vector<600x300xbf16>
    %cst_115 = arith.constant dense<0.000000e+00> : vector<15x300xf32>
    %136 = tpu.matmul %134, %135, %cst_115 {dimension_numbers = #tpu.dot_dimension_numbers<[1], [0], [0], [1], [0, 0, 1, 1], [], []>} : vector<15x600xbf16>, vector<600x300xbf16>, vector<15x300xf32> -> vector<15x300xf32>
    %c4_116 = arith.constant 4 : index
    %c0_117 = arith.constant 0 : index
    %137 = vector.load %arg7[%c4_116, %c0_117] : memref<10x300xf32, #tpu.memory_space<vmem>>, vector<1x300xf32>
    %138 = vector.broadcast %137 : vector<1x300xf32> to vector<15x300xf32>
    %139 = arith.addf %136, %138 : vector<15x300xf32>
    %cst_118 = arith.constant 0.000000e+00 : f32
    %140 = vector.broadcast %cst_118 : f32 to vector<15x300xf32>
    %141 = arith.cmpf ogt, %139, %140 : vector<15x300xf32>
    %cst_119 = arith.constant 0.000000e+00 : f32
    %142 = vector.broadcast %cst_119 : f32 to vector<15x300xf32>
    %143 = arith.minimumf %139, %142 : vector<15x300xf32>
    %144 = math.exp %143 : vector<15x300xf32>
    %cst_120 = arith.constant 1.000000e+00 : f32
    %145 = vector.broadcast %cst_120 : f32 to vector<15x300xf32>
    %146 = arith.subf %144, %145 : vector<15x300xf32>
    %147 = arith.select %141, %139, %146 : vector<15x300xi1>, vector<15x300xf32>
    %c5_121 = arith.constant 5 : index
    %c0_122 = arith.constant 0 : index
    %148 = vector.load %arg7[%c5_121, %c0_122] : memref<10x300xf32, #tpu.memory_space<vmem>>, vector<1x300xf32>
    %149 = vector.broadcast %148 : vector<1x300xf32> to vector<15x300xf32>
    %150 = arith.mulf %147, %149 : vector<15x300xf32>
    %c6_123 = arith.constant 6 : index
    %c0_124 = arith.constant 0 : index
    %151 = vector.load %arg7[%c6_123, %c0_124] : memref<10x300xf32, #tpu.memory_space<vmem>>, vector<1x300xf32>
    %152 = vector.broadcast %151 : vector<1x300xf32> to vector<15x300xf32>
    %153 = arith.addf %150, %152 : vector<15x300xf32>
    %154 = vector.extract_strided_slice %153 {offsets = [0, 0], sizes = [15, 100], strides = [1, 1]} : vector<15x300xf32> to vector<15x100xf32>
    %155 = vector.extract_strided_slice %153 {offsets = [0, 100], sizes = [15, 100], strides = [1, 1]} : vector<15x300xf32> to vector<15x100xf32>
    %156 = arith.maximumf %154, %155 : vector<15x100xf32>
    %157 = vector.extract_strided_slice %153 {offsets = [0, 200], sizes = [15, 100], strides = [1, 1]} : vector<15x300xf32> to vector<15x100xf32>
    %158 = arith.maximumf %156, %157 : vector<15x100xf32>
    %c0_125 = arith.constant 0 : index
    %c0_126 = arith.constant 0 : index
    %159 = vector.load %arg14[%c0_125, %c0_126] : memref<15x100xf32, #tpu.memory_space<vmem>>, vector<15x100xf32>
    tpu.vector_store %arg14[%c0_125, %c0_126], %158 {strides = array<i32>} : memref<15x100xf32, #tpu.memory_space<vmem>>, vector<15x100xf32>,
    %c0_127 = arith.constant 0 : index
    %c0_128 = arith.constant 0 : index
    %160 = vector.load %arg14[%c0_127, %c0_128] : memref<15x100xf32, #tpu.memory_space<vmem>>, vector<6x100xf32>
    %161 = arith.truncf %160 : vector<6x100xf32> to vector<6x100xbf16>
    %c0_129 = arith.constant 0 : index
    %c0_130 = arith.constant 0 : index
    %162 = vector.load %arg15[%c0_129, %c0_130] : memref<6x1000xbf16, #tpu.memory_space<vmem>>, vector<6x100xbf16>
    tpu.vector_store %arg15[%c0_129, %c0_130], %161 {strides = array<i32>} : memref<6x1000xbf16, #tpu.memory_space<vmem>>, vector<6x100xbf16>,
    %c1_131 = arith.constant 1 : index
    %c0_132 = arith.constant 0 : index
    %163 = vector.load %arg14[%c1_131, %c0_132] : memref<15x100xf32, #tpu.memory_space<vmem>>, vector<6x100xf32>
    %164 = arith.truncf %163 : vector<6x100xf32> to vector<6x100xbf16>
    %c0_133 = arith.constant 0 : index
    %c100_134 = arith.constant 100 : index
    %165 = vector.load %arg15[%c0_133, %c100_134] : memref<6x1000xbf16, #tpu.memory_space<vmem>>, vector<6x100xbf16>
    tpu.vector_store %arg15[%c0_133, %c100_134], %164 {strides = array<i32>} : memref<6x1000xbf16, #tpu.memory_space<vmem>>, vector<6x100xbf16>,
    %c2_135 = arith.constant 2 : index
    %c0_136 = arith.constant 0 : index
    %166 = vector.load %arg14[%c2_135, %c0_136] : memref<15x100xf32, #tpu.memory_space<vmem>>, vector<6x100xf32>
    %167 = arith.truncf %166 : vector<6x100xf32> to vector<6x100xbf16>
    %c0_137 = arith.constant 0 : index
    %c200_138 = arith.constant 200 : index
    %168 = vector.load %arg15[%c0_137, %c200_138] : memref<6x1000xbf16, #tpu.memory_space<vmem>>, vector<6x100xbf16>
    tpu.vector_store %arg15[%c0_137, %c200_138], %167 {strides = array<i32>} : memref<6x1000xbf16, #tpu.memory_space<vmem>>, vector<6x100xbf16>,
    %c3_139 = arith.constant 3 : index
    %c0_140 = arith.constant 0 : index
    %169 = vector.load %arg14[%c3_139, %c0_140] : memref<15x100xf32, #tpu.memory_space<vmem>>, vector<6x100xf32>
    %170 = arith.truncf %169 : vector<6x100xf32> to vector<6x100xbf16>
    %c0_141 = arith.constant 0 : index
    %c300_142 = arith.constant 300 : index
    %171 = vector.load %arg15[%c0_141, %c300_142] : memref<6x1000xbf16, #tpu.memory_space<vmem>>, vector<6x100xbf16>
    tpu.vector_store %arg15[%c0_141, %c300_142], %170 {strides = array<i32>} : memref<6x1000xbf16, #tpu.memory_space<vmem>>, vector<6x100xbf16>,
    %c4_143 = arith.constant 4 : index
    %c0_144 = arith.constant 0 : index
    %172 = vector.load %arg14[%c4_143, %c0_144] : memref<15x100xf32, #tpu.memory_space<vmem>>, vector<6x100xf32>
    %173 = arith.truncf %172 : vector<6x100xf32> to vector<6x100xbf16>
    %c0_145 = arith.constant 0 : index
    %c400_146 = arith.constant 400 : index
    %174 = vector.load %arg15[%c0_145, %c400_146] : memref<6x1000xbf16, #tpu.memory_space<vmem>>, vector<6x100xbf16>
    tpu.vector_store %arg15[%c0_145, %c400_146], %173 {strides = array<i32>} : memref<6x1000xbf16, #tpu.memory_space<vmem>>, vector<6x100xbf16>,
    %c5_147 = arith.constant 5 : index
    %c0_148 = arith.constant 0 : index
    %175 = vector.load %arg14[%c5_147, %c0_148] : memref<15x100xf32, #tpu.memory_space<vmem>>, vector<6x100xf32>
    %176 = arith.truncf %175 : vector<6x100xf32> to vector<6x100xbf16>
    %c0_149 = arith.constant 0 : index
    %c500_150 = arith.constant 500 : index
    %177 = vector.load %arg15[%c0_149, %c500_150] : memref<6x1000xbf16, #tpu.memory_space<vmem>>, vector<6x100xbf16>
    tpu.vector_store %arg15[%c0_149, %c500_150], %176 {strides = array<i32>} : memref<6x1000xbf16, #tpu.memory_space<vmem>>, vector<6x100xbf16>,
    %c6_151 = arith.constant 6 : index
    %c0_152 = arith.constant 0 : index
    %178 = vector.load %arg14[%c6_151, %c0_152] : memref<15x100xf32, #tpu.memory_space<vmem>>, vector<6x100xf32>
    %179 = arith.truncf %178 : vector<6x100xf32> to vector<6x100xbf16>
    %c0_153 = arith.constant 0 : index
    %c600 = arith.constant 600 : index
    %180 = vector.load %arg15[%c0_153, %c600] : memref<6x1000xbf16, #tpu.memory_space<vmem>>, vector<6x100xbf16>
    tpu.vector_store %arg15[%c0_153, %c600], %179 {strides = array<i32>} : memref<6x1000xbf16, #tpu.memory_space<vmem>>, vector<6x100xbf16>,
    %c7_154 = arith.constant 7 : index
    %c0_155 = arith.constant 0 : index
    %181 = vector.load %arg14[%c7_154, %c0_155] : memref<15x100xf32, #tpu.memory_space<vmem>>, vector<6x100xf32>
    %182 = arith.truncf %181 : vector<6x100xf32> to vector<6x100xbf16>
    %c0_156 = arith.constant 0 : index
    %c700 = arith.constant 700 : index
    %183 = vector.load %arg15[%c0_156, %c700] : memref<6x1000xbf16, #tpu.memory_space<vmem>>, vector<6x100xbf16>
    tpu.vector_store %arg15[%c0_156, %c700], %182 {strides = array<i32>} : memref<6x1000xbf16, #tpu.memory_space<vmem>>, vector<6x100xbf16>,
    %c8_157 = arith.constant 8 : index
    %c0_158 = arith.constant 0 : index
    %184 = vector.load %arg14[%c8_157, %c0_158] : memref<15x100xf32, #tpu.memory_space<vmem>>, vector<6x100xf32>
    %185 = arith.truncf %184 : vector<6x100xf32> to vector<6x100xbf16>
    %c0_159 = arith.constant 0 : index
    %c800 = arith.constant 800 : index
    %186 = vector.load %arg15[%c0_159, %c800] : memref<6x1000xbf16, #tpu.memory_space<vmem>>, vector<6x100xbf16>
    tpu.vector_store %arg15[%c0_159, %c800], %185 {strides = array<i32>} : memref<6x1000xbf16, #tpu.memory_space<vmem>>, vector<6x100xbf16>,
    %c9_160 = arith.constant 9 : index
    %c0_161 = arith.constant 0 : index
    %187 = vector.load %arg14[%c9_160, %c0_161] : memref<15x100xf32, #tpu.memory_space<vmem>>, vector<6x100xf32>
    %188 = arith.truncf %187 : vector<6x100xf32> to vector<6x100xbf16>
    %c0_162 = arith.constant 0 : index
    %c900 = arith.constant 900 : index
    %189 = vector.load %arg15[%c0_162, %c900] : memref<6x1000xbf16, #tpu.memory_space<vmem>>, vector<6x100xbf16>
    tpu.vector_store %arg15[%c0_162, %c900], %188 {strides = array<i32>} : memref<6x1000xbf16, #tpu.memory_space<vmem>>, vector<6x100xbf16>,
    %c0_163 = arith.constant 0 : index
    %c0_164 = arith.constant 0 : index
    %190 = vector.load %arg15[%c0_163, %c0_164] : memref<6x1000xbf16, #tpu.memory_space<vmem>>, vector<6x1000xbf16>
    %c0_165 = arith.constant 0 : index
    %c0_166 = arith.constant 0 : index
    %191 = vector.load %arg5[%c0_165, %c0_166] : memref<1000x200xbf16, #tpu.memory_space<vmem>>, vector<1000x200xbf16>
    %cst_167 = arith.constant dense<0.000000e+00> : vector<6x200xf32>
    %192 = tpu.matmul %190, %191, %cst_167 {dimension_numbers = #tpu.dot_dimension_numbers<[1], [0], [0], [1], [0, 0, 1, 1], [], []>} : vector<6x1000xbf16>, vector<1000x200xbf16>, vector<6x200xf32> -> vector<6x200xf32>
    %c7_168 = arith.constant 7 : index
    %c0_169 = arith.constant 0 : index
    %193 = vector.load %arg7[%c7_168, %c0_169] : memref<10x300xf32, #tpu.memory_space<vmem>>, vector<1x200xf32>
    %194 = vector.broadcast %193 : vector<1x200xf32> to vector<6x200xf32>
    %195 = arith.mulf %192, %194 : vector<6x200xf32>
    %c8_170 = arith.constant 8 : index
    %c0_171 = arith.constant 0 : index
    %196 = vector.load %arg7[%c8_170, %c0_171] : memref<10x300xf32, #tpu.memory_space<vmem>>, vector<1x200xf32>
    %197 = vector.broadcast %196 : vector<1x200xf32> to vector<6x200xf32>
    %198 = arith.addf %195, %197 : vector<6x200xf32>
    %cst_172 = arith.constant 0.000000e+00 : f32
    %199 = vector.broadcast %cst_172 : f32 to vector<6x200xf32>
    %200 = arith.cmpf ogt, %198, %199 : vector<6x200xf32>
    %cst_173 = arith.constant 0.000000e+00 : f32
    %201 = vector.broadcast %cst_173 : f32 to vector<6x200xf32>
    %202 = arith.minimumf %198, %201 : vector<6x200xf32>
    %203 = math.exp %202 : vector<6x200xf32>
    %cst_174 = arith.constant 1.000000e+00 : f32
    %204 = vector.broadcast %cst_174 : f32 to vector<6x200xf32>
    %205 = arith.subf %203, %204 : vector<6x200xf32>
    %206 = arith.select %200, %198, %205 : vector<6x200xi1>, vector<6x200xf32>
    %207 = vector.extract_strided_slice %206 {offsets = [0, 0], sizes = [1, 200], strides = [1, 1]} : vector<6x200xf32> to vector<1x200xf32>
    %208 = vector.extract_strided_slice %206 {offsets = [1, 0], sizes = [1, 200], strides = [1, 1]} : vector<6x200xf32> to vector<1x200xf32>
    %209 = arith.maximumf %207, %208 : vector<1x200xf32>
    %210 = vector.extract_strided_slice %206 {offsets = [2, 0], sizes = [1, 200], strides = [1, 1]} : vector<6x200xf32> to vector<1x200xf32>
    %211 = arith.maximumf %209, %210 : vector<1x200xf32>
    %212 = vector.extract_strided_slice %206 {offsets = [3, 0], sizes = [1, 200], strides = [1, 1]} : vector<6x200xf32> to vector<1x200xf32>
    %213 = vector.extract_strided_slice %206 {offsets = [4, 0], sizes = [1, 200], strides = [1, 1]} : vector<6x200xf32> to vector<1x200xf32>
    %214 = arith.maximumf %212, %213 : vector<1x200xf32>
    %215 = vector.extract_strided_slice %206 {offsets = [5, 0], sizes = [1, 200], strides = [1, 1]} : vector<6x200xf32> to vector<1x200xf32>
    %216 = arith.maximumf %214, %215 : vector<1x200xf32>
    %217 = tpu.concatenate %211, %216 in 0 : vector<1x200xf32>, vector<1x200xf32> -> vector<2x200xf32>
    %218 = arith.truncf %217 : vector<2x200xf32> to vector<2x200xbf16>
    %c0_175 = arith.constant 0 : index
    %c0_176 = arith.constant 0 : index
    %219 = vector.load %arg6[%c0_175, %c0_176] : memref<200x8xbf16, #tpu.memory_space<vmem>>, vector<200x8xbf16>
    %cst_177 = arith.constant dense<0.000000e+00> : vector<2x8xf32>
    %220 = tpu.matmul %218, %219, %cst_177 {dimension_numbers = #tpu.dot_dimension_numbers<[1], [0], [0], [1], [0, 0, 1, 1], [], []>} : vector<2x200xbf16>, vector<200x8xbf16>, vector<2x8xf32> -> vector<2x8xf32>
    %221 = vector.extract_strided_slice %220 {offsets = [0, 0], sizes = [1, 4], strides = [1, 1]} : vector<2x8xf32> to vector<1x4xf32>
    %222 = vector.extract_strided_slice %220 {offsets = [1, 4], sizes = [1, 4], strides = [1, 1]} : vector<2x8xf32> to vector<1x4xf32>
    %223 = arith.addf %221, %222 : vector<1x4xf32>
    %c9_178 = arith.constant 9 : index
    %c0_179 = arith.constant 0 : index
    %224 = vector.load %arg7[%c9_178, %c0_179] : memref<10x300xf32, #tpu.memory_space<vmem>>, vector<1x4xf32>
    %225 = arith.addf %223, %224 : vector<1x4xf32>
    %c0_180 = arith.constant 0 : index
    %c0_181 = arith.constant 0 : index
    %c0_182 = arith.constant 0 : index
    %226 = vector.load %arg8[%c0_180, %c0_181, %c0_182] : memref<1x1x4xf32, #tpu.memory_space<vmem>>, vector<1x1x4xf32>
    %227 = vector.shape_cast %226 : vector<1x1x4xf32> to vector<1x4xf32>
    %228 = vector.shape_cast %225 : vector<1x4xf32> to vector<1x1x4xf32>
    tpu.vector_store %arg8[%c0_180, %c0_181, %c0_182], %228 {strides = array<i32>} : memref<1x1x4xf32, #tpu.memory_space<vmem>>, vector<1x1x4xf32>,
    return
  }
  func.func @transform_0(%arg0: i32) -> (i32, i32, i32) {
    %c0_i32 = arith.constant 0 : i32
    %c0_i32_0 = arith.constant 0 : i32
    %c0_i32_1 = arith.constant 0 : i32
    return %arg0, %c0_i32, %c0_i32_0 : i32, i32, i32
  }
  func.func @transform_1(%arg0: i32) -> (i32, i32) {
    %c0_i32 = arith.constant 0 : i32
    %c0_i32_0 = arith.constant 0 : i32
    %c0_i32_1 = arith.constant 0 : i32
    return %c0_i32, %c0_i32_0 : i32, i32
  }
  func.func @transform_2(%arg0: i32) -> (i32, i32) {
    %c0_i32 = arith.constant 0 : i32
    %c0_i32_0 = arith.constant 0 : i32
    %c0_i32_1 = arith.constant 0 : i32
    return %c0_i32, %c0_i32_0 : i32, i32
  }
  func.func @transform_3(%arg0: i32) -> (i32, i32) {
    %c0_i32 = arith.constant 0 : i32
    %c0_i32_0 = arith.constant 0 : i32
    %c0_i32_1 = arith.constant 0 : i32
    return %c0_i32, %c0_i32_0 : i32, i32
  }
  func.func @transform_4(%arg0: i32) -> (i32, i32) {
    %c0_i32 = arith.constant 0 : i32
    %c0_i32_0 = arith.constant 0 : i32
    %c0_i32_1 = arith.constant 0 : i32
    return %c0_i32, %c0_i32_0 : i32, i32
  }
  func.func @transform_5(%arg0: i32) -> (i32, i32) {
    %c0_i32 = arith.constant 0 : i32
    %c0_i32_0 = arith.constant 0 : i32
    %c0_i32_1 = arith.constant 0 : i32
    return %c0_i32, %c0_i32_0 : i32, i32
  }
  func.func @transform_6(%arg0: i32) -> (i32, i32) {
    %c0_i32 = arith.constant 0 : i32
    %c0_i32_0 = arith.constant 0 : i32
    %c0_i32_1 = arith.constant 0 : i32
    return %c0_i32, %c0_i32_0 : i32, i32
  }
  func.func @transform_7(%arg0: i32) -> (i32, i32, i32) {
    %c0_i32 = arith.constant 0 : i32
    %c0_i32_0 = arith.constant 0 : i32
    %c0_i32_1 = arith.constant 0 : i32
    return %arg0, %c0_i32, %c0_i32_0 : i32, i32, i32
  }
}

</mosaic_0001>

<llo_original>
// kernel: tile.38
$region0: #{tile.38}
  #allocation0 [shape = 's32[1]{0}', space=sflag, size = 0x4, scoped, tag = 'scoped memory for tile.38']
  %s0 = inlined_call_operand.vmem [shape: f32[25], index: 0, kind: input, shape index: {}]
  %s1 = inlined_call_operand.vmem [shape: f32[3,25], index: 1, kind: output, shape index: {}]
  // Predicated region
  $region2: #{tile.38} parent=0 // pred_check
    _
  $region3: #{tile.38} parent=0 // pred_check_branch
    %3 = sbr.rel (0) target = $region5
  $region4: #{tile.38} parent=0 // pred_region
    _
  $region5: #{tile.38} parent=0 // pred_fallthru
    _
  %v4 = vld [vmem:[%s0] ss:$0 sm:$0xff]
  %5 = vst [vmem:[%s1] sm:$0xf] %v4

// kernel: tile.48
$region0: #{tile.48}
  #allocation0 [shape = 's32[1]{0}', space=sflag, size = 0x4, scoped, tag = 'scoped memory for tile.48']
  %s0 = inlined_call_operand.vmem [shape: f32[50], index: 0, kind: input, shape index: {}]
  %s1 = inlined_call_operand.vmem [shape: f32[3,50], index: 1, kind: output, shape index: {}]
  // Predicated region
  $region2: #{tile.48} parent=0 // pred_check
    _
  $region3: #{tile.48} parent=0 // pred_check_branch
    %3 = sbr.rel (0) target = $region5
  $region4: #{tile.48} parent=0 // pred_region
    _
  $region5: #{tile.48} parent=0 // pred_fallthru
    _
  %v4 = vld [vmem:[%s0] ss:$0 sm:$0xff]
  %5 = vst [vmem:[%s1] sm:$0xf] %v4

// kernel: tile.58
$region0: #{tile.58}
  #allocation0 [shape = 's32[1]{0}', space=sflag, size = 0x4, scoped, tag = 'scoped memory for tile.58']
  %s0 = inlined_call_operand.vmem [shape: f32[100], index: 0, kind: input, shape index: {}]
  %s1 = inlined_call_operand.vmem [shape: f32[3,100], index: 1, kind: output, shape index: {}]
  // Predicated region
  $region2: #{tile.58} parent=0 // pred_check
    _
  $region3: #{tile.58} parent=0 // pred_check_branch
    %3 = sbr.rel (0) target = $region5
  $region4: #{tile.58} parent=0 // pred_region
    _
  $region5: #{tile.58} parent=0 // pred_fallthru
    _
  %v4 = vld [vmem:[%s0] ss:$0 sm:$0xff]
  %5 = vst [vmem:[%s1] sm:$0xf] %v4

// kernel: deepconvnet_forward.1
$region0: #{deepconvnet_forward.1}
  #allocation0 [shape = 'u32[]', space=smem, size = 0x4, offset = 0x4, fixed_abs, tag = 'smem constant byte address 0x4 - core index']
  #allocation1 [shape = 'u32[144,128]{1,0:T(1,128)}', space=vmem, size = 0x12000, scoped, tag = 'internal scratch']
  #allocation2 [shape = 'bf16[171,360]{1,0:T(8,128)(2,1)}', space=vmem, size = 0x21000, scoped, tag = 'scratch operand']
  #allocation3 [shape = 'f32[171,25]{1,0:T(8,128)}', space=vmem, size = 0x16000, scoped, tag = 'scratch operand']
  #allocation4 [shape = 'bf16[54,300]{1,0:T(8,128)(2,1)}', space=vmem, size = 0xa800, scoped, tag = 'scratch operand']
  #allocation5 [shape = 'f32[54,50]{1,0:T(8,128)}', space=vmem, size = 0x7000, scoped, tag = 'scratch operand']
  #allocation6 [shape = 'bf16[15,600]{1,0:T(8,128)(2,1)}', space=vmem, size = 0x5000, scoped, tag = 'scratch operand']
  #allocation7 [shape = 'f32[15,100]{1,0:T(8,128)}', space=vmem, size = 0x2000, scoped, tag = 'scratch operand']
  #allocation8 [shape = 'bf16[6,1000]{1,0:T(8,128)(2,1)}', space=vmem, size = 0x4000, scoped, tag = 'scratch operand']
  %s0 = inlined_call_operand.vmem [shape: f32[2,174,90], index: 0, kind: input, shape index: {}]
  %s1 = inlined_call_operand.vmem [shape: bf16[360,75], index: 1, kind: input, shape index: {}]
  %s2 = inlined_call_operand.vmem [shape: bf16[300,150], index: 2, kind: input, shape index: {}]
  %s3 = inlined_call_operand.vmem [shape: bf16[600,300], index: 3, kind: input, shape index: {}]
  %s4 = inlined_call_operand.vmem [shape: bf16[1000,200], index: 4, kind: input, shape index: {}]
  %s5 = inlined_call_operand.vmem [shape: bf16[200,8], index: 5, kind: input, shape index: {}]
  %s6 = inlined_call_operand.vmem [shape: f32[10,300], index: 6, kind: input, shape index: {}]
  %s7 = inlined_call_operand.hbm [shape: f32[2,1,4], index: 7, kind: output, shape index: {}]
  %s8 = sld [smem:[#allocation0]]
  $region61: #{deepconvnet_forward.1} parent=0
    _
  %s10 = ssub.s32 1, %s8
  %s11 = scalar_select 0, %s10, %s8
  $region1: #{deepconvnet_forward.1} parent=0
    #allocation9 [shape = 'u8[1024]{0}', space=vmem, size = 0x400, scoped, tag = 'output window, operand 0']
    #allocation10 [shape = 's32[2]{0}', space=sflag, size = 0x8, scoped, tag = 'scoped memory for deepconvnet_forward.1']
    %12 = vsyncpa [#allocation10], 0
    %s13 = scalar_lea.sflag [#allocation10], 1
    %14 = vsyncpa %s13, 0
    loop: start=0, step=1, limit=4
    $region2: #{deepconvnet_forward.1} parent=1 // loop_pre_header
      _
    $region3: #{deepconvnet_forward.1} parent=1 // loop_header
      %s16 = sphi 0, %s20
      %p17 = scmp.ge.s32.totalorder %s16, 4
      %s26 = sphi 0, %s28
      %s29 = sphi 0, %s26
      %s30 = sphi 0, %s29
      %s46 = sphi 0, %s30
      %s50 = sphi 0, %s50
      %s52 = sphi 0, %s50
      %s53 = sphi 0, %s52
      %s67 = sphi 0, %s53
      %s71 = sphi 0, %s71
      %s73 = sphi 0, %s71
      %s74 = sphi 0, %s73
      %s88 = sphi 0, %s74
      %s92 = sphi 0, %s92
      %s94 = sphi 0, %s92
      %s95 = sphi 0, %s94
      %s109 = sphi 0, %s95
      %s113 = sphi 0, %s113
      %s115 = sphi 0, %s113
      %s116 = sphi 0, %s115
      %s130 = sphi 0, %s116
      %s134 = sphi 0, %s134
      %s136 = sphi 0, %s134
      %s137 = sphi 0, %s136
      %s151 = sphi 0, %s137
      %s155 = sphi 0, %s155
      %s157 = sphi 0, %s155
      %s158 = sphi 0, %s157
      %s172 = sphi 0, %s158
      %s178 = sphi 0, %s180
      %s181 = sphi 0, %s178
      %s182 = sphi 0, %s181
      %s198 = sphi 0, %s182
    $region4: #{deepconvnet_forward.1} parent=1 // loop_header_branch
      %19 = sbr.rel (%p17) target = $region8
    $region5: #{deepconvnet_forward.1} parent=1 // loop_body
      %s21 = ssub.s32 %s16, 1
      %s22 = ssub.s32 %s16, 2
      %s23 = sadd.s32 %s16, 1
      %s24 = ssub.s32 %s16, %s23
      %p25 = scmp.eq.s32.totalorder %s24, 0
      %s27 = sadd.s32 %s26, 1
      %s28 = scalar_select %p25, %s26, %s27
      %p31 = pneg %p25
      %p32 = scmp.eq.s32.totalorder %s16, 1
      %p33 = por %p31, %p32
      %p34 = scmp.ne.s32.totalorder %s26, %s29
      %p35 = scmp.eq.s32.totalorder %s16, 0
      %p36 = por %p34, %p35
      %p37 = scmp.ne.s32.totalorder %s26, %s29
      %p38 = scmp.eq.s32.totalorder %s21, 1
      %p39 = por %p37, %p38
      %p40 = scmp.ne.s32.totalorder %s29, %s30
      %p41 = scmp.eq.s32.totalorder %s21, 0
      %p42 = por %p40, %p41
      %p43 = scmp.ne.s32.totalorder %s29, %s30
      %p44 = scmp.eq.s32.totalorder %s22, 1
      %p45 = por %p43, %p44
      %p47 = scmp.ne.s32.totalorder %s30, %s46
      %p48 = scmp.eq.s32.totalorder %s22, 0
      %p49 = por %p47, %p48
      %s51 = sadd.s32 %s50, 1
      %p54 = scmp.eq.s32.totalorder %s16, 1
      %p55 = scmp.ne.s32.totalorder %s50, %s52
      %p56 = scmp.eq.s32.totalorder %s16, 0
      %p57 = por %p55, %p56
      %p58 = scmp.ne.s32.totalorder %s50, %s52
      %p59 = scmp.eq.s32.totalorder %s21, 1
      %p60 = por %p58, %p59
      %p61 = scmp.ne.s32.totalorder %s52, %s53
      %p62 = scmp.eq.s32.totalorder %s21, 0
      %p63 = por %p61, %p62
      %p64 = scmp.ne.s32.totalorder %s52, %s53
      %p65 = scmp.eq.s32.totalorder %s22, 1
      %p66 = por %p64, %p65
      %p68 = scmp.ne.s32.totalorder %s53, %s67
      %p69 = scmp.eq.s32.totalorder %s22, 0
      %p70 = por %p68, %p69
      %s72 = sadd.s32 %s71, 1
      %p75 = scmp.eq.s32.totalorder %s16, 1
      %p76 = scmp.ne.s32.totalorder %s71, %s73
      %p77 = scmp.eq.s32.totalorder %s16, 0
      %p78 = por %p76, %p77
      %p79 = scmp.ne.s32.totalorder %s71, %s73
      %p80 = scmp.eq.s32.totalorder %s21, 1
      %p81 = por %p79, %p80
      %p82 = scmp.ne.s32.totalorder %s73, %s74
      %p83 = scmp.eq.s32.totalorder %s21, 0
      %p84 = por %p82, %p83
      %p85 = scmp.ne.s32.totalorder %s73, %s74
      %p86 = scmp.eq.s32.totalorder %s22, 1
      %p87 = por %p85, %p86
      %p89 = scmp.ne.s32.totalorder %s74, %s88
      %p90 = scmp.eq.s32.totalorder %s22, 0
      %p91 = por %p89, %p90
      %s93 = sadd.s32 %s92, 1
      %p96 = scmp.eq.s32.totalorder %s16, 1
      %p97 = scmp.ne.s32.totalorder %s92, %s94
      %p98 = scmp.eq.s32.totalorder %s16, 0
      %p99 = por %p97, %p98
      %p100 = scmp.ne.s32.totalorder %s92, %s94
      %p101 = scmp.eq.s32.totalorder %s21, 1
      %p102 = por %p100, %p101
      %p103 = scmp.ne.s32.totalorder %s94, %s95
      %p104 = scmp.eq.s32.totalorder %s21, 0
      %p105 = por %p103, %p104
      %p106 = scmp.ne.s32.totalorder %s94, %s95
      %p107 = scmp.eq.s32.totalorder %s22, 1
      %p108 = por %p106, %p107
      %p110 = scmp.ne.s32.totalorder %s95, %s109
      %p111 = scmp.eq.s32.totalorder %s22, 0
      %p112 = por %p110, %p111
      %s114 = sadd.s32 %s113, 1
      %p117 = scmp.eq.s32.totalorder %s16, 1
      %p118 = scmp.ne.s32.totalorder %s113, %s115
      %p119 = scmp.eq.s32.totalorder %s16, 0
      %p120 = por %p118, %p119
      %p121 = scmp.ne.s32.totalorder %s113, %s115
      %p122 = scmp.eq.s32.totalorder %s21, 1
      %p123 = por %p121, %p122
      %p124 = scmp.ne.s32.totalorder %s115, %s116
      %p125 = scmp.eq.s32.totalorder %s21, 0
      %p126 = por %p124, %p125
      %p127 = scmp.ne.s32.totalorder %s115, %s116
      %p128 = scmp.eq.s32.totalorder %s22, 1
      %p129 = por %p127, %p128
      %p131 = scmp.ne.s32.totalorder %s116, %s130
      %p132 = scmp.eq.s32.totalorder %s22, 0
      %p133 = por %p131, %p132
      %s135 = sadd.s32 %s134, 1
      %p138 = scmp.eq.s32.totalorder %s16, 1
      %p139 = scmp.ne.s32.totalorder %s134, %s136
      %p140 = scmp.eq.s32.totalorder %s16, 0
      %p141 = por %p139, %p140
      %p142 = scmp.ne.s32.totalorder %s134, %s136
      %p143 = scmp.eq.s32.totalorder %s21, 1
      %p144 = por %p142, %p143
      %p145 = scmp.ne.s32.totalorder %s136, %s137
      %p146 = scmp.eq.s32.totalorder %s21, 0
      %p147 = por %p145, %p146
      %p148 = scmp.ne.s32.totalorder %s136, %s137
      %p149 = scmp.eq.s32.totalorder %s22, 1
      %p150 = por %p148, %p149
      %p152 = scmp.ne.s32.totalorder %s137, %s151
      %p153 = scmp.eq.s32.totalorder %s22, 0
      %p154 = por %p152, %p153
      %s156 = sadd.s32 %s155, 1
      %p159 = scmp.eq.s32.totalorder %s16, 1
      %p160 = scmp.ne.s32.totalorder %s155, %s157
      %p161 = scmp.eq.s32.totalorder %s16, 0
      %p162 = por %p160, %p161
      %p163 = scmp.ne.s32.totalorder %s155, %s157
      %p164 = scmp.eq.s32.totalorder %s21, 1
      %p165 = por %p163, %p164
      %p166 = scmp.ne.s32.totalorder %s157, %s158
      %p167 = scmp.eq.s32.totalorder %s21, 0
      %p168 = por %p166, %p167
      %p169 = scmp.ne.s32.totalorder %s157, %s158
      %p170 = scmp.eq.s32.totalorder %s22, 1
      %p171 = por %p169, %p170
      %p173 = scmp.ne.s32.totalorder %s158, %s172
      %p174 = scmp.eq.s32.totalorder %s22, 0
      %p175 = por %p173, %p174
      %s176 = ssub.s32 %s16, %s23
      %p177 = scmp.eq.s32.totalorder %s176, 0
      %s179 = sadd.s32 %s178, 1
      %s180 = scalar_select %p177, %s178, %s179
      %p183 = pneg %p177
      %p184 = scmp.eq.s32.totalorder %s16, 1
      %p185 = por %p183, %p184
      %p186 = scmp.ne.s32.totalorder %s178, %s181
      %p187 = scmp.eq.s32.totalorder %s16, 0
      %p188 = por %p186, %p187
      %p189 = scmp.ne.s32.totalorder %s178, %s181
      %p190 = scmp.eq.s32.totalorder %s21, 1
      %p191 = por %p189, %p190
      %p192 = scmp.ne.s32.totalorder %s181, %s182
      %p193 = scmp.eq.s32.totalorder %s21, 0
      %p194 = por %p192, %p193
      %p195 = scmp.ne.s32.totalorder %s181, %s182
      %p196 = scmp.eq.s32.totalorder %s22, 1
      %p197 = por %p195, %p196
      %p199 = scmp.ne.s32.totalorder %s182, %s198
      %p200 = scmp.eq.s32.totalorder %s22, 0
      %p201 = por %p199, %p200
      %p202 = scmp.le.s32.totalorder 1, %s16
      %p203 = scmp.lt.s32.totalorder %s16, 3
      %p204 = pnand %p202, %p203
      %p205 = pneg %p204
      // Predicated region
      $region9: #{deepconvnet_forward.1} parent=5 // pred_check
        _
      $region10: #{deepconvnet_forward.1} parent=5 // pred_check_branch
        %207 = sbr.rel (%p204) target = $region12
      $region11: #{deepconvnet_forward.1} parent=5 // pred_region
        %s208 = ssub.s32 %s16, 1
        // Predicated region
        $region13: #{deepconvnet_forward.1} parent=11 // pred_check
          %p209 = pneg %p63
        $region14: #{deepconvnet_forward.1} parent=11 // pred_check_branch
          %211 = sbr.rel (%p209) target = $region16
        $region15: #{deepconvnet_forward.1} parent=11 // pred_region
          _
        $region16: #{deepconvnet_forward.1} parent=11 // pred_fallthru
          _
        // Predicated region
        $region17: #{deepconvnet_forward.1} parent=11 // pred_check
          %p212 = pneg %p84
        $region18: #{deepconvnet_forward.1} parent=11 // pred_check_branch
          %214 = sbr.rel (%p212) target = $region20
        $region19: #{deepconvnet_forward.1} parent=11 // pred_region
          _
        $region20: #{deepconvnet_forward.1} parent=11 // pred_fallthru
          _
        // Predicated region
        $region21: #{deepconvnet_forward.1} parent=11 // pred_check
          %p215 = pneg %p105
        $region22: #{deepconvnet_forward.1} parent=11 // pred_check_branch
          %217 = sbr.rel (%p215) target = $region24
        $region23: #{deepconvnet_forward.1} parent=11 // pred_region
          _
        $region24: #{deepconvnet_forward.1} parent=11 // pred_fallthru
          _
        // Predicated region
        $region25: #{deepconvnet_forward.1} parent=11 // pred_check
          %p218 = pneg %p126
        $region26: #{deepconvnet_forward.1} parent=11 // pred_check_branch
          %220 = sbr.rel (%p218) target = $region28
        $region27: #{deepconvnet_forward.1} parent=11 // pred_region
          _
        $region28: #{deepconvnet_forward.1} parent=11 // pred_fallthru
          _
        // Predicated region
        $region29: #{deepconvnet_forward.1} parent=11 // pred_check
          %p221 = pneg %p147
        $region30: #{deepconvnet_forward.1} parent=11 // pred_check_branch
          %223 = sbr.rel (%p221) target = $region32
        $region31: #{deepconvnet_forward.1} parent=11 // pred_region
          _
        $region32: #{deepconvnet_forward.1} parent=11 // pred_fallthru
          _
        // Predicated region
        $region33: #{deepconvnet_forward.1} parent=11 // pred_check
          %p224 = pneg %p168
        $region34: #{deepconvnet_forward.1} parent=11 // pred_check_branch
          %226 = sbr.rel (%p224) target = $region36
        $region35: #{deepconvnet_forward.1} parent=11 // pred_region
          _
        $region36: #{deepconvnet_forward.1} parent=11 // pred_fallthru
          _
      $region12: #{deepconvnet_forward.1} parent=5 // pred_fallthru
        _
      %p227 = scmp.lt.s32.totalorder %s16, 2
      // Predicated region
      $region37: #{deepconvnet_forward.1} parent=5 // pred_check
        %p228 = pneg %p227
      $region38: #{deepconvnet_forward.1} parent=5 // pred_check_branch
        %230 = sbr.rel (%p228) target = $region40
      $region39: #{deepconvnet_forward.1} parent=5 // pred_region
        // Predicated region
        $region41: #{deepconvnet_forward.1} parent=39 // pred_check
          %p231 = pneg %p36
        $region42: #{deepconvnet_forward.1} parent=39 // pred_check_branch
          %233 = sbr.rel (%p231) target = $region44
        $region43: #{deepconvnet_forward.1} parent=39 // pred_region
          %p234 = scmp.lt.s32.totalorder %s16, 1
          %s235 = scalar_select %p234, %s16, 1
          %s236 = smul.addr %s235, 22
          %s237 = smul.addr %s236, 8
          %s238 = scalar_lea.vmem %s0, %s237
        $region44: #{deepconvnet_forward.1} parent=39 // pred_fallthru
          _
      $region40: #{deepconvnet_forward.1} parent=5 // pred_fallthru
        _
      %p239 = scmp.le.s32.totalorder 1, %s16
      %p240 = scmp.lt.s32.totalorder %s16, 3
      %p241 = pnand %p239, %p240
      %p242 = pneg %p241
      // Predicated region
      $region45: #{deepconvnet_forward.1} parent=5 // pred_check
        _
      $region46: #{deepconvnet_forward.1} parent=5 // pred_check_branch
        %244 = sbr.rel (%p241) target = $region48
      $region47: #{deepconvnet_forward.1} parent=5 // pred_region
        %s245 = ssub.s32 %s16, 1
        %p246 = scmp.lt.s32.totalorder %s21, 1
        %s247 = scalar_select %p246, %s21, 1
        %s248 = smul.addr %s247, 22
        %s249 = smul.addr %s248, 8
        %s250 = scalar_lea.vmem %s0, %s249
        %p251 = pneg %p42
        %p252 = pneg %p39
        %p253 = pneg %p63
        %p254 = pneg %p60
        %p255 = pneg %p84
        %p256 = pneg %p81
        %p257 = pneg %p105
        %p258 = pneg %p102
        %p259 = pneg %p126
        %p260 = pneg %p123
        %p261 = pneg %p147
        %p262 = pneg %p144
        %p263 = pneg %p168
        %p264 = pneg %p165
        %p265 = pneg %p194
        %p266 = pneg %p191
        %s267 = sand.u32 %s181, 1
        %s268 = scalar_lea.sflag [#allocation10], %s267
        %s269 = sand.u32 %s181, 1
        %s270 = scalar_lea.vmem [#allocation9], %s269
        %p271 = scmp.lt.s32.totalorder %s21, 1
        %s272 = scalar_select %p271, %s21, 1
        %s273 = smul.addr %s272, 22
        %s274 = smul.addr %s273, 8
        %s275 = scalar_lea.vmem %s0, %s274
        %v277 = vld [vmem:[%s275] sm:$0xff]
        %v278 = vld [vmem:[%s275 + $0x8] sm:$0xff]
        %v279 = vld [vmem:[%s275 + $0x10] sm:$0xff]
        %v280 = vld [vmem:[%s275 + $0x18] sm:$0xff]
        %v281 = vld [vmem:[%s275 + $0x20] sm:$0xff]
        %v282 = vld [vmem:[%s275 + $0x28] sm:$0xff]
        %v283 = vld [vmem:[%s275 + $0x30] sm:$0xff]
        %v284 = vld [vmem:[%s275 + $0x38] sm:$0xff]
        %v285 = vld [vmem:[%s275 + $0x40] sm:$0xff]
        %v286 = vld [vmem:[%s275 + $0x48] sm:$0xff]
        %v287 = vld [vmem:[%s275 + $0x50] sm:$0xff]
        %v288 = vld [vmem:[%s275 + $0x58] sm:$0xff]
        %v289 = vld [vmem:[%s275 + $0x60] sm:$0xff]
        %v290 = vld [vmem:[%s275 + $0x68] sm:$0xff]
        %v291 = vld [vmem:[%s275 + $0x70] sm:$0xff]
        %v292 = vld [vmem:[%s275 + $0x78] sm:$0xff]
        %v293 = vld [vmem:[%s275 + $0x80] sm:$0xff]
        %v294 = vld [vmem:[%s275 + $0x88] sm:$0xff]
        %v295 = vld [vmem:[%s275 + $0x90] sm:$0xff]
        %v296 = vld [vmem:[%s275 + $0x98] sm:$0xff]
        %v297 = vld [vmem:[%s275 + $0xa0] sm:$0xff]
        %v298 = vld [vmem:[%s275 + $0xa8] sm:$0x7]
        %v299 = vpack.c.bf16 %v278, %v277
        %v300 = vpack.c.bf16 %v280, %v279
        %v301 = vpack.c.bf16 %v282, %v281
        %v302 = vpack.c.bf16 %v284, %v283
        %v303 = vpack.c.bf16 %v286, %v285
        %v304 = vpack.c.bf16 %v288, %v287
        %v305 = vpack.c.bf16 %v290, %v289
        %v306 = vpack.c.bf16 %v292, %v291
        %v307 = vpack.c.bf16 %v294, %v293
        %v308 = vpack.c.bf16 %v296, %v295
        %v309 = vpack.c.bf16 %v298, %v297
        %v321 = vunpack.c.l.b16 %v299
        %v322 = vunpack.c.h.b16 %v299
        %v323 = vunpack.c.l.b16 %v300
        %v324 = vunpack.c.h.b16 %v300
        %v325 = vunpack.c.l.b16 %v301
        %v326 = vunpack.c.h.b16 %v301
        %v327 = vunpack.c.l.b16 %v302
        %v328 = vunpack.c.h.b16 %v302
        %v329 = vunpack.c.l.b16 %v303
        %v330 = vunpack.c.h.b16 %v303
        %v331 = vunpack.c.l.b16 %v304
        %v332 = vunpack.c.h.b16 %v304
        %v333 = vunpack.c.l.b16 %v305
        %v334 = vunpack.c.h.b16 %v305
        %v335 = vunpack.c.l.b16 %v306
        %v336 = vunpack.c.h.b16 %v306
        %v337 = vunpack.c.l.b16 %v307
        %v338 = vunpack.c.h.b16 %v307
        %v339 = vunpack.c.l.b16 %v308
        %v340 = vunpack.c.h.b16 %v308
        %v341 = vunpack.c.l.b16 %v309
        %v342 = vunpack.c.h.b16 %v309
        %v343 = vpack.c.b16 %v321, %v321
        %v344 = vpack.c.b16 %v322, %v322
        %v345 = vpack.c.b16 %v323, %v323
        %v346 = vpack.c.b16 %v324, %v324
        %v347 = vpack.c.b16 %v325, %v325
        %v348 = vpack.c.b16 %v326, %v326
        %v349 = vpack.c.b16 %v327, %v327
        %v350 = vpack.c.b16 %v328, %v328
        %v351 = vpack.c.b16 %v329, %v329
        %v352 = vpack.c.b16 %v330, %v330
        %v353 = vpack.c.b16 %v331, %v331
        %v354 = vpack.c.b16 %v332, %v332
        %v355 = vpack.c.b16 %v333, %v333
        %v356 = vpack.c.b16 %v334, %v334
        %v357 = vpack.c.b16 %v335, %v335
        %v358 = vpack.c.b16 %v336, %v336
        %v359 = vpack.c.b16 %v337, %v337
        %v360 = vpack.c.b16 %v338, %v338
        %v361 = vpack.c.b16 %v339, %v339
        %v362 = vpack.c.b16 %v340, %v340
        %v363 = vpack.c.b16 %v341, %v341
        %v364 = vpack.c.b16 %v342, %v342
        %vm387 = vcmask 732160
        %388 = vst.msk [vmem:[#allocation2] sm:$0xf] %vm387, %v343
        %389 = vst.msk [vmem:[#allocation2 + $0xc] sm:$0xf] %vm387, %v344
        %390 = vst.msk [vmem:[#allocation2 + $0x18] sm:$0xf] %vm387, %v345
        %391 = vst.msk [vmem:[#allocation2 + $0x24] sm:$0xf] %vm387, %v346
        %392 = vst.msk [vmem:[#allocation2 + $0x30] sm:$0xf] %vm387, %v347
        %393 = vst.msk [vmem:[#allocation2 + $0x3c] sm:$0xf] %vm387, %v348
        %394 = vst.msk [vmem:[#allocation2 + $0x48] sm:$0xf] %vm387, %v349
        %395 = vst.msk [vmem:[#allocation2 + $0x54] sm:$0xf] %vm387, %v350
        %396 = vst.msk [vmem:[#allocation2 + $0x60] sm:$0xf] %vm387, %v351
        %397 = vst.msk [vmem:[#allocation2 + $0x6c] sm:$0xf] %vm387, %v352
        %398 = vst.msk [vmem:[#allocation2 + $0x78] sm:$0xf] %vm387, %v353
        %399 = vst.msk [vmem:[#allocation2 + $0x84] sm:$0xf] %vm387, %v354
        %400 = vst.msk [vmem:[#allocation2 + $0x90] sm:$0xf] %vm387, %v355
        %401 = vst.msk [vmem:[#allocation2 + $0x9c] sm:$0xf] %vm387, %v356
        %402 = vst.msk [vmem:[#allocation2 + $0xa8] sm:$0xf] %vm387, %v357
        %403 = vst.msk [vmem:[#allocation2 + $0xb4] sm:$0xf] %vm387, %v358
        %404 = vst.msk [vmem:[#allocation2 + $0xc0] sm:$0xf] %vm387, %v359
        %405 = vst.msk [vmem:[#allocation2 + $0xcc] sm:$0xf] %vm387, %v360
        %406 = vst.msk [vmem:[#allocation2 + $0xd8] sm:$0xf] %vm387, %v361
        %407 = vst.msk [vmem:[#allocation2 + $0xe4] sm:$0xf] %vm387, %v362
        %408 = vst.msk [vmem:[#allocation2 + $0xf0] sm:$0xf] %vm387, %v363
        %vm409 = vcmask 730112
        %vm410 = vsmask.f32 1280
        %vm411 = vmand %vm409, %vm410
        %v412 = vld [vmem:[#allocation2 + $0xfc] sm:$0x3]
        %v413 = vsel %vm411, %v364, %v412
        %414 = vst [vmem:[#allocation2 + $0xfc] sm:$0x3] %v413
        %v415 = vld [vmem:[%s275 + $0x1] sm:$0xff]
        %v416 = vld [vmem:[%s275 + $0x9] sm:$0xff]
        %v417 = vld [vmem:[%s275 + $0x11] sm:$0xff]
        %v418 = vld [vmem:[%s275 + $0x19] sm:$0xff]
        %v419 = vld [vmem:[%s275 + $0x21] sm:$0xff]
        %v420 = vld [vmem:[%s275 + $0x29] sm:$0xff]
        %v421 = vld [vmem:[%s275 + $0x31] sm:$0xff]
        %v422 = vld [vmem:[%s275 + $0x39] sm:$0xff]
        %v423 = vld [vmem:[%s275 + $0x41] sm:$0xff]
        %v424 = vld [vmem:[%s275 + $0x49] sm:$0xff]
        %v425 = vld [vmem:[%s275 + $0x51] sm:$0xff]
        %v426 = vld [vmem:[%s275 + $0x59] sm:$0xff]
        %v427 = vld [vmem:[%s275 + $0x61] sm:$0xff]
        %v428 = vld [vmem:[%s275 + $0x69] sm:$0xff]
        %v429 = vld [vmem:[%s275 + $0x71] sm:$0xff]
        %v430 = vld [vmem:[%s275 + $0x79] sm:$0xff]
        %v431 = vld [vmem:[%s275 + $0x81] sm:$0xff]
        %v432 = vld [vmem:[%s275 + $0x89] sm:$0xff]
        %v433 = vld [vmem:[%s275 + $0x91] sm:$0xff]
        %v434 = vld [vmem:[%s275 + $0x99] sm:$0xff]
        %v435 = vld [vmem:[%s275 + $0xa1] sm:$0xff]
        %v436 = vld [vmem:[%s275 + $0xa9] sm:$0x7]
        %v437 = vpack.c.bf16 %v416, %v415
        %v438 = vpack.c.bf16 %v418, %v417
        %v439 = vpack.c.bf16 %v420, %v419
        %v440 = vpack.c.bf16 %v422, %v421
        %v441 = vpack.c.bf16 %v424, %v423
        %v442 = vpack.c.bf16 %v426, %v425
        %v443 = vpack.c.bf16 %v428, %v427
        %v444 = vpack.c.bf16 %v430, %v429
        %v445 = vpack.c.bf16 %v432, %v431
        %v446 = vpack.c.bf16 %v434, %v433
        %v447 = vpack.c.bf16 %v436, %v435
        %v459 = vunpack.c.l.b16 %v437
        %v460 = vunpack.c.h.b16 %v437
        %v461 = vunpack.c.l.b16 %v438
        %v462 = vunpack.c.h.b16 %v438
        %v463 = vunpack.c.l.b16 %v439
        %v464 = vunpack.c.h.b16 %v439
        %v465 = vunpack.c.l.b16 %v440
        %v466 = vunpack.c.h.b16 %v440
        %v467 = vunpack.c.l.b16 %v441
        %v468 = vunpack.c.h.b16 %v441
        %v469 = vunpack.c.l.b16 %v442
        %v470 = vunpack.c.h.b16 %v442
        %v471 = vunpack.c.l.b16 %v443
        %v472 = vunpack.c.h.b16 %v443
        %v473 = vunpack.c.l.b16 %v444
        %v474 = vunpack.c.h.b16 %v444
        %v475 = vunpack.c.l.b16 %v445
        %v476 = vunpack.c.h.b16 %v445
        %v477 = vunpack.c.l.b16 %v446
        %v478 = vunpack.c.h.b16 %v446
        %v479 = vunpack.c.l.b16 %v447
        %v480 = vunpack.c.h.b16 %v447
        %v481 = vpack.c.b16 %v459, %v459
        %v482 = vpack.c.b16 %v460, %v460
        %v483 = vpack.c.b16 %v461, %v461
        %v484 = vpack.c.b16 %v462, %v462
        %v485 = vpack.c.b16 %v463, %v463
        %v486 = vpack.c.b16 %v464, %v464
        %v487 = vpack.c.b16 %v465, %v465
        %v488 = vpack.c.b16 %v466, %v466
        %v489 = vpack.c.b16 %v467, %v467
        %v490 = vpack.c.b16 %v468, %v468
        %v491 = vpack.c.b16 %v469, %v469
        %v492 = vpack.c.b16 %v470, %v470
        %v493 = vpack.c.b16 %v471, %v471
        %v494 = vpack.c.b16 %v472, %v472
        %v495 = vpack.c.b16 %v473, %v473
        %v496 = vpack.c.b16 %v474, %v474
        %v497 = vpack.c.b16 %v475, %v475
        %v498 = vpack.c.b16 %v476, %v476
        %v499 = vpack.c.b16 %v477, %v477
        %v500 = vpack.c.b16 %v478, %v478
        %v501 = vpack.c.b16 %v479, %v479
        %v502 = vpack.c.b16 %v480, %v480
        %503 = vrot.lane.b32.xlu0 %v481, 90
        %v504 = vpop.permute.xlu0 %503
        %505 = vrot.lane.b32.xlu0 %v482, 90
        %v506 = vpop.permute.xlu0 %505
        %507 = vrot.lane.b32.xlu0 %v483, 90
        %v508 = vpop.permute.xlu0 %507
        %509 = vrot.lane.b32.xlu0 %v484, 90
        %v510 = vpop.permute.xlu0 %509
        %511 = vrot.lane.b32.xlu0 %v485, 90
        %v512 = vpop.permute.xlu0 %511
        %513 = vrot.lane.b32.xlu0 %v486, 90
        %v514 = vpop.permute.xlu0 %513
        %515 = vrot.lane.b32.xlu0 %v487, 90
        %v516 = vpop.permute.xlu0 %515
        %517 = vrot.lane.b32.xlu0 %v488, 90
        %v518 = vpop.permute.xlu0 %517
        %519 = vrot.lane.b32.xlu0 %v489, 90
        %v520 = vpop.permute.xlu0 %519
        %521 = vrot.lane.b32.xlu0 %v490, 90
        %v522 = vpop.permute.xlu0 %521
        %523 = vrot.lane.b32.xlu0 %v491, 90
        %v524 = vpop.permute.xlu0 %523
        %525 = vrot.lane.b32.xlu0 %v492, 90
        %v526 = vpop.permute.xlu0 %525
        %527 = vrot.lane.b32.xlu0 %v493, 90
        %v528 = vpop.permute.xlu0 %527
        %529 = vrot.lane.b32.xlu0 %v494, 90
        %v530 = vpop.permute.xlu0 %529
        %531 = vrot.lane.b32.xlu0 %v495, 90
        %v532 = vpop.permute.xlu0 %531
        %533 = vrot.lane.b32.xlu0 %v496, 90
        %v534 = vpop.permute.xlu0 %533
        %535 = vrot.lane.b32.xlu0 %v497, 90
        %v536 = vpop.permute.xlu0 %535
        %537 = vrot.lane.b32.xlu0 %v498, 90
        %v538 = vpop.permute.xlu0 %537
        %539 = vrot.lane.b32.xlu0 %v499, 90
        %v540 = vpop.permute.xlu0 %539
        %541 = vrot.lane.b32.xlu0 %v500, 90
        %v542 = vpop.permute.xlu0 %541
        %543 = vrot.lane.b32.xlu0 %v501, 90
        %v544 = vpop.permute.xlu0 %543
        %545 = vrot.lane.b32.xlu0 %v502, 90
        %v546 = vpop.permute.xlu0 %545
        %v547 = vrot.slane %v504, 4
        %v548 = vrot.slane %v506, 4
        %v549 = vrot.slane %v508, 4
        %v550 = vrot.slane %v510, 4
        %v551 = vrot.slane %v512, 4
        %v552 = vrot.slane %v514, 4
        %v553 = vrot.slane %v516, 4
        %v554 = vrot.slane %v518, 4
        %v555 = vrot.slane %v520, 4
        %v556 = vrot.slane %v522, 4
        %v557 = vrot.slane %v524, 4
        %v558 = vrot.slane %v526, 4
        %v559 = vrot.slane %v528, 4
        %v560 = vrot.slane %v530, 4
        %v561 = vrot.slane %v532, 4
        %v562 = vrot.slane %v534, 4
        %v563 = vrot.slane %v536, 4
        %v564 = vrot.slane %v538, 4
        %v565 = vrot.slane %v540, 4
        %v566 = vrot.slane %v542, 4
        %v567 = vrot.slane %v544, 4
        %v568 = vrot.slane %v546, 4
        %vm569 = vcmask 736256
        %v570 = vsel %vm569, %v547, %v504
        %v571 = vsel %vm569, %v548, %v506
        %v572 = vsel %vm569, %v549, %v508
        %v573 = vsel %vm569, %v550, %v510
        %v574 = vsel %vm569, %v551, %v512
        %v575 = vsel %vm569, %v552, %v514
        %v576 = vsel %vm569, %v553, %v516
        %v577 = vsel %vm569, %v554, %v518
        %v578 = vsel %vm569, %v555, %v520
        %v579 = vsel %vm569, %v556, %v522
        %v580 = vsel %vm569, %v557, %v524
        %v581 = vsel %vm569, %v558, %v526
        %v582 = vsel %vm569, %v559, %v528
        %v583 = vsel %vm569, %v560, %v530
        %v584 = vsel %vm569, %v561, %v532
        %v585 = vsel %vm569, %v562, %v534
        %v586 = vsel %vm569, %v563, %v536
        %v587 = vsel %vm569, %v564, %v538
        %v588 = vsel %vm569, %v565, %v540
        %v589 = vsel %vm569, %v566, %v542
        %v590 = vsel %vm569, %v567, %v544
        %v591 = vsel %vm569, %v568, %v546
        %vm614 = vcmask 1044176
        %vm615 = vcmask 424964
        %vm616 = vmor %vm615, %vm614
        %617 = vst.msk [vmem:[#allocation2] sm:$0xff] %vm616, %v570
        %618 = vst.msk [vmem:[#allocation2 + $0xc] sm:$0xff] %vm616, %v571
        %619 = vst.msk [vmem:[#allocation2 + $0x18] sm:$0xff] %vm616, %v572
        %620 = vst.msk [vmem:[#allocation2 + $0x24] sm:$0xff] %vm616, %v573
        %621 = vst.msk [vmem:[#allocation2 + $0x30] sm:$0xff] %vm616, %v574
        %622 = vst.msk [vmem:[#allocation2 + $0x3c] sm:$0xff] %vm616, %v575
        %623 = vst.msk [vmem:[#allocation2 + $0x48] sm:$0xff] %vm616, %v576
        %624 = vst.msk [vmem:[#allocation2 + $0x54] sm:$0xff] %vm616, %v577
        %625 = vst.msk [vmem:[#allocation2 + $0x60] sm:$0xff] %vm616, %v578
        %626 = vst.msk [vmem:[#allocation2 + $0x6c] sm:$0xff] %vm616, %v579
        %627 = vst.msk [vmem:[#allocation2 + $0x78] sm:$0xff] %vm616, %v580
        %628 = vst.msk [vmem:[#allocation2 + $0x84] sm:$0xff] %vm616, %v581
        %629 = vst.msk [vmem:[#allocation2 + $0x90] sm:$0xff] %vm616, %v582
        %630 = vst.msk [vmem:[#allocation2 + $0x9c] sm:$0xff] %vm616, %v583
        %631 = vst.msk [vmem:[#allocation2 + $0xa8] sm:$0xff] %vm616, %v584
        %632 = vst.msk [vmem:[#allocation2 + $0xb4] sm:$0xff] %vm616, %v585
        %633 = vst.msk [vmem:[#allocation2 + $0xc0] sm:$0xff] %vm616, %v586
        %634 = vst.msk [vmem:[#allocation2 + $0xcc] sm:$0xff] %vm616, %v587
        %635 = vst.msk [vmem:[#allocation2 + $0xd8] sm:$0xff] %vm616, %v588
        %636 = vst.msk [vmem:[#allocation2 + $0xe4] sm:$0xff] %vm616, %v589
        %637 = vst.msk [vmem:[#allocation2 + $0xf0] sm:$0xff] %vm616, %v590
        %vm638 = vcmask 1042128
        %vm639 = vmand %vm638, %vm410
        %vm640 = vcmask 422916
        %vm641 = vsmask.f32 5376
        %vm642 = vmand %vm640, %vm641
        %vm643 = vmor %vm642, %vm639
        %v644 = vld [vmem:[#allocation2 + $0xfc] sm:$0x33]
        %v645 = vsel %vm643, %v591, %v644
        %646 = vst [vmem:[#allocation2 + $0xfc] sm:$0x33] %v645
        %v647 = vld [vmem:[%s275 + $0x2] sm:$0xff]
        %v648 = vld [vmem:[%s275 + $0xa] sm:$0xff]
        %v649 = vld [vmem:[%s275 + $0x12] sm:$0xff]
        %v650 = vld [vmem:[%s275 + $0x1a] sm:$0xff]
        %v651 = vld [vmem:[%s275 + $0x22] sm:$0xff]
        %v652 = vld [vmem:[%s275 + $0x2a] sm:$0xff]
        %v653 = vld [vmem:[%s275 + $0x32] sm:$0xff]
        %v654 = vld [vmem:[%s275 + $0x3a] sm:$0xff]
        %v655 = vld [vmem:[%s275 + $0x42] sm:$0xff]
        %v656 = vld [vmem:[%s275 + $0x4a] sm:$0xff]
        %v657 = vld [vmem:[%s275 + $0x52] sm:$0xff]
        %v658 = vld [vmem:[%s275 + $0x5a] sm:$0xff]
        %v659 = vld [vmem:[%s275 + $0x62] sm:$0xff]
        %v660 = vld [vmem:[%s275 + $0x6a] sm:$0xff]
        %v661 = vld [vmem:[%s275 + $0x72] sm:$0xff]
        %v662 = vld [vmem:[%s275 + $0x7a] sm:$0xff]
        %v663 = vld [vmem:[%s275 + $0x82] sm:$0xff]
        %v664 = vld [vmem:[%s275 + $0x8a] sm:$0xff]
        %v665 = vld [vmem:[%s275 + $0x92] sm:$0xff]
        %v666 = vld [vmem:[%s275 + $0x9a] sm:$0xff]
        %v667 = vld [vmem:[%s275 + $0xa2] sm:$0xff]
        %v668 = vld [vmem:[%s275 + $0xaa] sm:$0x7]
        %v669 = vpack.c.bf16 %v648, %v647
        %v670 = vpack.c.bf16 %v650, %v649
        %v671 = vpack.c.bf16 %v652, %v651
        %v672 = vpack.c.bf16 %v654, %v653
        %v673 = vpack.c.bf16 %v656, %v655
        %v674 = vpack.c.bf16 %v658, %v657
        %v675 = vpack.c.bf16 %v660, %v659
        %v676 = vpack.c.bf16 %v662, %v661
        %v677 = vpack.c.bf16 %v664, %v663
        %v678 = vpack.c.bf16 %v666, %v665
        %v679 = vpack.c.bf16 %v668, %v667
        %v691 = vunpack.c.l.b16 %v669
        %v692 = vunpack.c.h.b16 %v669
        %v693 = vunpack.c.l.b16 %v670
        %v694 = vunpack.c.h.b16 %v670
        %v695 = vunpack.c.l.b16 %v671
        %v696 = vunpack.c.h.b16 %v671
        %v697 = vunpack.c.l.b16 %v672
        %v698 = vunpack.c.h.b16 %v672
        %v699 = vunpack.c.l.b16 %v673
        %v700 = vunpack.c.h.b16 %v673
        %v701 = vunpack.c.l.b16 %v674
        %v702 = vunpack.c.h.b16 %v674
        %v703 = vunpack.c.l.b16 %v675
        %v704 = vunpack.c.h.b16 %v675
        %v705 = vunpack.c.l.b16 %v676
        %v706 = vunpack.c.h.b16 %v676
        %v707 = vunpack.c.l.b16 %v677
        %v708 = vunpack.c.h.b16 %v677
        %v709 = vunpack.c.l.b16 %v678
        %v710 = vunpack.c.h.b16 %v678
        %v711 = vunpack.c.l.b16 %v679
        %v712 = vunpack.c.h.b16 %v679
        %v713 = vpack.c.b16 %v691, %v691
        %v714 = vpack.c.b16 %v692, %v692
        %v715 = vpack.c.b16 %v693, %v693
        %v716 = vpack.c.b16 %v694, %v694
        %v717 = vpack.c.b16 %v695, %v695
        %v718 = vpack.c.b16 %v696, %v696
        %v719 = vpack.c.b16 %v697, %v697
        %v720 = vpack.c.b16 %v698, %v698
        %v721 = vpack.c.b16 %v699, %v699
        %v722 = vpack.c.b16 %v700, %v700
        %v723 = vpack.c.b16 %v701, %v701
        %v724 = vpack.c.b16 %v702, %v702
        %v725 = vpack.c.b16 %v703, %v703
        %v726 = vpack.c.b16 %v704, %v704
        %v727 = vpack.c.b16 %v705, %v705
        %v728 = vpack.c.b16 %v706, %v706
        %v729 = vpack.c.b16 %v707, %v707
        %v730 = vpack.c.b16 %v708, %v708
        %v731 = vpack.c.b16 %v709, %v709
        %v732 = vpack.c.b16 %v710, %v710
        %v733 = vpack.c.b16 %v711, %v711
        %v734 = vpack.c.b16 %v712, %v712
        %735 = vrot.lane.b32.xlu0 %v713, 52
        %v736 = vpop.permute.xlu0 %735
        %737 = vrot.lane.b32.xlu0 %v714, 52
        %v738 = vpop.permute.xlu0 %737
        %739 = vrot.lane.b32.xlu0 %v715, 52
        %v740 = vpop.permute.xlu0 %739
        %741 = vrot.lane.b32.xlu0 %v716, 52
        %v742 = vpop.permute.xlu0 %741
        %743 = vrot.lane.b32.xlu0 %v717, 52
        %v744 = vpop.permute.xlu0 %743
        %745 = vrot.lane.b32.xlu0 %v718, 52
        %v746 = vpop.permute.xlu0 %745
        %747 = vrot.lane.b32.xlu0 %v719, 52
        %v748 = vpop.permute.xlu0 %747
        %749 = vrot.lane.b32.xlu0 %v720, 52
        %v750 = vpop.permute.xlu0 %749
        %751 = vrot.lane.b32.xlu0 %v721, 52
        %v752 = vpop.permute.xlu0 %751
        %753 = vrot.lane.b32.xlu0 %v722, 52
        %v754 = vpop.permute.xlu0 %753
        %755 = vrot.lane.b32.xlu0 %v723, 52
        %v756 = vpop.permute.xlu0 %755
        %757 = vrot.lane.b32.xlu0 %v724, 52
        %v758 = vpop.permute.xlu0 %757
        %759 = vrot.lane.b32.xlu0 %v725, 52
        %v760 = vpop.permute.xlu0 %759
        %761 = vrot.lane.b32.xlu0 %v726, 52
        %v762 = vpop.permute.xlu0 %761
        %763 = vrot.lane.b32.xlu0 %v727, 52
        %v764 = vpop.permute.xlu0 %763
        %765 = vrot.lane.b32.xlu0 %v728, 52
        %v766 = vpop.permute.xlu0 %765
        %767 = vrot.lane.b32.xlu0 %v729, 52
        %v768 = vpop.permute.xlu0 %767
        %769 = vrot.lane.b32.xlu0 %v730, 52
        %v770 = vpop.permute.xlu0 %769
        %771 = vrot.lane.b32.xlu0 %v731, 52
        %v772 = vpop.permute.xlu0 %771
        %773 = vrot.lane.b32.xlu0 %v732, 52
        %v774 = vpop.permute.xlu0 %773
        %775 = vrot.lane.b32.xlu0 %v733, 52
        %v776 = vpop.permute.xlu0 %775
        %777 = vrot.lane.b32.xlu0 %v734, 52
        %v778 = vpop.permute.xlu0 %777
        %v779 = vrot.slane %v736, 4
        %v780 = vrot.slane %v738, 4
        %v781 = vrot.slane %v740, 4
        %v782 = vrot.slane %v742, 4
        %v783 = vrot.slane %v744, 4
        %v784 = vrot.slane %v746, 4
        %v785 = vrot.slane %v748, 4
        %v786 = vrot.slane %v750, 4
        %v787 = vrot.slane %v752, 4
        %v788 = vrot.slane %v754, 4
        %v789 = vrot.slane %v756, 4
        %v790 = vrot.slane %v758, 4
        %v791 = vrot.slane %v760, 4
        %v792 = vrot.slane %v762, 4
        %v793 = vrot.slane %v764, 4
        %v794 = vrot.slane %v766, 4
        %v795 = vrot.slane %v768, 4
        %v796 = vrot.slane %v770, 4
        %v797 = vrot.slane %v772, 4
        %v798 = vrot.slane %v774, 4
        %v799 = vrot.slane %v776, 4
        %v800 = vrot.slane %v778, 4
        %vm801 = vcmask 424960
        %v802 = vsel %vm801, %v779, %v736
        %v803 = vsel %vm801, %v780, %v738
        %v804 = vsel %vm801, %v781, %v740
        %v805 = vsel %vm801, %v782, %v742
        %v806 = vsel %vm801, %v783, %v744
        %v807 = vsel %vm801, %v784, %v746
        %v808 = vsel %vm801, %v785, %v748
        %v809 = vsel %vm801, %v786, %v750
        %v810 = vsel %vm801, %v787, %v752
        %v811 = vsel %vm801, %v788, %v754
        %v812 = vsel %vm801, %v789, %v756
        %v813 = vsel %vm801, %v790, %v758
        %v814 = vsel %vm801, %v791, %v760
        %v815 = vsel %vm801, %v792, %v762
        %v816 = vsel %vm801, %v793, %v764
        %v817 = vsel %vm801, %v794, %v766
        %v818 = vsel %vm801, %v795, %v768
        %v819 = vsel %vm801, %v796, %v770
        %v820 = vsel %vm801, %v797, %v772
        %v821 = vsel %vm801, %v798, %v774
        %v822 = vsel %vm801, %v799, %v776
        %v823 = vsel %vm801, %v800, %v778
        %vm846 = vcmask 1043872
        %vm847 = vcmask 113668
        %vm848 = vmor %vm847, %vm846
        %849 = vst.msk [vmem:[#allocation2 + $0x4] sm:$0xff] %vm848, %v802
        %850 = vst.msk [vmem:[#allocation2 + $0x10] sm:$0xff] %vm848, %v803
        %851 = vst.msk [vmem:[#allocation2 + $0x1c] sm:$0xff] %vm848, %v804
        %852 = vst.msk [vmem:[#allocation2 + $0x28] sm:$0xff] %vm848, %v805
        %853 = vst.msk [vmem:[#allocation2 + $0x34] sm:$0xff] %vm848, %v806
        %854 = vst.msk [vmem:[#allocation2 + $0x40] sm:$0xff] %vm848, %v807
        %855 = vst.msk [vmem:[#allocation2 + $0x4c] sm:$0xff] %vm848, %v808
        %856 = vst.msk [vmem:[#allocation2 + $0x58] sm:$0xff] %vm848, %v809
        %857 = vst.msk [vmem:[#allocation2 + $0x64] sm:$0xff] %vm848, %v810
        %858 = vst.msk [vmem:[#allocation2 + $0x70] sm:$0xff] %vm848, %v811
        %859 = vst.msk [vmem:[#allocation2 + $0x7c] sm:$0xff] %vm848, %v812
        %860 = vst.msk [vmem:[#allocation2 + $0x88] sm:$0xff] %vm848, %v813
        %861 = vst.msk [vmem:[#allocation2 + $0x94] sm:$0xff] %vm848, %v814
        %862 = vst.msk [vmem:[#allocation2 + $0xa0] sm:$0xff] %vm848, %v815
        %863 = vst.msk [vmem:[#allocation2 + $0xac] sm:$0xff] %vm848, %v816
        %864 = vst.msk [vmem:[#allocation2 + $0xb8] sm:$0xff] %vm848, %v817
        %865 = vst.msk [vmem:[#allocation2 + $0xc4] sm:$0xff] %vm848, %v818
        %866 = vst.msk [vmem:[#allocation2 + $0xd0] sm:$0xff] %vm848, %v819
        %867 = vst.msk [vmem:[#allocation2 + $0xdc] sm:$0xff] %vm848, %v820
        %868 = vst.msk [vmem:[#allocation2 + $0xe8] sm:$0xff] %vm848, %v821
        %869 = vst.msk [vmem:[#allocation2 + $0xf4] sm:$0xff] %vm848, %v822
        %vm870 = vcmask 1041824
        %vm871 = vmand %vm870, %vm410
        %vm872 = vcmask 111620
        %vm873 = vmand %vm872, %vm641
        %vm874 = vmor %vm873, %vm871
        %v875 = vld [vmem:[#allocation2 + $0x100] sm:$0x33]
        %v876 = vsel %vm874, %v823, %v875
        %877 = vst [vmem:[#allocation2 + $0x100] sm:$0x33] %v876
        %v878 = vld [vmem:[%s275 + $0x3] sm:$0xff]
        %v879 = vld [vmem:[%s275 + $0xb] sm:$0xff]
        %v880 = vld [vmem:[%s275 + $0x13] sm:$0xff]
        %v881 = vld [vmem:[%s275 + $0x1b] sm:$0xff]
        %v882 = vld [vmem:[%s275 + $0x23] sm:$0xff]
        %v883 = vld [vmem:[%s275 + $0x2b] sm:$0xff]
        %v884 = vld [vmem:[%s275 + $0x33] sm:$0xff]
        %v885 = vld [vmem:[%s275 + $0x3b] sm:$0xff]
        %v886 = vld [vmem:[%s275 + $0x43] sm:$0xff]
        %v887 = vld [vmem:[%s275 + $0x4b] sm:$0xff]
        %v888 = vld [vmem:[%s275 + $0x53] sm:$0xff]
        %v889 = vld [vmem:[%s275 + $0x5b] sm:$0xff]
        %v890 = vld [vmem:[%s275 + $0x63] sm:$0xff]
        %v891 = vld [vmem:[%s275 + $0x6b] sm:$0xff]
        %v892 = vld [vmem:[%s275 + $0x73] sm:$0xff]
        %v893 = vld [vmem:[%s275 + $0x7b] sm:$0xff]
        %v894 = vld [vmem:[%s275 + $0x83] sm:$0xff]
        %v895 = vld [vmem:[%s275 + $0x8b] sm:$0xff]
        %v896 = vld [vmem:[%s275 + $0x93] sm:$0xff]
        %v897 = vld [vmem:[%s275 + $0x9b] sm:$0xff]
        %v898 = vld [vmem:[%s275 + $0xa3] sm:$0xff]
        %v899 = vld [vmem:[%s275 + $0xab] sm:$0x7]
        %v900 = vpack.c.bf16 %v879, %v878
        %v901 = vpack.c.bf16 %v881, %v880
        %v902 = vpack.c.bf16 %v883, %v882
        %v903 = vpack.c.bf16 %v885, %v884
        %v904 = vpack.c.bf16 %v887, %v886
        %v905 = vpack.c.bf16 %v889, %v888
        %v906 = vpack.c.bf16 %v891, %v890
        %v907 = vpack.c.bf16 %v893, %v892
        %v908 = vpack.c.bf16 %v895, %v894
        %v909 = vpack.c.bf16 %v897, %v896
        %v910 = vpack.c.bf16 %v899, %v898
        %v922 = vunpack.c.l.b16 %v900
        %v923 = vunpack.c.h.b16 %v900
        %v924 = vunpack.c.l.b16 %v901
        %v925 = vunpack.c.h.b16 %v901
        %v926 = vunpack.c.l.b16 %v902
        %v927 = vunpack.c.h.b16 %v902
        %v928 = vunpack.c.l.b16 %v903
        %v929 = vunpack.c.h.b16 %v903
        %v930 = vunpack.c.l.b16 %v904
        %v931 = vunpack.c.h.b16 %v904
        %v932 = vunpack.c.l.b16 %v905
        %v933 = vunpack.c.h.b16 %v905
        %v934 = vunpack.c.l.b16 %v906
        %v935 = vunpack.c.h.b16 %v906
        %v936 = vunpack.c.l.b16 %v907
        %v937 = vunpack.c.h.b16 %v907
        %v938 = vunpack.c.l.b16 %v908
        %v939 = vunpack.c.h.b16 %v908
        %v940 = vunpack.c.l.b16 %v909
        %v941 = vunpack.c.h.b16 %v909
        %v942 = vunpack.c.l.b16 %v910
        %v943 = vunpack.c.h.b16 %v910
        %v944 = vpack.c.b16 %v922, %v922
        %v945 = vpack.c.b16 %v923, %v923
        %v946 = vpack.c.b16 %v924, %v924
        %v947 = vpack.c.b16 %v925, %v925
        %v948 = vpack.c.b16 %v926, %v926
        %v949 = vpack.c.b16 %v927, %v927
        %v950 = vpack.c.b16 %v928, %v928
        %v951 = vpack.c.b16 %v929, %v929
        %v952 = vpack.c.b16 %v930, %v930
        %v953 = vpack.c.b16 %v931, %v931
        %v954 = vpack.c.b16 %v932, %v932
        %v955 = vpack.c.b16 %v933, %v933
        %v956 = vpack.c.b16 %v934, %v934
        %v957 = vpack.c.b16 %v935, %v935
        %v958 = vpack.c.b16 %v936, %v936
        %v959 = vpack.c.b16 %v937, %v937
        %v960 = vpack.c.b16 %v938, %v938
        %v961 = vpack.c.b16 %v939, %v939
        %v962 = vpack.c.b16 %v940, %v940
        %v963 = vpack.c.b16 %v941, %v941
        %v964 = vpack.c.b16 %v942, %v942
        %v965 = vpack.c.b16 %v943, %v943
        %966 = vrot.lane.b32.xlu0 %v944, 14
        %v967 = vpop.permute.xlu0 %966
        %968 = vrot.lane.b32.xlu0 %v945, 14
        %v969 = vpop.permute.xlu0 %968
        %970 = vrot.lane.b32.xlu0 %v946, 14
        %v971 = vpop.permute.xlu0 %970
        %972 = vrot.lane.b32.xlu0 %v947, 14
        %v973 = vpop.permute.xlu0 %972
        %974 = vrot.lane.b32.xlu0 %v948, 14
        %v975 = vpop.permute.xlu0 %974
        %976 = vrot.lane.b32.xlu0 %v949, 14
        %v977 = vpop.permute.xlu0 %976
        %978 = vrot.lane.b32.xlu0 %v950, 14
        %v979 = vpop.permute.xlu0 %978
        %980 = vrot.lane.b32.xlu0 %v951, 14
        %v981 = vpop.permute.xlu0 %980
        %982 = vrot.lane.b32.xlu0 %v952, 14
        %v983 = vpop.permute.xlu0 %982
        %984 = vrot.lane.b32.xlu0 %v953, 14
        %v985 = vpop.permute.xlu0 %984
        %986 = vrot.lane.b32.xlu0 %v954, 14
        %v987 = vpop.permute.xlu0 %986
        %988 = vrot.lane.b32.xlu0 %v955, 14
        %v989 = vpop.permute.xlu0 %988
        %990 = vrot.lane.b32.xlu0 %v956, 14
        %v991 = vpop.permute.xlu0 %990
        %992 = vrot.lane.b32.xlu0 %v957, 14
        %v993 = vpop.permute.xlu0 %992
        %994 = vrot.lane.b32.xlu0 %v958, 14
        %v995 = vpop.permute.xlu0 %994
        %996 = vrot.lane.b32.xlu0 %v959, 14
        %v997 = vpop.permute.xlu0 %996
        %998 = vrot.lane.b32.xlu0 %v960, 14
        %v999 = vpop.permute.xlu0 %998
        %1000 = vrot.lane.b32.xlu0 %v961, 14
        %v1001 = vpop.permute.xlu0 %1000
        %1002 = vrot.lane.b32.xlu0 %v962, 14
        %v1003 = vpop.permute.xlu0 %1002
        %1004 = vrot.lane.b32.xlu0 %v963, 14
        %v1005 = vpop.permute.xlu0 %1004
        %1006 = vrot.lane.b32.xlu0 %v964, 14
        %v1007 = vpop.permute.xlu0 %1006
        %1008 = vrot.lane.b32.xlu0 %v965, 14
        %v1009 = vpop.permute.xlu0 %1008
        %vm1032 = vcmask 846960
        %1033 = vst.msk [vmem:[#allocation2 + $0x8] sm:$0xf] %vm1032, %v967
        %1034 = vst.msk [vmem:[#allocation2 + $0x14] sm:$0xf] %vm1032, %v969
        %1035 = vst.msk [vmem:[#allocation2 + $0x20] sm:$0xf] %vm1032, %v971
        %1036 = vst.msk [vmem:[#allocation2 + $0x2c] sm:$0xf] %vm1032, %v973
        %1037 = vst.msk [vmem:[#allocation2 + $0x38] sm:$0xf] %vm1032, %v975
        %1038 = vst.msk [vmem:[#allocation2 + $0x44] sm:$0xf] %vm1032, %v977
        %1039 = vst.msk [vmem:[#allocation2 + $0x50] sm:$0xf] %vm1032, %v979
        %1040 = vst.msk [vmem:[#allocation2 + $0x5c] sm:$0xf] %vm1032, %v981
        %1041 = vst.msk [vmem:[#allocation2 + $0x68] sm:$0xf] %vm1032, %v983
        %1042 = vst.msk [vmem:[#allocation2 + $0x74] sm:$0xf] %vm1032, %v985
        %1043 = vst.msk [vmem:[#allocation2 + $0x80] sm:$0xf] %vm1032, %v987
        %1044 = vst.msk [vmem:[#allocation2 + $0x8c] sm:$0xf] %vm1032, %v989
        %1045 = vst.msk [vmem:[#allocation2 + $0x98] sm:$0xf] %vm1032, %v991
        %1046 = vst.msk [vmem:[#allocation2 + $0xa4] sm:$0xf] %vm1032, %v993
        %1047 = vst.msk [vmem:[#allocation2 + $0xb0] sm:$0xf] %vm1032, %v995
        %1048 = vst.msk [vmem:[#allocation2 + $0xbc] sm:$0xf] %vm1032, %v997
        %1049 = vst.msk [vmem:[#allocation2 + $0xc8] sm:$0xf] %vm1032, %v999
        %1050 = vst.msk [vmem:[#allocation2 + $0xd4] sm:$0xf] %vm1032, %v1001
        %1051 = vst.msk [vmem:[#allocation2 + $0xe0] sm:$0xf] %vm1032, %v1003
        %1052 = vst.msk [vmem:[#allocation2 + $0xec] sm:$0xf] %vm1032, %v1005
        %1053 = vst.msk [vmem:[#allocation2 + $0xf8] sm:$0xf] %vm1032, %v1007
        %vm1054 = vcmask 844912
        %vm1055 = vmand %vm1054, %vm410
        %v1056 = vld [vmem:[#allocation2 + $0x104] sm:$0x3]
        %v1057 = vsel %vm1055, %v1009, %v1056
        %1058 = vst [vmem:[#allocation2 + $0x104] sm:$0x3] %v1057
        %v1059 = vld [vmem:[#allocation2] sm:$0xff]
        %v1060 = vld [vmem:[#allocation2 + $0x8] sm:$0xf]
        %v1061 = vld [vmem:[#allocation2 + $0xc] sm:$0xff]
        %v1062 = vld [vmem:[#allocation2 + $0x14] sm:$0xf]
        %v1063 = vld [vmem:[#allocation2 + $0x18] sm:$0xff]
        %v1064 = vld [vmem:[#allocation2 + $0x20] sm:$0xf]
        %v1065 = vld [vmem:[#allocation2 + $0x24] sm:$0xff]
        %v1066 = vld [vmem:[#allocation2 + $0x2c] sm:$0xf]
        %v1067 = vld [vmem:[#allocation2 + $0x30] sm:$0xff]
        %v1068 = vld [vmem:[#allocation2 + $0x38] sm:$0xf]
        %v1069 = vld [vmem:[#allocation2 + $0x3c] sm:$0xff]
        %v1070 = vld [vmem:[#allocation2 + $0x44] sm:$0xf]
        %v1071 = vld [vmem:[#allocation2 + $0x48] sm:$0xff]
        %v1072 = vld [vmem:[#allocation2 + $0x50] sm:$0xf]
        %v1073 = vld [vmem:[#allocation2 + $0x54] sm:$0xff]
        %v1074 = vld [vmem:[#allocation2 + $0x5c] sm:$0xf]
        %v1075 = vld [vmem:[#allocation2 + $0x60] sm:$0xff]
        %v1076 = vld [vmem:[#allocation2 + $0x68] sm:$0xf]
        %v1077 = vld [vmem:[#allocation2 + $0x6c] sm:$0xff]
        %v1078 = vld [vmem:[#allocation2 + $0x74] sm:$0xf]
        %v1079 = vld [vmem:[#allocation2 + $0x78] sm:$0xff]
        %v1080 = vld [vmem:[#allocation2 + $0x80] sm:$0xf]
        %v1081 = vld [vmem:[#allocation2 + $0x84] sm:$0xff]
        %v1082 = vld [vmem:[#allocation2 + $0x8c] sm:$0xf]
        %v1083 = vld [vmem:[#allocation2 + $0x90] sm:$0xff]
        %v1084 = vld [vmem:[#allocation2 + $0x98] sm:$0xf]
        %v1085 = vld [vmem:[#allocation2 + $0x9c] sm:$0xff]
        %v1086 = vld [vmem:[#allocation2 + $0xa4] sm:$0xf]
        %v1087 = vld [vmem:[#allocation2 + $0xa8] sm:$0xff]
        %v1088 = vld [vmem:[#allocation2 + $0xb0] sm:$0xf]
        %v1089 = vld [vmem:[#allocation2 + $0xb4] sm:$0xff]
        %v1090 = vld [vmem:[#allocation2 + $0xbc] sm:$0xf]
        %v1091 = vld [vmem:[#allocation2 + $0xc0] sm:$0xff]
        %v1092 = vld [vmem:[#allocation2 + $0xc8] sm:$0xf]
        %v1093 = vld [vmem:[#allocation2 + $0xcc] sm:$0xff]
        %v1094 = vld [vmem:[#allocation2 + $0xd4] sm:$0xf]
        %v1095 = vld [vmem:[#allocation2 + $0xd8] sm:$0xff]
        %v1096 = vld [vmem:[#allocation2 + $0xe0] sm:$0xf]
        %v1097 = vld [vmem:[#allocation2 + $0xe4] sm:$0xff]
        %v1098 = vld [vmem:[#allocation2 + $0xec] sm:$0xf]
        %v1099 = vld [vmem:[#allocation2 + $0xf0] sm:$0xff]
        %v1100 = vld [vmem:[#allocation2 + $0xf8] sm:$0xf]
        %v1101 = vld [vmem:[#allocation2 + $0xfc] sm:$0x33]
        %v1102 = vld [vmem:[#allocation2 + $0x104] sm:$0x3]
        %v1103 = vld [vmem:[%s1] sm:$0xf]
        %v1104 = vld [vmem:[%s1 + $0x4] sm:$0xf]
        %v1105 = vld [vmem:[%s1 + $0x8] sm:$0xf]
        %v1106 = vld [vmem:[%s1 + $0xc] sm:$0xf]
        %v1107 = vld [vmem:[%s1 + $0x10] sm:$0xf]
        %v1108 = vld [vmem:[%s1 + $0x14] sm:$0xf]
        %v1109 = vld [vmem:[%s1 + $0x18] sm:$0xf]
        %v1110 = vld [vmem:[%s1 + $0x1c] sm:$0xf]
        %v1111 = vld [vmem:[%s1 + $0x20] sm:$0xf]
        %v1112 = vld [vmem:[%s1 + $0x24] sm:$0xf]
        %v1113 = vld [vmem:[%s1 + $0x28] sm:$0xf]
        %v1114 = vld [vmem:[%s1 + $0x2c] sm:$0xf]
        %v1115 = vld [vmem:[%s1 + $0x30] sm:$0xf]
        %v1116 = vld [vmem:[%s1 + $0x34] sm:$0xf]
        %v1117 = vld [vmem:[%s1 + $0x38] sm:$0xf]
        %v1118 = vld [vmem:[%s1 + $0x3c] sm:$0xf]
        %v1119 = vld [vmem:[%s1 + $0x40] sm:$0xf]
        %v1120 = vld [vmem:[%s1 + $0x44] sm:$0xf]
        %v1121 = vld [vmem:[%s1 + $0x48] sm:$0xf]
        %v1122 = vld [vmem:[%s1 + $0x4c] sm:$0xf]
        %v1123 = vld [vmem:[%s1 + $0x50] sm:$0xf]
        %v1124 = vld [vmem:[%s1 + $0x54] sm:$0xf]
        %v1125 = vld [vmem:[%s1 + $0x58] sm:$0xf]
        %v1126 = vld [vmem:[%s1 + $0x5c] sm:$0xf]
        %v1127 = vld [vmem:[%s1 + $0x60] sm:$0xf]
        %v1128 = vld [vmem:[%s1 + $0x64] sm:$0xf]
        %v1129 = vld [vmem:[%s1 + $0x68] sm:$0xf]
        %v1130 = vld [vmem:[%s1 + $0x6c] sm:$0xf]
        %v1131 = vld [vmem:[%s1 + $0x70] sm:$0xf]
        %v1132 = vld [vmem:[%s1 + $0x74] sm:$0xf]
        %v1133 = vld [vmem:[%s1 + $0x78] sm:$0xf]
        %v1134 = vld [vmem:[%s1 + $0x7c] sm:$0xf]
        %v1135 = vld [vmem:[%s1 + $0x80] sm:$0xf]
        %v1136 = vld [vmem:[%s1 + $0x84] sm:$0xf]
        %v1137 = vld [vmem:[%s1 + $0x88] sm:$0xf]
        %v1138 = vld [vmem:[%s1 + $0x8c] sm:$0xf]
        %v1139 = vld [vmem:[%s1 + $0x90] sm:$0xf]
        %v1140 = vld [vmem:[%s1 + $0x94] sm:$0xf]
        %v1141 = vld [vmem:[%s1 + $0x98] sm:$0xf]
        %v1142 = vld [vmem:[%s1 + $0x9c] sm:$0xf]
        %v1143 = vld [vmem:[%s1 + $0xa0] sm:$0xf]
        %v1144 = vld [vmem:[%s1 + $0xa4] sm:$0xf]
        %v1145 = vld [vmem:[%s1 + $0xa8] sm:$0xf]
        %v1146 = vld [vmem:[%s1 + $0xac] sm:$0xf]
        %v1147 = vld [vmem:[%s1 + $0xb0] sm:$0xf]
        %v1192 = vunpack.c.l.b16 %v1059
        %v1193 = vunpack.c.h.b16 %v1059
        %v1194 = vunpack.c.l.b16 %v1060
        %v1195 = vunpack.c.l.b16 %v1061
        %v1196 = vunpack.c.h.b16 %v1061
        %v1197 = vunpack.c.l.b16 %v1062
        %v1198 = vunpack.c.l.b16 %v1063
        %v1199 = vunpack.c.h.b16 %v1063
        %v1200 = vunpack.c.l.b16 %v1064
        %v1201 = vunpack.c.l.b16 %v1065
        %v1202 = vunpack.c.h.b16 %v1065
        %v1203 = vunpack.c.l.b16 %v1066
        %v1204 = vunpack.c.l.b16 %v1067
        %v1205 = vunpack.c.h.b16 %v1067
        %v1206 = vunpack.c.l.b16 %v1068
        %v1207 = vunpack.c.l.b16 %v1069
        %v1208 = vunpack.c.h.b16 %v1069
        %v1209 = vunpack.c.l.b16 %v1070
        %v1210 = vunpack.c.l.b16 %v1071
        %v1211 = vunpack.c.h.b16 %v1071
        %v1212 = vunpack.c.l.b16 %v1072
        %v1213 = vunpack.c.l.b16 %v1073
        %v1214 = vunpack.c.h.b16 %v1073
        %v1215 = vunpack.c.l.b16 %v1074
        %v1216 = vunpack.c.l.b16 %v1075
        %v1217 = vunpack.c.h.b16 %v1075
        %v1218 = vunpack.c.l.b16 %v1076
        %v1219 = vunpack.c.l.b16 %v1077
        %v1220 = vunpack.c.h.b16 %v1077
        %v1221 = vunpack.c.l.b16 %v1078
        %v1222 = vunpack.c.l.b16 %v1079
        %v1223 = vunpack.c.h.b16 %v1079
        %v1224 = vunpack.c.l.b16 %v1080
        %v1225 = vunpack.c.l.b16 %v1081
        %v1226 = vunpack.c.h.b16 %v1081
        %v1227 = vunpack.c.l.b16 %v1082
        %v1228 = vunpack.c.l.b16 %v1083
        %v1229 = vunpack.c.h.b16 %v1083
        %v1230 = vunpack.c.l.b16 %v1084
        %v1231 = vunpack.c.l.b16 %v1085
        %v1232 = vunpack.c.h.b16 %v1085
        %v1233 = vunpack.c.l.b16 %v1086
        %v1234 = vunpack.c.l.b16 %v1087
        %v1235 = vunpack.c.h.b16 %v1087
        %v1236 = vunpack.c.l.b16 %v1088
        %v1237 = vunpack.c.l.b16 %v1089
        %v1238 = vunpack.c.h.b16 %v1089
        %v1239 = vunpack.c.l.b16 %v1090
        %v1240 = vunpack.c.l.b16 %v1091
        %v1241 = vunpack.c.h.b16 %v1091
        %v1242 = vunpack.c.l.b16 %v1092
        %v1243 = vunpack.c.l.b16 %v1093
        %v1244 = vunpack.c.h.b16 %v1093
        %v1245 = vunpack.c.l.b16 %v1094
        %v1246 = vunpack.c.l.b16 %v1095
        %v1247 = vunpack.c.h.b16 %v1095
        %v1248 = vunpack.c.l.b16 %v1096
        %v1249 = vunpack.c.l.b16 %v1097
        %v1250 = vunpack.c.h.b16 %v1097
        %v1251 = vunpack.c.l.b16 %v1098
        %v1252 = vunpack.c.l.b16 %v1099
        %v1253 = vunpack.c.h.b16 %v1099
        %v1254 = vunpack.c.l.b16 %v1100
        %v1255 = vunpack.c.l.b16 %v1101
        %v1256 = vunpack.c.h.b16 %v1101
        %v1257 = vunpack.c.l.b16 %v1102
        %v1258 = vpack.c.b16 %v1195, %v1192
        %v1259 = vpack.c.b16 %v1196, %v1193
        %v1260 = vpack.c.b16 %v1197, %v1194
        %v1261 = vpack.c.b16 %v1201, %v1198
        %v1262 = vpack.c.b16 %v1202, %v1199
        %v1263 = vpack.c.b16 %v1203, %v1200
        %v1264 = vpack.c.b16 %v1207, %v1204
        %v1265 = vpack.c.b16 %v1208, %v1205
        %v1266 = vpack.c.b16 %v1209, %v1206
        %v1267 = vpack.c.b16 %v1213, %v1210
        %v1268 = vpack.c.b16 %v1214, %v1211
        %v1269 = vpack.c.b16 %v1215, %v1212
        %v1270 = vpack.c.b16 %v1219, %v1216
        %v1271 = vpack.c.b16 %v1220, %v1217
        %v1272 = vpack.c.b16 %v1221, %v1218
        %v1273 = vpack.c.b16 %v1225, %v1222
        %v1274 = vpack.c.b16 %v1226, %v1223
        %v1275 = vpack.c.b16 %v1227, %v1224
        %v1276 = vpack.c.b16 %v1231, %v1228
        %v1277 = vpack.c.b16 %v1232, %v1229
        %v1278 = vpack.c.b16 %v1233, %v1230
        %v1279 = vpack.c.b16 %v1237, %v1234
        %v1280 = vpack.c.b16 %v1238, %v1235
        %v1281 = vpack.c.b16 %v1239, %v1236
        %v1282 = vpack.c.b16 %v1243, %v1240
        %v1283 = vpack.c.b16 %v1244, %v1241
        %v1284 = vpack.c.b16 %v1245, %v1242
        %v1285 = vpack.c.b16 %v1249, %v1246
        %v1286 = vpack.c.b16 %v1250, %v1247
        %v1287 = vpack.c.b16 %v1251, %v1248
        %v1288 = vpack.c.b16 %v1255, %v1252
        %v1289 = vpack.c.b16 %v1256, %v1253
        %v1290 = vpack.c.b16 %v1257, %v1254
        %v1358 = vunpack.c.l.b16 %v1103
        %v1359 = vunpack.c.l.b16 %v1104
        %v1360 = vunpack.c.l.b16 %v1105
        %v1361 = vunpack.c.l.b16 %v1106
        %v1362 = vunpack.c.l.b16 %v1107
        %v1363 = vunpack.c.l.b16 %v1108
        %v1364 = vunpack.c.l.b16 %v1109
        %v1365 = vunpack.c.l.b16 %v1110
        %v1366 = vunpack.c.l.b16 %v1111
        %v1367 = vunpack.c.l.b16 %v1112
        %v1368 = vunpack.c.l.b16 %v1113
        %v1369 = vunpack.c.l.b16 %v1114
        %v1370 = vunpack.c.l.b16 %v1115
        %v1371 = vunpack.c.l.b16 %v1116
        %v1372 = vunpack.c.l.b16 %v1117
        %v1373 = vunpack.c.l.b16 %v1118
        %v1374 = vunpack.c.l.b16 %v1119
        %v1375 = vunpack.c.l.b16 %v1120
        %v1376 = vunpack.c.l.b16 %v1121
        %v1377 = vunpack.c.l.b16 %v1122
        %v1378 = vunpack.c.l.b16 %v1123
        %v1379 = vunpack.c.l.b16 %v1124
        %v1380 = vunpack.c.l.b16 %v1125
        %v1381 = vunpack.c.l.b16 %v1126
        %v1382 = vunpack.c.l.b16 %v1127
        %v1383 = vunpack.c.l.b16 %v1128
        %v1384 = vunpack.c.l.b16 %v1129
        %v1385 = vunpack.c.l.b16 %v1130
        %v1386 = vunpack.c.l.b16 %v1131
        %v1387 = vunpack.c.l.b16 %v1132
        %v1388 = vunpack.c.l.b16 %v1133
        %v1389 = vunpack.c.l.b16 %v1134
        %v1390 = vunpack.c.l.b16 %v1135
        %v1391 = vunpack.c.l.b16 %v1136
        %v1392 = vunpack.c.l.b16 %v1137
        %v1393 = vunpack.c.l.b16 %v1138
        %v1394 = vunpack.c.l.b16 %v1139
        %v1395 = vunpack.c.l.b16 %v1140
        %v1396 = vunpack.c.l.b16 %v1141
        %v1397 = vunpack.c.l.b16 %v1142
        %v1398 = vunpack.c.l.b16 %v1143
        %v1399 = vunpack.c.l.b16 %v1144
        %v1400 = vunpack.c.l.b16 %v1145
        %v1401 = vunpack.c.l.b16 %v1146
        %v1402 = vunpack.c.l.b16 %v1147
        %v1403 = vpack.c.b16 %v1359, %v1358
        %v1404 = vpack.c.b16 %v1361, %v1360
        %v1405 = vpack.c.b16 %v1363, %v1362
        %v1406 = vpack.c.b16 %v1365, %v1364
        %v1407 = vpack.c.b16 %v1367, %v1366
        %v1408 = vpack.c.b16 %v1369, %v1368
        %v1409 = vpack.c.b16 %v1371, %v1370
        %v1410 = vpack.c.b16 %v1373, %v1372
        %v1411 = vpack.c.b16 %v1375, %v1374
        %v1412 = vpack.c.b16 %v1377, %v1376
        %v1413 = vpack.c.b16 %v1379, %v1378
        %v1414 = vpack.c.b16 %v1381, %v1380
        %v1415 = vpack.c.b16 %v1383, %v1382
        %v1416 = vpack.c.b16 %v1385, %v1384
        %v1417 = vpack.c.b16 %v1387, %v1386
        %v1418 = vpack.c.b16 %v1389, %v1388
        %v1419 = vpack.c.b16 %v1391, %v1390
        %v1420 = vpack.c.b16 %v1393, %v1392
        %v1421 = vpack.c.b16 %v1395, %v1394
        %v1422 = vpack.c.b16 %v1397, %v1396
        %v1423 = vpack.c.b16 %v1399, %v1398
        %v1424 = vpack.c.b16 %v1401, %v1400
        %v1425 = vpack.c.b16 %v1402, %v1402
        %vm1448 = vcmask 850944
        %v1450 = vsel %vm1448, %v1260, 0
        %v1453 = vsel %vm1448, %v1263, 0
        %v1456 = vsel %vm1448, %v1266, 0
        %v1459 = vsel %vm1448, %v1269, 0
        %v1462 = vsel %vm1448, %v1272, 0
        %v1465 = vsel %vm1448, %v1275, 0
        %v1468 = vsel %vm1448, %v1278, 0
        %v1471 = vsel %vm1448, %v1281, 0
        %v1474 = vsel %vm1448, %v1284, 0
        %v1477 = vsel %vm1448, %v1287, 0
        %v1480 = vsel %vm1448, %v1290, 0
        %vm1482 = vcmask 1043456
        %v1484 = vsel %vm1482, %v1425, 0
        %1486 = vmatprep.subr.bf16.mxu0 0
        %1487 = vmatpush1.bf16.msra.mxu0 %v1403
        %1488 = vmatprep.subr.bf16.mxu0 0
        %1489 = vmatpush1.bf16.msra.mxu0 %v1404
        %1490 = vmatprep.subr.bf16.mxu0 0
        %1491 = vmatpush1.bf16.msra.mxu0 %v1405
        %1492 = vmatprep.subr.bf16.mxu0 0
        %1493 = vmatpush1.bf16.msra.mxu0 %v1406
        %1494 = vmatprep.subr.bf16.mxu0 0
        %1495 = vmatpush1.bf16.msra.mxu0 %v1407
        %1496 = vmatprep.subr.bf16.mxu0 0
        %1497 = vmatpush1.bf16.msra.mxu0 %v1408
        %1498 = vmatprep.subr.bf16.mxu0 0
        %1499 = vmatpush1.bf16.msra.mxu0 %v1409
        %1500 = vmatprep.subr.bf16.mxu0 0
        %1501 = vmatpush1.bf16.msra.mxu0 %v1410
        %1502 = vmatprep.subr.bf16.mxu0 0
        %1503 = vmatpush1.bf16.msra.mxu0 %v1411
        %1504 = vmatprep.subr.bf16.mxu0 0
        %1505 = vmatpush1.bf16.msra.mxu0 %v1412
        %1506 = vmatprep.subr.bf16.mxu0 0
        %1507 = vmatpush1.bf16.msra.mxu0 %v1413
        %1508 = vmatprep.subr.bf16.mxu0 0
        %1509 = vmatpush1.bf16.msra.mxu0 %v1414
        %1510 = vmatprep.subr.bf16.mxu0 0
        %1511 = vmatpush1.bf16.msra.mxu0 %v1415
        %1512 = vmatprep.subr.bf16.mxu0 0
        %1513 = vmatpush1.bf16.msra.mxu0 %v1416
        %1514 = vmatprep.subr.bf16.mxu0 0
        %1515 = vmatpush1.bf16.msra.mxu0 %v1417
        %1516 = vmatprep.subr.bf16.mxu0 0
        %1517 = vmatpush1.bf16.msra.mxu0 %v1418
        %1518 = vmatprep.mubr.bf16.mxu0 %v1259
        %1519 = vmatmul.mubr.bf16.gmra.mrb[0].mxu0 %v1258
        %v1520 = vpop.f32.mrb[0].mxu0
        %v1521 = vadd.f32 0.0, %v1520
        %v1522 = vpop.f32.mrb[0].mxu0
        %v1523 = vpop.f32.mrb[0].mxu0
        %v1524 = vadd.f32 0.0, %v1523
        %v1525 = vpop.f32.mrb[0].mxu0
        %1526 = vmatprep.mubr.bf16.mxu0 %v1262
        %1527 = vmatmul.mubr.bf16.gmra.mrb[0].mxu0 %v1261
        %v1528 = vpop.f32.mrb[0].mxu0
        %v1529 = vadd.f32 0.0, %v1528
        %v1530 = vpop.f32.mrb[0].mxu0
        %v1531 = vpop.f32.mrb[0].mxu0
        %v1532 = vadd.f32 0.0, %v1531
        %v1533 = vpop.f32.mrb[0].mxu0
        %1534 = vmatprep.mubr.bf16.mxu0 %v1265
        %1535 = vmatmul.mubr.bf16.gmra.mrb[0].mxu0 %v1264
        %v1536 = vpop.f32.mrb[0].mxu0
        %v1537 = vadd.f32 0.0, %v1536
        %v1538 = vpop.f32.mrb[0].mxu0
        %v1539 = vpop.f32.mrb[0].mxu0
        %v1540 = vadd.f32 0.0, %v1539
        %v1541 = vpop.f32.mrb[0].mxu0
        %1542 = vmatprep.mubr.bf16.mxu0 %v1268
        %1543 = vmatmul.mubr.bf16.gmra.mrb[0].mxu0 %v1267
        %v1544 = vpop.f32.mrb[0].mxu0
        %v1545 = vadd.f32 0.0, %v1544
        %v1546 = vpop.f32.mrb[0].mxu0
        %v1547 = vpop.f32.mrb[0].mxu0
        %v1548 = vadd.f32 0.0, %v1547
        %v1549 = vpop.f32.mrb[0].mxu0
        %1550 = vmatprep.mubr.bf16.mxu0 %v1271
        %1551 = vmatmul.mubr.bf16.gmra.mrb[0].mxu0 %v1270
        %v1552 = vpop.f32.mrb[0].mxu0
        %v1553 = vadd.f32 0.0, %v1552
        %v1554 = vpop.f32.mrb[0].mxu0
        %v1555 = vpop.f32.mrb[0].mxu0
        %v1556 = vadd.f32 0.0, %v1555
        %v1557 = vpop.f32.mrb[0].mxu0
        %1558 = vmatprep.mubr.bf16.mxu0 %v1274
        %1559 = vmatmul.mubr.bf16.gmra.mrb[0].mxu0 %v1273
        %v1560 = vpop.f32.mrb[0].mxu0
        %v1561 = vadd.f32 0.0, %v1560
        %v1562 = vpop.f32.mrb[0].mxu0
        %v1563 = vpop.f32.mrb[0].mxu0
        %v1564 = vadd.f32 0.0, %v1563
        %v1565 = vpop.f32.mrb[0].mxu0
        %1566 = vmatprep.mubr.bf16.mxu0 %v1277
        %1567 = vmatmul.mubr.bf16.gmra.mrb[0].mxu0 %v1276
        %v1568 = vpop.f32.mrb[0].mxu0
        %v1569 = vadd.f32 0.0, %v1568
        %v1570 = vpop.f32.mrb[0].mxu0
        %v1571 = vpop.f32.mrb[0].mxu0
        %v1572 = vadd.f32 0.0, %v1571
        %v1573 = vpop.f32.mrb[0].mxu0
        %1574 = vmatprep.mubr.bf16.mxu0 %v1280
        %1575 = vmatmul.mubr.bf16.gmra.mrb[0].mxu0 %v1279
        %v1576 = vpop.f32.mrb[0].mxu0
        %v1577 = vadd.f32 0.0, %v1576
        %v1578 = vpop.f32.mrb[0].mxu0
        %v1579 = vpop.f32.mrb[0].mxu0
        %v1580 = vadd.f32 0.0, %v1579
        %v1581 = vpop.f32.mrb[0].mxu0
        %1582 = vmatprep.mubr.bf16.mxu0 %v1283
        %1583 = vmatmul.mubr.bf16.gmra.mrb[0].mxu0 %v1282
        %v1584 = vpop.f32.mrb[0].mxu0
        %v1585 = vadd.f32 0.0, %v1584
        %v1586 = vpop.f32.mrb[0].mxu0
        %v1587 = vpop.f32.mrb[0].mxu0
        %v1588 = vadd.f32 0.0, %v1587
        %v1589 = vpop.f32.mrb[0].mxu0
        %1590 = vmatprep.mubr.bf16.mxu0 %v1286
        %1591 = vmatmul.mubr.bf16.gmra.mrb[0].mxu0 %v1285
        %v1592 = vpop.f32.mrb[0].mxu0
        %v1593 = vadd.f32 0.0, %v1592
        %v1594 = vpop.f32.mrb[0].mxu0
        %v1595 = vpop.f32.mrb[0].mxu0
        %v1596 = vadd.f32 0.0, %v1595
        %v1597 = vpop.f32.mrb[0].mxu0
        %1598 = vmatprep.mubr.bf16.mxu0 %v1289
        %1599 = vmatmul.mubr.bf16.gmra.mrb[0].mxu0 %v1288
        %v1600 = vpop.f32.mrb[0].mxu0
        %v1601 = vadd.f32 0.0, %v1600
        %v1602 = vpop.f32.mrb[0].mxu0
        %v1603 = vpop.f32.mrb[0].mxu0
        %v1604 = vadd.f32 0.0, %v1603
        %v1605 = vpop.f32.mrb[0].mxu0
        %1606 = vdwg.mxu0
        %1607 = vmatprep.subr.bf16.mxu0 0
        %1608 = vmatpush1.bf16.msra.mxu0 %v1419
        %1609 = vmatprep.subr.bf16.mxu0 0
        %1610 = vmatpush1.bf16.msra.mxu0 %v1420
        %1611 = vmatprep.subr.bf16.mxu0 0
        %1612 = vmatpush1.bf16.msra.mxu0 %v1421
        %1613 = vmatprep.subr.bf16.mxu0 0
        %1614 = vmatpush1.bf16.msra.mxu0 %v1422
        %1615 = vmatprep.subr.bf16.mxu0 0
        %1616 = vmatpush1.bf16.msra.mxu0 %v1423
        %1617 = vmatprep.subr.bf16.mxu0 0
        %1618 = vmatpush1.bf16.msra.mxu0 %v1424
        %1619 = vmatprep.subr.bf16.mxu0 0
        %1620 = vmatpush1.bf16.msra.mxu0 %v1484
        %1621 = vmatprep.subr.bf16.mxu0 0
        %1622 = vmatpush1.bf16.msra.mxu0 0
        %1623 = vmatprep.subr.bf16.mxu0 0
        %1624 = vmatpush1.bf16.msra.mxu0 0
        %1625 = vmatprep.subr.bf16.mxu0 0
        %1626 = vmatpush1.bf16.msra.mxu0 0
        %1627 = vmatprep.subr.bf16.mxu0 0
        %1628 = vmatpush1.bf16.msra.mxu0 0
        %1629 = vmatprep.subr.bf16.mxu0 0
        %1630 = vmatpush1.bf16.msra.mxu0 0
        %1631 = vmatprep.subr.bf16.mxu0 0
        %1632 = vmatpush1.bf16.msra.mxu0 0
        %1633 = vmatprep.subr.bf16.mxu0 0
        %1634 = vmatpush1.bf16.msra.mxu0 0
        %1635 = vmatprep.subr.bf16.mxu0 0
        %1636 = vmatpush1.bf16.msra.mxu0 0
        %1637 = vmatprep.subr.bf16.mxu0 0
        %1638 = vmatpush1.bf16.msra.mxu0 0
        %1639 = vmatprep.mubr.bf16.mxu0 0
        %1640 = vmatmul.mubr.bf16.gmra.mrb[0].mxu0 %v1450
        %v1641 = vpop.f32.mrb[0].mxu0
        %v1642 = vadd.f32 %v1521, %v1641
        %v1643 = vpop.f32.mrb[0].mxu0
        %v1644 = vpop.f32.mrb[0].mxu0
        %v1645 = vadd.f32 %v1524, %v1644
        %v1646 = vpop.f32.mrb[0].mxu0
        %1647 = vmatprep.mubr.bf16.mxu0 0
        %1648 = vmatmul.mubr.bf16.gmra.mrb[0].mxu0 %v1453
        %v1649 = vpop.f32.mrb[0].mxu0
        %v1650 = vadd.f32 %v1529, %v1649
        %v1651 = vpop.f32.mrb[0].mxu0
        %v1652 = vpop.f32.mrb[0].mxu0
        %v1653 = vadd.f32 %v1532, %v1652
        %v1654 = vpop.f32.mrb[0].mxu0
        %1655 = vmatprep.mubr.bf16.mxu0 0
        %1656 = vmatmul.mubr.bf16.gmra.mrb[0].mxu0 %v1456
        %v1657 = vpop.f32.mrb[0].mxu0
        %v1658 = vadd.f32 %v1537, %v1657
        %v1659 = vpop.f32.mrb[0].mxu0
        %v1660 = vpop.f32.mrb[0].mxu0
        %v1661 = vadd.f32 %v1540, %v1660
        %v1662 = vpop.f32.mrb[0].mxu0
        %1663 = vmatprep.mubr.bf16.mxu0 0
        %1664 = vmatmul.mubr.bf16.gmra.mrb[0].mxu0 %v1459
        %v1665 = vpop.f32.mrb[0].mxu0
        %v1666 = vadd.f32 %v1545, %v1665
        %v1667 = vpop.f32.mrb[0].mxu0
        %v1668 = vpop.f32.mrb[0].mxu0
        %v1669 = vadd.f32 %v1548, %v1668
        %v1670 = vpop.f32.mrb[0].mxu0
        %1671 = vmatprep.mubr.bf16.mxu0 0
        %1672 = vmatmul.mubr.bf16.gmra.mrb[0].mxu0 %v1462
        %v1673 = vpop.f32.mrb[0].mxu0
        %v1674 = vadd.f32 %v1553, %v1673
        %v1675 = vpop.f32.mrb[0].mxu0
        %v1676 = vpop.f32.mrb[0].mxu0
        %v1677 = vadd.f32 %v1556, %v1676
        %v1678 = vpop.f32.mrb[0].mxu0
        %1679 = vmatprep.mubr.bf16.mxu0 0
        %1680 = vmatmul.mubr.bf16.gmra.mrb[0].mxu0 %v1465
        %v1681 = vpop.f32.mrb[0].mxu0
        %v1682 = vadd.f32 %v1561, %v1681
        %v1683 = vpop.f32.mrb[0].mxu0
        %v1684 = vpop.f32.mrb[0].mxu0
        %v1685 = vadd.f32 %v1564, %v1684
        %v1686 = vpop.f32.mrb[0].mxu0
        %1687 = vmatprep.mubr.bf16.mxu0 0
        %1688 = vmatmul.mubr.bf16.gmra.mrb[0].mxu0 %v1468
        %v1689 = vpop.f32.mrb[0].mxu0
        %v1690 = vadd.f32 %v1569, %v1689
        %v1691 = vpop.f32.mrb[0].mxu0
        %v1692 = vpop.f32.mrb[0].mxu0
        %v1693 = vadd.f32 %v1572, %v1692
        %v1694 = vpop.f32.mrb[0].mxu0
        %1695 = vmatprep.mubr.bf16.mxu0 0
        %1696 = vmatmul.mubr.bf16.gmra.mrb[0].mxu0 %v1471
        %v1697 = vpop.f32.mrb[0].mxu0
        %v1698 = vadd.f32 %v1577, %v1697
        %v1699 = vpop.f32.mrb[0].mxu0
        %v1700 = vpop.f32.mrb[0].mxu0
        %v1701 = vadd.f32 %v1580, %v1700
        %v1702 = vpop.f32.mrb[0].mxu0
        %1703 = vmatprep.mubr.bf16.mxu0 0
        %1704 = vmatmul.mubr.bf16.gmra.mrb[0].mxu0 %v1474
        %v1705 = vpop.f32.mrb[0].mxu0
        %v1706 = vadd.f32 %v1585, %v1705
        %v1707 = vpop.f32.mrb[0].mxu0
        %v1708 = vpop.f32.mrb[0].mxu0
        %v1709 = vadd.f32 %v1588, %v1708
        %v1710 = vpop.f32.mrb[0].mxu0
        %1711 = vmatprep.mubr.bf16.mxu0 0
        %1712 = vmatmul.mubr.bf16.gmra.mrb[0].mxu0 %v1477
        %v1713 = vpop.f32.mrb[0].mxu0
        %v1714 = vadd.f32 %v1593, %v1713
        %v1715 = vpop.f32.mrb[0].mxu0
        %v1716 = vpop.f32.mrb[0].mxu0
        %v1717 = vadd.f32 %v1596, %v1716
        %v1718 = vpop.f32.mrb[0].mxu0
        %1719 = vmatprep.mubr.bf16.mxu0 0
        %1720 = vmatmul.mubr.bf16.gmra.mrb[0].mxu0 %v1480
        %v1721 = vpop.f32.mrb[0].mxu0
        %v1722 = vadd.f32 %v1601, %v1721
        %v1723 = vpop.f32.mrb[0].mxu0
        %v1724 = vpop.f32.mrb[0].mxu0
        %v1725 = vadd.f32 %v1604, %v1724
        %v1726 = vpop.f32.mrb[0].mxu0
        %1727 = vdwg.mxu0
        %v1728 = vld [vmem:[%s6] ss:$0 sm:$0xff]
        %v1729 = vmul.f32 %v1642, %v1728
        %v1730 = vmul.f32 %v1645, %v1728
        %v1731 = vmul.f32 %v1650, %v1728
        %v1732 = vmul.f32 %v1653, %v1728
        %v1733 = vmul.f32 %v1658, %v1728
        %v1734 = vmul.f32 %v1661, %v1728
        %v1735 = vmul.f32 %v1666, %v1728
        %v1736 = vmul.f32 %v1669, %v1728
        %v1737 = vmul.f32 %v1674, %v1728
        %v1738 = vmul.f32 %v1677, %v1728
        %v1739 = vmul.f32 %v1682, %v1728
        %v1740 = vmul.f32 %v1685, %v1728
        %v1741 = vmul.f32 %v1690, %v1728
        %v1742 = vmul.f32 %v1693, %v1728
        %v1743 = vmul.f32 %v1698, %v1728
        %v1744 = vmul.f32 %v1701, %v1728
        %v1745 = vmul.f32 %v1706, %v1728
        %v1746 = vmul.f32 %v1709, %v1728
        %v1747 = vmul.f32 %v1714, %v1728
        %v1748 = vmul.f32 %v1717, %v1728
        %v1749 = vmul.f32 %v1722, %v1728
        %v1750 = vmul.f32 %v1725, %v1728
        %v1751 = vld [vmem:[%s6 + $0x1] ss:$0 sm:$0xff]
        %v1752 = vadd.f32 %v1729, %v1751
        %v1753 = vadd.f32 %v1730, %v1751
        %v1754 = vadd.f32 %v1731, %v1751
        %v1755 = vadd.f32 %v1732, %v1751
        %v1756 = vadd.f32 %v1733, %v1751
        %v1757 = vadd.f32 %v1734, %v1751
        %v1758 = vadd.f32 %v1735, %v1751
        %v1759 = vadd.f32 %v1736, %v1751
        %v1760 = vadd.f32 %v1737, %v1751
        %v1761 = vadd.f32 %v1738, %v1751
        %v1762 = vadd.f32 %v1739, %v1751
        %v1763 = vadd.f32 %v1740, %v1751
        %v1764 = vadd.f32 %v1741, %v1751
        %v1765 = vadd.f32 %v1742, %v1751
        %v1766 = vadd.f32 %v1743, %v1751
        %v1767 = vadd.f32 %v1744, %v1751
        %v1768 = vadd.f32 %v1745, %v1751
        %v1769 = vadd.f32 %v1746, %v1751
        %v1770 = vadd.f32 %v1747, %v1751
        %v1771 = vadd.f32 %v1748, %v1751
        %v1772 = vadd.f32 %v1749, %v1751
        %v1773 = vadd.f32 %v1750, %v1751
        %vm1774 = vcmp.gt.f32.partialorder %v1752, 0.0
        %vm1775 = vcmp.gt.f32.partialorder %v1753, 0.0
        %vm1776 = vcmp.gt.f32.partialorder %v1754, 0.0
        %vm1777 = vcmp.gt.f32.partialorder %v1755, 0.0
        %vm1778 = vcmp.gt.f32.partialorder %v1756, 0.0
        %vm1779 = vcmp.gt.f32.partialorder %v1757, 0.0
        %vm1780 = vcmp.gt.f32.partialorder %v1758, 0.0
        %vm1781 = vcmp.gt.f32.partialorder %v1759, 0.0
        %vm1782 = vcmp.gt.f32.partialorder %v1760, 0.0
        %vm1783 = vcmp.gt.f32.partialorder %v1761, 0.0
        %vm1784 = vcmp.gt.f32.partialorder %v1762, 0.0
        %vm1785 = vcmp.gt.f32.partialorder %v1763, 0.0
        %vm1786 = vcmp.gt.f32.partialorder %v1764, 0.0
        %vm1787 = vcmp.gt.f32.partialorder %v1765, 0.0
        %vm1788 = vcmp.gt.f32.partialorder %v1766, 0.0
        %vm1789 = vcmp.gt.f32.partialorder %v1767, 0.0
        %vm1790 = vcmp.gt.f32.partialorder %v1768, 0.0
        %vm1791 = vcmp.gt.f32.partialorder %v1769, 0.0
        %vm1792 = vcmp.gt.f32.partialorder %v1770, 0.0
        %vm1793 = vcmp.gt.f32.partialorder %v1771, 0.0
        %vm1794 = vcmp.gt.f32.partialorder %v1772, 0.0
        %vm1795 = vcmp.gt.f32.partialorder %v1773, 0.0
        %v1796 = vmin.f32 %v1752, 0.0
        %v1797 = vmin.f32 %v1753, 0.0
        %v1798 = vmin.f32 %v1754, 0.0
        %v1799 = vmin.f32 %v1755, 0.0
        %v1800 = vmin.f32 %v1756, 0.0
        %v1801 = vmin.f32 %v1757, 0.0
        %v1802 = vmin.f32 %v1758, 0.0
        %v1803 = vmin.f32 %v1759, 0.0
        %v1804 = vmin.f32 %v1760, 0.0
        %v1805 = vmin.f32 %v1761, 0.0
        %v1806 = vmin.f32 %v1762, 0.0
        %v1807 = vmin.f32 %v1763, 0.0
        %v1808 = vmin.f32 %v1764, 0.0
        %v1809 = vmin.f32 %v1765, 0.0
        %v1810 = vmin.f32 %v1766, 0.0
        %v1811 = vmin.f32 %v1767, 0.0
        %v1812 = vmin.f32 %v1768, 0.0
        %v1813 = vmin.f32 %v1769, 0.0
        %v1814 = vmin.f32 %v1770, 0.0
        %v1815 = vmin.f32 %v1771, 0.0
        %v1816 = vmin.f32 %v1772, 0.0
        %v1817 = vmin.f32 %v1773, 0.0
        %v1818 = vmul.f32 %v1796, 1.442695
        %v1819 = vpow.pop %v1818
        %v1820 = vmul.f32 %v1797, 1.442695
        %v1821 = vpow.pop %v1820
        %v1822 = vmul.f32 %v1798, 1.442695
        %v1823 = vpow.pop %v1822
        %v1824 = vmul.f32 %v1799, 1.442695
        %v1825 = vpow.pop %v1824
        %v1826 = vmul.f32 %v1800, 1.442695
        %v1827 = vpow.pop %v1826
        %v1828 = vmul.f32 %v1801, 1.442695
        %v1829 = vpow.pop %v1828
        %v1830 = vmul.f32 %v1802, 1.442695
        %v1831 = vpow.pop %v1830
        %v1832 = vmul.f32 %v1803, 1.442695
        %v1833 = vpow.pop %v1832
        %v1834 = vmul.f32 %v1804, 1.442695
        %v1835 = vpow.pop %v1834
        %v1836 = vmul.f32 %v1805, 1.442695
        %v1837 = vpow.pop %v1836
        %v1838 = vmul.f32 %v1806, 1.442695
        %v1839 = vpow.pop %v1838
        %v1840 = vmul.f32 %v1807, 1.442695
        %v1841 = vpow.pop %v1840
        %v1842 = vmul.f32 %v1808, 1.442695
        %v1843 = vpow.pop %v1842
        %v1844 = vmul.f32 %v1809, 1.442695
        %v1845 = vpow.pop %v1844
        %v1846 = vmul.f32 %v1810, 1.442695
        %v1847 = vpow.pop %v1846
        %v1848 = vmul.f32 %v1811, 1.442695
        %v1849 = vpow.pop %v1848
        %v1850 = vmul.f32 %v1812, 1.442695
        %v1851 = vpow.pop %v1850
        %v1852 = vmul.f32 %v1813, 1.442695
        %v1853 = vpow.pop %v1852
        %v1854 = vmul.f32 %v1814, 1.442695
        %v1855 = vpow.pop %v1854
        %v1856 = vmul.f32 %v1815, 1.442695
        %v1857 = vpow.pop %v1856
        %v1858 = vmul.f32 %v1816, 1.442695
        %v1859 = vpow.pop %v1858
        %v1860 = vmul.f32 %v1817, 1.442695
        %v1861 = vpow.pop %v1860
        %v1862 = vsub.f32 %v1819, 1.0
        %v1863 = vsub.f32 %v1821, 1.0
        %v1864 = vsub.f32 %v1823, 1.0
        %v1865 = vsub.f32 %v1825, 1.0
        %v1866 = vsub.f32 %v1827, 1.0
        %v1867 = vsub.f32 %v1829, 1.0
        %v1868 = vsub.f32 %v1831, 1.0
        %v1869 = vsub.f32 %v1833, 1.0
        %v1870 = vsub.f32 %v1835, 1.0
        %v1871 = vsub.f32 %v1837, 1.0
        %v1872 = vsub.f32 %v1839, 1.0
        %v1873 = vsub.f32 %v1841, 1.0
        %v1874 = vsub.f32 %v1843, 1.0
        %v1875 = vsub.f32 %v1845, 1.0
        %v1876 = vsub.f32 %v1847, 1.0
        %v1877 = vsub.f32 %v1849, 1.0
        %v1878 = vsub.f32 %v1851, 1.0
        %v1879 = vsub.f32 %v1853, 1.0
        %v1880 = vsub.f32 %v1855, 1.0
        %v1881 = vsub.f32 %v1857, 1.0
        %v1882 = vsub.f32 %v1859, 1.0
        %v1883 = vsub.f32 %v1861, 1.0
        %v1884 = vsel %vm1774, %v1752, %v1862
        %v1885 = vsel %vm1775, %v1753, %v1863
        %v1886 = vsel %vm1776, %v1754, %v1864
        %v1887 = vsel %vm1777, %v1755, %v1865
        %v1888 = vsel %vm1778, %v1756, %v1866
        %v1889 = vsel %vm1779, %v1757, %v1867
        %v1890 = vsel %vm1780, %v1758, %v1868
        %v1891 = vsel %vm1781, %v1759, %v1869
        %v1892 = vsel %vm1782, %v1760, %v1870
        %v1893 = vsel %vm1783, %v1761, %v1871
        %v1894 = vsel %vm1784, %v1762, %v1872
        %v1895 = vsel %vm1785, %v1763, %v1873
        %v1896 = vsel %vm1786, %v1764, %v1874
        %v1897 = vsel %vm1787, %v1765, %v1875
        %v1898 = vsel %vm1788, %v1766, %v1876
        %v1899 = vsel %vm1789, %v1767, %v1877
        %v1900 = vsel %vm1790, %v1768, %v1878
        %v1901 = vsel %vm1791, %v1769, %v1879
        %v1902 = vsel %vm1792, %v1770, %v1880
        %v1903 = vsel %vm1793, %v1771, %v1881
        %v1904 = vsel %vm1794, %v1772, %v1882
        %v1905 = vsel %vm1795, %v1773, %v1883
        %1928 = vrot.lane.b32.xlu0 %v1884, 103
        %v1929 = vpop.permute.xlu0 %1928
        %1930 = vrot.lane.b32.xlu0 %v1885, 103
        %v1931 = vpop.permute.xlu0 %1930
        %1932 = vrot.lane.b32.xlu0 %v1886, 103
        %v1933 = vpop.permute.xlu0 %1932
        %1934 = vrot.lane.b32.xlu0 %v1887, 103
        %v1935 = vpop.permute.xlu0 %1934
        %1936 = vrot.lane.b32.xlu0 %v1888, 103
        %v1937 = vpop.permute.xlu0 %1936
        %1938 = vrot.lane.b32.xlu0 %v1889, 103
        %v1939 = vpop.permute.xlu0 %1938
        %1940 = vrot.lane.b32.xlu0 %v1890, 103
        %v1941 = vpop.permute.xlu0 %1940
        %1942 = vrot.lane.b32.xlu0 %v1891, 103
        %v1943 = vpop.permute.xlu0 %1942
        %1944 = vrot.lane.b32.xlu0 %v1892, 103
        %v1945 = vpop.permute.xlu0 %1944
        %1946 = vrot.lane.b32.xlu0 %v1893, 103
        %v1947 = vpop.permute.xlu0 %1946
        %1948 = vrot.lane.b32.xlu0 %v1894, 103
        %v1949 = vpop.permute.xlu0 %1948
        %1950 = vrot.lane.b32.xlu0 %v1895, 103
        %v1951 = vpop.permute.xlu0 %1950
        %1952 = vrot.lane.b32.xlu0 %v1896, 103
        %v1953 = vpop.permute.xlu0 %1952
        %1954 = vrot.lane.b32.xlu0 %v1897, 103
        %v1955 = vpop.permute.xlu0 %1954
        %1956 = vrot.lane.b32.xlu0 %v1898, 103
        %v1957 = vpop.permute.xlu0 %1956
        %1958 = vrot.lane.b32.xlu0 %v1899, 103
        %v1959 = vpop.permute.xlu0 %1958
        %1960 = vrot.lane.b32.xlu0 %v1900, 103
        %v1961 = vpop.permute.xlu0 %1960
        %1962 = vrot.lane.b32.xlu0 %v1901, 103
        %v1963 = vpop.permute.xlu0 %1962
        %1964 = vrot.lane.b32.xlu0 %v1902, 103
        %v1965 = vpop.permute.xlu0 %1964
        %1966 = vrot.lane.b32.xlu0 %v1903, 103
        %v1967 = vpop.permute.xlu0 %1966
        %1968 = vrot.lane.b32.xlu0 %v1904, 103
        %v1969 = vpop.permute.xlu0 %1968
        %1970 = vrot.lane.b32.xlu0 %v1905, 103
        %v1971 = vpop.permute.xlu0 %1970
        %v1994 = vmax.f32 %v1884, %v1929
        %v1995 = vmax.f32 %v1885, %v1931
        %v1996 = vmax.f32 %v1886, %v1933
        %v1997 = vmax.f32 %v1887, %v1935
        %v1998 = vmax.f32 %v1888, %v1937
        %v1999 = vmax.f32 %v1889, %v1939
        %v2000 = vmax.f32 %v1890, %v1941
        %v2001 = vmax.f32 %v1891, %v1943
        %v2002 = vmax.f32 %v1892, %v1945
        %v2003 = vmax.f32 %v1893, %v1947
        %v2004 = vmax.f32 %v1894, %v1949
        %v2005 = vmax.f32 %v1895, %v1951
        %v2006 = vmax.f32 %v1896, %v1953
        %v2007 = vmax.f32 %v1897, %v1955
        %v2008 = vmax.f32 %v1898, %v1957
        %v2009 = vmax.f32 %v1899, %v1959
        %v2010 = vmax.f32 %v1900, %v1961
        %v2011 = vmax.f32 %v1901, %v1963
        %v2012 = vmax.f32 %v1902, %v1965
        %v2013 = vmax.f32 %v1903, %v1967
        %v2014 = vmax.f32 %v1904, %v1969
        %v2015 = vmax.f32 %v1905, %v1971
        %2016 = vrot.lane.b32.xlu0 %v1884, 78
        %v2017 = vpop.permute.xlu0 %2016
        %2018 = vrot.lane.b32.xlu0 %v1885, 78
        %v2019 = vpop.permute.xlu0 %2018
        %2020 = vrot.lane.b32.xlu0 %v1886, 78
        %v2021 = vpop.permute.xlu0 %2020
        %2022 = vrot.lane.b32.xlu0 %v1887, 78
        %v2023 = vpop.permute.xlu0 %2022
        %2024 = vrot.lane.b32.xlu0 %v1888, 78
        %v2025 = vpop.permute.xlu0 %2024
        %2026 = vrot.lane.b32.xlu0 %v1889, 78
        %v2027 = vpop.permute.xlu0 %2026
        %2028 = vrot.lane.b32.xlu0 %v1890, 78
        %v2029 = vpop.permute.xlu0 %2028
        %2030 = vrot.lane.b32.xlu0 %v1891, 78
        %v2031 = vpop.permute.xlu0 %2030
        %2032 = vrot.lane.b32.xlu0 %v1892, 78
        %v2033 = vpop.permute.xlu0 %2032
        %2034 = vrot.lane.b32.xlu0 %v1893, 78
        %v2035 = vpop.permute.xlu0 %2034
        %2036 = vrot.lane.b32.xlu0 %v1894, 78
        %v2037 = vpop.permute.xlu0 %2036
        %2038 = vrot.lane.b32.xlu0 %v1895, 78
        %v2039 = vpop.permute.xlu0 %2038
        %2040 = vrot.lane.b32.xlu0 %v1896, 78
        %v2041 = vpop.permute.xlu0 %2040
        %2042 = vrot.lane.b32.xlu0 %v1897, 78
        %v2043 = vpop.permute.xlu0 %2042
        %2044 = vrot.lane.b32.xlu0 %v1898, 78
        %v2045 = vpop.permute.xlu0 %2044
        %2046 = vrot.lane.b32.xlu0 %v1899, 78
        %v2047 = vpop.permute.xlu0 %2046
        %2048 = vrot.lane.b32.xlu0 %v1900, 78
        %v2049 = vpop.permute.xlu0 %2048
        %2050 = vrot.lane.b32.xlu0 %v1901, 78
        %v2051 = vpop.permute.xlu0 %2050
        %2052 = vrot.lane.b32.xlu0 %v1902, 78
        %v2053 = vpop.permute.xlu0 %2052
        %2054 = vrot.lane.b32.xlu0 %v1903, 78
        %v2055 = vpop.permute.xlu0 %2054
        %2056 = vrot.lane.b32.xlu0 %v1904, 78
        %v2057 = vpop.permute.xlu0 %2056
        %2058 = vrot.lane.b32.xlu0 %v1905, 78
        %v2059 = vpop.permute.xlu0 %2058
        %v2082 = vmax.f32 %v1994, %v2017
        %v2083 = vmax.f32 %v1995, %v2019
        %v2084 = vmax.f32 %v1996, %v2021
        %v2085 = vmax.f32 %v1997, %v2023
        %v2086 = vmax.f32 %v1998, %v2025
        %v2087 = vmax.f32 %v1999, %v2027
        %v2088 = vmax.f32 %v2000, %v2029
        %v2089 = vmax.f32 %v2001, %v2031
        %v2090 = vmax.f32 %v2002, %v2033
        %v2091 = vmax.f32 %v2003, %v2035
        %v2092 = vmax.f32 %v2004, %v2037
        %v2093 = vmax.f32 %v2005, %v2039
        %v2094 = vmax.f32 %v2006, %v2041
        %v2095 = vmax.f32 %v2007, %v2043
        %v2096 = vmax.f32 %v2008, %v2045
        %v2097 = vmax.f32 %v2009, %v2047
        %v2098 = vmax.f32 %v2010, %v2049
        %v2099 = vmax.f32 %v2011, %v2051
        %v2100 = vmax.f32 %v2012, %v2053
        %v2101 = vmax.f32 %v2013, %v2055
        %v2102 = vmax.f32 %v2014, %v2057
        %v2103 = vmax.f32 %v2015, %v2059
        %vm2104 = vcmask 203776
        %2105 = vst.msk [vmem:[#allocation3] sm:$0xff] %vm2104, %v2082
        %2106 = vst.msk [vmem:[#allocation3 + $0x8] sm:$0xff] %vm2104, %v2083
        %2107 = vst.msk [vmem:[#allocation3 + $0x10] sm:$0xff] %vm2104, %v2084
        %2108 = vst.msk [vmem:[#allocation3 + $0x18] sm:$0xff] %vm2104, %v2085
        %2109 = vst.msk [vmem:[#allocation3 + $0x20] sm:$0xff] %vm2104, %v2086
        %2110 = vst.msk [vmem:[#allocation3 + $0x28] sm:$0xff] %vm2104, %v2087
        %2111 = vst.msk [vmem:[#allocation3 + $0x30] sm:$0xff] %vm2104, %v2088
        %2112 = vst.msk [vmem:[#allocation3 + $0x38] sm:$0xff] %vm2104, %v2089
        %2113 = vst.msk [vmem:[#allocation3 + $0x40] sm:$0xff] %vm2104, %v2090
        %2114 = vst.msk [vmem:[#allocation3 + $0x48] sm:$0xff] %vm2104, %v2091
        %2115 = vst.msk [vmem:[#allocation3 + $0x50] sm:$0xff] %vm2104, %v2092
        %2116 = vst.msk [vmem:[#allocation3 + $0x58] sm:$0xff] %vm2104, %v2093
        %2117 = vst.msk [vmem:[#allocation3 + $0x60] sm:$0xff] %vm2104, %v2094
        %2118 = vst.msk [vmem:[#allocation3 + $0x68] sm:$0xff] %vm2104, %v2095
        %2119 = vst.msk [vmem:[#allocation3 + $0x70] sm:$0xff] %vm2104, %v2096
        %2120 = vst.msk [vmem:[#allocation3 + $0x78] sm:$0xff] %vm2104, %v2097
        %2121 = vst.msk [vmem:[#allocation3 + $0x80] sm:$0xff] %vm2104, %v2098
        %2122 = vst.msk [vmem:[#allocation3 + $0x88] sm:$0xff] %vm2104, %v2099
        %2123 = vst.msk [vmem:[#allocation3 + $0x90] sm:$0xff] %vm2104, %v2100
        %2124 = vst.msk [vmem:[#allocation3 + $0x98] sm:$0xff] %vm2104, %v2101
        %2125 = vst.msk [vmem:[#allocation3 + $0xa0] sm:$0xff] %vm2104, %v2102
        %vm2126 = vcmask 198656
        %2127 = vst.msk [vmem:[#allocation3 + $0xa8] sm:$0x7] %vm2126, %v2103
        %v2128 = vld [vmem:[#allocation3] ss:$3 sm:$0xff]
        %s2129 = scalar_lea.vmem [#allocation3], 24
        %v2130 = vld [vmem:[%s2129] ss:$3 sm:$0xff]
        %s2131 = scalar_lea.vmem [#allocation3], 48
        %v2132 = vld [vmem:[%s2131] ss:$3 sm:$0xff]
        %s2133 = scalar_lea.vmem [#allocation3], 72
        %v2134 = vld [vmem:[%s2133] ss:$3 sm:$0xff]
        %s2135 = scalar_lea.vmem [#allocation3], 96
        %v2136 = vld [vmem:[%s2135] ss:$3 sm:$0xff]
        %s2137 = scalar_lea.vmem [#allocation3], 120
        %v2138 = vld [vmem:[%s2137] ss:$3 sm:$0xff]
        %s2139 = scalar_lea.vmem [#allocation3], 144
        %v2140 = vld [vmem:[%s2139] ss:$3 sm:$0x3f]
        %v2141 = vpack.c.bf16 %v2130, %v2128
        %v2142 = vpack.c.bf16 %v2134, %v2132
        %v2143 = vpack.c.bf16 %v2138, %v2136
        %v2144 = vpack.c.bf16 %v2140, %v2140
        %v2149 = vunpack.c.l.b16 %v2141
        %v2150 = vunpack.c.h.b16 %v2141
        %v2151 = vunpack.c.l.b16 %v2142
        %v2152 = vunpack.c.h.b16 %v2142
        %v2153 = vunpack.c.l.b16 %v2143
        %v2154 = vunpack.c.h.b16 %v2143
        %v2155 = vunpack.c.l.b16 %v2144
        %v2156 = vpack.c.b16 %v2149, %v2149
        %v2157 = vpack.c.b16 %v2150, %v2150
        %v2158 = vpack.c.b16 %v2151, %v2151
        %v2159 = vpack.c.b16 %v2152, %v2152
        %v2160 = vpack.c.b16 %v2153, %v2153
        %v2161 = vpack.c.b16 %v2154, %v2154
        %v2162 = vpack.c.b16 %v2155, %v2155
        %vm2170 = vcmask 199680
        %2171 = vst.msk [vmem:[#allocation4] sm:$0xf] %vm2170, %v2156
        %2172 = vst.msk [vmem:[#allocation4 + $0xc] sm:$0xf] %vm2170, %v2157
        %2173 = vst.msk [vmem:[#allocation4 + $0x18] sm:$0xf] %vm2170, %v2158
        %2174 = vst.msk [vmem:[#allocation4 + $0x24] sm:$0xf] %vm2170, %v2159
        %2175 = vst.msk [vmem:[#allocation4 + $0x30] sm:$0xf] %vm2170, %v2160
        %2176 = vst.msk [vmem:[#allocation4 + $0x3c] sm:$0xf] %vm2170, %v2161
        %2177 = vst.msk [vmem:[#allocation4 + $0x48] sm:$0x7] %vm2126, %v2162
        %s2178 = scalar_lea.vmem [#allocation3], 1
        %v2179 = vld [vmem:[%s2178] ss:$3 sm:$0xff]
        %s2180 = scalar_lea.vmem [#allocation3], 25
        %v2181 = vld [vmem:[%s2180] ss:$3 sm:$0xff]
        %s2182 = scalar_lea.vmem [#allocation3], 49
        %v2183 = vld [vmem:[%s2182] ss:$3 sm:$0xff]
        %s2184 = scalar_lea.vmem [#allocation3], 73
        %v2185 = vld [vmem:[%s2184] ss:$3 sm:$0xff]
        %s2186 = scalar_lea.vmem [#allocation3], 97
        %v2187 = vld [vmem:[%s2186] ss:$3 sm:$0xff]
        %s2188 = scalar_lea.vmem [#allocation3], 121
        %v2189 = vld [vmem:[%s2188] ss:$3 sm:$0xff]
        %s2190 = scalar_lea.vmem [#allocation3], 145
        %v2191 = vld [vmem:[%s2190] ss:$3 sm:$0x3f]
        %v2192 = vpack.c.bf16 %v2181, %v2179
        %v2193 = vpack.c.bf16 %v2185, %v2183
        %v2194 = vpack.c.bf16 %v2189, %v2187
        %v2195 = vpack.c.bf16 %v2191, %v2191
        %v2200 = vunpack.c.l.b16 %v2192
        %v2201 = vunpack.c.h.b16 %v2192
        %v2202 = vunpack.c.l.b16 %v2193
        %v2203 = vunpack.c.h.b16 %v2193
        %v2204 = vunpack.c.l.b16 %v2194
        %v2205 = vunpack.c.h.b16 %v2194
        %v2206 = vunpack.c.l.b16 %v2195
        %v2207 = vpack.c.b16 %v2200, %v2200
        %v2208 = vpack.c.b16 %v2201, %v2201
        %v2209 = vpack.c.b16 %v2202, %v2202
        %v2210 = vpack.c.b16 %v2203, %v2203
        %v2211 = vpack.c.b16 %v2204, %v2204
        %v2212 = vpack.c.b16 %v2205, %v2205
        %v2213 = vpack.c.b16 %v2206, %v2206
        %2214 = vrot.lane.b32.xlu0 %v2207, 25
        %v2215 = vpop.permute.xlu0 %2214
        %2216 = vrot.lane.b32.xlu0 %v2208, 25
        %v2217 = vpop.permute.xlu0 %2216
        %2218 = vrot.lane.b32.xlu0 %v2209, 25
        %v2219 = vpop.permute.xlu0 %2218
        %2220 = vrot.lane.b32.xlu0 %v2210, 25
        %v2221 = vpop.permute.xlu0 %2220
        %2222 = vrot.lane.b32.xlu0 %v2211, 25
        %v2223 = vpop.permute.xlu0 %2222
        %2224 = vrot.lane.b32.xlu0 %v2212, 25
        %v2225 = vpop.permute.xlu0 %2224
        %2226 = vrot.lane.b32.xlu0 %v2213, 25
        %v2227 = vpop.permute.xlu0 %2226
        %vm2235 = vcmask 404680
        %2236 = vst.msk [vmem:[#allocation4] sm:$0xf] %vm2235, %v2215
        %2237 = vst.msk [vmem:[#allocation4 + $0xc] sm:$0xf] %vm2235, %v2217
        %2238 = vst.msk [vmem:[#allocation4 + $0x18] sm:$0xf] %vm2235, %v2219
        %2239 = vst.msk [vmem:[#allocation4 + $0x24] sm:$0xf] %vm2235, %v2221
        %2240 = vst.msk [vmem:[#allocation4 + $0x30] sm:$0xf] %vm2235, %v2223
        %2241 = vst.msk [vmem:[#allocation4 + $0x3c] sm:$0xf] %vm2235, %v2225
        %vm2242 = vcmask 403656
        %2243 = vst.msk [vmem:[#allocation4 + $0x48] sm:$0x7] %vm2242, %v2227
        %s2244 = scalar_lea.vmem [#allocation3], 2
        %v2245 = vld [vmem:[%s2244] ss:$3 sm:$0xff]
        %s2246 = scalar_lea.vmem [#allocation3], 26
        %v2247 = vld [vmem:[%s2246] ss:$3 sm:$0xff]
        %s2248 = scalar_lea.vmem [#allocation3], 50
        %v2249 = vld [vmem:[%s2248] ss:$3 sm:$0xff]
        %s2250 = scalar_lea.vmem [#allocation3], 74
        %v2251 = vld [vmem:[%s2250] ss:$3 sm:$0xff]
        %s2252 = scalar_lea.vmem [#allocation3], 98
        %v2253 = vld [vmem:[%s2252] ss:$3 sm:$0xff]
        %s2254 = scalar_lea.vmem [#allocation3], 122
        %v2255 = vld [vmem:[%s2254] ss:$3 sm:$0xff]
        %s2256 = scalar_lea.vmem [#allocation3], 146
        %v2257 = vld [vmem:[%s2256] ss:$3 sm:$0x3f]
        %v2258 = vpack.c.bf16 %v2247, %v2245
        %v2259 = vpack.c.bf16 %v2251, %v2249
        %v2260 = vpack.c.bf16 %v2255, %v2253
        %v2261 = vpack.c.bf16 %v2257, %v2257
        %v2266 = vunpack.c.l.b16 %v2258
        %v2267 = vunpack.c.h.b16 %v2258
        %v2268 = vunpack.c.l.b16 %v2259
        %v2269 = vunpack.c.h.b16 %v2259
        %v2270 = vunpack.c.l.b16 %v2260
        %v2271 = vunpack.c.h.b16 %v2260
        %v2272 = vunpack.c.l.b16 %v2261
        %v2273 = vpack.c.b16 %v2266, %v2266
        %v2274 = vpack.c.b16 %v2267, %v2267
        %v2275 = vpack.c.b16 %v2268, %v2268
        %v2276 = vpack.c.b16 %v2269, %v2269
        %v2277 = vpack.c.b16 %v2270, %v2270
        %v2278 = vpack.c.b16 %v2271, %v2271
        %v2279 = vpack.c.b16 %v2272, %v2272
        %2280 = vrot.lane.b32.xlu0 %v2273, 50
        %v2281 = vpop.permute.xlu0 %2280
        %2282 = vrot.lane.b32.xlu0 %v2274, 50
        %v2283 = vpop.permute.xlu0 %2282
        %2284 = vrot.lane.b32.xlu0 %v2275, 50
        %v2285 = vpop.permute.xlu0 %2284
        %2286 = vrot.lane.b32.xlu0 %v2276, 50
        %v2287 = vpop.permute.xlu0 %2286
        %2288 = vrot.lane.b32.xlu0 %v2277, 50
        %v2289 = vpop.permute.xlu0 %2288
        %2290 = vrot.lane.b32.xlu0 %v2278, 50
        %v2291 = vpop.permute.xlu0 %2290
        %2292 = vrot.lane.b32.xlu0 %v2279, 50
        %v2293 = vpop.permute.xlu0 %2292
        %vm2301 = vcmask 609680
        %2302 = vst.msk [vmem:[#allocation4] sm:$0xf] %vm2301, %v2281
        %2303 = vst.msk [vmem:[#allocation4 + $0xc] sm:$0xf] %vm2301, %v2283
        %2304 = vst.msk [vmem:[#allocation4 + $0x18] sm:$0xf] %vm2301, %v2285
        %2305 = vst.msk [vmem:[#allocation4 + $0x24] sm:$0xf] %vm2301, %v2287
        %2306 = vst.msk [vmem:[#allocation4 + $0x30] sm:$0xf] %vm2301, %v2289
        %2307 = vst.msk [vmem:[#allocation4 + $0x3c] sm:$0xf] %vm2301, %v2291
        %vm2308 = vcmask 608656
        %2309 = vst.msk [vmem:[#allocation4 + $0x48] sm:$0x7] %vm2308, %v2293
        %s2310 = scalar_lea.vmem [#allocation3], 3
        %v2311 = vld [vmem:[%s2310] ss:$3 sm:$0xff]
        %s2312 = scalar_lea.vmem [#allocation3], 27
        %v2313 = vld [vmem:[%s2312] ss:$3 sm:$0xff]
        %s2314 = scalar_lea.vmem [#allocation3], 51
        %v2315 = vld [vmem:[%s2314] ss:$3 sm:$0xff]
        %s2316 = scalar_lea.vmem [#allocation3], 75
        %v2317 = vld [vmem:[%s2316] ss:$3 sm:$0xff]
        %s2318 = scalar_lea.vmem [#allocation3], 99
        %v2319 = vld [vmem:[%s2318] ss:$3 sm:$0xff]
        %s2320 = scalar_lea.vmem [#allocation3], 123
        %v2321 = vld [vmem:[%s2320] ss:$3 sm:$0xff]
        %s2322 = scalar_lea.vmem [#allocation3], 147
        %v2323 = vld [vmem:[%s2322] ss:$3 sm:$0x3f]
        %v2324 = vpack.c.bf16 %v2313, %v2311
        %v2325 = vpack.c.bf16 %v2317, %v2315
        %v2326 = vpack.c.bf16 %v2321, %v2319
        %v2327 = vpack.c.bf16 %v2323, %v2323
        %v2332 = vunpack.c.l.b16 %v2324
        %v2333 = vunpack.c.h.b16 %v2324
        %v2334 = vunpack.c.l.b16 %v2325
        %v2335 = vunpack.c.h.b16 %v2325
        %v2336 = vunpack.c.l.b16 %v2326
        %v2337 = vunpack.c.h.b16 %v2326
        %v2338 = vunpack.c.l.b16 %v2327
        %v2339 = vpack.c.b16 %v2332, %v2332
        %v2340 = vpack.c.b16 %v2333, %v2333
        %v2341 = vpack.c.b16 %v2334, %v2334
        %v2342 = vpack.c.b16 %v2335, %v2335
        %v2343 = vpack.c.b16 %v2336, %v2336
        %v2344 = vpack.c.b16 %v2337, %v2337
        %v2345 = vpack.c.b16 %v2338, %v2338
        %2346 = vrot.lane.b32.xlu0 %v2339, 75
        %v2347 = vpop.permute.xlu0 %2346
        %2348 = vrot.lane.b32.xlu0 %v2340, 75
        %v2349 = vpop.permute.xlu0 %2348
        %2350 = vrot.lane.b32.xlu0 %v2341, 75
        %v2351 = vpop.permute.xlu0 %2350
        %2352 = vrot.lane.b32.xlu0 %v2342, 75
        %v2353 = vpop.permute.xlu0 %2352
        %2354 = vrot.lane.b32.xlu0 %v2343, 75
        %v2355 = vpop.permute.xlu0 %2354
        %2356 = vrot.lane.b32.xlu0 %v2344, 75
        %v2357 = vpop.permute.xlu0 %2356
        %2358 = vrot.lane.b32.xlu0 %v2345, 75
        %v2359 = vpop.permute.xlu0 %2358
        %vm2367 = vcmask 814680
        %2368 = vst.msk [vmem:[#allocation4] sm:$0xf] %vm2367, %v2347
        %2369 = vst.msk [vmem:[#allocation4 + $0xc] sm:$0xf] %vm2367, %v2349
        %2370 = vst.msk [vmem:[#allocation4 + $0x18] sm:$0xf] %vm2367, %v2351
        %2371 = vst.msk [vmem:[#allocation4 + $0x24] sm:$0xf] %vm2367, %v2353
        %2372 = vst.msk [vmem:[#allocation4 + $0x30] sm:$0xf] %vm2367, %v2355
        %2373 = vst.msk [vmem:[#allocation4 + $0x3c] sm:$0xf] %vm2367, %v2357
        %vm2374 = vcmask 813656
        %2375 = vst.msk [vmem:[#allocation4 + $0x48] sm:$0x7] %vm2374, %v2359
        %s2376 = scalar_lea.vmem [#allocation3], 4
        %v2377 = vld [vmem:[%s2376] ss:$3 sm:$0xff]
        %s2378 = scalar_lea.vmem [#allocation3], 28
        %v2379 = vld [vmem:[%s2378] ss:$3 sm:$0xff]
        %s2380 = scalar_lea.vmem [#allocation3], 52
        %v2381 = vld [vmem:[%s2380] ss:$3 sm:$0xff]
        %s2382 = scalar_lea.vmem [#allocation3], 76
        %v2383 = vld [vmem:[%s2382] ss:$3 sm:$0xff]
        %s2384 = scalar_lea.vmem [#allocation3], 100
        %v2385 = vld [vmem:[%s2384] ss:$3 sm:$0xff]
        %s2386 = scalar_lea.vmem [#allocation3], 124
        %v2387 = vld [vmem:[%s2386] ss:$3 sm:$0xff]
        %s2388 = scalar_lea.vmem [#allocation3], 148
        %v2389 = vld [vmem:[%s2388] ss:$3 sm:$0x3f]
        %v2390 = vpack.c.bf16 %v2379, %v2377
        %v2391 = vpack.c.bf16 %v2383, %v2381
        %v2392 = vpack.c.bf16 %v2387, %v2385
        %v2393 = vpack.c.bf16 %v2389, %v2389
        %v2398 = vunpack.c.l.b16 %v2390
        %v2399 = vunpack.c.h.b16 %v2390
        %v2400 = vunpack.c.l.b16 %v2391
        %v2401 = vunpack.c.h.b16 %v2391
        %v2402 = vunpack.c.l.b16 %v2392
        %v2403 = vunpack.c.h.b16 %v2392
        %v2404 = vunpack.c.l.b16 %v2393
        %v2405 = vpack.c.b16 %v2398, %v2398
        %v2406 = vpack.c.b16 %v2399, %v2399
        %v2407 = vpack.c.b16 %v2400, %v2400
        %v2408 = vpack.c.b16 %v2401, %v2401
        %v2409 = vpack.c.b16 %v2402, %v2402
        %v2410 = vpack.c.b16 %v2403, %v2403
        %v2411 = vpack.c.b16 %v2404, %v2404
        %2412 = vrot.lane.b32.xlu0 %v2405, 100
        %v2413 = vpop.permute.xlu0 %2412
        %2414 = vrot.lane.b32.xlu0 %v2406, 100
        %v2415 = vpop.permute.xlu0 %2414
        %2416 = vrot.lane.b32.xlu0 %v2407, 100
        %v2417 = vpop.permute.xlu0 %2416
        %2418 = vrot.lane.b32.xlu0 %v2408, 100
        %v2419 = vpop.permute.xlu0 %2418
        %2420 = vrot.lane.b32.xlu0 %v2409, 100
        %v2421 = vpop.permute.xlu0 %2420
        %2422 = vrot.lane.b32.xlu0 %v2410, 100
        %v2423 = vpop.permute.xlu0 %2422
        %2424 = vrot.lane.b32.xlu0 %v2411, 100
        %v2425 = vpop.permute.xlu0 %2424
        %vm2433 = vcmask 1019680
        %2434 = vst.msk [vmem:[#allocation4] sm:$0xf] %vm2433, %v2413
        %2435 = vst.msk [vmem:[#allocation4 + $0xc] sm:$0xf] %vm2433, %v2415
        %2436 = vst.msk [vmem:[#allocation4 + $0x18] sm:$0xf] %vm2433, %v2417
        %2437 = vst.msk [vmem:[#allocation4 + $0x24] sm:$0xf] %vm2433, %v2419
        %2438 = vst.msk [vmem:[#allocation4 + $0x30] sm:$0xf] %vm2433, %v2421
        %2439 = vst.msk [vmem:[#allocation4 + $0x3c] sm:$0xf] %vm2433, %v2423
        %vm2440 = vcmask 1018656
        %2441 = vst.msk [vmem:[#allocation4 + $0x48] sm:$0x7] %vm2440, %v2425
        %s2442 = scalar_lea.vmem [#allocation3], 5
        %v2443 = vld [vmem:[%s2442] ss:$3 sm:$0xff]
        %s2444 = scalar_lea.vmem [#allocation3], 29
        %v2445 = vld [vmem:[%s2444] ss:$3 sm:$0xff]
        %s2446 = scalar_lea.vmem [#allocation3], 53
        %v2447 = vld [vmem:[%s2446] ss:$3 sm:$0xff]
        %s2448 = scalar_lea.vmem [#allocation3], 77
        %v2449 = vld [vmem:[%s2448] ss:$3 sm:$0xff]
        %s2450 = scalar_lea.vmem [#allocation3], 101
        %v2451 = vld [vmem:[%s2450] ss:$3 sm:$0xff]
        %s2452 = scalar_lea.vmem [#allocation3], 125
        %v2453 = vld [vmem:[%s2452] ss:$3 sm:$0xff]
        %s2454 = scalar_lea.vmem [#allocation3], 149
        %v2455 = vld [vmem:[%s2454] ss:$3 sm:$0x3f]
        %v2456 = vpack.c.bf16 %v2445, %v2443
        %v2457 = vpack.c.bf16 %v2449, %v2447
        %v2458 = vpack.c.bf16 %v2453, %v2451
        %v2459 = vpack.c.bf16 %v2455, %v2455
        %v2464 = vunpack.c.l.b16 %v2456
        %v2465 = vunpack.c.h.b16 %v2456
        %v2466 = vunpack.c.l.b16 %v2457
        %v2467 = vunpack.c.h.b16 %v2457
        %v2468 = vunpack.c.l.b16 %v2458
        %v2469 = vunpack.c.h.b16 %v2458
        %v2470 = vunpack.c.l.b16 %v2459
        %v2471 = vpack.c.b16 %v2464, %v2464
        %v2472 = vpack.c.b16 %v2465, %v2465
        %v2473 = vpack.c.b16 %v2466, %v2466
        %v2474 = vpack.c.b16 %v2467, %v2467
        %v2475 = vpack.c.b16 %v2468, %v2468
        %v2476 = vpack.c.b16 %v2469, %v2469
        %v2477 = vpack.c.b16 %v2470, %v2470
        %2478 = vrot.lane.b32.xlu0 %v2471, 125
        %v2479 = vpop.permute.xlu0 %2478
        %2480 = vrot.lane.b32.xlu0 %v2472, 125
        %v2481 = vpop.permute.xlu0 %2480
        %2482 = vrot.lane.b32.xlu0 %v2473, 125
        %v2483 = vpop.permute.xlu0 %2482
        %2484 = vrot.lane.b32.xlu0 %v2474, 125
        %v2485 = vpop.permute.xlu0 %2484
        %2486 = vrot.lane.b32.xlu0 %v2475, 125
        %v2487 = vpop.permute.xlu0 %2486
        %2488 = vrot.lane.b32.xlu0 %v2476, 125
        %v2489 = vpop.permute.xlu0 %2488
        %2490 = vrot.lane.b32.xlu0 %v2477, 125
        %v2491 = vpop.permute.xlu0 %2490
        %v2492 = vrot.slane %v2479, 4
        %v2493 = vrot.slane %v2481, 4
        %v2494 = vrot.slane %v2483, 4
        %v2495 = vrot.slane %v2485, 4
        %v2496 = vrot.slane %v2487, 4
        %v2497 = vrot.slane %v2489, 4
        %v2498 = vrot.slane %v2491, 4
        %vm2499 = vcmask 1022976
        %v2500 = vsel %vm2499, %v2492, %v2479
        %v2501 = vsel %vm2499, %v2493, %v2481
        %v2502 = vsel %vm2499, %v2494, %v2483
        %v2503 = vsel %vm2499, %v2495, %v2485
        %v2504 = vsel %vm2499, %v2496, %v2487
        %v2505 = vsel %vm2499, %v2497, %v2489
        %v2506 = vsel %vm2499, %v2498, %v2491
        %vm2514 = vcmask 1044456
        %vm2515 = vcmask 179204
        %vm2516 = vmor %vm2515, %vm2514
        %2517 = vst.msk [vmem:[#allocation4] sm:$0xff] %vm2516, %v2500
        %2518 = vst.msk [vmem:[#allocation4 + $0xc] sm:$0xff] %vm2516, %v2501
        %2519 = vst.msk [vmem:[#allocation4 + $0x18] sm:$0xff] %vm2516, %v2502
        %2520 = vst.msk [vmem:[#allocation4 + $0x24] sm:$0xff] %vm2516, %v2503
        %2521 = vst.msk [vmem:[#allocation4 + $0x30] sm:$0xff] %vm2516, %v2504
        %2522 = vst.msk [vmem:[#allocation4 + $0x3c] sm:$0xff] %vm2516, %v2505
        %vm2523 = vcmask 1043432
        %vm2524 = vcmask 178180
        %vm2525 = vmor %vm2524, %vm2523
        %2526 = vst.msk [vmem:[#allocation4 + $0x48] sm:$0x77] %vm2525, %v2506
        %s2527 = scalar_lea.vmem [#allocation3], 6
        %v2528 = vld [vmem:[%s2527] ss:$3 sm:$0xff]
        %s2529 = scalar_lea.vmem [#allocation3], 30
        %v2530 = vld [vmem:[%s2529] ss:$3 sm:$0xff]
        %s2531 = scalar_lea.vmem [#allocation3], 54
        %v2532 = vld [vmem:[%s2531] ss:$3 sm:$0xff]
        %s2533 = scalar_lea.vmem [#allocation3], 78
        %v2534 = vld [vmem:[%s2533] ss:$3 sm:$0xff]
        %s2535 = scalar_lea.vmem [#allocation3], 102
        %v2536 = vld [vmem:[%s2535] ss:$3 sm:$0xff]
        %s2537 = scalar_lea.vmem [#allocation3], 126
        %v2538 = vld [vmem:[%s2537] ss:$3 sm:$0xff]
        %s2539 = scalar_lea.vmem [#allocation3], 150
        %v2540 = vld [vmem:[%s2539] ss:$3 sm:$0x3f]
        %v2541 = vpack.c.bf16 %v2530, %v2528
        %v2542 = vpack.c.bf16 %v2534, %v2532
        %v2543 = vpack.c.bf16 %v2538, %v2536
        %v2544 = vpack.c.bf16 %v2540, %v2540
        %v2549 = vunpack.c.l.b16 %v2541
        %v2550 = vunpack.c.h.b16 %v2541
        %v2551 = vunpack.c.l.b16 %v2542
        %v2552 = vunpack.c.h.b16 %v2542
        %v2553 = vunpack.c.l.b16 %v2543
        %v2554 = vunpack.c.h.b16 %v2543
        %v2555 = vunpack.c.l.b16 %v2544
        %v2556 = vpack.c.b16 %v2549, %v2549
        %v2557 = vpack.c.b16 %v2550, %v2550
        %v2558 = vpack.c.b16 %v2551, %v2551
        %v2559 = vpack.c.b16 %v2552, %v2552
        %v2560 = vpack.c.b16 %v2553, %v2553
        %v2561 = vpack.c.b16 %v2554, %v2554
        %v2562 = vpack.c.b16 %v2555, %v2555
        %2563 = vrot.lane.b32.xlu0 %v2556, 22
        %v2564 = vpop.permute.xlu0 %2563
        %2565 = vrot.lane.b32.xlu0 %v2557, 22
        %v2566 = vpop.permute.xlu0 %2565
        %2567 = vrot.lane.b32.xlu0 %v2558, 22
        %v2568 = vpop.permute.xlu0 %2567
        %2569 = vrot.lane.b32.xlu0 %v2559, 22
        %v2570 = vpop.permute.xlu0 %2569
        %2571 = vrot.lane.b32.xlu0 %v2560, 22
        %v2572 = vpop.permute.xlu0 %2571
        %2573 = vrot.lane.b32.xlu0 %v2561, 22
        %v2574 = vpop.permute.xlu0 %2573
        %2575 = vrot.lane.b32.xlu0 %v2562, 22
        %v2576 = vpop.permute.xlu0 %2575
        %vm2584 = vcmask 380080
        %2585 = vst.msk [vmem:[#allocation4 + $0x4] sm:$0xf] %vm2584, %v2564
        %2586 = vst.msk [vmem:[#allocation4 + $0x10] sm:$0xf] %vm2584, %v2566
        %2587 = vst.msk [vmem:[#allocation4 + $0x1c] sm:$0xf] %vm2584, %v2568
        %2588 = vst.msk [vmem:[#allocation4 + $0x28] sm:$0xf] %vm2584, %v2570
        %2589 = vst.msk [vmem:[#allocation4 + $0x34] sm:$0xf] %vm2584, %v2572
        %2590 = vst.msk [vmem:[#allocation4 + $0x40] sm:$0xf] %vm2584, %v2574
        %vm2591 = vcmask 379056
        %2592 = vst.msk [vmem:[#allocation4 + $0x4c] sm:$0x7] %vm2591, %v2576
        %s2593 = scalar_lea.vmem [#allocation3], 7
        %v2594 = vld [vmem:[%s2593] ss:$3 sm:$0xff]
        %s2595 = scalar_lea.vmem [#allocation3], 31
        %v2596 = vld [vmem:[%s2595] ss:$3 sm:$0xff]
        %s2597 = scalar_lea.vmem [#allocation3], 55
        %v2598 = vld [vmem:[%s2597] ss:$3 sm:$0xff]
        %s2599 = scalar_lea.vmem [#allocation3], 79
        %v2600 = vld [vmem:[%s2599] ss:$3 sm:$0xff]
        %s2601 = scalar_lea.vmem [#allocation3], 103
        %v2602 = vld [vmem:[%s2601] ss:$3 sm:$0xff]
        %s2603 = scalar_lea.vmem [#allocation3], 127
        %v2604 = vld [vmem:[%s2603] ss:$3 sm:$0xff]
        %s2605 = scalar_lea.vmem [#allocation3], 151
        %v2606 = vld [vmem:[%s2605] ss:$3 sm:$0x3f]
        %v2607 = vpack.c.bf16 %v2596, %v2594
        %v2608 = vpack.c.bf16 %v2600, %v2598
        %v2609 = vpack.c.bf16 %v2604, %v2602
        %v2610 = vpack.c.bf16 %v2606, %v2606
        %v2615 = vunpack.c.l.b16 %v2607
        %v2616 = vunpack.c.h.b16 %v2607
        %v2617 = vunpack.c.l.b16 %v2608
        %v2618 = vunpack.c.h.b16 %v2608
        %v2619 = vunpack.c.l.b16 %v2609
        %v2620 = vunpack.c.h.b16 %v2609
        %v2621 = vunpack.c.l.b16 %v2610
        %v2622 = vpack.c.b16 %v2615, %v2615
        %v2623 = vpack.c.b16 %v2616, %v2616
        %v2624 = vpack.c.b16 %v2617, %v2617
        %v2625 = vpack.c.b16 %v2618, %v2618
        %v2626 = vpack.c.b16 %v2619, %v2619
        %v2627 = vpack.c.b16 %v2620, %v2620
        %v2628 = vpack.c.b16 %v2621, %v2621
        %2629 = vrot.lane.b32.xlu0 %v2622, 47
        %v2630 = vpop.permute.xlu0 %2629
        %2631 = vrot.lane.b32.xlu0 %v2623, 47
        %v2632 = vpop.permute.xlu0 %2631
        %2633 = vrot.lane.b32.xlu0 %v2624, 47
        %v2634 = vpop.permute.xlu0 %2633
        %2635 = vrot.lane.b32.xlu0 %v2625, 47
        %v2636 = vpop.permute.xlu0 %2635
        %2637 = vrot.lane.b32.xlu0 %v2626, 47
        %v2638 = vpop.permute.xlu0 %2637
        %2639 = vrot.lane.b32.xlu0 %v2627, 47
        %v2640 = vpop.permute.xlu0 %2639
        %2641 = vrot.lane.b32.xlu0 %v2628, 47
        %v2642 = vpop.permute.xlu0 %2641
        %vm2650 = vcmask 585080
        %2651 = vst.msk [vmem:[#allocation4 + $0x4] sm:$0xf] %vm2650, %v2630
        %2652 = vst.msk [vmem:[#allocation4 + $0x10] sm:$0xf] %vm2650, %v2632
        %2653 = vst.msk [vmem:[#allocation4 + $0x1c] sm:$0xf] %vm2650, %v2634
        %2654 = vst.msk [vmem:[#allocation4 + $0x28] sm:$0xf] %vm2650, %v2636
        %2655 = vst.msk [vmem:[#allocation4 + $0x34] sm:$0xf] %vm2650, %v2638
        %2656 = vst.msk [vmem:[#allocation4 + $0x40] sm:$0xf] %vm2650, %v2640
        %vm2657 = vcmask 584056
        %2658 = vst.msk [vmem:[#allocation4 + $0x4c] sm:$0x7] %vm2657, %v2642
        %s2659 = scalar_lea.vmem [#allocation3], 8
        %v2660 = vld [vmem:[%s2659] ss:$3 sm:$0xff]
        %s2661 = scalar_lea.vmem [#allocation3], 32
        %v2662 = vld [vmem:[%s2661] ss:$3 sm:$0xff]
        %s2663 = scalar_lea.vmem [#allocation3], 56
        %v2664 = vld [vmem:[%s2663] ss:$3 sm:$0xff]
        %s2665 = scalar_lea.vmem [#allocation3], 80
        %v2666 = vld [vmem:[%s2665] ss:$3 sm:$0xff]
        %s2667 = scalar_lea.vmem [#allocation3], 104
        %v2668 = vld [vmem:[%s2667] ss:$3 sm:$0xff]
        %s2669 = scalar_lea.vmem [#allocation3], 128
        %v2670 = vld [vmem:[%s2669] ss:$3 sm:$0xff]
        %s2671 = scalar_lea.vmem [#allocation3], 152
        %v2672 = vld [vmem:[%s2671] ss:$3 sm:$0x3f]
        %v2673 = vpack.c.bf16 %v2662, %v2660
        %v2674 = vpack.c.bf16 %v2666, %v2664
        %v2675 = vpack.c.bf16 %v2670, %v2668
        %v2676 = vpack.c.bf16 %v2672, %v2672
        %v2681 = vunpack.c.l.b16 %v2673
        %v2682 = vunpack.c.h.b16 %v2673
        %v2683 = vunpack.c.l.b16 %v2674
        %v2684 = vunpack.c.h.b16 %v2674
        %v2685 = vunpack.c.l.b16 %v2675
        %v2686 = vunpack.c.h.b16 %v2675
        %v2687 = vunpack.c.l.b16 %v2676
        %v2688 = vpack.c.b16 %v2681, %v2681
        %v2689 = vpack.c.b16 %v2682, %v2682
        %v2690 = vpack.c.b16 %v2683, %v2683
        %v2691 = vpack.c.b16 %v2684, %v2684
        %v2692 = vpack.c.b16 %v2685, %v2685
        %v2693 = vpack.c.b16 %v2686, %v2686
        %v2694 = vpack.c.b16 %v2687, %v2687
        %2695 = vrot.lane.b32.xlu0 %v2688, 72
        %v2696 = vpop.permute.xlu0 %2695
        %2697 = vrot.lane.b32.xlu0 %v2689, 72
        %v2698 = vpop.permute.xlu0 %2697
        %2699 = vrot.lane.b32.xlu0 %v2690, 72
        %v2700 = vpop.permute.xlu0 %2699
        %2701 = vrot.lane.b32.xlu0 %v2691, 72
        %v2702 = vpop.permute.xlu0 %2701
        %2703 = vrot.lane.b32.xlu0 %v2692, 72
        %v2704 = vpop.permute.xlu0 %2703
        %2705 = vrot.lane.b32.xlu0 %v2693, 72
        %v2706 = vpop.permute.xlu0 %2705
        %2707 = vrot.lane.b32.xlu0 %v2694, 72
        %v2708 = vpop.permute.xlu0 %2707
        %vm2716 = vcmask 790080
        %2717 = vst.msk [vmem:[#allocation4 + $0x4] sm:$0xf] %vm2716, %v2696
        %2718 = vst.msk [vmem:[#allocation4 + $0x10] sm:$0xf] %vm2716, %v2698
        %2719 = vst.msk [vmem:[#allocation4 + $0x1c] sm:$0xf] %vm2716, %v2700
        %2720 = vst.msk [vmem:[#allocation4 + $0x28] sm:$0xf] %vm2716, %v2702
        %2721 = vst.msk [vmem:[#allocation4 + $0x34] sm:$0xf] %vm2716, %v2704
        %2722 = vst.msk [vmem:[#allocation4 + $0x40] sm:$0xf] %vm2716, %v2706
        %vm2723 = vcmask 789056
        %2724 = vst.msk [vmem:[#allocation4 + $0x4c] sm:$0x7] %vm2723, %v2708
        %s2725 = scalar_lea.vmem [#allocation3], 9
        %v2726 = vld [vmem:[%s2725] ss:$3 sm:$0xff]
        %s2727 = scalar_lea.vmem [#allocation3], 33
        %v2728 = vld [vmem:[%s2727] ss:$3 sm:$0xff]
        %s2729 = scalar_lea.vmem [#allocation3], 57
        %v2730 = vld [vmem:[%s2729] ss:$3 sm:$0xff]
        %s2731 = scalar_lea.vmem [#allocation3], 81
        %v2732 = vld [vmem:[%s2731] ss:$3 sm:$0xff]
        %s2733 = scalar_lea.vmem [#allocation3], 105
        %v2734 = vld [vmem:[%s2733] ss:$3 sm:$0xff]
        %s2735 = scalar_lea.vmem [#allocation3], 129
        %v2736 = vld [vmem:[%s2735] ss:$3 sm:$0xff]
        %s2737 = scalar_lea.vmem [#allocation3], 153
        %v2738 = vld [vmem:[%s2737] ss:$3 sm:$0x3f]
        %v2739 = vpack.c.bf16 %v2728, %v2726
        %v2740 = vpack.c.bf16 %v2732, %v2730
        %v2741 = vpack.c.bf16 %v2736, %v2734
        %v2742 = vpack.c.bf16 %v2738, %v2738
        %v2747 = vunpack.c.l.b16 %v2739
        %v2748 = vunpack.c.h.b16 %v2739
        %v2749 = vunpack.c.l.b16 %v2740
        %v2750 = vunpack.c.h.b16 %v2740
        %v2751 = vunpack.c.l.b16 %v2741
        %v2752 = vunpack.c.h.b16 %v2741
        %v2753 = vunpack.c.l.b16 %v2742
        %v2754 = vpack.c.b16 %v2747, %v2747
        %v2755 = vpack.c.b16 %v2748, %v2748
        %v2756 = vpack.c.b16 %v2749, %v2749
        %v2757 = vpack.c.b16 %v2750, %v2750
        %v2758 = vpack.c.b16 %v2751, %v2751
        %v2759 = vpack.c.b16 %v2752, %v2752
        %v2760 = vpack.c.b16 %v2753, %v2753
        %2761 = vrot.lane.b32.xlu0 %v2754, 97
        %v2762 = vpop.permute.xlu0 %2761
        %2763 = vrot.lane.b32.xlu0 %v2755, 97
        %v2764 = vpop.permute.xlu0 %2763
        %2765 = vrot.lane.b32.xlu0 %v2756, 97
        %v2766 = vpop.permute.xlu0 %2765
        %2767 = vrot.lane.b32.xlu0 %v2757, 97
        %v2768 = vpop.permute.xlu0 %2767
        %2769 = vrot.lane.b32.xlu0 %v2758, 97
        %v2770 = vpop.permute.xlu0 %2769
        %2771 = vrot.lane.b32.xlu0 %v2759, 97
        %v2772 = vpop.permute.xlu0 %2771
        %2773 = vrot.lane.b32.xlu0 %v2760, 97
        %v2774 = vpop.permute.xlu0 %2773
        %vm2782 = vcmask 995080
        %2783 = vst.msk [vmem:[#allocation4 + $0x4] sm:$0xf] %vm2782, %v2762
        %2784 = vst.msk [vmem:[#allocation4 + $0x10] sm:$0xf] %vm2782, %v2764
        %2785 = vst.msk [vmem:[#allocation4 + $0x1c] sm:$0xf] %vm2782, %v2766
        %2786 = vst.msk [vmem:[#allocation4 + $0x28] sm:$0xf] %vm2782, %v2768
        %2787 = vst.msk [vmem:[#allocation4 + $0x34] sm:$0xf] %vm2782, %v2770
        %2788 = vst.msk [vmem:[#allocation4 + $0x40] sm:$0xf] %vm2782, %v2772
        %vm2789 = vcmask 994056
        %2790 = vst.msk [vmem:[#allocation4 + $0x4c] sm:$0x7] %vm2789, %v2774
        %s2791 = scalar_lea.vmem [#allocation3], 10
        %v2792 = vld [vmem:[%s2791] ss:$3 sm:$0xff]
        %s2793 = scalar_lea.vmem [#allocation3], 34
        %v2794 = vld [vmem:[%s2793] ss:$3 sm:$0xff]
        %s2795 = scalar_lea.vmem [#allocation3], 58
        %v2796 = vld [vmem:[%s2795] ss:$3 sm:$0xff]
        %s2797 = scalar_lea.vmem [#allocation3], 82
        %v2798 = vld [vmem:[%s2797] ss:$3 sm:$0xff]
        %s2799 = scalar_lea.vmem [#allocation3], 106
        %v2800 = vld [vmem:[%s2799] ss:$3 sm:$0xff]
        %s2801 = scalar_lea.vmem [#allocation3], 130
        %v2802 = vld [vmem:[%s2801] ss:$3 sm:$0xff]
        %s2803 = scalar_lea.vmem [#allocation3], 154
        %v2804 = vld [vmem:[%s2803] ss:$3 sm:$0x3f]
        %v2805 = vpack.c.bf16 %v2794, %v2792
        %v2806 = vpack.c.bf16 %v2798, %v2796
        %v2807 = vpack.c.bf16 %v2802, %v2800
        %v2808 = vpack.c.bf16 %v2804, %v2804
        %v2813 = vunpack.c.l.b16 %v2805
        %v2814 = vunpack.c.h.b16 %v2805
        %v2815 = vunpack.c.l.b16 %v2806
        %v2816 = vunpack.c.h.b16 %v2806
        %v2817 = vunpack.c.l.b16 %v2807
        %v2818 = vunpack.c.h.b16 %v2807
        %v2819 = vunpack.c.l.b16 %v2808
        %v2820 = vpack.c.b16 %v2813, %v2813
        %v2821 = vpack.c.b16 %v2814, %v2814
        %v2822 = vpack.c.b16 %v2815, %v2815
        %v2823 = vpack.c.b16 %v2816, %v2816
        %v2824 = vpack.c.b16 %v2817, %v2817
        %v2825 = vpack.c.b16 %v2818, %v2818
        %v2826 = vpack.c.b16 %v2819, %v2819
        %2827 = vrot.lane.b32.xlu0 %v2820, 122
        %v2828 = vpop.permute.xlu0 %2827
        %2829 = vrot.lane.b32.xlu0 %v2821, 122
        %v2830 = vpop.permute.xlu0 %2829
        %2831 = vrot.lane.b32.xlu0 %v2822, 122
        %v2832 = vpop.permute.xlu0 %2831
        %2833 = vrot.lane.b32.xlu0 %v2823, 122
        %v2834 = vpop.permute.xlu0 %2833
        %2835 = vrot.lane.b32.xlu0 %v2824, 122
        %v2836 = vpop.permute.xlu0 %2835
        %2837 = vrot.lane.b32.xlu0 %v2825, 122
        %v2838 = vpop.permute.xlu0 %2837
        %2839 = vrot.lane.b32.xlu0 %v2826, 122
        %v2840 = vpop.permute.xlu0 %2839
        %v2841 = vrot.slane %v2828, 4
        %v2842 = vrot.slane %v2830, 4
        %v2843 = vrot.slane %v2832, 4
        %v2844 = vrot.slane %v2834, 4
        %v2845 = vrot.slane %v2836, 4
        %v2846 = vrot.slane %v2838, 4
        %v2847 = vrot.slane %v2840, 4
        %vm2848 = vcmask 998400
        %v2849 = vsel %vm2848, %v2841, %v2828
        %v2850 = vsel %vm2848, %v2842, %v2830
        %v2851 = vsel %vm2848, %v2843, %v2832
        %v2852 = vsel %vm2848, %v2844, %v2834
        %v2853 = vsel %vm2848, %v2845, %v2836
        %v2854 = vsel %vm2848, %v2846, %v2838
        %v2855 = vsel %vm2848, %v2847, %v2840
        %vm2863 = vcmask 1044432
        %vm2864 = vcmask 154628
        %vm2865 = vmor %vm2864, %vm2863
        %2866 = vst.msk [vmem:[#allocation4 + $0x4] sm:$0xff] %vm2865, %v2849
        %2867 = vst.msk [vmem:[#allocation4 + $0x10] sm:$0xff] %vm2865, %v2850
        %2868 = vst.msk [vmem:[#allocation4 + $0x1c] sm:$0xff] %vm2865, %v2851
        %2869 = vst.msk [vmem:[#allocation4 + $0x28] sm:$0xff] %vm2865, %v2852
        %2870 = vst.msk [vmem:[#allocation4 + $0x34] sm:$0xff] %vm2865, %v2853
        %2871 = vst.msk [vmem:[#allocation4 + $0x40] sm:$0xff] %vm2865, %v2854
        %vm2872 = vcmask 1043408
        %vm2873 = vcmask 153604
        %vm2874 = vmor %vm2873, %vm2872
        %2875 = vst.msk [vmem:[#allocation4 + $0x4c] sm:$0x77] %vm2874, %v2855
        %s2876 = scalar_lea.vmem [#allocation3], 11
        %v2877 = vld [vmem:[%s2876] ss:$3 sm:$0xff]
        %s2878 = scalar_lea.vmem [#allocation3], 35
        %v2879 = vld [vmem:[%s2878] ss:$3 sm:$0xff]
        %s2880 = scalar_lea.vmem [#allocation3], 59
        %v2881 = vld [vmem:[%s2880] ss:$3 sm:$0xff]
        %s2882 = scalar_lea.vmem [#allocation3], 83
        %v2883 = vld [vmem:[%s2882] ss:$3 sm:$0xff]
        %s2884 = scalar_lea.vmem [#allocation3], 107
        %v2885 = vld [vmem:[%s2884] ss:$3 sm:$0xff]
        %s2886 = scalar_lea.vmem [#allocation3], 131
        %v2887 = vld [vmem:[%s2886] ss:$3 sm:$0xff]
        %s2888 = scalar_lea.vmem [#allocation3], 155
        %v2889 = vld [vmem:[%s2888] ss:$3 sm:$0x3f]
        %v2890 = vpack.c.bf16 %v2879, %v2877
        %v2891 = vpack.c.bf16 %v2883, %v2881
        %v2892 = vpack.c.bf16 %v2887, %v2885
        %v2893 = vpack.c.bf16 %v2889, %v2889
        %v2898 = vunpack.c.l.b16 %v2890
        %v2899 = vunpack.c.h.b16 %v2890
        %v2900 = vunpack.c.l.b16 %v2891
        %v2901 = vunpack.c.h.b16 %v2891
        %v2902 = vunpack.c.l.b16 %v2892
        %v2903 = vunpack.c.h.b16 %v2892
        %v2904 = vunpack.c.l.b16 %v2893
        %v2905 = vpack.c.b16 %v2898, %v2898
        %v2906 = vpack.c.b16 %v2899, %v2899
        %v2907 = vpack.c.b16 %v2900, %v2900
        %v2908 = vpack.c.b16 %v2901, %v2901
        %v2909 = vpack.c.b16 %v2902, %v2902
        %v2910 = vpack.c.b16 %v2903, %v2903
        %v2911 = vpack.c.b16 %v2904, %v2904
        %2912 = vrot.lane.b32.xlu0 %v2905, 19
        %v2913 = vpop.permute.xlu0 %2912
        %2914 = vrot.lane.b32.xlu0 %v2906, 19
        %v2915 = vpop.permute.xlu0 %2914
        %2916 = vrot.lane.b32.xlu0 %v2907, 19
        %v2917 = vpop.permute.xlu0 %2916
        %2918 = vrot.lane.b32.xlu0 %v2908, 19
        %v2919 = vpop.permute.xlu0 %2918
        %2920 = vrot.lane.b32.xlu0 %v2909, 19
        %v2921 = vpop.permute.xlu0 %2920
        %2922 = vrot.lane.b32.xlu0 %v2910, 19
        %v2923 = vpop.permute.xlu0 %2922
        %2924 = vrot.lane.b32.xlu0 %v2911, 19
        %v2925 = vpop.permute.xlu0 %2924
        %vm2933 = vcmask 355480
        %2934 = vst.msk [vmem:[#allocation4 + $0x8] sm:$0xf] %vm2933, %v2913
        %2935 = vst.msk [vmem:[#allocation4 + $0x14] sm:$0xf] %vm2933, %v2915
        %2936 = vst.msk [vmem:[#allocation4 + $0x20] sm:$0xf] %vm2933, %v2917
        %2937 = vst.msk [vmem:[#allocation4 + $0x2c] sm:$0xf] %vm2933, %v2919
        %2938 = vst.msk [vmem:[#allocation4 + $0x38] sm:$0xf] %vm2933, %v2921
        %2939 = vst.msk [vmem:[#allocation4 + $0x44] sm:$0xf] %vm2933, %v2923
        %vm2940 = vcmask 354456
        %2941 = vst.msk [vmem:[#allocation4 + $0x50] sm:$0x7] %vm2940, %v2925
        %v2942 = vld [vmem:[#allocation4] sm:$0xff]
        %v2943 = vld [vmem:[#allocation4 + $0x8] sm:$0xf]
        %v2944 = vld [vmem:[#allocation4 + $0xc] sm:$0xff]
        %v2945 = vld [vmem:[#allocation4 + $0x14] sm:$0xf]
        %v2946 = vld [vmem:[#allocation4 + $0x18] sm:$0xff]
        %v2947 = vld [vmem:[#allocation4 + $0x20] sm:$0xf]
        %v2948 = vld [vmem:[#allocation4 + $0x24] sm:$0xff]
        %v2949 = vld [vmem:[#allocation4 + $0x2c] sm:$0xf]
        %v2950 = vld [vmem:[#allocation4 + $0x30] sm:$0xff]
        %v2951 = vld [vmem:[#allocation4 + $0x38] sm:$0xf]
        %v2952 = vld [vmem:[#allocation4 + $0x3c] sm:$0xff]
        %v2953 = vld [vmem:[#allocation4 + $0x44] sm:$0xf]
        %v2954 = vld [vmem:[#allocation4 + $0x48] sm:$0x77]
        %v2955 = vld [vmem:[#allocation4 + $0x50] sm:$0x7]
        %v2956 = vld [vmem:[%s2] sm:$0xff]
        %v2957 = vld [vmem:[%s2 + $0x8] sm:$0xff]
        %v2958 = vld [vmem:[%s2 + $0x10] sm:$0xff]
        %v2959 = vld [vmem:[%s2 + $0x18] sm:$0xff]
        %v2960 = vld [vmem:[%s2 + $0x20] sm:$0xff]
        %v2961 = vld [vmem:[%s2 + $0x28] sm:$0xff]
        %v2962 = vld [vmem:[%s2 + $0x30] sm:$0xff]
        %v2963 = vld [vmem:[%s2 + $0x38] sm:$0xff]
        %v2964 = vld [vmem:[%s2 + $0x40] sm:$0xff]
        %v2965 = vld [vmem:[%s2 + $0x48] sm:$0xff]
        %v2966 = vld [vmem:[%s2 + $0x50] sm:$0xff]
        %v2967 = vld [vmem:[%s2 + $0x58] sm:$0xff]
        %v2968 = vld [vmem:[%s2 + $0x60] sm:$0xff]
        %v2969 = vld [vmem:[%s2 + $0x68] sm:$0xff]
        %v2970 = vld [vmem:[%s2 + $0x70] sm:$0xff]
        %v2971 = vld [vmem:[%s2 + $0x78] sm:$0xff]
        %v2972 = vld [vmem:[%s2 + $0x80] sm:$0xff]
        %v2973 = vld [vmem:[%s2 + $0x88] sm:$0xff]
        %v2974 = vld [vmem:[%s2 + $0x90] sm:$0xff]
        %v2975 = vld [vmem:[%s2 + $0x98] sm:$0xff]
        %v2976 = vld [vmem:[%s2 + $0xa0] sm:$0xff]
        %v2977 = vld [vmem:[%s2 + $0xa8] sm:$0xff]
        %v2978 = vld [vmem:[%s2 + $0xb0] sm:$0xff]
        %v2979 = vld [vmem:[%s2 + $0xb8] sm:$0xff]
        %v2980 = vld [vmem:[%s2 + $0xc0] sm:$0xff]
        %v2981 = vld [vmem:[%s2 + $0xc8] sm:$0xff]
        %v2982 = vld [vmem:[%s2 + $0xd0] sm:$0xff]
        %v2983 = vld [vmem:[%s2 + $0xd8] sm:$0xff]
        %v2984 = vld [vmem:[%s2 + $0xe0] sm:$0xff]
        %v2985 = vld [vmem:[%s2 + $0xe8] sm:$0xff]
        %v2986 = vld [vmem:[%s2 + $0xf0] sm:$0xff]
        %v2987 = vld [vmem:[%s2 + $0xf8] sm:$0xff]
        %v2988 = vld [vmem:[%s2 + $0x100] sm:$0xff]
        %v2989 = vld [vmem:[%s2 + $0x108] sm:$0xff]
        %v2990 = vld [vmem:[%s2 + $0x110] sm:$0xff]
        %v2991 = vld [vmem:[%s2 + $0x118] sm:$0xff]
        %v2992 = vld [vmem:[%s2 + $0x120] sm:$0xff]
        %v2993 = vld [vmem:[%s2 + $0x128] sm:$0x33]
        %v3008 = vunpack.c.l.b16 %v2942
        %v3009 = vunpack.c.h.b16 %v2942
        %v3010 = vunpack.c.l.b16 %v2943
        %v3011 = vunpack.c.l.b16 %v2944
        %v3012 = vunpack.c.h.b16 %v2944
        %v3013 = vunpack.c.l.b16 %v2945
        %v3014 = vunpack.c.l.b16 %v2946
        %v3015 = vunpack.c.h.b16 %v2946
        %v3016 = vunpack.c.l.b16 %v2947
        %v3017 = vunpack.c.l.b16 %v2948
        %v3018 = vunpack.c.h.b16 %v2948
        %v3019 = vunpack.c.l.b16 %v2949
        %v3020 = vunpack.c.l.b16 %v2950
        %v3021 = vunpack.c.h.b16 %v2950
        %v3022 = vunpack.c.l.b16 %v2951
        %v3023 = vunpack.c.l.b16 %v2952
        %v3024 = vunpack.c.h.b16 %v2952
        %v3025 = vunpack.c.l.b16 %v2953
        %v3026 = vunpack.c.l.b16 %v2954
        %v3027 = vunpack.c.h.b16 %v2954
        %v3028 = vunpack.c.l.b16 %v2955
        %v3029 = vpack.c.b16 %v3011, %v3008
        %v3030 = vpack.c.b16 %v3012, %v3009
        %v3031 = vpack.c.b16 %v3013, %v3010
        %v3032 = vpack.c.b16 %v3017, %v3014
        %v3033 = vpack.c.b16 %v3018, %v3015
        %v3034 = vpack.c.b16 %v3019, %v3016
        %v3035 = vpack.c.b16 %v3023, %v3020
        %v3036 = vpack.c.b16 %v3024, %v3021
        %v3037 = vpack.c.b16 %v3025, %v3022
        %v3038 = vpack.c.b16 %v3026, %v3026
        %v3039 = vpack.c.b16 %v3027, %v3027
        %v3040 = vpack.c.b16 %v3028, %v3028
        %v3087 = vunpack.c.l.b16 %v2956
        %v3088 = vunpack.c.h.b16 %v2956
        %v3089 = vunpack.c.l.b16 %v2957
        %v3090 = vunpack.c.h.b16 %v2957
        %v3091 = vunpack.c.l.b16 %v2958
        %v3092 = vunpack.c.h.b16 %v2958
        %v3093 = vunpack.c.l.b16 %v2959
        %v3094 = vunpack.c.h.b16 %v2959
        %v3095 = vunpack.c.l.b16 %v2960
        %v3096 = vunpack.c.h.b16 %v2960
        %v3097 = vunpack.c.l.b16 %v2961
        %v3098 = vunpack.c.h.b16 %v2961
        %v3099 = vunpack.c.l.b16 %v2962
        %v3100 = vunpack.c.h.b16 %v2962
        %v3101 = vunpack.c.l.b16 %v2963
        %v3102 = vunpack.c.h.b16 %v2963
        %v3103 = vunpack.c.l.b16 %v2964
        %v3104 = vunpack.c.h.b16 %v2964
        %v3105 = vunpack.c.l.b16 %v2965
        %v3106 = vunpack.c.h.b16 %v2965
        %v3107 = vunpack.c.l.b16 %v2966
        %v3108 = vunpack.c.h.b16 %v2966
        %v3109 = vunpack.c.l.b16 %v2967
        %v3110 = vunpack.c.h.b16 %v2967
        %v3111 = vunpack.c.l.b16 %v2968
        %v3112 = vunpack.c.h.b16 %v2968
        %v3113 = vunpack.c.l.b16 %v2969
        %v3114 = vunpack.c.h.b16 %v2969
        %v3115 = vunpack.c.l.b16 %v2970
        %v3116 = vunpack.c.h.b16 %v2970
        %v3117 = vunpack.c.l.b16 %v2971
        %v3118 = vunpack.c.h.b16 %v2971
        %v3119 = vunpack.c.l.b16 %v2972
        %v3120 = vunpack.c.h.b16 %v2972
        %v3121 = vunpack.c.l.b16 %v2973
        %v3122 = vunpack.c.h.b16 %v2973
        %v3123 = vunpack.c.l.b16 %v2974
        %v3124 = vunpack.c.h.b16 %v2974
        %v3125 = vunpack.c.l.b16 %v2975
        %v3126 = vunpack.c.h.b16 %v2975
        %v3127 = vunpack.c.l.b16 %v2976
        %v3128 = vunpack.c.h.b16 %v2976
        %v3129 = vunpack.c.l.b16 %v2977
        %v3130 = vunpack.c.h.b16 %v2977
        %v3131 = vunpack.c.l.b16 %v2978
        %v3132 = vunpack.c.h.b16 %v2978
        %v3133 = vunpack.c.l.b16 %v2979
        %v3134 = vunpack.c.h.b16 %v2979
        %v3135 = vunpack.c.l.b16 %v2980
        %v3136 = vunpack.c.h.b16 %v2980
        %v3137 = vunpack.c.l.b16 %v2981
        %v3138 = vunpack.c.h.b16 %v2981
        %v3139 = vunpack.c.l.b16 %v2982
        %v3140 = vunpack.c.h.b16 %v2982
        %v3141 = vunpack.c.l.b16 %v2983
        %v3142 = vunpack.c.h.b16 %v2983
        %v3143 = vunpack.c.l.b16 %v2984
        %v3144 = vunpack.c.h.b16 %v2984
        %v3145 = vunpack.c.l.b16 %v2985
        %v3146 = vunpack.c.h.b16 %v2985
        %v3147 = vunpack.c.l.b16 %v2986
        %v3148 = vunpack.c.h.b16 %v2986
        %v3149 = vunpack.c.l.b16 %v2987
        %v3150 = vunpack.c.h.b16 %v2987
        %v3151 = vunpack.c.l.b16 %v2988
        %v3152 = vunpack.c.h.b16 %v2988
        %v3153 = vunpack.c.l.b16 %v2989
        %v3154 = vunpack.c.h.b16 %v2989
        %v3155 = vunpack.c.l.b16 %v2990
        %v3156 = vunpack.c.h.b16 %v2990
        %v3157 = vunpack.c.l.b16 %v2991
        %v3158 = vunpack.c.h.b16 %v2991
        %v3159 = vunpack.c.l.b16 %v2992
        %v3160 = vunpack.c.h.b16 %v2992
        %v3161 = vunpack.c.l.b16 %v2993
        %v3162 = vunpack.c.h.b16 %v2993
        %v3163 = vpack.c.b16 %v3089, %v3087
        %v3164 = vpack.c.b16 %v3090, %v3088
        %v3165 = vpack.c.b16 %v3093, %v3091
        %v3166 = vpack.c.b16 %v3094, %v3092
        %v3167 = vpack.c.b16 %v3097, %v3095
        %v3168 = vpack.c.b16 %v3098, %v3096
        %v3169 = vpack.c.b16 %v3101, %v3099
        %v3170 = vpack.c.b16 %v3102, %v3100
        %v3171 = vpack.c.b16 %v3105, %v3103
        %v3172 = vpack.c.b16 %v3106, %v3104
        %v3173 = vpack.c.b16 %v3109, %v3107
        %v3174 = vpack.c.b16 %v3110, %v3108
        %v3175 = vpack.c.b16 %v3113, %v3111
        %v3176 = vpack.c.b16 %v3114, %v3112
        %v3177 = vpack.c.b16 %v3117, %v3115
        %v3178 = vpack.c.b16 %v3118, %v3116
        %v3179 = vpack.c.b16 %v3121, %v3119
        %v3180 = vpack.c.b16 %v3122, %v3120
        %v3181 = vpack.c.b16 %v3125, %v3123
        %v3182 = vpack.c.b16 %v3126, %v3124
        %v3183 = vpack.c.b16 %v3129, %v3127
        %v3184 = vpack.c.b16 %v3130, %v3128
        %v3185 = vpack.c.b16 %v3133, %v3131
        %v3186 = vpack.c.b16 %v3134, %v3132
        %v3187 = vpack.c.b16 %v3137, %v3135
        %v3188 = vpack.c.b16 %v3138, %v3136
        %v3189 = vpack.c.b16 %v3141, %v3139
        %v3190 = vpack.c.b16 %v3142, %v3140
        %v3191 = vpack.c.b16 %v3145, %v3143
        %v3192 = vpack.c.b16 %v3146, %v3144
        %v3193 = vpack.c.b16 %v3149, %v3147
        %v3194 = vpack.c.b16 %v3150, %v3148
        %v3195 = vpack.c.b16 %v3153, %v3151
        %v3196 = vpack.c.b16 %v3154, %v3152
        %v3197 = vpack.c.b16 %v3157, %v3155
        %v3198 = vpack.c.b16 %v3158, %v3156
        %v3199 = vpack.c.b16 %v3161, %v3159
        %v3200 = vpack.c.b16 %v3162, %v3160
        %vm3237 = vcmask 359424
        %v3239 = vsel %vm3237, %v3031, 0
        %v3242 = vsel %vm3237, %v3034, 0
        %v3245 = vsel %vm3237, %v3037, 0
        %v3248 = vsel %vm3237, %v3040, 0
        %vm3250 = vcmask 1045504
        %v3252 = vsel %vm3250, %v3199, 0
        %v3255 = vsel %vm3250, %v3200, 0
        %3257 = vmatprep.subr.bf16.mxu0 %v3164
        %3258 = vmatpush1.bf16.msra.mxu0 %v3163
        %3259 = vmatprep.subr.bf16.mxu0 %v3166
        %3260 = vmatpush1.bf16.msra.mxu0 %v3165
        %3261 = vmatprep.subr.bf16.mxu0 %v3168
        %3262 = vmatpush1.bf16.msra.mxu0 %v3167
        %3263 = vmatprep.subr.bf16.mxu0 %v3170
        %3264 = vmatpush1.bf16.msra.mxu0 %v3169
        %3265 = vmatprep.subr.bf16.mxu0 %v3172
        %3266 = vmatpush1.bf16.msra.mxu0 %v3171
        %3267 = vmatprep.subr.bf16.mxu0 %v3174
        %3268 = vmatpush1.bf16.msra.mxu0 %v3173
        %3269 = vmatprep.subr.bf16.mxu0 %v3176
        %3270 = vmatpush1.bf16.msra.mxu0 %v3175
        %3271 = vmatprep.subr.bf16.mxu0 %v3178
        %3272 = vmatpush1.bf16.msra.mxu0 %v3177
        %3273 = vmatprep.subr.bf16.mxu0 %v3180
        %3274 = vmatpush1.bf16.msra.mxu0 %v3179
        %3275 = vmatprep.subr.bf16.mxu0 %v3182
        %3276 = vmatpush1.bf16.msra.mxu0 %v3181
        %3277 = vmatprep.subr.bf16.mxu0 %v3184
        %3278 = vmatpush1.bf16.msra.mxu0 %v3183
        %3279 = vmatprep.subr.bf16.mxu0 %v3186
        %3280 = vmatpush1.bf16.msra.mxu0 %v3185
        %3281 = vmatprep.subr.bf16.mxu0 %v3188
        %3282 = vmatpush1.bf16.msra.mxu0 %v3187
        %3283 = vmatprep.subr.bf16.mxu0 %v3190
        %3284 = vmatpush1.bf16.msra.mxu0 %v3189
        %3285 = vmatprep.subr.bf16.mxu0 %v3192
        %3286 = vmatpush1.bf16.msra.mxu0 %v3191
        %3287 = vmatprep.subr.bf16.mxu0 %v3194
        %3288 = vmatpush1.bf16.msra.mxu0 %v3193
        %3289 = vmatprep.mubr.bf16.mxu0 %v3030
        %3290 = vmatmul.mubr.bf16.gmra.mrb[0].mxu0 %v3029
        %v3291 = vpop.f32.mrb[0].mxu0
        %v3292 = vadd.f32 0.0, %v3291
        %v3293 = vpop.f32.mrb[0].mxu0
        %v3294 = vadd.f32 0.0, %v3293
        %v3295 = vpop.f32.mrb[0].mxu0
        %v3296 = vadd.f32 0.0, %v3295
        %v3297 = vpop.f32.mrb[0].mxu0
        %v3298 = vadd.f32 0.0, %v3297
        %3299 = vmatprep.mubr.bf16.mxu0 %v3033
        %3300 = vmatmul.mubr.bf16.gmra.mrb[0].mxu0 %v3032
        %v3301 = vpop.f32.mrb[0].mxu0
        %v3302 = vadd.f32 0.0, %v3301
        %v3303 = vpop.f32.mrb[0].mxu0
        %v3304 = vadd.f32 0.0, %v3303
        %v3305 = vpop.f32.mrb[0].mxu0
        %v3306 = vadd.f32 0.0, %v3305
        %v3307 = vpop.f32.mrb[0].mxu0
        %v3308 = vadd.f32 0.0, %v3307
        %3309 = vmatprep.mubr.bf16.mxu0 %v3036
        %3310 = vmatmul.mubr.bf16.gmra.mrb[0].mxu0 %v3035
        %v3311 = vpop.f32.mrb[0].mxu0
        %v3312 = vadd.f32 0.0, %v3311
        %v3313 = vpop.f32.mrb[0].mxu0
        %v3314 = vadd.f32 0.0, %v3313
        %v3315 = vpop.f32.mrb[0].mxu0
        %v3316 = vadd.f32 0.0, %v3315
        %v3317 = vpop.f32.mrb[0].mxu0
        %v3318 = vadd.f32 0.0, %v3317
        %3319 = vmatprep.mubr.bf16.mxu0 %v3039
        %3320 = vmatmul.mubr.bf16.gmra.mrb[0].mxu0 %v3038
        %v3321 = vpop.f32.mrb[0].mxu0
        %v3322 = vadd.f32 0.0, %v3321
        %v3323 = vpop.f32.mrb[0].mxu0
        %v3324 = vadd.f32 0.0, %v3323
        %v3325 = vpop.f32.mrb[0].mxu0
        %v3326 = vpop.f32.mrb[0].mxu0
        %3327 = vdwg.mxu0
        %3328 = vmatprep.subr.bf16.mxu0 %v3196
        %3329 = vmatpush1.bf16.msra.mxu0 %v3195
        %3330 = vmatprep.subr.bf16.mxu0 %v3198
        %3331 = vmatpush1.bf16.msra.mxu0 %v3197
        %3332 = vmatprep.subr.bf16.mxu0 %v3255
        %3333 = vmatpush1.bf16.msra.mxu0 %v3252
        %3334 = vmatprep.subr.bf16.mxu0 0
        %3335 = vmatpush1.bf16.msra.mxu0 0
        %3336 = vmatprep.subr.bf16.mxu0 0
        %3337 = vmatpush1.bf16.msra.mxu0 0
        %3338 = vmatprep.subr.bf16.mxu0 0
        %3339 = vmatpush1.bf16.msra.mxu0 0
        %3340 = vmatprep.subr.bf16.mxu0 0
        %3341 = vmatpush1.bf16.msra.mxu0 0
        %3342 = vmatprep.subr.bf16.mxu0 0
        %3343 = vmatpush1.bf16.msra.mxu0 0
        %3344 = vmatprep.subr.bf16.mxu0 0
        %3345 = vmatpush1.bf16.msra.mxu0 0
        %3346 = vmatprep.subr.bf16.mxu0 0
        %3347 = vmatpush1.bf16.msra.mxu0 0
        %3348 = vmatprep.subr.bf16.mxu0 0
        %3349 = vmatpush1.bf16.msra.mxu0 0
        %3350 = vmatprep.subr.bf16.mxu0 0
        %3351 = vmatpush1.bf16.msra.mxu0 0
        %3352 = vmatprep.subr.bf16.mxu0 0
        %3353 = vmatpush1.bf16.msra.mxu0 0
        %3354 = vmatprep.subr.bf16.mxu0 0
        %3355 = vmatpush1.bf16.msra.mxu0 0
        %3356 = vmatprep.subr.bf16.mxu0 0
        %3357 = vmatpush1.bf16.msra.mxu0 0
        %3358 = vmatprep.subr.bf16.mxu0 0
        %3359 = vmatpush1.bf16.msra.mxu0 0
        %3360 = vmatprep.mubr.bf16.mxu0 0
        %3361 = vmatmul.mubr.bf16.gmra.mrb[0].mxu0 %v3239
        %v3362 = vpop.f32.mrb[0].mxu0
        %v3363 = vadd.f32 %v3292, %v3362
        %v3364 = vpop.f32.mrb[0].mxu0
        %v3365 = vadd.f32 %v3294, %v3364
        %v3366 = vpop.f32.mrb[0].mxu0
        %v3367 = vadd.f32 %v3296, %v3366
        %v3368 = vpop.f32.mrb[0].mxu0
        %v3369 = vadd.f32 %v3298, %v3368
        %3370 = vmatprep.mubr.bf16.mxu0 0
        %3371 = vmatmul.mubr.bf16.gmra.mrb[0].mxu0 %v3242
        %v3372 = vpop.f32.mrb[0].mxu0
        %v3373 = vadd.f32 %v3302, %v3372
        %v3374 = vpop.f32.mrb[0].mxu0
        %v3375 = vadd.f32 %v3304, %v3374
        %v3376 = vpop.f32.mrb[0].mxu0
        %v3377 = vadd.f32 %v3306, %v3376
        %v3378 = vpop.f32.mrb[0].mxu0
        %v3379 = vadd.f32 %v3308, %v3378
        %3380 = vmatprep.mubr.bf16.mxu0 0
        %3381 = vmatmul.mubr.bf16.gmra.mrb[0].mxu0 %v3245
        %v3382 = vpop.f32.mrb[0].mxu0
        %v3383 = vadd.f32 %v3312, %v3382
        %v3384 = vpop.f32.mrb[0].mxu0
        %v3385 = vadd.f32 %v3314, %v3384
        %v3386 = vpop.f32.mrb[0].mxu0
        %v3387 = vadd.f32 %v3316, %v3386
        %v3388 = vpop.f32.mrb[0].mxu0
        %v3389 = vadd.f32 %v3318, %v3388
        %3390 = vmatprep.mubr.bf16.mxu0 0
        %3391 = vmatmul.mubr.bf16.gmra.mrb[0].mxu0 %v3248
        %v3392 = vpop.f32.mrb[0].mxu0
        %v3393 = vadd.f32 %v3322, %v3392
        %v3394 = vpop.f32.mrb[0].mxu0
        %v3395 = vadd.f32 %v3324, %v3394
        %v3396 = vpop.f32.mrb[0].mxu0
        %v3397 = vpop.f32.mrb[0].mxu0
        %3398 = vdwg.mxu0
        %s3399 = scalar_lea.vmem %s6, 2
        %v3400 = vld [vmem:[%s3399] ss:$8 sm:$0x3]
        %v3402 = vlaneseq
        %v3403 = vshrl.u32 %v3402, 7
        %v3404 = vsub.s32 0, %v3403
        %v3405 = vrot.slane %v3400, %v3404
        %v3406 = vlaneseq
        %v3407 = vshrl.u32 %v3406, 7
        %v3408 = vsub.s32 1, %v3407
        %v3409 = vrot.slane %v3400, %v3408
        %v3412 = vmul.f32 %v3363, %v3405
        %v3413 = vmul.f32 %v3365, %v3409
        %v3414 = vmul.f32 %v3367, %v3405
        %v3415 = vmul.f32 %v3369, %v3409
        %v3416 = vmul.f32 %v3373, %v3405
        %v3417 = vmul.f32 %v3375, %v3409
        %v3418 = vmul.f32 %v3377, %v3405
        %v3419 = vmul.f32 %v3379, %v3409
        %v3420 = vmul.f32 %v3383, %v3405
        %v3421 = vmul.f32 %v3385, %v3409
        %v3422 = vmul.f32 %v3387, %v3405
        %v3423 = vmul.f32 %v3389, %v3409
        %v3424 = vmul.f32 %v3393, %v3405
        %v3425 = vmul.f32 %v3395, %v3409
        %s3426 = scalar_lea.vmem %s6, 3
        %v3427 = vld [vmem:[%s3426] ss:$8 sm:$0x3]
        %v3429 = vlaneseq
        %v3430 = vshrl.u32 %v3429, 7
        %v3431 = vsub.s32 0, %v3430
        %v3432 = vrot.slane %v3427, %v3431
        %v3433 = vlaneseq
        %v3434 = vshrl.u32 %v3433, 7
        %v3435 = vsub.s32 1, %v3434
        %v3436 = vrot.slane %v3427, %v3435
        %v3439 = vadd.f32 %v3412, %v3432
        %v3440 = vadd.f32 %v3413, %v3436
        %v3441 = vadd.f32 %v3414, %v3432
        %v3442 = vadd.f32 %v3415, %v3436
        %v3443 = vadd.f32 %v3416, %v3432
        %v3444 = vadd.f32 %v3417, %v3436
        %v3445 = vadd.f32 %v3418, %v3432
        %v3446 = vadd.f32 %v3419, %v3436
        %v3447 = vadd.f32 %v3420, %v3432
        %v3448 = vadd.f32 %v3421, %v3436
        %v3449 = vadd.f32 %v3422, %v3432
        %v3450 = vadd.f32 %v3423, %v3436
        %v3451 = vadd.f32 %v3424, %v3432
        %v3452 = vadd.f32 %v3425, %v3436
        %vm3453 = vcmp.gt.f32.partialorder %v3439, 0.0
        %vm3454 = vcmp.gt.f32.partialorder %v3440, 0.0
        %vm3455 = vcmp.gt.f32.partialorder %v3441, 0.0
        %vm3456 = vcmp.gt.f32.partialorder %v3442, 0.0
        %vm3457 = vcmp.gt.f32.partialorder %v3443, 0.0
        %vm3458 = vcmp.gt.f32.partialorder %v3444, 0.0
        %vm3459 = vcmp.gt.f32.partialorder %v3445, 0.0
        %vm3460 = vcmp.gt.f32.partialorder %v3446, 0.0
        %vm3461 = vcmp.gt.f32.partialorder %v3447, 0.0
        %vm3462 = vcmp.gt.f32.partialorder %v3448, 0.0
        %vm3463 = vcmp.gt.f32.partialorder %v3449, 0.0
        %vm3464 = vcmp.gt.f32.partialorder %v3450, 0.0
        %vm3465 = vcmp.gt.f32.partialorder %v3451, 0.0
        %vm3466 = vcmp.gt.f32.partialorder %v3452, 0.0
        %v3467 = vmin.f32 %v3439, 0.0
        %v3468 = vmin.f32 %v3440, 0.0
        %v3469 = vmin.f32 %v3441, 0.0
        %v3470 = vmin.f32 %v3442, 0.0
        %v3471 = vmin.f32 %v3443, 0.0
        %v3472 = vmin.f32 %v3444, 0.0
        %v3473 = vmin.f32 %v3445, 0.0
        %v3474 = vmin.f32 %v3446, 0.0
        %v3475 = vmin.f32 %v3447, 0.0
        %v3476 = vmin.f32 %v3448, 0.0
        %v3477 = vmin.f32 %v3449, 0.0
        %v3478 = vmin.f32 %v3450, 0.0
        %v3479 = vmin.f32 %v3451, 0.0
        %v3480 = vmin.f32 %v3452, 0.0
        %v3481 = vmul.f32 %v3467, 1.442695
        %v3482 = vpow.pop %v3481
        %v3483 = vmul.f32 %v3468, 1.442695
        %v3484 = vpow.pop %v3483
        %v3485 = vmul.f32 %v3469, 1.442695
        %v3486 = vpow.pop %v3485
        %v3487 = vmul.f32 %v3470, 1.442695
        %v3488 = vpow.pop %v3487
        %v3489 = vmul.f32 %v3471, 1.442695
        %v3490 = vpow.pop %v3489
        %v3491 = vmul.f32 %v3472, 1.442695
        %v3492 = vpow.pop %v3491
        %v3493 = vmul.f32 %v3473, 1.442695
        %v3494 = vpow.pop %v3493
        %v3495 = vmul.f32 %v3474, 1.442695
        %v3496 = vpow.pop %v3495
        %v3497 = vmul.f32 %v3475, 1.442695
        %v3498 = vpow.pop %v3497
        %v3499 = vmul.f32 %v3476, 1.442695
        %v3500 = vpow.pop %v3499
        %v3501 = vmul.f32 %v3477, 1.442695
        %v3502 = vpow.pop %v3501
        %v3503 = vmul.f32 %v3478, 1.442695
        %v3504 = vpow.pop %v3503
        %v3505 = vmul.f32 %v3479, 1.442695
        %v3506 = vpow.pop %v3505
        %v3507 = vmul.f32 %v3480, 1.442695
        %v3508 = vpow.pop %v3507
        %v3509 = vsub.f32 %v3482, 1.0
        %v3510 = vsub.f32 %v3484, 1.0
        %v3511 = vsub.f32 %v3486, 1.0
        %v3512 = vsub.f32 %v3488, 1.0
        %v3513 = vsub.f32 %v3490, 1.0
        %v3514 = vsub.f32 %v3492, 1.0
        %v3515 = vsub.f32 %v3494, 1.0
        %v3516 = vsub.f32 %v3496, 1.0
        %v3517 = vsub.f32 %v3498, 1.0
        %v3518 = vsub.f32 %v3500, 1.0
        %v3519 = vsub.f32 %v3502, 1.0
        %v3520 = vsub.f32 %v3504, 1.0
        %v3521 = vsub.f32 %v3506, 1.0
        %v3522 = vsub.f32 %v3508, 1.0
        %v3523 = vsel %vm3453, %v3439, %v3509
        %v3524 = vsel %vm3454, %v3440, %v3510
        %v3525 = vsel %vm3455, %v3441, %v3511
        %v3526 = vsel %vm3456, %v3442, %v3512
        %v3527 = vsel %vm3457, %v3443, %v3513
        %v3528 = vsel %vm3458, %v3444, %v3514
        %v3529 = vsel %vm3459, %v3445, %v3515
        %v3530 = vsel %vm3460, %v3446, %v3516
        %v3531 = vsel %vm3461, %v3447, %v3517
        %v3532 = vsel %vm3462, %v3448, %v3518
        %v3533 = vsel %vm3463, %v3449, %v3519
        %v3534 = vsel %vm3464, %v3450, %v3520
        %v3535 = vsel %vm3465, %v3451, %v3521
        %v3536 = vsel %vm3466, %v3452, %v3522
        %3544 = vrot.lane.b32.xlu0 %v3523, 78
        %v3545 = vpop.permute.xlu0 %3544
        %3546 = vrot.lane.b32.xlu0 %v3525, 78
        %v3547 = vpop.permute.xlu0 %3546
        %3548 = vrot.lane.b32.xlu0 %v3527, 78
        %v3549 = vpop.permute.xlu0 %3548
        %3550 = vrot.lane.b32.xlu0 %v3529, 78
        %v3551 = vpop.permute.xlu0 %3550
        %3552 = vrot.lane.b32.xlu0 %v3531, 78
        %v3553 = vpop.permute.xlu0 %3552
        %3554 = vrot.lane.b32.xlu0 %v3533, 78
        %v3555 = vpop.permute.xlu0 %3554
        %3556 = vrot.lane.b32.xlu0 %v3535, 78
        %v3557 = vpop.permute.xlu0 %3556
        %v3565 = vmax.f32 %v3523, %v3545
        %v3566 = vmax.f32 %v3525, %v3547
        %v3567 = vmax.f32 %v3527, %v3549
        %v3568 = vmax.f32 %v3529, %v3551
        %v3569 = vmax.f32 %v3531, %v3553
        %v3570 = vmax.f32 %v3533, %v3555
        %v3571 = vmax.f32 %v3535, %v3557
        %3579 = vrot.lane.b32.xlu0 %v3523, 28
        %v3580 = vpop.permute.xlu0 %3579
        %3581 = vrot.lane.b32.xlu0 %v3524, 28
        %v3582 = vpop.permute.xlu0 %3581
        %3583 = vrot.lane.b32.xlu0 %v3525, 28
        %v3584 = vpop.permute.xlu0 %3583
        %3585 = vrot.lane.b32.xlu0 %v3526, 28
        %v3586 = vpop.permute.xlu0 %3585
        %3587 = vrot.lane.b32.xlu0 %v3527, 28
        %v3588 = vpop.permute.xlu0 %3587
        %3589 = vrot.lane.b32.xlu0 %v3528, 28
        %v3590 = vpop.permute.xlu0 %3589
        %3591 = vrot.lane.b32.xlu0 %v3529, 28
        %v3592 = vpop.permute.xlu0 %3591
        %3593 = vrot.lane.b32.xlu0 %v3530, 28
        %v3594 = vpop.permute.xlu0 %3593
        %3595 = vrot.lane.b32.xlu0 %v3531, 28
        %v3596 = vpop.permute.xlu0 %3595
        %3597 = vrot.lane.b32.xlu0 %v3532, 28
        %v3598 = vpop.permute.xlu0 %3597
        %3599 = vrot.lane.b32.xlu0 %v3533, 28
        %v3600 = vpop.permute.xlu0 %3599
        %3601 = vrot.lane.b32.xlu0 %v3534, 28
        %v3602 = vpop.permute.xlu0 %3601
        %3603 = vrot.lane.b32.xlu0 %v3535, 28
        %v3604 = vpop.permute.xlu0 %3603
        %3605 = vrot.lane.b32.xlu0 %v3536, 28
        %v3606 = vpop.permute.xlu0 %3605
        %vm3607 = vcmask 228352
        %v3608 = vsel %vm3607, %v3580, %v3582
        %v3609 = vsel %vm3607, %v3584, %v3586
        %v3610 = vsel %vm3607, %v3588, %v3590
        %v3611 = vsel %vm3607, %v3592, %v3594
        %v3612 = vsel %vm3607, %v3596, %v3598
        %v3613 = vsel %vm3607, %v3600, %v3602
        %v3614 = vsel %vm3607, %v3604, %v3606
        %v3622 = vmax.f32 %v3565, %v3608
        %v3623 = vmax.f32 %v3566, %v3609
        %v3624 = vmax.f32 %v3567, %v3610
        %v3625 = vmax.f32 %v3568, %v3611
        %v3626 = vmax.f32 %v3569, %v3612
        %v3627 = vmax.f32 %v3570, %v3613
        %v3628 = vmax.f32 %v3571, %v3614
        %vm3629 = vcmask 408576
        %3630 = vst.msk [vmem:[#allocation5] sm:$0xff] %vm3629, %v3622
        %3631 = vst.msk [vmem:[#allocation5 + $0x8] sm:$0xff] %vm3629, %v3623
        %3632 = vst.msk [vmem:[#allocation5 + $0x10] sm:$0xff] %vm3629, %v3624
        %3633 = vst.msk [vmem:[#allocation5 + $0x18] sm:$0xff] %vm3629, %v3625
        %3634 = vst.msk [vmem:[#allocation5 + $0x20] sm:$0xff] %vm3629, %v3626
        %3635 = vst.msk [vmem:[#allocation5 + $0x28] sm:$0xff] %vm3629, %v3627
        %vm3636 = vcmask 406528
        %3637 = vst.msk [vmem:[#allocation5 + $0x30] sm:$0x3f] %vm3636, %v3628
        %v3638 = vld [vmem:[#allocation5] ss:$3 sm:$0xff]
        %s3639 = scalar_lea.vmem [#allocation5], 24
        %v3640 = vld [vmem:[%s3639] ss:$3 sm:$0x7f]
        %v3641 = vpack.c.bf16 %v3640, %v3638
        %v3643 = vunpack.c.l.b16 %v3641
        %v3644 = vunpack.c.h.b16 %v3641
        %v3645 = vpack.c.b16 %v3643, %v3643
        %v3646 = vpack.c.b16 %v3644, %v3644
        %vm3649 = vcmask 404480
        %3650 = vst.msk [vmem:[#allocation6] sm:$0xf] %vm3649, %v3645
        %vm3651 = vcmask 404480
        %vm3652 = vsmask.f32 3328
        %vm3653 = vmand %vm3651, %vm3652
        %v3654 = vld [vmem:[#allocation6 + $0x14] sm:$0xf]
        %v3655 = vsel %vm3653, %v3646, %v3654
        %3656 = vst [vmem:[#allocation6 + $0x14] sm:$0xf] %v3655
        %s3657 = scalar_lea.vmem [#allocation5], 1
        %v3658 = vld [vmem:[%s3657] ss:$3 sm:$0xff]
        %s3659 = scalar_lea.vmem [#allocation5], 25
        %v3660 = vld [vmem:[%s3659] ss:$3 sm:$0x7f]
        %v3661 = vpack.c.bf16 %v3660, %v3658
        %v3663 = vunpack.c.l.b16 %v3661
        %v3664 = vunpack.c.h.b16 %v3661
        %v3665 = vpack.c.b16 %v3663, %v3663
        %v3666 = vpack.c.b16 %v3664, %v3664
        %3667 = vrot.lane.b32.xlu0 %v3665, 50
        %v3668 = vpop.permute.xlu0 %3667
        %3669 = vrot.lane.b32.xlu0 %v3666, 50
        %v3670 = vpop.permute.xlu0 %3669
        %vm3673 = vcmask 814480
        %3674 = vst.msk [vmem:[#allocation6] sm:$0xf] %vm3673, %v3668
        %vm3675 = vcmask 814480
        %vm3676 = vmand %vm3675, %vm3652
        %v3677 = vld [vmem:[#allocation6 + $0x14] sm:$0xf]
        %v3678 = vsel %vm3676, %v3670, %v3677
        %3679 = vst [vmem:[#allocation6 + $0x14] sm:$0xf] %v3678
        %s3680 = scalar_lea.vmem [#allocation5], 2
        %v3681 = vld [vmem:[%s3680] ss:$3 sm:$0xff]
        %s3682 = scalar_lea.vmem [#allocation5], 26
        %v3683 = vld [vmem:[%s3682] ss:$3 sm:$0x7f]
        %v3684 = vpack.c.bf16 %v3683, %v3681
        %v3686 = vunpack.c.l.b16 %v3684
        %v3687 = vunpack.c.h.b16 %v3684
        %v3688 = vpack.c.b16 %v3686, %v3686
        %v3689 = vpack.c.b16 %v3687, %v3687
        %3690 = vrot.lane.b32.xlu0 %v3688, 100
        %v3691 = vpop.permute.xlu0 %3690
        %3692 = vrot.lane.b32.xlu0 %v3689, 100
        %v3693 = vpop.permute.xlu0 %3692
        %v3694 = vrot.slane %v3691, 4
        %v3695 = vrot.slane %v3693, 4
        %vm3696 = vcmask 818176
        %v3697 = vsel %vm3696, %v3694, %v3691
        %v3698 = vsel %vm3696, %v3695, %v3693
        %vm3701 = vcmask 1044256
        %vm3702 = vmor %vm2515, %vm3701
        %3703 = vst.msk [vmem:[#allocation6] sm:$0xff] %vm3702, %v3697
        %vm3704 = vcmask 1044256
        %vm3705 = vmand %vm3704, %vm3652
        %vm3706 = vcmask 179204
        %vm3707 = vsmask.f32 7424
        %vm3708 = vmand %vm3706, %vm3707
        %vm3709 = vmor %vm3708, %vm3705
        %v3710 = vld [vmem:[#allocation6 + $0x14] sm:$0xff]
        %v3711 = vsel %vm3709, %v3698, %v3710
        %3712 = vst [vmem:[#allocation6 + $0x14] sm:$0xff] %v3711
        %s3713 = scalar_lea.vmem [#allocation5], 3
        %v3714 = vld [vmem:[%s3713] ss:$3 sm:$0xff]
        %s3715 = scalar_lea.vmem [#allocation5], 27
        %v3716 = vld [vmem:[%s3715] ss:$3 sm:$0x7f]
        %v3717 = vpack.c.bf16 %v3716, %v3714
        %v3719 = vunpack.c.l.b16 %v3717
        %v3720 = vunpack.c.h.b16 %v3717
        %v3721 = vpack.c.b16 %v3719, %v3719
        %v3722 = vpack.c.b16 %v3720, %v3720
        %3723 = vrot.lane.b32.xlu0 %v3721, 22
        %v3724 = vpop.permute.xlu0 %3723
        %3725 = vrot.lane.b32.xlu0 %v3722, 22
        %v3726 = vpop.permute.xlu0 %3725
        %vm3729 = vcmask 584880
        %3730 = vst.msk [vmem:[#allocation6 + $0x4] sm:$0xf] %vm3729, %v3724
        %vm3731 = vcmask 584880
        %vm3732 = vmand %vm3731, %vm3652
        %v3733 = vld [vmem:[#allocation6 + $0x18] sm:$0xf]
        %v3734 = vsel %vm3732, %v3726, %v3733
        %3735 = vst [vmem:[#allocation6 + $0x18] sm:$0xf] %v3734
        %s3736 = scalar_lea.vmem [#allocation5], 4
        %v3737 = vld [vmem:[%s3736] ss:$3 sm:$0xff]
        %s3738 = scalar_lea.vmem [#allocation5], 28
        %v3739 = vld [vmem:[%s3738] ss:$3 sm:$0x7f]
        %v3740 = vpack.c.bf16 %v3739, %v3737
        %v3742 = vunpack.c.l.b16 %v3740
        %v3743 = vunpack.c.h.b16 %v3740
        %v3744 = vpack.c.b16 %v3742, %v3742
        %v3745 = vpack.c.b16 %v3743, %v3743
        %3746 = vrot.lane.b32.xlu0 %v3744, 72
        %v3747 = vpop.permute.xlu0 %3746
        %3748 = vrot.lane.b32.xlu0 %v3745, 72
        %v3749 = vpop.permute.xlu0 %3748
        %vm3752 = vcmask 994880
        %3753 = vst.msk [vmem:[#allocation6 + $0x4] sm:$0xf] %vm3752, %v3747
        %vm3754 = vcmask 994880
        %vm3755 = vmand %vm3754, %vm3652
        %v3756 = vld [vmem:[#allocation6 + $0x18] sm:$0xf]
        %v3757 = vsel %vm3755, %v3749, %v3756
        %3758 = vst [vmem:[#allocation6 + $0x18] sm:$0xf] %v3757
        %s3759 = scalar_lea.vmem [#allocation5], 5
        %v3760 = vld [vmem:[%s3759] ss:$3 sm:$0xff]
        %s3761 = scalar_lea.vmem [#allocation5], 29
        %v3762 = vld [vmem:[%s3761] ss:$3 sm:$0x7f]
        %v3763 = vpack.c.bf16 %v3762, %v3760
        %v3765 = vunpack.c.l.b16 %v3763
        %v3766 = vunpack.c.h.b16 %v3763
        %v3767 = vpack.c.b16 %v3765, %v3765
        %v3768 = vpack.c.b16 %v3766, %v3766
        %3769 = vrot.lane.b32.xlu0 %v3767, 122
        %v3770 = vpop.permute.xlu0 %3769
        %3771 = vrot.lane.b32.xlu0 %v3768, 122
        %v3772 = vpop.permute.xlu0 %3771
        %v3773 = vrot.slane %v3770, 4
        %v3774 = vrot.slane %v3772, 4
        %v3775 = vsel %vm2848, %v3773, %v3770
        %v3776 = vsel %vm2848, %v3774, %v3772
        %vm3779 = vcmask 359428
        %vm3780 = vmor %vm3779, %vm2863
        %3781 = vst.msk [vmem:[#allocation6 + $0x4] sm:$0xff] %vm3780, %v3775
        %vm3782 = vcmask 1044432
        %vm3783 = vmand %vm3782, %vm3652
        %vm3784 = vcmask 359428
        %vm3785 = vmand %vm3784, %vm3707
        %vm3786 = vmor %vm3785, %vm3783
        %v3787 = vld [vmem:[#allocation6 + $0x18] sm:$0xff]
        %v3788 = vsel %vm3786, %v3776, %v3787
        %3789 = vst [vmem:[#allocation6 + $0x18] sm:$0xff] %v3788
        %s3790 = scalar_lea.vmem [#allocation5], 6
        %v3791 = vld [vmem:[%s3790] ss:$3 sm:$0xff]
        %s3792 = scalar_lea.vmem [#allocation5], 30
        %v3793 = vld [vmem:[%s3792] ss:$3 sm:$0x7f]
        %v3794 = vpack.c.bf16 %v3793, %v3791
        %v3796 = vunpack.c.l.b16 %v3794
        %v3797 = vunpack.c.h.b16 %v3794
        %v3798 = vpack.c.b16 %v3796, %v3796
        %v3799 = vpack.c.b16 %v3797, %v3797
        %3800 = vrot.lane.b32.xlu0 %v3798, 44
        %v3801 = vpop.permute.xlu0 %3800
        %3802 = vrot.lane.b32.xlu0 %v3799, 44
        %v3803 = vpop.permute.xlu0 %3802
        %vm3806 = vcmask 765280
        %3807 = vst.msk [vmem:[#allocation6 + $0x8] sm:$0xf] %vm3806, %v3801
        %vm3808 = vcmask 765280
        %vm3809 = vmand %vm3808, %vm3652
        %v3810 = vld [vmem:[#allocation6 + $0x1c] sm:$0xf]
        %v3811 = vsel %vm3809, %v3803, %v3810
        %3812 = vst [vmem:[#allocation6 + $0x1c] sm:$0xf] %v3811
        %s3813 = scalar_lea.vmem [#allocation5], 7
        %v3814 = vld [vmem:[%s3813] ss:$3 sm:$0xff]
        %s3815 = scalar_lea.vmem [#allocation5], 31
        %v3816 = vld [vmem:[%s3815] ss:$3 sm:$0x7f]
        %v3817 = vpack.c.bf16 %v3816, %v3814
        %v3819 = vunpack.c.l.b16 %v3817
        %v3820 = vunpack.c.h.b16 %v3817
        %v3821 = vpack.c.b16 %v3819, %v3819
        %v3822 = vpack.c.b16 %v3820, %v3820
        %3823 = vrot.lane.b32.xlu0 %v3821, 94
        %v3824 = vpop.permute.xlu0 %3823
        %3825 = vrot.lane.b32.xlu0 %v3822, 94
        %v3826 = vpop.permute.xlu0 %3825
        %v3827 = vrot.slane %v3824, 4
        %v3828 = vrot.slane %v3826, 4
        %vm3829 = vcmask 769024
        %v3830 = vsel %vm3829, %v3827, %v3824
        %v3831 = vsel %vm3829, %v3828, %v3826
        %vm3834 = vcmask 1044208
        %vm3835 = vcmask 130052
        %vm3836 = vmor %vm3835, %vm3834
        %3837 = vst.msk [vmem:[#allocation6 + $0x8] sm:$0xff] %vm3836, %v3830
        %vm3838 = vcmask 1044208
        %vm3839 = vmand %vm3838, %vm3652
        %vm3840 = vcmask 130052
        %vm3841 = vmand %vm3840, %vm3707
        %vm3842 = vmor %vm3841, %vm3839
        %v3843 = vld [vmem:[#allocation6 + $0x1c] sm:$0xff]
        %v3844 = vsel %vm3842, %v3831, %v3843
        %3845 = vst [vmem:[#allocation6 + $0x1c] sm:$0xff] %v3844
        %s3846 = scalar_lea.vmem [#allocation5], 8
        %v3847 = vld [vmem:[%s3846] ss:$3 sm:$0xff]
        %s3848 = scalar_lea.vmem [#allocation5], 32
        %v3849 = vld [vmem:[%s3848] ss:$3 sm:$0x7f]
        %v3850 = vpack.c.bf16 %v3849, %v3847
        %v3852 = vunpack.c.l.b16 %v3850
        %v3853 = vunpack.c.h.b16 %v3850
        %v3854 = vpack.c.b16 %v3852, %v3852
        %v3855 = vpack.c.b16 %v3853, %v3853
        %3856 = vrot.lane.b32.xlu0 %v3854, 16
        %v3857 = vpop.permute.xlu0 %3856
        %3858 = vrot.lane.b32.xlu0 %v3855, 16
        %v3859 = vpop.permute.xlu0 %3858
        %vm3862 = vcmask 535680
        %3863 = vst.msk [vmem:[#allocation6 + $0xc] sm:$0xf] %vm3862, %v3857
        %vm3864 = vcmask 535680
        %vm3865 = vmand %vm3864, %vm3652
        %v3866 = vld [vmem:[#allocation6 + $0x20] sm:$0xf]
        %v3867 = vsel %vm3865, %v3859, %v3866
        %3868 = vst [vmem:[#allocation6 + $0x20] sm:$0xf] %v3867
        %s3869 = scalar_lea.vmem [#allocation5], 9
        %v3870 = vld [vmem:[%s3869] ss:$3 sm:$0xff]
        %s3871 = scalar_lea.vmem [#allocation5], 33
        %v3872 = vld [vmem:[%s3871] ss:$3 sm:$0x7f]
        %v3873 = vpack.c.bf16 %v3872, %v3870
        %v3875 = vunpack.c.l.b16 %v3873
        %v3876 = vunpack.c.h.b16 %v3873
        %v3877 = vpack.c.b16 %v3875, %v3875
        %v3878 = vpack.c.b16 %v3876, %v3876
        %3879 = vrot.lane.b32.xlu0 %v3877, 66
        %v3880 = vpop.permute.xlu0 %3879
        %3881 = vrot.lane.b32.xlu0 %v3878, 66
        %v3882 = vpop.permute.xlu0 %3881
        %vm3885 = vcmask 945680
        %3886 = vst.msk [vmem:[#allocation6 + $0xc] sm:$0xf] %vm3885, %v3880
        %vm3887 = vcmask 945680
        %vm3888 = vmand %vm3887, %vm3652
        %v3889 = vld [vmem:[#allocation6 + $0x20] sm:$0xf]
        %v3890 = vsel %vm3888, %v3882, %v3889
        %3891 = vst [vmem:[#allocation6 + $0x20] sm:$0xf] %v3890
        %s3892 = scalar_lea.vmem [#allocation5], 10
        %v3893 = vld [vmem:[%s3892] ss:$3 sm:$0xff]
        %s3894 = scalar_lea.vmem [#allocation5], 34
        %v3895 = vld [vmem:[%s3894] ss:$3 sm:$0x7f]
        %v3896 = vpack.c.bf16 %v3895, %v3893
        %v3898 = vunpack.c.l.b16 %v3896
        %v3899 = vunpack.c.h.b16 %v3896
        %v3900 = vpack.c.b16 %v3898, %v3898
        %v3901 = vpack.c.b16 %v3899, %v3899
        %3902 = vrot.lane.b32.xlu0 %v3900, 116
        %v3903 = vpop.permute.xlu0 %3902
        %3904 = vrot.lane.b32.xlu0 %v3901, 116
        %v3905 = vpop.permute.xlu0 %3904
        %v3906 = vrot.slane %v3903, 4
        %v3907 = vrot.slane %v3905, 4
        %vm3908 = vcmask 949248
        %v3909 = vsel %vm3908, %v3906, %v3903
        %v3910 = vsel %vm3908, %v3907, %v3905
        %vm3913 = vcmask 1044384
        %vm3914 = vcmask 310276
        %vm3915 = vmor %vm3914, %vm3913
        %3916 = vst.msk [vmem:[#allocation6 + $0xc] sm:$0xff] %vm3915, %v3909
        %vm3917 = vcmask 1044384
        %vm3918 = vmand %vm3917, %vm3652
        %vm3919 = vcmask 310276
        %vm3920 = vmand %vm3919, %vm3707
        %vm3921 = vmor %vm3920, %vm3918
        %v3922 = vld [vmem:[#allocation6 + $0x20] sm:$0xff]
        %v3923 = vsel %vm3921, %v3910, %v3922
        %3924 = vst [vmem:[#allocation6 + $0x20] sm:$0xff] %v3923
        %s3925 = scalar_lea.vmem [#allocation5], 11
        %v3926 = vld [vmem:[%s3925] ss:$3 sm:$0xff]
        %s3927 = scalar_lea.vmem [#allocation5], 35
        %v3928 = vld [vmem:[%s3927] ss:$3 sm:$0x7f]
        %v3929 = vpack.c.bf16 %v3928, %v3926
        %v3931 = vunpack.c.l.b16 %v3929
        %v3932 = vunpack.c.h.b16 %v3929
        %v3933 = vpack.c.b16 %v3931, %v3931
        %v3934 = vpack.c.b16 %v3932, %v3932
        %3935 = vrot.lane.b32.xlu0 %v3933, 38
        %v3936 = vpop.permute.xlu0 %3935
        %3937 = vrot.lane.b32.xlu0 %v3934, 38
        %v3938 = vpop.permute.xlu0 %3937
        %vm3941 = vcmask 716080
        %3942 = vst.msk [vmem:[#allocation6 + $0x10] sm:$0xf] %vm3941, %v3936
        %vm3943 = vcmask 716080
        %vm3944 = vmand %vm3943, %vm3652
        %v3945 = vld [vmem:[#allocation6 + $0x24] sm:$0xf]
        %v3946 = vsel %vm3944, %v3938, %v3945
        %3947 = vst [vmem:[#allocation6 + $0x24] sm:$0xf] %v3946
        %v3948 = vld [vmem:[#allocation6] sm:$0xff]
        %v3949 = vld [vmem:[#allocation6 + $0x8] sm:$0xff]
        %v3950 = vld [vmem:[#allocation6 + $0x10] sm:$0xf]
        %v3951 = vld [vmem:[#allocation6 + $0x14] sm:$0xff]
        %v3952 = vld [vmem:[#allocation6 + $0x1c] sm:$0xff]
        %v3953 = vld [vmem:[#allocation6 + $0x24] sm:$0xf]
        %v3954 = vld [vmem:[%s3] sm:$0xff]
        %v3955 = vld [vmem:[%s3 + $0x8] sm:$0xf]
        %v3956 = vld [vmem:[%s3 + $0xc] sm:$0xff]
        %v3957 = vld [vmem:[%s3 + $0x14] sm:$0xf]
        %v3958 = vld [vmem:[%s3 + $0x18] sm:$0xff]
        %v3959 = vld [vmem:[%s3 + $0x20] sm:$0xf]
        %v3960 = vld [vmem:[%s3 + $0x24] sm:$0xff]
        %v3961 = vld [vmem:[%s3 + $0x2c] sm:$0xf]
        %v3962 = vld [vmem:[%s3 + $0x30] sm:$0xff]
        %v3963 = vld [vmem:[%s3 + $0x38] sm:$0xf]
        %v3964 = vld [vmem:[%s3 + $0x3c] sm:$0xff]
        %v3965 = vld [vmem:[%s3 + $0x44] sm:$0xf]
        %v3966 = vld [vmem:[%s3 + $0x48] sm:$0xff]
        %v3967 = vld [vmem:[%s3 + $0x50] sm:$0xf]
        %v3968 = vld [vmem:[%s3 + $0x54] sm:$0xff]
        %v3969 = vld [vmem:[%s3 + $0x5c] sm:$0xf]
        %v3970 = vld [vmem:[%s3 + $0x60] sm:$0xff]
        %v3971 = vld [vmem:[%s3 + $0x68] sm:$0xf]
        %v3972 = vld [vmem:[%s3 + $0x6c] sm:$0xff]
        %v3973 = vld [vmem:[%s3 + $0x74] sm:$0xf]
        %v3974 = vld [vmem:[%s3 + $0x78] sm:$0xff]
        %v3975 = vld [vmem:[%s3 + $0x80] sm:$0xf]
        %v3976 = vld [vmem:[%s3 + $0x84] sm:$0xff]
        %v3977 = vld [vmem:[%s3 + $0x8c] sm:$0xf]
        %v3978 = vld [vmem:[%s3 + $0x90] sm:$0xff]
        %v3979 = vld [vmem:[%s3 + $0x98] sm:$0xf]
        %v3980 = vld [vmem:[%s3 + $0x9c] sm:$0xff]
        %v3981 = vld [vmem:[%s3 + $0xa4] sm:$0xf]
        %v3982 = vld [vmem:[%s3 + $0xa8] sm:$0xff]
        %v3983 = vld [vmem:[%s3 + $0xb0] sm:$0xf]
        %v3984 = vld [vmem:[%s3 + $0xb4] sm:$0xff]
        %v3985 = vld [vmem:[%s3 + $0xbc] sm:$0xf]
        %v3986 = vld [vmem:[%s3 + $0xc0] sm:$0xff]
        %v3987 = vld [vmem:[%s3 + $0xc8] sm:$0xf]
        %v3988 = vld [vmem:[%s3 + $0xcc] sm:$0xff]
        %v3989 = vld [vmem:[%s3 + $0xd4] sm:$0xf]
        %v3990 = vld [vmem:[%s3 + $0xd8] sm:$0xff]
        %v3991 = vld [vmem:[%s3 + $0xe0] sm:$0xf]
        %v3992 = vld [vmem:[%s3 + $0xe4] sm:$0xff]
        %v3993 = vld [vmem:[%s3 + $0xec] sm:$0xf]
        %v3994 = vld [vmem:[%s3 + $0xf0] sm:$0xff]
        %v3995 = vld [vmem:[%s3 + $0xf8] sm:$0xf]
        %v3996 = vld [vmem:[%s3 + $0xfc] sm:$0xff]
        %v3997 = vld [vmem:[%s3 + $0x104] sm:$0xf]
        %v3998 = vld [vmem:[%s3 + $0x108] sm:$0xff]
        %v3999 = vld [vmem:[%s3 + $0x110] sm:$0xf]
        %v4000 = vld [vmem:[%s3 + $0x114] sm:$0xff]
        %v4001 = vld [vmem:[%s3 + $0x11c] sm:$0xf]
        %v4002 = vld [vmem:[%s3 + $0x120] sm:$0xff]
        %v4003 = vld [vmem:[%s3 + $0x128] sm:$0xf]
        %v4004 = vld [vmem:[%s3 + $0x12c] sm:$0xff]
        %v4005 = vld [vmem:[%s3 + $0x134] sm:$0xf]
        %v4006 = vld [vmem:[%s3 + $0x138] sm:$0xff]
        %v4007 = vld [vmem:[%s3 + $0x140] sm:$0xf]
        %v4008 = vld [vmem:[%s3 + $0x144] sm:$0xff]
        %v4009 = vld [vmem:[%s3 + $0x14c] sm:$0xf]
        %v4010 = vld [vmem:[%s3 + $0x150] sm:$0xff]
        %v4011 = vld [vmem:[%s3 + $0x158] sm:$0xf]
        %v4012 = vld [vmem:[%s3 + $0x15c] sm:$0xff]
        %v4013 = vld [vmem:[%s3 + $0x164] sm:$0xf]
        %v4014 = vld [vmem:[%s3 + $0x168] sm:$0xff]
        %v4015 = vld [vmem:[%s3 + $0x170] sm:$0xf]
        %v4016 = vld [vmem:[%s3 + $0x174] sm:$0xff]
        %v4017 = vld [vmem:[%s3 + $0x17c] sm:$0xf]
        %v4018 = vld [vmem:[%s3 + $0x180] sm:$0xff]
        %v4019 = vld [vmem:[%s3 + $0x188] sm:$0xf]
        %v4020 = vld [vmem:[%s3 + $0x18c] sm:$0xff]
        %v4021 = vld [vmem:[%s3 + $0x194] sm:$0xf]
        %v4022 = vld [vmem:[%s3 + $0x198] sm:$0xff]
        %v4023 = vld [vmem:[%s3 + $0x1a0] sm:$0xf]
        %v4024 = vld [vmem:[%s3 + $0x1a4] sm:$0xff]
        %v4025 = vld [vmem:[%s3 + $0x1ac] sm:$0xf]
        %v4026 = vld [vmem:[%s3 + $0x1b0] sm:$0xff]
        %v4027 = vld [vmem:[%s3 + $0x1b8] sm:$0xf]
        %v4028 = vld [vmem:[%s3 + $0x1bc] sm:$0xff]
        %v4029 = vld [vmem:[%s3 + $0x1c4] sm:$0xf]
        %v4030 = vld [vmem:[%s3 + $0x1c8] sm:$0xff]
        %v4031 = vld [vmem:[%s3 + $0x1d0] sm:$0xf]
        %v4032 = vld [vmem:[%s3 + $0x1d4] sm:$0xff]
        %v4033 = vld [vmem:[%s3 + $0x1dc] sm:$0xf]
        %v4034 = vld [vmem:[%s3 + $0x1e0] sm:$0xff]
        %v4035 = vld [vmem:[%s3 + $0x1e8] sm:$0xf]
        %v4036 = vld [vmem:[%s3 + $0x1ec] sm:$0xff]
        %v4037 = vld [vmem:[%s3 + $0x1f4] sm:$0xf]
        %v4038 = vld [vmem:[%s3 + $0x1f8] sm:$0xff]
        %v4039 = vld [vmem:[%s3 + $0x200] sm:$0xf]
        %v4040 = vld [vmem:[%s3 + $0x204] sm:$0xff]
        %v4041 = vld [vmem:[%s3 + $0x20c] sm:$0xf]
        %v4042 = vld [vmem:[%s3 + $0x210] sm:$0xff]
        %v4043 = vld [vmem:[%s3 + $0x218] sm:$0xf]
        %v4044 = vld [vmem:[%s3 + $0x21c] sm:$0xff]
        %v4045 = vld [vmem:[%s3 + $0x224] sm:$0xf]
        %v4046 = vld [vmem:[%s3 + $0x228] sm:$0xff]
        %v4047 = vld [vmem:[%s3 + $0x230] sm:$0xf]
        %v4048 = vld [vmem:[%s3 + $0x234] sm:$0xff]
        %v4049 = vld [vmem:[%s3 + $0x23c] sm:$0xf]
        %v4050 = vld [vmem:[%s3 + $0x240] sm:$0xff]
        %v4051 = vld [vmem:[%s3 + $0x248] sm:$0xf]
        %v4052 = vld [vmem:[%s3 + $0x24c] sm:$0xff]
        %v4053 = vld [vmem:[%s3 + $0x254] sm:$0xf]
        %v4054 = vld [vmem:[%s3 + $0x258] sm:$0xff]
        %v4055 = vld [vmem:[%s3 + $0x260] sm:$0xf]
        %v4056 = vld [vmem:[%s3 + $0x264] sm:$0xff]
        %v4057 = vld [vmem:[%s3 + $0x26c] sm:$0xf]
        %v4058 = vld [vmem:[%s3 + $0x270] sm:$0xff]
        %v4059 = vld [vmem:[%s3 + $0x278] sm:$0xf]
        %v4060 = vld [vmem:[%s3 + $0x27c] sm:$0xff]
        %v4061 = vld [vmem:[%s3 + $0x284] sm:$0xf]
        %v4062 = vld [vmem:[%s3 + $0x288] sm:$0xff]
        %v4063 = vld [vmem:[%s3 + $0x290] sm:$0xf]
        %v4064 = vld [vmem:[%s3 + $0x294] sm:$0xff]
        %v4065 = vld [vmem:[%s3 + $0x29c] sm:$0xf]
        %v4066 = vld [vmem:[%s3 + $0x2a0] sm:$0xff]
        %v4067 = vld [vmem:[%s3 + $0x2a8] sm:$0xf]
        %v4068 = vld [vmem:[%s3 + $0x2ac] sm:$0xff]
        %v4069 = vld [vmem:[%s3 + $0x2b4] sm:$0xf]
        %v4070 = vld [vmem:[%s3 + $0x2b8] sm:$0xff]
        %v4071 = vld [vmem:[%s3 + $0x2c0] sm:$0xf]
        %v4072 = vld [vmem:[%s3 + $0x2c4] sm:$0xff]
        %v4073 = vld [vmem:[%s3 + $0x2cc] sm:$0xf]
        %v4074 = vld [vmem:[%s3 + $0x2d0] sm:$0xff]
        %v4075 = vld [vmem:[%s3 + $0x2d8] sm:$0xf]
        %v4076 = vld [vmem:[%s3 + $0x2dc] sm:$0xff]
        %v4077 = vld [vmem:[%s3 + $0x2e4] sm:$0xf]
        %v4078 = vld [vmem:[%s3 + $0x2e8] sm:$0xff]
        %v4079 = vld [vmem:[%s3 + $0x2f0] sm:$0xf]
        %v4080 = vld [vmem:[%s3 + $0x2f4] sm:$0xff]
        %v4081 = vld [vmem:[%s3 + $0x2fc] sm:$0xf]
        %v4082 = vld [vmem:[%s3 + $0x300] sm:$0xff]
        %v4083 = vld [vmem:[%s3 + $0x308] sm:$0xf]
        %v4084 = vld [vmem:[%s3 + $0x30c] sm:$0xff]
        %v4085 = vld [vmem:[%s3 + $0x314] sm:$0xf]
        %v4086 = vld [vmem:[%s3 + $0x318] sm:$0xff]
        %v4087 = vld [vmem:[%s3 + $0x320] sm:$0xf]
        %v4088 = vld [vmem:[%s3 + $0x324] sm:$0xff]
        %v4089 = vld [vmem:[%s3 + $0x32c] sm:$0xf]
        %v4090 = vld [vmem:[%s3 + $0x330] sm:$0xff]
        %v4091 = vld [vmem:[%s3 + $0x338] sm:$0xf]
        %v4092 = vld [vmem:[%s3 + $0x33c] sm:$0xff]
        %v4093 = vld [vmem:[%s3 + $0x344] sm:$0xf]
        %v4094 = vld [vmem:[%s3 + $0x348] sm:$0xff]
        %v4095 = vld [vmem:[%s3 + $0x350] sm:$0xf]
        %v4096 = vld [vmem:[%s3 + $0x354] sm:$0xff]
        %v4097 = vld [vmem:[%s3 + $0x35c] sm:$0xf]
        %v4098 = vld [vmem:[%s3 + $0x360] sm:$0xff]
        %v4099 = vld [vmem:[%s3 + $0x368] sm:$0xf]
        %v4100 = vld [vmem:[%s3 + $0x36c] sm:$0xff]
        %v4101 = vld [vmem:[%s3 + $0x374] sm:$0xf]
        %v4102 = vld [vmem:[%s3 + $0x378] sm:$0xff]
        %v4103 = vld [vmem:[%s3 + $0x380] sm:$0xf]
        %s4104 = scalar_lea.vmem %s6, 4
        %v4105 = vld [vmem:[%s4104] ss:$8 sm:$0x7]
        %v4107 = vlaneseq
        %v4108 = vshrl.u32 %v4107, 7
        %v4109 = vsub.s32 0, %v4108
        %v4110 = vrot.slane %v4105, %v4109
        %v4111 = vlaneseq
        %v4112 = vshrl.u32 %v4111, 7
        %v4113 = vsub.s32 1, %v4112
        %v4114 = vrot.slane %v4105, %v4113
        %v4115 = vlaneseq
        %v4116 = vshrl.u32 %v4115, 7
        %v4117 = vsub.s32 2, %v4116
        %v4118 = vrot.slane %v4105, %v4117
        %v4128 = vunpack.c.l.b16 %v3948
        %v4129 = vunpack.c.h.b16 %v3948
        %v4130 = vunpack.c.l.b16 %v3949
        %v4131 = vunpack.c.h.b16 %v3949
        %v4132 = vunpack.c.l.b16 %v3950
        %v4133 = vunpack.c.l.b16 %v3951
        %v4134 = vunpack.c.h.b16 %v3951
        %v4135 = vunpack.c.l.b16 %v3952
        %v4136 = vunpack.c.h.b16 %v3952
        %v4137 = vunpack.c.l.b16 %v3953
        %v4138 = vpack.c.b16 %v4133, %v4128
        %v4139 = vpack.c.b16 %v4134, %v4129
        %v4140 = vpack.c.b16 %v4135, %v4130
        %v4141 = vpack.c.b16 %v4136, %v4131
        %v4142 = vpack.c.b16 %v4137, %v4132
        %v4297 = vunpack.c.l.b16 %v3954
        %v4298 = vunpack.c.h.b16 %v3954
        %v4299 = vunpack.c.l.b16 %v3955
        %v4300 = vunpack.c.l.b16 %v3956
        %v4301 = vunpack.c.h.b16 %v3956
        %v4302 = vunpack.c.l.b16 %v3957
        %v4303 = vunpack.c.l.b16 %v3958
        %v4304 = vunpack.c.h.b16 %v3958
        %v4305 = vunpack.c.l.b16 %v3959
        %v4306 = vunpack.c.l.b16 %v3960
        %v4307 = vunpack.c.h.b16 %v3960
        %v4308 = vunpack.c.l.b16 %v3961
        %v4309 = vunpack.c.l.b16 %v3962
        %v4310 = vunpack.c.h.b16 %v3962
        %v4311 = vunpack.c.l.b16 %v3963
        %v4312 = vunpack.c.l.b16 %v3964
        %v4313 = vunpack.c.h.b16 %v3964
        %v4314 = vunpack.c.l.b16 %v3965
        %v4315 = vunpack.c.l.b16 %v3966
        %v4316 = vunpack.c.h.b16 %v3966
        %v4317 = vunpack.c.l.b16 %v3967
        %v4318 = vunpack.c.l.b16 %v3968
        %v4319 = vunpack.c.h.b16 %v3968
        %v4320 = vunpack.c.l.b16 %v3969
        %v4321 = vunpack.c.l.b16 %v3970
        %v4322 = vunpack.c.h.b16 %v3970
        %v4323 = vunpack.c.l.b16 %v3971
        %v4324 = vunpack.c.l.b16 %v3972
        %v4325 = vunpack.c.h.b16 %v3972
        %v4326 = vunpack.c.l.b16 %v3973
        %v4327 = vunpack.c.l.b16 %v3974
        %v4328 = vunpack.c.h.b16 %v3974
        %v4329 = vunpack.c.l.b16 %v3975
        %v4330 = vunpack.c.l.b16 %v3976
        %v4331 = vunpack.c.h.b16 %v3976
        %v4332 = vunpack.c.l.b16 %v3977
        %v4333 = vunpack.c.l.b16 %v3978
        %v4334 = vunpack.c.h.b16 %v3978
        %v4335 = vunpack.c.l.b16 %v3979
        %v4336 = vunpack.c.l.b16 %v3980
        %v4337 = vunpack.c.h.b16 %v3980
        %v4338 = vunpack.c.l.b16 %v3981
        %v4339 = vunpack.c.l.b16 %v3982
        %v4340 = vunpack.c.h.b16 %v3982
        %v4341 = vunpack.c.l.b16 %v3983
        %v4342 = vunpack.c.l.b16 %v3984
        %v4343 = vunpack.c.h.b16 %v3984
        %v4344 = vunpack.c.l.b16 %v3985
        %v4345 = vunpack.c.l.b16 %v3986
        %v4346 = vunpack.c.h.b16 %v3986
        %v4347 = vunpack.c.l.b16 %v3987
        %v4348 = vunpack.c.l.b16 %v3988
        %v4349 = vunpack.c.h.b16 %v3988
        %v4350 = vunpack.c.l.b16 %v3989
        %v4351 = vunpack.c.l.b16 %v3990
        %v4352 = vunpack.c.h.b16 %v3990
        %v4353 = vunpack.c.l.b16 %v3991
        %v4354 = vunpack.c.l.b16 %v3992
        %v4355 = vunpack.c.h.b16 %v3992
        %v4356 = vunpack.c.l.b16 %v3993
        %v4357 = vunpack.c.l.b16 %v3994
        %v4358 = vunpack.c.h.b16 %v3994
        %v4359 = vunpack.c.l.b16 %v3995
        %v4360 = vunpack.c.l.b16 %v3996
        %v4361 = vunpack.c.h.b16 %v3996
        %v4362 = vunpack.c.l.b16 %v3997
        %v4363 = vunpack.c.l.b16 %v3998
        %v4364 = vunpack.c.h.b16 %v3998
        %v4365 = vunpack.c.l.b16 %v3999
        %v4366 = vunpack.c.l.b16 %v4000
        %v4367 = vunpack.c.h.b16 %v4000
        %v4368 = vunpack.c.l.b16 %v4001
        %v4369 = vunpack.c.l.b16 %v4002
        %v4370 = vunpack.c.h.b16 %v4002
        %v4371 = vunpack.c.l.b16 %v4003
        %v4372 = vunpack.c.l.b16 %v4004
        %v4373 = vunpack.c.h.b16 %v4004
        %v4374 = vunpack.c.l.b16 %v4005
        %v4375 = vunpack.c.l.b16 %v4006
        %v4376 = vunpack.c.h.b16 %v4006
        %v4377 = vunpack.c.l.b16 %v4007
        %v4378 = vunpack.c.l.b16 %v4008
        %v4379 = vunpack.c.h.b16 %v4008
        %v4380 = vunpack.c.l.b16 %v4009
        %v4381 = vunpack.c.l.b16 %v4010
        %v4382 = vunpack.c.h.b16 %v4010
        %v4383 = vunpack.c.l.b16 %v4011
        %v4384 = vunpack.c.l.b16 %v4012
        %v4385 = vunpack.c.h.b16 %v4012
        %v4386 = vunpack.c.l.b16 %v4013
        %v4387 = vunpack.c.l.b16 %v4014
        %v4388 = vunpack.c.h.b16 %v4014
        %v4389 = vunpack.c.l.b16 %v4015
        %v4390 = vunpack.c.l.b16 %v4016
        %v4391 = vunpack.c.h.b16 %v4016
        %v4392 = vunpack.c.l.b16 %v4017
        %v4393 = vunpack.c.l.b16 %v4018
        %v4394 = vunpack.c.h.b16 %v4018
        %v4395 = vunpack.c.l.b16 %v4019
        %v4396 = vunpack.c.l.b16 %v4020
        %v4397 = vunpack.c.h.b16 %v4020
        %v4398 = vunpack.c.l.b16 %v4021
        %v4399 = vunpack.c.l.b16 %v4022
        %v4400 = vunpack.c.h.b16 %v4022
        %v4401 = vunpack.c.l.b16 %v4023
        %v4402 = vunpack.c.l.b16 %v4024
        %v4403 = vunpack.c.h.b16 %v4024
        %v4404 = vunpack.c.l.b16 %v4025
        %v4405 = vunpack.c.l.b16 %v4026
        %v4406 = vunpack.c.h.b16 %v4026
        %v4407 = vunpack.c.l.b16 %v4027
        %v4408 = vunpack.c.l.b16 %v4028
        %v4409 = vunpack.c.h.b16 %v4028
        %v4410 = vunpack.c.l.b16 %v4029
        %v4411 = vunpack.c.l.b16 %v4030
        %v4412 = vunpack.c.h.b16 %v4030
        %v4413 = vunpack.c.l.b16 %v4031
        %v4414 = vunpack.c.l.b16 %v4032
        %v4415 = vunpack.c.h.b16 %v4032
        %v4416 = vunpack.c.l.b16 %v4033
        %v4417 = vunpack.c.l.b16 %v4034
        %v4418 = vunpack.c.h.b16 %v4034
        %v4419 = vunpack.c.l.b16 %v4035
        %v4420 = vunpack.c.l.b16 %v4036
        %v4421 = vunpack.c.h.b16 %v4036
        %v4422 = vunpack.c.l.b16 %v4037
        %v4423 = vunpack.c.l.b16 %v4038
        %v4424 = vunpack.c.h.b16 %v4038
        %v4425 = vunpack.c.l.b16 %v4039
        %v4426 = vunpack.c.l.b16 %v4040
        %v4427 = vunpack.c.h.b16 %v4040
        %v4428 = vunpack.c.l.b16 %v4041
        %v4429 = vunpack.c.l.b16 %v4042
        %v4430 = vunpack.c.h.b16 %v4042
        %v4431 = vunpack.c.l.b16 %v4043
        %v4432 = vunpack.c.l.b16 %v4044
        %v4433 = vunpack.c.h.b16 %v4044
        %v4434 = vunpack.c.l.b16 %v4045
        %v4435 = vunpack.c.l.b16 %v4046
        %v4436 = vunpack.c.h.b16 %v4046
        %v4437 = vunpack.c.l.b16 %v4047
        %v4438 = vunpack.c.l.b16 %v4048
        %v4439 = vunpack.c.h.b16 %v4048
        %v4440 = vunpack.c.l.b16 %v4049
        %v4441 = vunpack.c.l.b16 %v4050
        %v4442 = vunpack.c.h.b16 %v4050
        %v4443 = vunpack.c.l.b16 %v4051
        %v4444 = vunpack.c.l.b16 %v4052
        %v4445 = vunpack.c.h.b16 %v4052
        %v4446 = vunpack.c.l.b16 %v4053
        %v4447 = vunpack.c.l.b16 %v4054
        %v4448 = vunpack.c.h.b16 %v4054
        %v4449 = vunpack.c.l.b16 %v4055
        %v4450 = vunpack.c.l.b16 %v4056
        %v4451 = vunpack.c.h.b16 %v4056
        %v4452 = vunpack.c.l.b16 %v4057
        %v4453 = vunpack.c.l.b16 %v4058
        %v4454 = vunpack.c.h.b16 %v4058
        %v4455 = vunpack.c.l.b16 %v4059
        %v4456 = vunpack.c.l.b16 %v4060
        %v4457 = vunpack.c.h.b16 %v4060
        %v4458 = vunpack.c.l.b16 %v4061
        %v4459 = vunpack.c.l.b16 %v4062
        %v4460 = vunpack.c.h.b16 %v4062
        %v4461 = vunpack.c.l.b16 %v4063
        %v4462 = vunpack.c.l.b16 %v4064
        %v4463 = vunpack.c.h.b16 %v4064
        %v4464 = vunpack.c.l.b16 %v4065
        %v4465 = vunpack.c.l.b16 %v4066
        %v4466 = vunpack.c.h.b16 %v4066
        %v4467 = vunpack.c.l.b16 %v4067
        %v4468 = vunpack.c.l.b16 %v4068
        %v4469 = vunpack.c.h.b16 %v4068
        %v4470 = vunpack.c.l.b16 %v4069
        %v4471 = vunpack.c.l.b16 %v4070
        %v4472 = vunpack.c.h.b16 %v4070
        %v4473 = vunpack.c.l.b16 %v4071
        %v4474 = vunpack.c.l.b16 %v4072
        %v4475 = vunpack.c.h.b16 %v4072
        %v4476 = vunpack.c.l.b16 %v4073
        %v4477 = vunpack.c.l.b16 %v4074
        %v4478 = vunpack.c.h.b16 %v4074
        %v4479 = vunpack.c.l.b16 %v4075
        %v4480 = vunpack.c.l.b16 %v4076
        %v4481 = vunpack.c.h.b16 %v4076
        %v4482 = vunpack.c.l.b16 %v4077
        %v4483 = vunpack.c.l.b16 %v4078
        %v4484 = vunpack.c.h.b16 %v4078
        %v4485 = vunpack.c.l.b16 %v4079
        %v4486 = vunpack.c.l.b16 %v4080
        %v4487 = vunpack.c.h.b16 %v4080
        %v4488 = vunpack.c.l.b16 %v4081
        %v4489 = vunpack.c.l.b16 %v4082
        %v4490 = vunpack.c.h.b16 %v4082
        %v4491 = vunpack.c.l.b16 %v4083
        %v4492 = vunpack.c.l.b16 %v4084
        %v4493 = vunpack.c.h.b16 %v4084
        %v4494 = vunpack.c.l.b16 %v4085
        %v4495 = vunpack.c.l.b16 %v4086
        %v4496 = vunpack.c.h.b16 %v4086
        %v4497 = vunpack.c.l.b16 %v4087
        %v4498 = vunpack.c.l.b16 %v4088
        %v4499 = vunpack.c.h.b16 %v4088
        %v4500 = vunpack.c.l.b16 %v4089
        %v4501 = vunpack.c.l.b16 %v4090
        %v4502 = vunpack.c.h.b16 %v4090
        %v4503 = vunpack.c.l.b16 %v4091
        %v4504 = vunpack.c.l.b16 %v4092
        %v4505 = vunpack.c.h.b16 %v4092
        %v4506 = vunpack.c.l.b16 %v4093
        %v4507 = vunpack.c.l.b16 %v4094
        %v4508 = vunpack.c.h.b16 %v4094
        %v4509 = vunpack.c.l.b16 %v4095
        %v4510 = vunpack.c.l.b16 %v4096
        %v4511 = vunpack.c.h.b16 %v4096
        %v4512 = vunpack.c.l.b16 %v4097
        %v4513 = vunpack.c.l.b16 %v4098
        %v4514 = vunpack.c.h.b16 %v4098
        %v4515 = vunpack.c.l.b16 %v4099
        %v4516 = vunpack.c.l.b16 %v4100
        %v4517 = vunpack.c.h.b16 %v4100
        %v4518 = vunpack.c.l.b16 %v4101
        %v4519 = vunpack.c.l.b16 %v4102
        %v4520 = vunpack.c.h.b16 %v4102
        %v4521 = vunpack.c.l.b16 %v4103
        %v4522 = vpack.c.b16 %v4300, %v4297
        %v4523 = vpack.c.b16 %v4301, %v4298
        %v4524 = vpack.c.b16 %v4302, %v4299
        %v4525 = vpack.c.b16 %v4306, %v4303
        %v4526 = vpack.c.b16 %v4307, %v4304
        %v4527 = vpack.c.b16 %v4308, %v4305
        %v4528 = vpack.c.b16 %v4312, %v4309
        %v4529 = vpack.c.b16 %v4313, %v4310
        %v4530 = vpack.c.b16 %v4314, %v4311
        %v4531 = vpack.c.b16 %v4318, %v4315
        %v4532 = vpack.c.b16 %v4319, %v4316
        %v4533 = vpack.c.b16 %v4320, %v4317
        %v4534 = vpack.c.b16 %v4324, %v4321
        %v4535 = vpack.c.b16 %v4325, %v4322
        %v4536 = vpack.c.b16 %v4326, %v4323
        %v4537 = vpack.c.b16 %v4330, %v4327
        %v4538 = vpack.c.b16 %v4331, %v4328
        %v4539 = vpack.c.b16 %v4332, %v4329
        %v4540 = vpack.c.b16 %v4336, %v4333
        %v4541 = vpack.c.b16 %v4337, %v4334
        %v4542 = vpack.c.b16 %v4338, %v4335
        %v4543 = vpack.c.b16 %v4342, %v4339
        %v4544 = vpack.c.b16 %v4343, %v4340
        %v4545 = vpack.c.b16 %v4344, %v4341
        %v4546 = vpack.c.b16 %v4348, %v4345
        %v4547 = vpack.c.b16 %v4349, %v4346
        %v4548 = vpack.c.b16 %v4350, %v4347
        %v4549 = vpack.c.b16 %v4354, %v4351
        %v4550 = vpack.c.b16 %v4355, %v4352
        %v4551 = vpack.c.b16 %v4356, %v4353
        %v4552 = vpack.c.b16 %v4360, %v4357
        %v4553 = vpack.c.b16 %v4361, %v4358
        %v4554 = vpack.c.b16 %v4362, %v4359
        %v4555 = vpack.c.b16 %v4366, %v4363
        %v4556 = vpack.c.b16 %v4367, %v4364
        %v4557 = vpack.c.b16 %v4368, %v4365
        %v4558 = vpack.c.b16 %v4372, %v4369
        %v4559 = vpack.c.b16 %v4373, %v4370
        %v4560 = vpack.c.b16 %v4374, %v4371
        %v4561 = vpack.c.b16 %v4378, %v4375
        %v4562 = vpack.c.b16 %v4379, %v4376
        %v4563 = vpack.c.b16 %v4380, %v4377
        %v4564 = vpack.c.b16 %v4384, %v4381
        %v4565 = vpack.c.b16 %v4385, %v4382
        %v4566 = vpack.c.b16 %v4386, %v4383
        %v4567 = vpack.c.b16 %v4390, %v4387
        %v4568 = vpack.c.b16 %v4391, %v4388
        %v4569 = vpack.c.b16 %v4392, %v4389
        %v4570 = vpack.c.b16 %v4396, %v4393
        %v4571 = vpack.c.b16 %v4397, %v4394
        %v4572 = vpack.c.b16 %v4398, %v4395
        %v4573 = vpack.c.b16 %v4402, %v4399
        %v4574 = vpack.c.b16 %v4403, %v4400
        %v4575 = vpack.c.b16 %v4404, %v4401
        %v4576 = vpack.c.b16 %v4408, %v4405
        %v4577 = vpack.c.b16 %v4409, %v4406
        %v4578 = vpack.c.b16 %v4410, %v4407
        %v4579 = vpack.c.b16 %v4414, %v4411
        %v4580 = vpack.c.b16 %v4415, %v4412
        %v4581 = vpack.c.b16 %v4416, %v4413
        %v4582 = vpack.c.b16 %v4420, %v4417
        %v4583 = vpack.c.b16 %v4421, %v4418
        %v4584 = vpack.c.b16 %v4422, %v4419
        %v4585 = vpack.c.b16 %v4426, %v4423
        %v4586 = vpack.c.b16 %v4427, %v4424
        %v4587 = vpack.c.b16 %v4428, %v4425
        %v4588 = vpack.c.b16 %v4432, %v4429
        %v4589 = vpack.c.b16 %v4433, %v4430
        %v4590 = vpack.c.b16 %v4434, %v4431
        %v4591 = vpack.c.b16 %v4438, %v4435
        %v4592 = vpack.c.b16 %v4439, %v4436
        %v4593 = vpack.c.b16 %v4440, %v4437
        %v4594 = vpack.c.b16 %v4444, %v4441
        %v4595 = vpack.c.b16 %v4445, %v4442
        %v4596 = vpack.c.b16 %v4446, %v4443
        %v4597 = vpack.c.b16 %v4450, %v4447
        %v4598 = vpack.c.b16 %v4451, %v4448
        %v4599 = vpack.c.b16 %v4452, %v4449
        %v4600 = vpack.c.b16 %v4456, %v4453
        %v4601 = vpack.c.b16 %v4457, %v4454
        %v4602 = vpack.c.b16 %v4458, %v4455
        %v4603 = vpack.c.b16 %v4462, %v4459
        %v4604 = vpack.c.b16 %v4463, %v4460
        %v4605 = vpack.c.b16 %v4464, %v4461
        %v4606 = vpack.c.b16 %v4468, %v4465
        %v4607 = vpack.c.b16 %v4469, %v4466
        %v4608 = vpack.c.b16 %v4470, %v4467
        %v4609 = vpack.c.b16 %v4474, %v4471
        %v4610 = vpack.c.b16 %v4475, %v4472
        %v4611 = vpack.c.b16 %v4476, %v4473
        %v4612 = vpack.c.b16 %v4480, %v4477
        %v4613 = vpack.c.b16 %v4481, %v4478
        %v4614 = vpack.c.b16 %v4482, %v4479
        %v4615 = vpack.c.b16 %v4486, %v4483
        %v4616 = vpack.c.b16 %v4487, %v4484
        %v4617 = vpack.c.b16 %v4488, %v4485
        %v4618 = vpack.c.b16 %v4492, %v4489
        %v4619 = vpack.c.b16 %v4493, %v4490
        %v4620 = vpack.c.b16 %v4494, %v4491
        %v4621 = vpack.c.b16 %v4498, %v4495
        %v4622 = vpack.c.b16 %v4499, %v4496
        %v4623 = vpack.c.b16 %v4500, %v4497
        %v4624 = vpack.c.b16 %v4504, %v4501
        %v4625 = vpack.c.b16 %v4505, %v4502
        %v4626 = vpack.c.b16 %v4506, %v4503
        %v4627 = vpack.c.b16 %v4510, %v4507
        %v4628 = vpack.c.b16 %v4511, %v4508
        %v4629 = vpack.c.b16 %v4512, %v4509
        %v4630 = vpack.c.b16 %v4516, %v4513
        %v4631 = vpack.c.b16 %v4517, %v4514
        %v4632 = vpack.c.b16 %v4518, %v4515
        %v4633 = vpack.c.b16 %v4519, %v4519
        %v4634 = vpack.c.b16 %v4520, %v4520
        %v4635 = vpack.c.b16 %v4521, %v4521
        %vm4747 = vcmask 719872
        %v4749 = vsel %vm4747, %v4142, 0
        %v4752 = vsel %vm1482, %v4633, 0
        %v4755 = vsel %vm1482, %v4634, 0
        %v4758 = vsel %vm1482, %v4635, 0
        %4760 = vmatprep.subr.bf16.mxu0 %v4523
        %4761 = vmatpush1.bf16.msra.mxu0 %v4522
        %4762 = vmatprep.subr.bf16.mxu0 %v4526
        %4763 = vmatpush1.bf16.msra.mxu0 %v4525
        %4764 = vmatprep.subr.bf16.mxu0 %v4529
        %4765 = vmatpush1.bf16.msra.mxu0 %v4528
        %4766 = vmatprep.subr.bf16.mxu0 %v4532
        %4767 = vmatpush1.bf16.msra.mxu0 %v4531
        %4768 = vmatprep.subr.bf16.mxu0 %v4535
        %4769 = vmatpush1.bf16.msra.mxu0 %v4534
        %4770 = vmatprep.subr.bf16.mxu0 %v4538
        %4771 = vmatpush1.bf16.msra.mxu0 %v4537
        %4772 = vmatprep.subr.bf16.mxu0 %v4541
        %4773 = vmatpush1.bf16.msra.mxu0 %v4540
        %4774 = vmatprep.subr.bf16.mxu0 %v4544
        %4775 = vmatpush1.bf16.msra.mxu0 %v4543
        %4776 = vmatprep.subr.bf16.mxu0 %v4547
        %4777 = vmatpush1.bf16.msra.mxu0 %v4546
        %4778 = vmatprep.subr.bf16.mxu0 %v4550
        %4779 = vmatpush1.bf16.msra.mxu0 %v4549
        %4780 = vmatprep.subr.bf16.mxu0 %v4553
        %4781 = vmatpush1.bf16.msra.mxu0 %v4552
        %4782 = vmatprep.subr.bf16.mxu0 %v4556
        %4783 = vmatpush1.bf16.msra.mxu0 %v4555
        %4784 = vmatprep.subr.bf16.mxu0 %v4559
        %4785 = vmatpush1.bf16.msra.mxu0 %v4558
        %4786 = vmatprep.subr.bf16.mxu0 %v4562
        %4787 = vmatpush1.bf16.msra.mxu0 %v4561
        %4788 = vmatprep.subr.bf16.mxu0 %v4565
        %4789 = vmatpush1.bf16.msra.mxu0 %v4564
        %4790 = vmatprep.subr.bf16.mxu0 %v4568
        %4791 = vmatpush1.bf16.msra.mxu0 %v4567
        %4792 = vmatprep.mubr.bf16.mxu0 %v4139
        %4793 = vmatmul.mubr.bf16.gmra.mrb[0].mxu0 %v4138
        %v4794 = vpop.f32.mrb[0].mxu0
        %v4795 = vadd.f32 %v4110, %v4794
        %v4796 = vpop.f32.mrb[0].mxu0
        %v4797 = vadd.f32 %v4114, %v4796
        %v4798 = vpop.f32.mrb[0].mxu0
        %v4799 = vadd.f32 %v4110, %v4798
        %v4800 = vpop.f32.mrb[0].mxu0
        %v4801 = vadd.f32 %v4114, %v4800
        %4802 = vdwg.mxu0
        %4803 = vmatprep.subr.bf16.mxu0 %v4571
        %4804 = vmatpush1.bf16.msra.mxu0 %v4570
        %4805 = vmatprep.subr.bf16.mxu0 %v4574
        %4806 = vmatpush1.bf16.msra.mxu0 %v4573
        %4807 = vmatprep.subr.bf16.mxu0 %v4577
        %4808 = vmatpush1.bf16.msra.mxu0 %v4576
        %4809 = vmatprep.subr.bf16.mxu0 %v4580
        %4810 = vmatpush1.bf16.msra.mxu0 %v4579
        %4811 = vmatprep.subr.bf16.mxu0 %v4583
        %4812 = vmatpush1.bf16.msra.mxu0 %v4582
        %4813 = vmatprep.subr.bf16.mxu0 %v4586
        %4814 = vmatpush1.bf16.msra.mxu0 %v4585
        %4815 = vmatprep.subr.bf16.mxu0 %v4589
        %4816 = vmatpush1.bf16.msra.mxu0 %v4588
        %4817 = vmatprep.subr.bf16.mxu0 %v4592
        %4818 = vmatpush1.bf16.msra.mxu0 %v4591
        %4819 = vmatprep.subr.bf16.mxu0 %v4595
        %4820 = vmatpush1.bf16.msra.mxu0 %v4594
        %4821 = vmatprep.subr.bf16.mxu0 %v4598
        %4822 = vmatpush1.bf16.msra.mxu0 %v4597
        %4823 = vmatprep.subr.bf16.mxu0 %v4601
        %4824 = vmatpush1.bf16.msra.mxu0 %v4600
        %4825 = vmatprep.subr.bf16.mxu0 %v4604
        %4826 = vmatpush1.bf16.msra.mxu0 %v4603
        %4827 = vmatprep.subr.bf16.mxu0 %v4607
        %4828 = vmatpush1.bf16.msra.mxu0 %v4606
        %4829 = vmatprep.subr.bf16.mxu0 %v4610
        %4830 = vmatpush1.bf16.msra.mxu0 %v4609
        %4831 = vmatprep.subr.bf16.mxu0 %v4613
        %4832 = vmatpush1.bf16.msra.mxu0 %v4612
        %4833 = vmatprep.subr.bf16.mxu0 %v4616
        %4834 = vmatpush1.bf16.msra.mxu0 %v4615
        %4835 = vmatprep.mubr.bf16.mxu0 %v4141
        %4836 = vmatmul.mubr.bf16.gmra.mrb[0].mxu0 %v4140
        %v4837 = vpop.f32.mrb[0].mxu0
        %v4838 = vadd.f32 %v4795, %v4837
        %v4839 = vpop.f32.mrb[0].mxu0
        %v4840 = vadd.f32 %v4797, %v4839
        %v4841 = vpop.f32.mrb[0].mxu0
        %v4842 = vadd.f32 %v4799, %v4841
        %v4843 = vpop.f32.mrb[0].mxu0
        %v4844 = vadd.f32 %v4801, %v4843
        %4845 = vdwg.mxu0
        %4846 = vmatprep.subr.bf16.mxu0 %v4619
        %4847 = vmatpush1.bf16.msra.mxu0 %v4618
        %4848 = vmatprep.subr.bf16.mxu0 %v4622
        %4849 = vmatpush1.bf16.msra.mxu0 %v4621
        %4850 = vmatprep.subr.bf16.mxu0 %v4625
        %4851 = vmatpush1.bf16.msra.mxu0 %v4624
        %4852 = vmatprep.subr.bf16.mxu0 %v4628
        %4853 = vmatpush1.bf16.msra.mxu0 %v4627
        %4854 = vmatprep.subr.bf16.mxu0 %v4631
        %4855 = vmatpush1.bf16.msra.mxu0 %v4630
        %4856 = vmatprep.subr.bf16.mxu0 %v4755
        %4857 = vmatpush1.bf16.msra.mxu0 %v4752
        %4858 = vmatprep.subr.bf16.mxu0 0
        %4859 = vmatpush1.bf16.msra.mxu0 0
        %4860 = vmatprep.subr.bf16.mxu0 0
        %4861 = vmatpush1.bf16.msra.mxu0 0
        %4862 = vmatprep.subr.bf16.mxu0 0
        %4863 = vmatpush1.bf16.msra.mxu0 0
        %4864 = vmatprep.subr.bf16.mxu0 0
        %4865 = vmatpush1.bf16.msra.mxu0 0
        %4866 = vmatprep.subr.bf16.mxu0 0
        %4867 = vmatpush1.bf16.msra.mxu0 0
        %4868 = vmatprep.subr.bf16.mxu0 0
        %4869 = vmatpush1.bf16.msra.mxu0 0
        %4870 = vmatprep.subr.bf16.mxu0 0
        %4871 = vmatpush1.bf16.msra.mxu0 0
        %4872 = vmatprep.subr.bf16.mxu0 0
        %4873 = vmatpush1.bf16.msra.mxu0 0
        %4874 = vmatprep.subr.bf16.mxu0 0
        %4875 = vmatpush1.bf16.msra.mxu0 0
        %4876 = vmatprep.subr.bf16.mxu0 0
        %4877 = vmatpush1.bf16.msra.mxu0 0
        %4878 = vmatprep.mubr.bf16.mxu0 0
        %4879 = vmatmul.mubr.bf16.gmra.mrb[0].mxu0 %v4749
        %v4880 = vpop.f32.mrb[0].mxu0
        %v4881 = vadd.f32 %v4838, %v4880
        %v4882 = vpop.f32.mrb[0].mxu0
        %v4883 = vadd.f32 %v4840, %v4882
        %v4884 = vpop.f32.mrb[0].mxu0
        %v4885 = vadd.f32 %v4842, %v4884
        %v4886 = vpop.f32.mrb[0].mxu0
        %v4887 = vadd.f32 %v4844, %v4886
        %4888 = vdwg.mxu0
        %4889 = vmatprep.subr.bf16.mxu0 0
        %4890 = vmatpush1.bf16.msra.mxu0 %v4524
        %4891 = vmatprep.subr.bf16.mxu0 0
        %4892 = vmatpush1.bf16.msra.mxu0 %v4527
        %4893 = vmatprep.subr.bf16.mxu0 0
        %4894 = vmatpush1.bf16.msra.mxu0 %v4530
        %4895 = vmatprep.subr.bf16.mxu0 0
        %4896 = vmatpush1.bf16.msra.mxu0 %v4533
        %4897 = vmatprep.subr.bf16.mxu0 0
        %4898 = vmatpush1.bf16.msra.mxu0 %v4536
        %4899 = vmatprep.subr.bf16.mxu0 0
        %4900 = vmatpush1.bf16.msra.mxu0 %v4539
        %4901 = vmatprep.subr.bf16.mxu0 0
        %4902 = vmatpush1.bf16.msra.mxu0 %v4542
        %4903 = vmatprep.subr.bf16.mxu0 0
        %4904 = vmatpush1.bf16.msra.mxu0 %v4545
        %4905 = vmatprep.subr.bf16.mxu0 0
        %4906 = vmatpush1.bf16.msra.mxu0 %v4548
        %4907 = vmatprep.subr.bf16.mxu0 0
        %4908 = vmatpush1.bf16.msra.mxu0 %v4551
        %4909 = vmatprep.subr.bf16.mxu0 0
        %4910 = vmatpush1.bf16.msra.mxu0 %v4554
        %4911 = vmatprep.subr.bf16.mxu0 0
        %4912 = vmatpush1.bf16.msra.mxu0 %v4557
        %4913 = vmatprep.subr.bf16.mxu0 0
        %4914 = vmatpush1.bf16.msra.mxu0 %v4560
        %4915 = vmatprep.subr.bf16.mxu0 0
        %4916 = vmatpush1.bf16.msra.mxu0 %v4563
        %4917 = vmatprep.subr.bf16.mxu0 0
        %4918 = vmatpush1.bf16.msra.mxu0 %v4566
        %4919 = vmatprep.subr.bf16.mxu0 0
        %4920 = vmatpush1.bf16.msra.mxu0 %v4569
        %4921 = vmatprep.mubr.bf16.mxu0 %v4139
        %4922 = vmatmul.mubr.bf16.gmra.mrb[0].mxu0 %v4138
        %v4923 = vpop.f32.mrb[0].mxu0
        %v4924 = vadd.f32 %v4118, %v4923
        %v4925 = vpop.f32.mrb[0].mxu0
        %v4926 = vpop.f32.mrb[0].mxu0
        %v4927 = vadd.f32 %v4118, %v4926
        %v4928 = vpop.f32.mrb[0].mxu0
        %4929 = vdwg.mxu0
        %4930 = vmatprep.subr.bf16.mxu0 0
        %4931 = vmatpush1.bf16.msra.mxu0 %v4572
        %4932 = vmatprep.subr.bf16.mxu0 0
        %4933 = vmatpush1.bf16.msra.mxu0 %v4575
        %4934 = vmatprep.subr.bf16.mxu0 0
        %4935 = vmatpush1.bf16.msra.mxu0 %v4578
        %4936 = vmatprep.subr.bf16.mxu0 0
        %4937 = vmatpush1.bf16.msra.mxu0 %v4581
        %4938 = vmatprep.subr.bf16.mxu0 0
        %4939 = vmatpush1.bf16.msra.mxu0 %v4584
        %4940 = vmatprep.subr.bf16.mxu0 0
        %4941 = vmatpush1.bf16.msra.mxu0 %v4587
        %4942 = vmatprep.subr.bf16.mxu0 0
        %4943 = vmatpush1.bf16.msra.mxu0 %v4590
        %4944 = vmatprep.subr.bf16.mxu0 0
        %4945 = vmatpush1.bf16.msra.mxu0 %v4593
        %4946 = vmatprep.subr.bf16.mxu0 0
        %4947 = vmatpush1.bf16.msra.mxu0 %v4596
        %4948 = vmatprep.subr.bf16.mxu0 0
        %4949 = vmatpush1.bf16.msra.mxu0 %v4599
        %4950 = vmatprep.subr.bf16.mxu0 0
        %4951 = vmatpush1.bf16.msra.mxu0 %v4602
        %4952 = vmatprep.subr.bf16.mxu0 0
        %4953 = vmatpush1.bf16.msra.mxu0 %v4605
        %4954 = vmatprep.subr.bf16.mxu0 0
        %4955 = vmatpush1.bf16.msra.mxu0 %v4608
        %4956 = vmatprep.subr.bf16.mxu0 0
        %4957 = vmatpush1.bf16.msra.mxu0 %v4611
        %4958 = vmatprep.subr.bf16.mxu0 0
        %4959 = vmatpush1.bf16.msra.mxu0 %v4614
        %4960 = vmatprep.subr.bf16.mxu0 0
        %4961 = vmatpush1.bf16.msra.mxu0 %v4617
        %4962 = vmatprep.mubr.bf16.mxu0 %v4141
        %4963 = vmatmul.mubr.bf16.gmra.mrb[0].mxu0 %v4140
        %v4964 = vpop.f32.mrb[0].mxu0
        %v4965 = vadd.f32 %v4924, %v4964
        %v4966 = vpop.f32.mrb[0].mxu0
        %v4967 = vpop.f32.mrb[0].mxu0
        %v4968 = vadd.f32 %v4927, %v4967
        %v4969 = vpop.f32.mrb[0].mxu0
        %4970 = vdwg.mxu0
        %4971 = vmatprep.subr.bf16.mxu0 0
        %4972 = vmatpush1.bf16.msra.mxu0 %v4620
        %4973 = vmatprep.subr.bf16.mxu0 0
        %4974 = vmatpush1.bf16.msra.mxu0 %v4623
        %4975 = vmatprep.subr.bf16.mxu0 0
        %4976 = vmatpush1.bf16.msra.mxu0 %v4626
        %4977 = vmatprep.subr.bf16.mxu0 0
        %4978 = vmatpush1.bf16.msra.mxu0 %v4629
        %4979 = vmatprep.subr.bf16.mxu0 0
        %4980 = vmatpush1.bf16.msra.mxu0 %v4632
        %4981 = vmatprep.subr.bf16.mxu0 0
        %4982 = vmatpush1.bf16.msra.mxu0 %v4758
        %4983 = vmatprep.subr.bf16.mxu0 0
        %4984 = vmatpush1.bf16.msra.mxu0 0
        %4985 = vmatprep.subr.bf16.mxu0 0
        %4986 = vmatpush1.bf16.msra.mxu0 0
        %4987 = vmatprep.subr.bf16.mxu0 0
        %4988 = vmatpush1.bf16.msra.mxu0 0
        %4989 = vmatprep.subr.bf16.mxu0 0
        %4990 = vmatpush1.bf16.msra.mxu0 0
        %4991 = vmatprep.subr.bf16.mxu0 0
        %4992 = vmatpush1.bf16.msra.mxu0 0
        %4993 = vmatprep.subr.bf16.mxu0 0
        %4994 = vmatpush1.bf16.msra.mxu0 0
        %4995 = vmatprep.subr.bf16.mxu0 0
        %4996 = vmatpush1.bf16.msra.mxu0 0
        %4997 = vmatprep.subr.bf16.mxu0 0
        %4998 = vmatpush1.bf16.msra.mxu0 0
        %4999 = vmatprep.subr.bf16.mxu0 0
        %5000 = vmatpush1.bf16.msra.mxu0 0
        %5001 = vmatprep.subr.bf16.mxu0 0
        %5002 = vmatpush1.bf16.msra.mxu0 0
        %5003 = vmatprep.mubr.bf16.mxu0 0
        %5004 = vmatmul.mubr.bf16.gmra.mrb[0].mxu0 %v4749
        %v5005 = vpop.f32.mrb[0].mxu0
        %v5006 = vadd.f32 %v4965, %v5005
        %v5007 = vpop.f32.mrb[0].mxu0
        %v5008 = vpop.f32.mrb[0].mxu0
        %v5009 = vadd.f32 %v4968, %v5008
        %v5010 = vpop.f32.mrb[0].mxu0
        %5011 = vdwg.mxu0
        %vm5012 = vcmp.gt.f32.partialorder %v4881, 0.0
        %vm5013 = vcmp.gt.f32.partialorder %v4883, 0.0
        %vm5014 = vcmp.gt.f32.partialorder %v5006, 0.0
        %vm5015 = vcmp.gt.f32.partialorder %v4885, 0.0
        %vm5016 = vcmp.gt.f32.partialorder %v4887, 0.0
        %vm5017 = vcmp.gt.f32.partialorder %v5009, 0.0
        %v5018 = vmin.f32 %v4881, 0.0
        %v5019 = vmin.f32 %v4883, 0.0
        %v5020 = vmin.f32 %v5006, 0.0
        %v5021 = vmin.f32 %v4885, 0.0
        %v5022 = vmin.f32 %v4887, 0.0
        %v5023 = vmin.f32 %v5009, 0.0
        %v5024 = vmul.f32 %v5018, 1.442695
        %v5025 = vpow.pop %v5024
        %v5026 = vmul.f32 %v5019, 1.442695
        %v5027 = vpow.pop %v5026
        %v5028 = vmul.f32 %v5020, 1.442695
        %v5029 = vpow.pop %v5028
        %v5030 = vmul.f32 %v5021, 1.442695
        %v5031 = vpow.pop %v5030
        %v5032 = vmul.f32 %v5022, 1.442695
        %v5033 = vpow.pop %v5032
        %v5034 = vmul.f32 %v5023, 1.442695
        %v5035 = vpow.pop %v5034
        %v5036 = vsub.f32 %v5025, 1.0
        %v5037 = vsub.f32 %v5027, 1.0
        %v5038 = vsub.f32 %v5029, 1.0
        %v5039 = vsub.f32 %v5031, 1.0
        %v5040 = vsub.f32 %v5033, 1.0
        %v5041 = vsub.f32 %v5035, 1.0
        %v5042 = vsel %vm5012, %v4881, %v5036
        %v5043 = vsel %vm5013, %v4883, %v5037
        %v5044 = vsel %vm5014, %v5006, %v5038
        %v5045 = vsel %vm5015, %v4885, %v5039
        %v5046 = vsel %vm5016, %v4887, %v5040
        %v5047 = vsel %vm5017, %v5009, %v5041
        %s5048 = scalar_lea.vmem %s6, 5
        %v5049 = vld [vmem:[%s5048] ss:$8 sm:$0x7]
        %v5051 = vlaneseq
        %v5052 = vshrl.u32 %v5051, 7
        %v5053 = vsub.s32 0, %v5052
        %v5054 = vrot.slane %v5049, %v5053
        %v5055 = vlaneseq
        %v5056 = vshrl.u32 %v5055, 7
        %v5057 = vsub.s32 1, %v5056
        %v5058 = vrot.slane %v5049, %v5057
        %v5059 = vlaneseq
        %v5060 = vshrl.u32 %v5059, 7
        %v5061 = vsub.s32 2, %v5060
        %v5062 = vrot.slane %v5049, %v5061
        %v5066 = vmul.f32 %v5042, %v5054
        %v5067 = vmul.f32 %v5043, %v5058
        %v5068 = vmul.f32 %v5044, %v5062
        %v5069 = vmul.f32 %v5045, %v5054
        %v5070 = vmul.f32 %v5046, %v5058
        %v5071 = vmul.f32 %v5047, %v5062
        %s5072 = scalar_lea.vmem %s6, 6
        %v5073 = vld [vmem:[%s5072] ss:$8 sm:$0x7]
        %v5075 = vlaneseq
        %v5076 = vshrl.u32 %v5075, 7
        %v5077 = vsub.s32 0, %v5076
        %v5078 = vrot.slane %v5073, %v5077
        %v5079 = vlaneseq
        %v5080 = vshrl.u32 %v5079, 7
        %v5081 = vsub.s32 1, %v5080
        %v5082 = vrot.slane %v5073, %v5081
        %v5083 = vlaneseq
        %v5084 = vshrl.u32 %v5083, 7
        %v5085 = vsub.s32 2, %v5084
        %v5086 = vrot.slane %v5073, %v5085
        %v5090 = vadd.f32 %v5066, %v5078
        %v5091 = vadd.f32 %v5067, %v5082
        %v5092 = vadd.f32 %v5068, %v5086
        %v5093 = vadd.f32 %v5069, %v5078
        %v5094 = vadd.f32 %v5070, %v5082
        %v5095 = vadd.f32 %v5071, %v5086
        %5100 = vrot.lane.b32.xlu0 %v5090, 28
        %v5101 = vpop.permute.xlu0 %5100
        %5102 = vrot.lane.b32.xlu0 %v5091, 28
        %v5103 = vpop.permute.xlu0 %5102
        %5104 = vrot.lane.b32.xlu0 %v5093, 28
        %v5105 = vpop.permute.xlu0 %5104
        %5106 = vrot.lane.b32.xlu0 %v5094, 28
        %v5107 = vpop.permute.xlu0 %5106
        %v5108 = vsel %vm3607, %v5101, %v5103
        %v5109 = vsel %vm3607, %v5105, %v5107
        %v5112 = vmax.f32 %v5090, %v5108
        %v5113 = vmax.f32 %v5093, %v5109
        %5116 = vrot.lane.b32.xlu0 %v5091, 56
        %v5117 = vpop.permute.xlu0 %5116
        %5118 = vrot.lane.b32.xlu0 %v5092, 56
        %v5119 = vpop.permute.xlu0 %5118
        %5120 = vrot.lane.b32.xlu0 %v5094, 56
        %v5121 = vpop.permute.xlu0 %5120
        %5122 = vrot.lane.b32.xlu0 %v5095, 56
        %v5123 = vpop.permute.xlu0 %5122
        %vm5124 = vcmask 457728
        %v5125 = vsel %vm5124, %v5117, %v5119
        %v5126 = vsel %vm5124, %v5121, %v5123
        %v5129 = vmax.f32 %v5112, %v5125
        %v5130 = vmax.f32 %v5113, %v5126
        %vm5131 = vcmask 818176
        %5132 = vst.msk [vmem:[#allocation7] sm:$0xff] %vm5131, %v5129
        %vm5133 = vcmask 817152
        %5134 = vst.msk [vmem:[#allocation7 + $0x8] sm:$0x7f] %vm5133, %v5130
        %v5135 = vld [vmem:[#allocation7] sm:$0x3f]
        %v5136 = vpack.c.bf16 %v5135, %v5135
        %vm5137 = vcmask 813056
        %5138 = vst.msk [vmem:[#allocation8] sm:$0x7] %vm5137, %v5136
        %v5139 = vld [vmem:[#allocation7 + $0x1] sm:$0x3f]
        %v5140 = vpack.c.bf16 %v5139, %v5139
        %v5142 = vunpack.c.l.b16 %v5140
        %v5143 = vpack.c.b16 %v5142, %v5142
        %5144 = vrot.lane.b32.xlu0 %v5143, 100
        %v5145 = vpop.permute.xlu0 %5144
        %v5146 = vrot.slane %v5145, 4
        %v5147 = vsel %vm3696, %v5146, %v5145
        %vm5149 = vcmask 1043232
        %vm5150 = vcmask 587780
        %vm5151 = vmor %vm5150, %vm5149
        %5152 = vst.msk [vmem:[#allocation8] sm:$0x77] %vm5151, %v5147
        %v5153 = vld [vmem:[#allocation7 + $0x2] sm:$0x3f]
        %v5154 = vpack.c.bf16 %v5153, %v5153
        %v5156 = vunpack.c.l.b16 %v5154
        %v5157 = vpack.c.b16 %v5156, %v5156
        %5158 = vrot.lane.b32.xlu0 %v5157, 72
        %v5159 = vpop.permute.xlu0 %5158
        %v5160 = vrot.slane %v5159, 4
        %vm5161 = vcmask 588800
        %v5162 = vsel %vm5161, %v5160, %v5159
        %vm5164 = vcmask 1043008
        %vm5165 = vcmask 358404
        %vm5166 = vmor %vm5165, %vm5164
        %5167 = vst.msk [vmem:[#allocation8 + $0x4] sm:$0x77] %vm5166, %v5162
        %v5168 = vld [vmem:[#allocation7 + $0x3] sm:$0x3f]
        %v5169 = vpack.c.bf16 %v5168, %v5168
        %v5171 = vunpack.c.l.b16 %v5169
        %v5172 = vpack.c.b16 %v5171, %v5171
        %5173 = vrot.lane.b32.xlu0 %v5172, 44
        %v5174 = vpop.permute.xlu0 %5173
        %v5175 = vrot.slane %v5174, 4
        %vm5176 = vcmask 359424
        %v5177 = vsel %vm5176, %v5175, %v5174
        %vm5179 = vcmask 1042784
        %vm5180 = vcmask 129028
        %vm5181 = vmor %vm5180, %vm5179
        %5182 = vst.msk [vmem:[#allocation8 + $0x8] sm:$0x77] %vm5181, %v5177
        %v5183 = vld [vmem:[#allocation7 + $0x4] sm:$0x3f]
        %v5184 = vpack.c.bf16 %v5183, %v5183
        %v5186 = vunpack.c.l.b16 %v5184
        %v5187 = vpack.c.b16 %v5186, %v5186
        %5188 = vrot.lane.b32.xlu0 %v5187, 16
        %v5189 = vpop.permute.xlu0 %5188
        %vm5191 = vcmask 944256
        %5192 = vst.msk [vmem:[#allocation8 + $0xc] sm:$0x7] %vm5191, %v5189
        %v5193 = vld [vmem:[#allocation7 + $0x5] sm:$0x3f]
        %v5194 = vpack.c.bf16 %v5193, %v5193
        %v5196 = vunpack.c.l.b16 %v5194
        %v5197 = vpack.c.b16 %v5196, %v5196
        %5198 = vrot.lane.b32.xlu0 %v5197, 116
        %v5199 = vpop.permute.xlu0 %5198
        %v5200 = vrot.slane %v5199, 4
        %v5201 = vsel %vm3908, %v5200, %v5199
        %vm5203 = vcmask 1043360
        %vm5204 = vcmask 718852
        %vm5205 = vmor %vm5204, %vm5203
        %5206 = vst.msk [vmem:[#allocation8 + $0xc] sm:$0x77] %vm5205, %v5201
        %v5207 = vld [vmem:[#allocation7 + $0x6] sm:$0x3f]
        %v5208 = vpack.c.bf16 %v5207, %v5207
        %v5210 = vunpack.c.l.b16 %v5208
        %v5211 = vpack.c.b16 %v5210, %v5210
        %5212 = vrot.lane.b32.xlu0 %v5211, 88
        %v5213 = vpop.permute.xlu0 %5212
        %v5214 = vrot.slane %v5213, 4
        %vm5215 = vcmask 719872
        %v5216 = vsel %vm5215, %v5214, %v5213
        %vm5218 = vcmask 1043136
        %vm5219 = vcmask 489476
        %vm5220 = vmor %vm5219, %vm5218
        %5221 = vst.msk [vmem:[#allocation8 + $0x10] sm:$0x77] %vm5220, %v5216
        %v5222 = vld [vmem:[#allocation7 + $0x7] sm:$0x3f]
        %v5223 = vpack.c.bf16 %v5222, %v5222
        %v5225 = vunpack.c.l.b16 %v5223
        %v5226 = vpack.c.b16 %v5225, %v5225
        %5227 = vrot.lane.b32.xlu0 %v5226, 60
        %v5228 = vpop.permute.xlu0 %5227
        %v5229 = vrot.slane %v5228, 4
        %vm5230 = vcmask 490496
        %v5231 = vsel %vm5230, %v5229, %v5228
        %vm5233 = vcmask 1042912
        %vm5234 = vcmask 260100
        %vm5235 = vmor %vm5234, %vm5233
        %5236 = vst.msk [vmem:[#allocation8 + $0x14] sm:$0x77] %vm5235, %v5231
        %v5237 = vld [vmem:[#allocation7 + $0x8] sm:$0x3f]
        %v5238 = vpack.c.bf16 %v5237, %v5237
        %v5240 = vunpack.c.l.b16 %v5238
        %v5241 = vpack.c.b16 %v5240, %v5240
        %5242 = vrot.lane.b32.xlu0 %v5241, 32
        %v5243 = vpop.permute.xlu0 %5242
        %v5244 = vrot.slane %v5243, 4
        %vm5245 = vcmask 261120
        %v5246 = vsel %vm5245, %v5244, %v5243
        %vm5248 = vcmask 1042688
        %vm5249 = vcmask 30724
        %vm5250 = vmor %vm5249, %vm5248
        %5251 = vst.msk [vmem:[#allocation8 + $0x18] sm:$0x77] %vm5250, %v5246
        %v5252 = vld [vmem:[#allocation7 + $0x9] sm:$0x3f]
        %v5253 = vpack.c.bf16 %v5252, %v5252
        %v5255 = vunpack.c.l.b16 %v5253
        %v5256 = vpack.c.b16 %v5255, %v5255
        %5257 = vrot.lane.b32.xlu0 %v5256, 4
        %v5258 = vpop.permute.xlu0 %5257
        %vm5260 = vcmask 845856
        %5261 = vst.msk [vmem:[#allocation8 + $0x1c] sm:$0x7] %vm5260, %v5258
        %v5262 = vld [vmem:[#allocation8] sm:$0x77]
        %v5263 = vld [vmem:[#allocation8 + $0x8] sm:$0x77]
        %v5264 = vld [vmem:[#allocation8 + $0x10] sm:$0x77]
        %v5265 = vld [vmem:[#allocation8 + $0x18] sm:$0x77]
        %v5266 = vld [vmem:[%s4] sm:$0xff]
        %v5267 = vld [vmem:[%s4 + $0x8] sm:$0xff]
        %v5268 = vld [vmem:[%s4 + $0x10] sm:$0xff]
        %v5269 = vld [vmem:[%s4 + $0x18] sm:$0xff]
        %v5270 = vld [vmem:[%s4 + $0x20] sm:$0xff]
        %v5271 = vld [vmem:[%s4 + $0x28] sm:$0xff]
        %v5272 = vld [vmem:[%s4 + $0x30] sm:$0xff]
        %v5273 = vld [vmem:[%s4 + $0x38] sm:$0xff]
        %v5274 = vld [vmem:[%s4 + $0x40] sm:$0xff]
        %v5275 = vld [vmem:[%s4 + $0x48] sm:$0xff]
        %v5276 = vld [vmem:[%s4 + $0x50] sm:$0xff]
        %v5277 = vld [vmem:[%s4 + $0x58] sm:$0xff]
        %v5278 = vld [vmem:[%s4 + $0x60] sm:$0xff]
        %v5279 = vld [vmem:[%s4 + $0x68] sm:$0xff]
        %v5280 = vld [vmem:[%s4 + $0x70] sm:$0xff]
        %v5281 = vld [vmem:[%s4 + $0x78] sm:$0xff]
        %v5282 = vld [vmem:[%s4 + $0x80] sm:$0xff]
        %v5283 = vld [vmem:[%s4 + $0x88] sm:$0xff]
        %v5284 = vld [vmem:[%s4 + $0x90] sm:$0xff]
        %v5285 = vld [vmem:[%s4 + $0x98] sm:$0xff]
        %v5286 = vld [vmem:[%s4 + $0xa0] sm:$0xff]
        %v5287 = vld [vmem:[%s4 + $0xa8] sm:$0xff]
        %v5288 = vld [vmem:[%s4 + $0xb0] sm:$0xff]
        %v5289 = vld [vmem:[%s4 + $0xb8] sm:$0xff]
        %v5290 = vld [vmem:[%s4 + $0xc0] sm:$0xff]
        %v5291 = vld [vmem:[%s4 + $0xc8] sm:$0xff]
        %v5292 = vld [vmem:[%s4 + $0xd0] sm:$0xff]
        %v5293 = vld [vmem:[%s4 + $0xd8] sm:$0xff]
        %v5294 = vld [vmem:[%s4 + $0xe0] sm:$0xff]
        %v5295 = vld [vmem:[%s4 + $0xe8] sm:$0xff]
        %v5296 = vld [vmem:[%s4 + $0xf0] sm:$0xff]
        %v5297 = vld [vmem:[%s4 + $0xf8] sm:$0xff]
        %v5298 = vld [vmem:[%s4 + $0x100] sm:$0xff]
        %v5299 = vld [vmem:[%s4 + $0x108] sm:$0xff]
        %v5300 = vld [vmem:[%s4 + $0x110] sm:$0xff]
        %v5301 = vld [vmem:[%s4 + $0x118] sm:$0xff]
        %v5302 = vld [vmem:[%s4 + $0x120] sm:$0xff]
        %v5303 = vld [vmem:[%s4 + $0x128] sm:$0xff]
        %v5304 = vld [vmem:[%s4 + $0x130] sm:$0xff]
        %v5305 = vld [vmem:[%s4 + $0x138] sm:$0xff]
        %v5306 = vld [vmem:[%s4 + $0x140] sm:$0xff]
        %v5307 = vld [vmem:[%s4 + $0x148] sm:$0xff]
        %v5308 = vld [vmem:[%s4 + $0x150] sm:$0xff]
        %v5309 = vld [vmem:[%s4 + $0x158] sm:$0xff]
        %v5310 = vld [vmem:[%s4 + $0x160] sm:$0xff]
        %v5311 = vld [vmem:[%s4 + $0x168] sm:$0xff]
        %v5312 = vld [vmem:[%s4 + $0x170] sm:$0xff]
        %v5313 = vld [vmem:[%s4 + $0x178] sm:$0xff]
        %v5314 = vld [vmem:[%s4 + $0x180] sm:$0xff]
        %v5315 = vld [vmem:[%s4 + $0x188] sm:$0xff]
        %v5316 = vld [vmem:[%s4 + $0x190] sm:$0xff]
        %v5317 = vld [vmem:[%s4 + $0x198] sm:$0xff]
        %v5318 = vld [vmem:[%s4 + $0x1a0] sm:$0xff]
        %v5319 = vld [vmem:[%s4 + $0x1a8] sm:$0xff]
        %v5320 = vld [vmem:[%s4 + $0x1b0] sm:$0xff]
        %v5321 = vld [vmem:[%s4 + $0x1b8] sm:$0xff]
        %v5322 = vld [vmem:[%s4 + $0x1c0] sm:$0xff]
        %v5323 = vld [vmem:[%s4 + $0x1c8] sm:$0xff]
        %v5324 = vld [vmem:[%s4 + $0x1d0] sm:$0xff]
        %v5325 = vld [vmem:[%s4 + $0x1d8] sm:$0xff]
        %v5326 = vld [vmem:[%s4 + $0x1e0] sm:$0xff]
        %v5327 = vld [vmem:[%s4 + $0x1e8] sm:$0xff]
        %v5328 = vld [vmem:[%s4 + $0x1f0] sm:$0xff]
        %v5329 = vld [vmem:[%s4 + $0x1f8] sm:$0xff]
        %v5330 = vld [vmem:[%s4 + $0x200] sm:$0xff]
        %v5331 = vld [vmem:[%s4 + $0x208] sm:$0xff]
        %v5332 = vld [vmem:[%s4 + $0x210] sm:$0xff]
        %v5333 = vld [vmem:[%s4 + $0x218] sm:$0xff]
        %v5334 = vld [vmem:[%s4 + $0x220] sm:$0xff]
        %v5335 = vld [vmem:[%s4 + $0x228] sm:$0xff]
        %v5336 = vld [vmem:[%s4 + $0x230] sm:$0xff]
        %v5337 = vld [vmem:[%s4 + $0x238] sm:$0xff]
        %v5338 = vld [vmem:[%s4 + $0x240] sm:$0xff]
        %v5339 = vld [vmem:[%s4 + $0x248] sm:$0xff]
        %v5340 = vld [vmem:[%s4 + $0x250] sm:$0xff]
        %v5341 = vld [vmem:[%s4 + $0x258] sm:$0xff]
        %v5342 = vld [vmem:[%s4 + $0x260] sm:$0xff]
        %v5343 = vld [vmem:[%s4 + $0x268] sm:$0xff]
        %v5344 = vld [vmem:[%s4 + $0x270] sm:$0xff]
        %v5345 = vld [vmem:[%s4 + $0x278] sm:$0xff]
        %v5346 = vld [vmem:[%s4 + $0x280] sm:$0xff]
        %v5347 = vld [vmem:[%s4 + $0x288] sm:$0xff]
        %v5348 = vld [vmem:[%s4 + $0x290] sm:$0xff]
        %v5349 = vld [vmem:[%s4 + $0x298] sm:$0xff]
        %v5350 = vld [vmem:[%s4 + $0x2a0] sm:$0xff]
        %v5351 = vld [vmem:[%s4 + $0x2a8] sm:$0xff]
        %v5352 = vld [vmem:[%s4 + $0x2b0] sm:$0xff]
        %v5353 = vld [vmem:[%s4 + $0x2b8] sm:$0xff]
        %v5354 = vld [vmem:[%s4 + $0x2c0] sm:$0xff]
        %v5355 = vld [vmem:[%s4 + $0x2c8] sm:$0xff]
        %v5356 = vld [vmem:[%s4 + $0x2d0] sm:$0xff]
        %v5357 = vld [vmem:[%s4 + $0x2d8] sm:$0xff]
        %v5358 = vld [vmem:[%s4 + $0x2e0] sm:$0xff]
        %v5359 = vld [vmem:[%s4 + $0x2e8] sm:$0xff]
        %v5360 = vld [vmem:[%s4 + $0x2f0] sm:$0xff]
        %v5361 = vld [vmem:[%s4 + $0x2f8] sm:$0xff]
        %v5362 = vld [vmem:[%s4 + $0x300] sm:$0xff]
        %v5363 = vld [vmem:[%s4 + $0x308] sm:$0xff]
        %v5364 = vld [vmem:[%s4 + $0x310] sm:$0xff]
        %v5365 = vld [vmem:[%s4 + $0x318] sm:$0xff]
        %v5366 = vld [vmem:[%s4 + $0x320] sm:$0xff]
        %v5367 = vld [vmem:[%s4 + $0x328] sm:$0xff]
        %v5368 = vld [vmem:[%s4 + $0x330] sm:$0xff]
        %v5369 = vld [vmem:[%s4 + $0x338] sm:$0xff]
        %v5370 = vld [vmem:[%s4 + $0x340] sm:$0xff]
        %v5371 = vld [vmem:[%s4 + $0x348] sm:$0xff]
        %v5372 = vld [vmem:[%s4 + $0x350] sm:$0xff]
        %v5373 = vld [vmem:[%s4 + $0x358] sm:$0xff]
        %v5374 = vld [vmem:[%s4 + $0x360] sm:$0xff]
        %v5375 = vld [vmem:[%s4 + $0x368] sm:$0xff]
        %v5376 = vld [vmem:[%s4 + $0x370] sm:$0xff]
        %v5377 = vld [vmem:[%s4 + $0x378] sm:$0xff]
        %v5378 = vld [vmem:[%s4 + $0x380] sm:$0xff]
        %v5379 = vld [vmem:[%s4 + $0x388] sm:$0xff]
        %v5380 = vld [vmem:[%s4 + $0x390] sm:$0xff]
        %v5381 = vld [vmem:[%s4 + $0x398] sm:$0xff]
        %v5382 = vld [vmem:[%s4 + $0x3a0] sm:$0xff]
        %v5383 = vld [vmem:[%s4 + $0x3a8] sm:$0xff]
        %v5384 = vld [vmem:[%s4 + $0x3b0] sm:$0xff]
        %v5385 = vld [vmem:[%s4 + $0x3b8] sm:$0xff]
        %v5386 = vld [vmem:[%s4 + $0x3c0] sm:$0xff]
        %v5387 = vld [vmem:[%s4 + $0x3c8] sm:$0xff]
        %v5388 = vld [vmem:[%s4 + $0x3d0] sm:$0xff]
        %v5389 = vld [vmem:[%s4 + $0x3d8] sm:$0xff]
        %v5390 = vld [vmem:[%s4 + $0x3e0] sm:$0xff]
        %v5395 = vunpack.c.l.b16 %v5262
        %v5396 = vunpack.c.h.b16 %v5262
        %v5397 = vunpack.c.l.b16 %v5263
        %v5398 = vunpack.c.h.b16 %v5263
        %v5399 = vunpack.c.l.b16 %v5264
        %v5400 = vunpack.c.h.b16 %v5264
        %v5401 = vunpack.c.l.b16 %v5265
        %v5402 = vunpack.c.h.b16 %v5265
        %v5403 = vpack.c.b16 %v5395, %v5395
        %v5404 = vpack.c.b16 %v5396, %v5396
        %v5405 = vpack.c.b16 %v5397, %v5397
        %v5406 = vpack.c.b16 %v5398, %v5398
        %v5407 = vpack.c.b16 %v5399, %v5399
        %v5408 = vpack.c.b16 %v5400, %v5400
        %v5409 = vpack.c.b16 %v5401, %v5401
        %v5410 = vpack.c.b16 %v5402, %v5402
        %v5543 = vunpack.c.l.b16 %v5266
        %v5544 = vunpack.c.h.b16 %v5266
        %v5545 = vunpack.c.l.b16 %v5267
        %v5546 = vunpack.c.h.b16 %v5267
        %v5547 = vunpack.c.l.b16 %v5268
        %v5548 = vunpack.c.h.b16 %v5268
        %v5549 = vunpack.c.l.b16 %v5269
        %v5550 = vunpack.c.h.b16 %v5269
        %v5551 = vunpack.c.l.b16 %v5270
        %v5552 = vunpack.c.h.b16 %v5270
        %v5553 = vunpack.c.l.b16 %v5271
        %v5554 = vunpack.c.h.b16 %v5271
        %v5555 = vunpack.c.l.b16 %v5272
        %v5556 = vunpack.c.h.b16 %v5272
        %v5557 = vunpack.c.l.b16 %v5273
        %v5558 = vunpack.c.h.b16 %v5273
        %v5559 = vunpack.c.l.b16 %v5274
        %v5560 = vunpack.c.h.b16 %v5274
        %v5561 = vunpack.c.l.b16 %v5275
        %v5562 = vunpack.c.h.b16 %v5275
        %v5563 = vunpack.c.l.b16 %v5276
        %v5564 = vunpack.c.h.b16 %v5276
        %v5565 = vunpack.c.l.b16 %v5277
        %v5566 = vunpack.c.h.b16 %v5277
        %v5567 = vunpack.c.l.b16 %v5278
        %v5568 = vunpack.c.h.b16 %v5278
        %v5569 = vunpack.c.l.b16 %v5279
        %v5570 = vunpack.c.h.b16 %v5279
        %v5571 = vunpack.c.l.b16 %v5280
        %v5572 = vunpack.c.h.b16 %v5280
        %v5573 = vunpack.c.l.b16 %v5281
        %v5574 = vunpack.c.h.b16 %v5281
        %v5575 = vunpack.c.l.b16 %v5282
        %v5576 = vunpack.c.h.b16 %v5282
        %v5577 = vunpack.c.l.b16 %v5283
        %v5578 = vunpack.c.h.b16 %v5283
        %v5579 = vunpack.c.l.b16 %v5284
        %v5580 = vunpack.c.h.b16 %v5284
        %v5581 = vunpack.c.l.b16 %v5285
        %v5582 = vunpack.c.h.b16 %v5285
        %v5583 = vunpack.c.l.b16 %v5286
        %v5584 = vunpack.c.h.b16 %v5286
        %v5585 = vunpack.c.l.b16 %v5287
        %v5586 = vunpack.c.h.b16 %v5287
        %v5587 = vunpack.c.l.b16 %v5288
        %v5588 = vunpack.c.h.b16 %v5288
        %v5589 = vunpack.c.l.b16 %v5289
        %v5590 = vunpack.c.h.b16 %v5289
        %v5591 = vunpack.c.l.b16 %v5290
        %v5592 = vunpack.c.h.b16 %v5290
        %v5593 = vunpack.c.l.b16 %v5291
        %v5594 = vunpack.c.h.b16 %v5291
        %v5595 = vunpack.c.l.b16 %v5292
        %v5596 = vunpack.c.h.b16 %v5292
        %v5597 = vunpack.c.l.b16 %v5293
        %v5598 = vunpack.c.h.b16 %v5293
        %v5599 = vunpack.c.l.b16 %v5294
        %v5600 = vunpack.c.h.b16 %v5294
        %v5601 = vunpack.c.l.b16 %v5295
        %v5602 = vunpack.c.h.b16 %v5295
        %v5603 = vunpack.c.l.b16 %v5296
        %v5604 = vunpack.c.h.b16 %v5296
        %v5605 = vunpack.c.l.b16 %v5297
        %v5606 = vunpack.c.h.b16 %v5297
        %v5607 = vunpack.c.l.b16 %v5298
        %v5608 = vunpack.c.h.b16 %v5298
        %v5609 = vunpack.c.l.b16 %v5299
        %v5610 = vunpack.c.h.b16 %v5299
        %v5611 = vunpack.c.l.b16 %v5300
        %v5612 = vunpack.c.h.b16 %v5300
        %v5613 = vunpack.c.l.b16 %v5301
        %v5614 = vunpack.c.h.b16 %v5301
        %v5615 = vunpack.c.l.b16 %v5302
        %v5616 = vunpack.c.h.b16 %v5302
        %v5617 = vunpack.c.l.b16 %v5303
        %v5618 = vunpack.c.h.b16 %v5303
        %v5619 = vunpack.c.l.b16 %v5304
        %v5620 = vunpack.c.h.b16 %v5304
        %v5621 = vunpack.c.l.b16 %v5305
        %v5622 = vunpack.c.h.b16 %v5305
        %v5623 = vunpack.c.l.b16 %v5306
        %v5624 = vunpack.c.h.b16 %v5306
        %v5625 = vunpack.c.l.b16 %v5307
        %v5626 = vunpack.c.h.b16 %v5307
        %v5627 = vunpack.c.l.b16 %v5308
        %v5628 = vunpack.c.h.b16 %v5308
        %v5629 = vunpack.c.l.b16 %v5309
        %v5630 = vunpack.c.h.b16 %v5309
        %v5631 = vunpack.c.l.b16 %v5310
        %v5632 = vunpack.c.h.b16 %v5310
        %v5633 = vunpack.c.l.b16 %v5311
        %v5634 = vunpack.c.h.b16 %v5311
        %v5635 = vunpack.c.l.b16 %v5312
        %v5636 = vunpack.c.h.b16 %v5312
        %v5637 = vunpack.c.l.b16 %v5313
        %v5638 = vunpack.c.h.b16 %v5313
        %v5639 = vunpack.c.l.b16 %v5314
        %v5640 = vunpack.c.h.b16 %v5314
        %v5641 = vunpack.c.l.b16 %v5315
        %v5642 = vunpack.c.h.b16 %v5315
        %v5643 = vunpack.c.l.b16 %v5316
        %v5644 = vunpack.c.h.b16 %v5316
        %v5645 = vunpack.c.l.b16 %v5317
        %v5646 = vunpack.c.h.b16 %v5317
        %v5647 = vunpack.c.l.b16 %v5318
        %v5648 = vunpack.c.h.b16 %v5318
        %v5649 = vunpack.c.l.b16 %v5319
        %v5650 = vunpack.c.h.b16 %v5319
        %v5651 = vunpack.c.l.b16 %v5320
        %v5652 = vunpack.c.h.b16 %v5320
        %v5653 = vunpack.c.l.b16 %v5321
        %v5654 = vunpack.c.h.b16 %v5321
        %v5655 = vunpack.c.l.b16 %v5322
        %v5656 = vunpack.c.h.b16 %v5322
        %v5657 = vunpack.c.l.b16 %v5323
        %v5658 = vunpack.c.h.b16 %v5323
        %v5659 = vunpack.c.l.b16 %v5324
        %v5660 = vunpack.c.h.b16 %v5324
        %v5661 = vunpack.c.l.b16 %v5325
        %v5662 = vunpack.c.h.b16 %v5325
        %v5663 = vunpack.c.l.b16 %v5326
        %v5664 = vunpack.c.h.b16 %v5326
        %v5665 = vunpack.c.l.b16 %v5327
        %v5666 = vunpack.c.h.b16 %v5327
        %v5667 = vunpack.c.l.b16 %v5328
        %v5668 = vunpack.c.h.b16 %v5328
        %v5669 = vunpack.c.l.b16 %v5329
        %v5670 = vunpack.c.h.b16 %v5329
        %v5671 = vunpack.c.l.b16 %v5330
        %v5672 = vunpack.c.h.b16 %v5330
        %v5673 = vunpack.c.l.b16 %v5331
        %v5674 = vunpack.c.h.b16 %v5331
        %v5675 = vunpack.c.l.b16 %v5332
        %v5676 = vunpack.c.h.b16 %v5332
        %v5677 = vunpack.c.l.b16 %v5333
        %v5678 = vunpack.c.h.b16 %v5333
        %v5679 = vunpack.c.l.b16 %v5334
        %v5680 = vunpack.c.h.b16 %v5334
        %v5681 = vunpack.c.l.b16 %v5335
        %v5682 = vunpack.c.h.b16 %v5335
        %v5683 = vunpack.c.l.b16 %v5336
        %v5684 = vunpack.c.h.b16 %v5336
        %v5685 = vunpack.c.l.b16 %v5337
        %v5686 = vunpack.c.h.b16 %v5337
        %v5687 = vunpack.c.l.b16 %v5338
        %v5688 = vunpack.c.h.b16 %v5338
        %v5689 = vunpack.c.l.b16 %v5339
        %v5690 = vunpack.c.h.b16 %v5339
        %v5691 = vunpack.c.l.b16 %v5340
        %v5692 = vunpack.c.h.b16 %v5340
        %v5693 = vunpack.c.l.b16 %v5341
        %v5694 = vunpack.c.h.b16 %v5341
        %v5695 = vunpack.c.l.b16 %v5342
        %v5696 = vunpack.c.h.b16 %v5342
        %v5697 = vunpack.c.l.b16 %v5343
        %v5698 = vunpack.c.h.b16 %v5343
        %v5699 = vunpack.c.l.b16 %v5344
        %v5700 = vunpack.c.h.b16 %v5344
        %v5701 = vunpack.c.l.b16 %v5345
        %v5702 = vunpack.c.h.b16 %v5345
        %v5703 = vunpack.c.l.b16 %v5346
        %v5704 = vunpack.c.h.b16 %v5346
        %v5705 = vunpack.c.l.b16 %v5347
        %v5706 = vunpack.c.h.b16 %v5347
        %v5707 = vunpack.c.l.b16 %v5348
        %v5708 = vunpack.c.h.b16 %v5348
        %v5709 = vunpack.c.l.b16 %v5349
        %v5710 = vunpack.c.h.b16 %v5349
        %v5711 = vunpack.c.l.b16 %v5350
        %v5712 = vunpack.c.h.b16 %v5350
        %v5713 = vunpack.c.l.b16 %v5351
        %v5714 = vunpack.c.h.b16 %v5351
        %v5715 = vunpack.c.l.b16 %v5352
        %v5716 = vunpack.c.h.b16 %v5352
        %v5717 = vunpack.c.l.b16 %v5353
        %v5718 = vunpack.c.h.b16 %v5353
        %v5719 = vunpack.c.l.b16 %v5354
        %v5720 = vunpack.c.h.b16 %v5354
        %v5721 = vunpack.c.l.b16 %v5355
        %v5722 = vunpack.c.h.b16 %v5355
        %v5723 = vunpack.c.l.b16 %v5356
        %v5724 = vunpack.c.h.b16 %v5356
        %v5725 = vunpack.c.l.b16 %v5357
        %v5726 = vunpack.c.h.b16 %v5357
        %v5727 = vunpack.c.l.b16 %v5358
        %v5728 = vunpack.c.h.b16 %v5358
        %v5729 = vunpack.c.l.b16 %v5359
        %v5730 = vunpack.c.h.b16 %v5359
        %v5731 = vunpack.c.l.b16 %v5360
        %v5732 = vunpack.c.h.b16 %v5360
        %v5733 = vunpack.c.l.b16 %v5361
        %v5734 = vunpack.c.h.b16 %v5361
        %v5735 = vunpack.c.l.b16 %v5362
        %v5736 = vunpack.c.h.b16 %v5362
        %v5737 = vunpack.c.l.b16 %v5363
        %v5738 = vunpack.c.h.b16 %v5363
        %v5739 = vunpack.c.l.b16 %v5364
        %v5740 = vunpack.c.h.b16 %v5364
        %v5741 = vunpack.c.l.b16 %v5365
        %v5742 = vunpack.c.h.b16 %v5365
        %v5743 = vunpack.c.l.b16 %v5366
        %v5744 = vunpack.c.h.b16 %v5366
        %v5745 = vunpack.c.l.b16 %v5367
        %v5746 = vunpack.c.h.b16 %v5367
        %v5747 = vunpack.c.l.b16 %v5368
        %v5748 = vunpack.c.h.b16 %v5368
        %v5749 = vunpack.c.l.b16 %v5369
        %v5750 = vunpack.c.h.b16 %v5369
        %v5751 = vunpack.c.l.b16 %v5370
        %v5752 = vunpack.c.h.b16 %v5370
        %v5753 = vunpack.c.l.b16 %v5371
        %v5754 = vunpack.c.h.b16 %v5371
        %v5755 = vunpack.c.l.b16 %v5372
        %v5756 = vunpack.c.h.b16 %v5372
        %v5757 = vunpack.c.l.b16 %v5373
        %v5758 = vunpack.c.h.b16 %v5373
        %v5759 = vunpack.c.l.b16 %v5374
        %v5760 = vunpack.c.h.b16 %v5374
        %v5761 = vunpack.c.l.b16 %v5375
        %v5762 = vunpack.c.h.b16 %v5375
        %v5763 = vunpack.c.l.b16 %v5376
        %v5764 = vunpack.c.h.b16 %v5376
        %v5765 = vunpack.c.l.b16 %v5377
        %v5766 = vunpack.c.h.b16 %v5377
        %v5767 = vunpack.c.l.b16 %v5378
        %v5768 = vunpack.c.h.b16 %v5378
        %v5769 = vunpack.c.l.b16 %v5379
        %v5770 = vunpack.c.h.b16 %v5379
        %v5771 = vunpack.c.l.b16 %v5380
        %v5772 = vunpack.c.h.b16 %v5380
        %v5773 = vunpack.c.l.b16 %v5381
        %v5774 = vunpack.c.h.b16 %v5381
        %v5775 = vunpack.c.l.b16 %v5382
        %v5776 = vunpack.c.h.b16 %v5382
        %v5777 = vunpack.c.l.b16 %v5383
        %v5778 = vunpack.c.h.b16 %v5383
        %v5779 = vunpack.c.l.b16 %v5384
        %v5780 = vunpack.c.h.b16 %v5384
        %v5781 = vunpack.c.l.b16 %v5385
        %v5782 = vunpack.c.h.b16 %v5385
        %v5783 = vunpack.c.l.b16 %v5386
        %v5784 = vunpack.c.h.b16 %v5386
        %v5785 = vunpack.c.l.b16 %v5387
        %v5786 = vunpack.c.h.b16 %v5387
        %v5787 = vunpack.c.l.b16 %v5388
        %v5788 = vunpack.c.h.b16 %v5388
        %v5789 = vunpack.c.l.b16 %v5389
        %v5790 = vunpack.c.h.b16 %v5389
        %v5791 = vunpack.c.l.b16 %v5390
        %v5792 = vunpack.c.h.b16 %v5390
        %v5793 = vpack.c.b16 %v5545, %v5543
        %v5794 = vpack.c.b16 %v5546, %v5544
        %v5795 = vpack.c.b16 %v5549, %v5547
        %v5796 = vpack.c.b16 %v5550, %v5548
        %v5797 = vpack.c.b16 %v5553, %v5551
        %v5798 = vpack.c.b16 %v5554, %v5552
        %v5799 = vpack.c.b16 %v5557, %v5555
        %v5800 = vpack.c.b16 %v5558, %v5556
        %v5801 = vpack.c.b16 %v5561, %v5559
        %v5802 = vpack.c.b16 %v5562, %v5560
        %v5803 = vpack.c.b16 %v5565, %v5563
        %v5804 = vpack.c.b16 %v5566, %v5564
        %v5805 = vpack.c.b16 %v5569, %v5567
        %v5806 = vpack.c.b16 %v5570, %v5568
        %v5807 = vpack.c.b16 %v5573, %v5571
        %v5808 = vpack.c.b16 %v5574, %v5572
        %v5809 = vpack.c.b16 %v5577, %v5575
        %v5810 = vpack.c.b16 %v5578, %v5576
        %v5811 = vpack.c.b16 %v5581, %v5579
        %v5812 = vpack.c.b16 %v5582, %v5580
        %v5813 = vpack.c.b16 %v5585, %v5583
        %v5814 = vpack.c.b16 %v5586, %v5584
        %v5815 = vpack.c.b16 %v5589, %v5587
        %v5816 = vpack.c.b16 %v5590, %v5588
        %v5817 = vpack.c.b16 %v5593, %v5591
        %v5818 = vpack.c.b16 %v5594, %v5592
        %v5819 = vpack.c.b16 %v5597, %v5595
        %v5820 = vpack.c.b16 %v5598, %v5596
        %v5821 = vpack.c.b16 %v5601, %v5599
        %v5822 = vpack.c.b16 %v5602, %v5600
        %v5823 = vpack.c.b16 %v5605, %v5603
        %v5824 = vpack.c.b16 %v5606, %v5604
        %v5825 = vpack.c.b16 %v5609, %v5607
        %v5826 = vpack.c.b16 %v5610, %v5608
        %v5827 = vpack.c.b16 %v5613, %v5611
        %v5828 = vpack.c.b16 %v5614, %v5612
        %v5829 = vpack.c.b16 %v5617, %v5615
        %v5830 = vpack.c.b16 %v5618, %v5616
        %v5831 = vpack.c.b16 %v5621, %v5619
        %v5832 = vpack.c.b16 %v5622, %v5620
        %v5833 = vpack.c.b16 %v5625, %v5623
        %v5834 = vpack.c.b16 %v5626, %v5624
        %v5835 = vpack.c.b16 %v5629, %v5627
        %v5836 = vpack.c.b16 %v5630, %v5628
        %v5837 = vpack.c.b16 %v5633, %v5631
        %v5838 = vpack.c.b16 %v5634, %v5632
        %v5839 = vpack.c.b16 %v5637, %v5635
        %v5840 = vpack.c.b16 %v5638, %v5636
        %v5841 = vpack.c.b16 %v5641, %v5639
        %v5842 = vpack.c.b16 %v5642, %v5640
        %v5843 = vpack.c.b16 %v5645, %v5643
        %v5844 = vpack.c.b16 %v5646, %v5644
        %v5845 = vpack.c.b16 %v5649, %v5647
        %v5846 = vpack.c.b16 %v5650, %v5648
        %v5847 = vpack.c.b16 %v5653, %v5651
        %v5848 = vpack.c.b16 %v5654, %v5652
        %v5849 = vpack.c.b16 %v5657, %v5655
        %v5850 = vpack.c.b16 %v5658, %v5656
        %v5851 = vpack.c.b16 %v5661, %v5659
        %v5852 = vpack.c.b16 %v5662, %v5660
        %v5853 = vpack.c.b16 %v5665, %v5663
        %v5854 = vpack.c.b16 %v5666, %v5664
        %v5855 = vpack.c.b16 %v5669, %v5667
        %v5856 = vpack.c.b16 %v5670, %v5668
        %v5857 = vpack.c.b16 %v5673, %v5671
        %v5858 = vpack.c.b16 %v5674, %v5672
        %v5859 = vpack.c.b16 %v5677, %v5675
        %v5860 = vpack.c.b16 %v5678, %v5676
        %v5861 = vpack.c.b16 %v5681, %v5679
        %v5862 = vpack.c.b16 %v5682, %v5680
        %v5863 = vpack.c.b16 %v5685, %v5683
        %v5864 = vpack.c.b16 %v5686, %v5684
        %v5865 = vpack.c.b16 %v5689, %v5687
        %v5866 = vpack.c.b16 %v5690, %v5688
        %v5867 = vpack.c.b16 %v5693, %v5691
        %v5868 = vpack.c.b16 %v5694, %v5692
        %v5869 = vpack.c.b16 %v5697, %v5695
        %v5870 = vpack.c.b16 %v5698, %v5696
        %v5871 = vpack.c.b16 %v5701, %v5699
        %v5872 = vpack.c.b16 %v5702, %v5700
        %v5873 = vpack.c.b16 %v5705, %v5703
        %v5874 = vpack.c.b16 %v5706, %v5704
        %v5875 = vpack.c.b16 %v5709, %v5707
        %v5876 = vpack.c.b16 %v5710, %v5708
        %v5877 = vpack.c.b16 %v5713, %v5711
        %v5878 = vpack.c.b16 %v5714, %v5712
        %v5879 = vpack.c.b16 %v5717, %v5715
        %v5880 = vpack.c.b16 %v5718, %v5716
        %v5881 = vpack.c.b16 %v5721, %v5719
        %v5882 = vpack.c.b16 %v5722, %v5720
        %v5883 = vpack.c.b16 %v5725, %v5723
        %v5884 = vpack.c.b16 %v5726, %v5724
        %v5885 = vpack.c.b16 %v5729, %v5727
        %v5886 = vpack.c.b16 %v5730, %v5728
        %v5887 = vpack.c.b16 %v5733, %v5731
        %v5888 = vpack.c.b16 %v5734, %v5732
        %v5889 = vpack.c.b16 %v5737, %v5735
        %v5890 = vpack.c.b16 %v5738, %v5736
        %v5891 = vpack.c.b16 %v5741, %v5739
        %v5892 = vpack.c.b16 %v5742, %v5740
        %v5893 = vpack.c.b16 %v5745, %v5743
        %v5894 = vpack.c.b16 %v5746, %v5744
        %v5895 = vpack.c.b16 %v5749, %v5747
        %v5896 = vpack.c.b16 %v5750, %v5748
        %v5897 = vpack.c.b16 %v5753, %v5751
        %v5898 = vpack.c.b16 %v5754, %v5752
        %v5899 = vpack.c.b16 %v5757, %v5755
        %v5900 = vpack.c.b16 %v5758, %v5756
        %v5901 = vpack.c.b16 %v5761, %v5759
        %v5902 = vpack.c.b16 %v5762, %v5760
        %v5903 = vpack.c.b16 %v5765, %v5763
        %v5904 = vpack.c.b16 %v5766, %v5764
        %v5905 = vpack.c.b16 %v5769, %v5767
        %v5906 = vpack.c.b16 %v5770, %v5768
        %v5907 = vpack.c.b16 %v5773, %v5771
        %v5908 = vpack.c.b16 %v5774, %v5772
        %v5909 = vpack.c.b16 %v5777, %v5775
        %v5910 = vpack.c.b16 %v5778, %v5776
        %v5911 = vpack.c.b16 %v5781, %v5779
        %v5912 = vpack.c.b16 %v5782, %v5780
        %v5913 = vpack.c.b16 %v5785, %v5783
        %v5914 = vpack.c.b16 %v5786, %v5784
        %v5915 = vpack.c.b16 %v5789, %v5787
        %v5916 = vpack.c.b16 %v5790, %v5788
        %v5917 = vpack.c.b16 %v5791, %v5791
        %v5918 = vpack.c.b16 %v5792, %v5792
        %v6044 = vsel %vm1448, %v5410, 0
        %v6047 = vsel %vm1482, %v5917, 0
        %v6050 = vsel %vm1482, %v5918, 0
        %6052 = vmatprep.subr.bf16.mxu0 %v5794
        %6053 = vmatpush1.bf16.msra.mxu0 %v5793
        %6054 = vmatprep.subr.bf16.mxu0 %v5796
        %6055 = vmatpush1.bf16.msra.mxu0 %v5795
        %6056 = vmatprep.subr.bf16.mxu0 %v5798
        %6057 = vmatpush1.bf16.msra.mxu0 %v5797
        %6058 = vmatprep.subr.bf16.mxu0 %v5800
        %6059 = vmatpush1.bf16.msra.mxu0 %v5799
        %6060 = vmatprep.subr.bf16.mxu0 %v5802
        %6061 = vmatpush1.bf16.msra.mxu0 %v5801
        %6062 = vmatprep.subr.bf16.mxu0 %v5804
        %6063 = vmatpush1.bf16.msra.mxu0 %v5803
        %6064 = vmatprep.subr.bf16.mxu0 %v5806
        %6065 = vmatpush1.bf16.msra.mxu0 %v5805
        %6066 = vmatprep.subr.bf16.mxu0 %v5808
        %6067 = vmatpush1.bf16.msra.mxu0 %v5807
        %6068 = vmatprep.subr.bf16.mxu0 %v5810
        %6069 = vmatpush1.bf16.msra.mxu0 %v5809
        %6070 = vmatprep.subr.bf16.mxu0 %v5812
        %6071 = vmatpush1.bf16.msra.mxu0 %v5811
        %6072 = vmatprep.subr.bf16.mxu0 %v5814
        %6073 = vmatpush1.bf16.msra.mxu0 %v5813
        %6074 = vmatprep.subr.bf16.mxu0 %v5816
        %6075 = vmatpush1.bf16.msra.mxu0 %v5815
        %6076 = vmatprep.subr.bf16.mxu0 %v5818
        %6077 = vmatpush1.bf16.msra.mxu0 %v5817
        %6078 = vmatprep.subr.bf16.mxu0 %v5820
        %6079 = vmatpush1.bf16.msra.mxu0 %v5819
        %6080 = vmatprep.subr.bf16.mxu0 %v5822
        %6081 = vmatpush1.bf16.msra.mxu0 %v5821
        %6082 = vmatprep.subr.bf16.mxu0 %v5824
        %6083 = vmatpush1.bf16.msra.mxu0 %v5823
        %6084 = vmatprep.mubr.bf16.mxu0 %v5404
        %6085 = vmatmul.mubr.bf16.gmra.mrb[0].mxu0 %v5403
        %v6086 = vpop.f32.mrb[0].mxu0
        %v6087 = vadd.f32 0.0, %v6086
        %v6088 = vpop.f32.mrb[0].mxu0
        %v6089 = vadd.f32 0.0, %v6088
        %v6090 = vpop.f32.mrb[0].mxu0
        %v6091 = vpop.f32.mrb[0].mxu0
        %6092 = vdwg.mxu0
        %6093 = vmatprep.subr.bf16.mxu0 %v5826
        %6094 = vmatpush1.bf16.msra.mxu0 %v5825
        %6095 = vmatprep.subr.bf16.mxu0 %v5828
        %6096 = vmatpush1.bf16.msra.mxu0 %v5827
        %6097 = vmatprep.subr.bf16.mxu0 %v5830
        %6098 = vmatpush1.bf16.msra.mxu0 %v5829
        %6099 = vmatprep.subr.bf16.mxu0 %v5832
        %6100 = vmatpush1.bf16.msra.mxu0 %v5831
        %6101 = vmatprep.subr.bf16.mxu0 %v5834
        %6102 = vmatpush1.bf16.msra.mxu0 %v5833
        %6103 = vmatprep.subr.bf16.mxu0 %v5836
        %6104 = vmatpush1.bf16.msra.mxu0 %v5835
        %6105 = vmatprep.subr.bf16.mxu0 %v5838
        %6106 = vmatpush1.bf16.msra.mxu0 %v5837
        %6107 = vmatprep.subr.bf16.mxu0 %v5840
        %6108 = vmatpush1.bf16.msra.mxu0 %v5839
        %6109 = vmatprep.subr.bf16.mxu0 %v5842
        %6110 = vmatpush1.bf16.msra.mxu0 %v5841
        %6111 = vmatprep.subr.bf16.mxu0 %v5844
        %6112 = vmatpush1.bf16.msra.mxu0 %v5843
        %6113 = vmatprep.subr.bf16.mxu0 %v5846
        %6114 = vmatpush1.bf16.msra.mxu0 %v5845
        %6115 = vmatprep.subr.bf16.mxu0 %v5848
        %6116 = vmatpush1.bf16.msra.mxu0 %v5847
        %6117 = vmatprep.subr.bf16.mxu0 %v5850
        %6118 = vmatpush1.bf16.msra.mxu0 %v5849
        %6119 = vmatprep.subr.bf16.mxu0 %v5852
        %6120 = vmatpush1.bf16.msra.mxu0 %v5851
        %6121 = vmatprep.subr.bf16.mxu0 %v5854
        %6122 = vmatpush1.bf16.msra.mxu0 %v5853
        %6123 = vmatprep.subr.bf16.mxu0 %v5856
        %6124 = vmatpush1.bf16.msra.mxu0 %v5855
        %6125 = vmatprep.mubr.bf16.mxu0 %v5406
        %6126 = vmatmul.mubr.bf16.gmra.mrb[0].mxu0 %v5405
        %v6127 = vpop.f32.mrb[0].mxu0
        %v6128 = vadd.f32 %v6087, %v6127
        %v6129 = vpop.f32.mrb[0].mxu0
        %v6130 = vadd.f32 %v6089, %v6129
        %v6131 = vpop.f32.mrb[0].mxu0
        %v6132 = vpop.f32.mrb[0].mxu0
        %6133 = vdwg.mxu0
        %6134 = vmatprep.subr.bf16.mxu0 %v5858
        %6135 = vmatpush1.bf16.msra.mxu0 %v5857
        %6136 = vmatprep.subr.bf16.mxu0 %v5860
        %6137 = vmatpush1.bf16.msra.mxu0 %v5859
        %6138 = vmatprep.subr.bf16.mxu0 %v5862
        %6139 = vmatpush1.bf16.msra.mxu0 %v5861
        %6140 = vmatprep.subr.bf16.mxu0 %v5864
        %6141 = vmatpush1.bf16.msra.mxu0 %v5863
        %6142 = vmatprep.subr.bf16.mxu0 %v5866
        %6143 = vmatpush1.bf16.msra.mxu0 %v5865
        %6144 = vmatprep.subr.bf16.mxu0 %v5868
        %6145 = vmatpush1.bf16.msra.mxu0 %v5867
        %6146 = vmatprep.subr.bf16.mxu0 %v5870
        %6147 = vmatpush1.bf16.msra.mxu0 %v5869
        %6148 = vmatprep.subr.bf16.mxu0 %v5872
        %6149 = vmatpush1.bf16.msra.mxu0 %v5871
        %6150 = vmatprep.subr.bf16.mxu0 %v5874
        %6151 = vmatpush1.bf16.msra.mxu0 %v5873
        %6152 = vmatprep.subr.bf16.mxu0 %v5876
        %6153 = vmatpush1.bf16.msra.mxu0 %v5875
        %6154 = vmatprep.subr.bf16.mxu0 %v5878
        %6155 = vmatpush1.bf16.msra.mxu0 %v5877
        %6156 = vmatprep.subr.bf16.mxu0 %v5880
        %6157 = vmatpush1.bf16.msra.mxu0 %v5879
        %6158 = vmatprep.subr.bf16.mxu0 %v5882
        %6159 = vmatpush1.bf16.msra.mxu0 %v5881
        %6160 = vmatprep.subr.bf16.mxu0 %v5884
        %6161 = vmatpush1.bf16.msra.mxu0 %v5883
        %6162 = vmatprep.subr.bf16.mxu0 %v5886
        %6163 = vmatpush1.bf16.msra.mxu0 %v5885
        %6164 = vmatprep.subr.bf16.mxu0 %v5888
        %6165 = vmatpush1.bf16.msra.mxu0 %v5887
        %6166 = vmatprep.mubr.bf16.mxu0 %v5408
        %6167 = vmatmul.mubr.bf16.gmra.mrb[0].mxu0 %v5407
        %v6168 = vpop.f32.mrb[0].mxu0
        %v6169 = vadd.f32 %v6128, %v6168
        %v6170 = vpop.f32.mrb[0].mxu0
        %v6171 = vadd.f32 %v6130, %v6170
        %v6172 = vpop.f32.mrb[0].mxu0
        %v6173 = vpop.f32.mrb[0].mxu0
        %6174 = vdwg.mxu0
        %6175 = vmatprep.subr.bf16.mxu0 %v5890
        %6176 = vmatpush1.bf16.msra.mxu0 %v5889
        %6177 = vmatprep.subr.bf16.mxu0 %v5892
        %6178 = vmatpush1.bf16.msra.mxu0 %v5891
        %6179 = vmatprep.subr.bf16.mxu0 %v5894
        %6180 = vmatpush1.bf16.msra.mxu0 %v5893
        %6181 = vmatprep.subr.bf16.mxu0 %v5896
        %6182 = vmatpush1.bf16.msra.mxu0 %v5895
        %6183 = vmatprep.subr.bf16.mxu0 %v5898
        %6184 = vmatpush1.bf16.msra.mxu0 %v5897
        %6185 = vmatprep.subr.bf16.mxu0 %v5900
        %6186 = vmatpush1.bf16.msra.mxu0 %v5899
        %6187 = vmatprep.subr.bf16.mxu0 %v5902
        %6188 = vmatpush1.bf16.msra.mxu0 %v5901
        %6189 = vmatprep.subr.bf16.mxu0 %v5904
        %6190 = vmatpush1.bf16.msra.mxu0 %v5903
        %6191 = vmatprep.subr.bf16.mxu0 %v5906
        %6192 = vmatpush1.bf16.msra.mxu0 %v5905
        %6193 = vmatprep.subr.bf16.mxu0 %v5908
        %6194 = vmatpush1.bf16.msra.mxu0 %v5907
        %6195 = vmatprep.subr.bf16.mxu0 %v5910
        %6196 = vmatpush1.bf16.msra.mxu0 %v5909
        %6197 = vmatprep.subr.bf16.mxu0 %v5912
        %6198 = vmatpush1.bf16.msra.mxu0 %v5911
        %6199 = vmatprep.subr.bf16.mxu0 %v5914
        %6200 = vmatpush1.bf16.msra.mxu0 %v5913
        %6201 = vmatprep.subr.bf16.mxu0 %v5916
        %6202 = vmatpush1.bf16.msra.mxu0 %v5915
        %6203 = vmatprep.subr.bf16.mxu0 %v6050
        %6204 = vmatpush1.bf16.msra.mxu0 %v6047
        %6205 = vmatprep.subr.bf16.mxu0 0
        %6206 = vmatpush1.bf16.msra.mxu0 0
        %6207 = vmatprep.mubr.bf16.mxu0 %v6044
        %6208 = vmatmul.mubr.bf16.gmra.mrb[0].mxu0 %v5409
        %v6209 = vpop.f32.mrb[0].mxu0
        %v6210 = vadd.f32 %v6169, %v6209
        %v6211 = vpop.f32.mrb[0].mxu0
        %v6212 = vadd.f32 %v6171, %v6211
        %v6213 = vpop.f32.mrb[0].mxu0
        %v6214 = vpop.f32.mrb[0].mxu0
        %6215 = vdwg.mxu0
        %s6216 = scalar_lea.vmem %s6, 7
        %v6217 = vld [vmem:[%s6216] ss:$8 sm:$0x3]
        %v6219 = vlaneseq
        %v6220 = vshrl.u32 %v6219, 7
        %v6221 = vsub.s32 0, %v6220
        %v6222 = vrot.slane %v6217, %v6221
        %v6223 = vlaneseq
        %v6224 = vshrl.u32 %v6223, 7
        %v6225 = vsub.s32 1, %v6224
        %v6226 = vrot.slane %v6217, %v6225
        %v6229 = vmul.f32 %v6210, %v6222
        %v6230 = vmul.f32 %v6212, %v6226
        %s6231 = scalar_lea.vmem %s6, 24
        %v6232 = vld [vmem:[%s6231] ss:$8 sm:$0x3]
        %v6234 = vlaneseq
        %v6235 = vshrl.u32 %v6234, 7
        %v6236 = vsub.s32 0, %v6235
        %v6237 = vrot.slane %v6232, %v6236
        %v6238 = vlaneseq
        %v6239 = vshrl.u32 %v6238, 7
        %v6240 = vsub.s32 1, %v6239
        %v6241 = vrot.slane %v6232, %v6240
        %v6244 = vadd.f32 %v6229, %v6237
        %v6245 = vadd.f32 %v6230, %v6241
        %vm6246 = vcmp.gt.f32.partialorder %v6244, 0.0
        %vm6247 = vcmp.gt.f32.partialorder %v6245, 0.0
        %v6248 = vmin.f32 %v6244, 0.0
        %v6249 = vmin.f32 %v6245, 0.0
        %v6250 = vmul.f32 %v6248, 1.442695
        %v6251 = vpow.pop %v6250
        %v6252 = vmul.f32 %v6249, 1.442695
        %v6253 = vpow.pop %v6252
        %v6254 = vsub.f32 %v6251, 1.0
        %v6255 = vsub.f32 %v6253, 1.0
        %v6256 = vsel %vm6246, %v6244, %v6254
        %v6257 = vsel %vm6247, %v6245, %v6255
        %v6260 = vrot.slane %v6256, 1
        %v6261 = vrot.slane %v6257, 1
        %v6264 = vmax.f32 %v6256, %v6260
        %v6265 = vmax.f32 %v6257, %v6261
        %v6266 = vrot.slane %v6256, 2
        %v6267 = vrot.slane %v6257, 2
        %v6270 = vmax.f32 %v6264, %v6266
        %v6271 = vmax.f32 %v6265, %v6267
        %v6274 = vrot.slane %v6270, 2
        %v6275 = vrot.slane %v6271, 2
        %vm6278 = vcmask 1040384
        %v6279 = vsel %vm6278, %v6270, %v6274
        %v6280 = vsel %vm6278, %v6271, %v6275
        %v6281 = vpack.c.bf16 %v6279, %v6279
        %v6282 = vpack.c.bf16 %v6280, %v6280
        %v6283 = vld [vmem:[%s5] sm:$0xf]
        %v6284 = vld [vmem:[%s5 + $0x4] sm:$0xf]
        %v6285 = vld [vmem:[%s5 + $0x8] sm:$0xf]
        %v6286 = vld [vmem:[%s5 + $0xc] sm:$0xf]
        %v6287 = vld [vmem:[%s5 + $0x10] sm:$0xf]
        %v6288 = vld [vmem:[%s5 + $0x14] sm:$0xf]
        %v6289 = vld [vmem:[%s5 + $0x18] sm:$0xf]
        %v6290 = vld [vmem:[%s5 + $0x1c] sm:$0xf]
        %v6291 = vld [vmem:[%s5 + $0x20] sm:$0xf]
        %v6292 = vld [vmem:[%s5 + $0x24] sm:$0xf]
        %v6293 = vld [vmem:[%s5 + $0x28] sm:$0xf]
        %v6294 = vld [vmem:[%s5 + $0x2c] sm:$0xf]
        %v6295 = vld [vmem:[%s5 + $0x30] sm:$0xf]
        %v6296 = vld [vmem:[%s5 + $0x34] sm:$0xf]
        %v6297 = vld [vmem:[%s5 + $0x38] sm:$0xf]
        %v6298 = vld [vmem:[%s5 + $0x3c] sm:$0xf]
        %v6299 = vld [vmem:[%s5 + $0x40] sm:$0xf]
        %v6300 = vld [vmem:[%s5 + $0x44] sm:$0xf]
        %v6301 = vld [vmem:[%s5 + $0x48] sm:$0xf]
        %v6302 = vld [vmem:[%s5 + $0x4c] sm:$0xf]
        %v6303 = vld [vmem:[%s5 + $0x50] sm:$0xf]
        %v6304 = vld [vmem:[%s5 + $0x54] sm:$0xf]
        %v6305 = vld [vmem:[%s5 + $0x58] sm:$0xf]
        %v6306 = vld [vmem:[%s5 + $0x5c] sm:$0xf]
        %v6307 = vld [vmem:[%s5 + $0x60] sm:$0xf]
        %v6333 = vunpack.c.l.b16 %v6283
        %v6334 = vunpack.c.l.b16 %v6284
        %v6335 = vunpack.c.l.b16 %v6285
        %v6336 = vunpack.c.l.b16 %v6286
        %v6337 = vunpack.c.l.b16 %v6287
        %v6338 = vunpack.c.l.b16 %v6288
        %v6339 = vunpack.c.l.b16 %v6289
        %v6340 = vunpack.c.l.b16 %v6290
        %v6341 = vunpack.c.l.b16 %v6291
        %v6342 = vunpack.c.l.b16 %v6292
        %v6343 = vunpack.c.l.b16 %v6293
        %v6344 = vunpack.c.l.b16 %v6294
        %v6345 = vunpack.c.l.b16 %v6295
        %v6346 = vunpack.c.l.b16 %v6296
        %v6347 = vunpack.c.l.b16 %v6297
        %v6348 = vunpack.c.l.b16 %v6298
        %v6349 = vunpack.c.l.b16 %v6299
        %v6350 = vunpack.c.l.b16 %v6300
        %v6351 = vunpack.c.l.b16 %v6301
        %v6352 = vunpack.c.l.b16 %v6302
        %v6353 = vunpack.c.l.b16 %v6303
        %v6354 = vunpack.c.l.b16 %v6304
        %v6355 = vunpack.c.l.b16 %v6305
        %v6356 = vunpack.c.l.b16 %v6306
        %v6357 = vunpack.c.l.b16 %v6307
        %v6358 = vpack.c.b16 %v6334, %v6333
        %v6359 = vpack.c.b16 %v6336, %v6335
        %v6360 = vpack.c.b16 %v6338, %v6337
        %v6361 = vpack.c.b16 %v6340, %v6339
        %v6362 = vpack.c.b16 %v6342, %v6341
        %v6363 = vpack.c.b16 %v6344, %v6343
        %v6364 = vpack.c.b16 %v6346, %v6345
        %v6365 = vpack.c.b16 %v6348, %v6347
        %v6366 = vpack.c.b16 %v6350, %v6349
        %v6367 = vpack.c.b16 %v6352, %v6351
        %v6368 = vpack.c.b16 %v6354, %v6353
        %v6369 = vpack.c.b16 %v6356, %v6355
        %v6370 = vpack.c.b16 %v6357, %v6357
        %vm6383 = vcmask 588800
        %v6385 = vsel %vm6383, %v6282, 0
        %v6388 = vsel %vm1482, %v6370, 0
        %6390 = vmatprep.subr.bf16.mxu0 0
        %6391 = vmatpush1.bf16.msra.mxu0 %v6358
        %6392 = vmatprep.subr.bf16.mxu0 0
        %6393 = vmatpush1.bf16.msra.mxu0 %v6359
        %6394 = vmatprep.subr.bf16.mxu0 0
        %6395 = vmatpush1.bf16.msra.mxu0 %v6360
        %6396 = vmatprep.subr.bf16.mxu0 0
        %6397 = vmatpush1.bf16.msra.mxu0 %v6361
        %6398 = vmatprep.subr.bf16.mxu0 0
        %6399 = vmatpush1.bf16.msra.mxu0 %v6362
        %6400 = vmatprep.subr.bf16.mxu0 0
        %6401 = vmatpush1.bf16.msra.mxu0 %v6363
        %6402 = vmatprep.subr.bf16.mxu0 0
        %6403 = vmatpush1.bf16.msra.mxu0 %v6364
        %6404 = vmatprep.subr.bf16.mxu0 0
        %6405 = vmatpush1.bf16.msra.mxu0 %v6365
        %6406 = vmatprep.subr.bf16.mxu0 0
        %6407 = vmatpush1.bf16.msra.mxu0 %v6366
        %6408 = vmatprep.subr.bf16.mxu0 0
        %6409 = vmatpush1.bf16.msra.mxu0 %v6367
        %6410 = vmatprep.subr.bf16.mxu0 0
        %6411 = vmatpush1.bf16.msra.mxu0 %v6368
        %6412 = vmatprep.subr.bf16.mxu0 0
        %6413 = vmatpush1.bf16.msra.mxu0 %v6369
        %6414 = vmatprep.subr.bf16.mxu0 0
        %6415 = vmatpush1.bf16.msra.mxu0 %v6388
        %6416 = vmatprep.subr.bf16.mxu0 0
        %6417 = vmatpush1.bf16.msra.mxu0 0
        %6418 = vmatprep.subr.bf16.mxu0 0
        %6419 = vmatpush1.bf16.msra.mxu0 0
        %6420 = vmatprep.subr.bf16.mxu0 0
        %6421 = vmatpush1.bf16.msra.mxu0 0
        %6422 = vmatprep.mubr.bf16.mxu0 %v6385
        %6423 = vmatmul.mubr.bf16.gmra.mrb[0].mxu0 %v6281
        %v6424 = vpop.f32.mrb[0].mxu0
        %v6425 = vadd.f32 0.0, %v6424
        %v6426 = vpop.f32.mrb[0].mxu0
        %v6427 = vpop.f32.mrb[0].mxu0
        %v6428 = vpop.f32.mrb[0].mxu0
        %6429 = vdwg.mxu0
        %v6431 = vrot.slane %v6425, 1
        %6432 = vrot.lane.b32.xlu0 %v6431, 124
        %v6433 = vpop.permute.xlu0 %6432
        %v6435 = vadd.f32 %v6425, %v6433
        %v6436 = vld [vmem:[%s6 + $0x19] ss:$0 sm:$0xff]
        %v6437 = vadd.f32 %v6435, %v6436
        %vm6438 = vcmask 24576
        %6439 = vst.msk [vmem:[%s270] sm:$0x1] %vm6438, %v6437
        %s6440 = sand.u32 %s181, 1
        %s6441 = scalar_lea.sflag [#allocation10], %s6440
        %s6442 = sand.u32 %s181, 1
        %s6443 = scalar_lea.vmem [#allocation9], %s6442
        // Predicated region
        $region49: #{deepconvnet_forward.1} parent=47 // pred_check
          %p6444 = pneg %p191
        $region50: #{deepconvnet_forward.1} parent=47 // pred_check_branch
          %6446 = sbr.rel (%p6444) target = $region52
        $region51: #{deepconvnet_forward.1} parent=47 // pred_region
          %s6448 = ssub.s32 16, 16
          %6449 = vsyncadd %s6441, %s6448
          %s6450 = smul.addr %s21, 16
          %s6451 = scalar_lea.hbm %s7, %s6450
          %s6453 = sshll.u32 %s6443, 4
          %s6454 = int_to_ptr.vmem [resolvable:$true] %s6453
          %6456 = dma.vmem_to_hbm [thread:$0]  %s6454, 16, %s6451, %s6441
        $region52: #{deepconvnet_forward.1} parent=47 // pred_fallthru
          _
      $region48: #{deepconvnet_forward.1} parent=5 // pred_fallthru
        _
      %p6457 = scmp.le.s32.totalorder 2, %s16
      // Predicated region
      $region53: #{deepconvnet_forward.1} parent=5 // pred_check
        %p6458 = pneg %p6457
      $region54: #{deepconvnet_forward.1} parent=5 // pred_check_branch
        %6460 = sbr.rel (%p6458) target = $region56
      $region55: #{deepconvnet_forward.1} parent=5 // pred_region
        %s6461 = ssub.s32 %s16, 2
        // Predicated region
        $region57: #{deepconvnet_forward.1} parent=55 // pred_check
          %p6462 = pneg %p197
        $region58: #{deepconvnet_forward.1} parent=55 // pred_check_branch
          %6464 = sbr.rel (%p6462) target = $region60
        $region59: #{deepconvnet_forward.1} parent=55 // pred_region
          %s6465 = sand.u32 %s182, 1
          %s6466 = scalar_lea.sflag [#allocation10], %s6465
          %s6467 = sand.u32 %s182, 1
          %s6468 = scalar_lea.vmem [#allocation9], %s6467
          %6469 = dma.done %s6466, 16
        $region60: #{deepconvnet_forward.1} parent=55 // pred_fallthru
          _
      $region56: #{deepconvnet_forward.1} parent=5 // pred_fallthru
        _
    $region6: #{deepconvnet_forward.1} parent=1 // loop_footer
      %s20 = sadd.s32 1, %s16
    $region7: #{deepconvnet_forward.1} parent=1 // loop_footer_branch
      %15 = sbr.rel target = $region3
    $region8: #{deepconvnet_forward.1} parent=1 // loop_exit
      _
    %6470 = vsyncpa [#allocation10], 1
    %s6471 = scalar_lea.sflag [#allocation10], 1
    %6472 = vsyncpa %s6471, 1

</llo_original>
